<compile_context>
chip_gen: v6e
topology: v6e:2x2x1
jax: 0.10.0
libtpu: 0.0.40
codegen_flags: <defaults>
</compile_context>

<pallas_src>
import functools

import jax
import jax.numpy as jnp
from jax import lax
from jax.experimental import pallas as pl
from jax.experimental.pallas import tpu as pltpu


def decoder_layer_kernel(
    tgt_ref, ctx_ref, tgt_row_ref, tgt_col_ref, ctx_row_ref,
    wq1_ref, wk1_ref, wv1_ref, wo1_ref,
    wq2_ref, wk2_ref, wv2_ref, wo2_ref,
    g1_ref, b1_ref, g2_ref, b2_ref,
    wf1_ref, bf1_ref, wf2_ref, bf2_ref,
    g3_ref, b3_ref,
    out_ref,
    *, n_heads: int, head_sz: int, compute_dtype):

    x_t = tgt_ref[0]                      # (seq_t, emb) f32
    x_c = ctx_ref[0]                      # (seq_c, emb) f32
    seq_t = x_t.shape[0]
    seq_c = x_c.shape[0]
    hd = n_heads * head_sz
    scale = 1.0 / (float(head_sz) ** 0.5)

    # ---- additive mask biases from rank-1 pad vectors (no seq^2 HBM traffic)
    tq_valid = tgt_col_ref[0] > 0.5       # (seq_t, 1) bool  (query rows valid)
    tk_valid = tgt_row_ref[0] > 0.5       # (1, seq_t) bool  (self keys valid)
    ck_valid = ctx_row_ref[0] > 0.5       # (1, seq_c) bool  (ctx  keys valid)
    ri = lax.broadcasted_iota(jnp.int32, (seq_t, seq_t), 0)
    ci = lax.broadcasted_iota(jnp.int32, (seq_t, seq_t), 1)
    neg = jnp.float32(-50000.0)
    self_bias = jnp.where(tq_valid & tk_valid & (ri >= ci), 0.0, neg)   # (t, t)
    cross_bias = jnp.where(tq_valid & ck_valid, 0.0, neg)               # (t, c)

    def mha(xq, xkv, wq, wk, wv, wo, bias, sq, sk):
        # Projections: bf16 operands, f32 accumulation on the MXU.
        xq_c = xq.astype(compute_dtype)
        xkv_c = xkv.astype(compute_dtype)
        q = jnp.dot(xq_c, wq, preferred_element_type=jnp.float32)
        k = jnp.dot(xkv_c, wk, preferred_element_type=jnp.float32)
        v = jnp.dot(xkv_c, wv, preferred_element_type=jnp.float32)
        # Token-major (s, H, D) views; head batching lives inside the einsums.
        qh = q.reshape(sq, n_heads, head_sz).astype(compute_dtype)
        kh = k.reshape(sk, n_heads, head_sz).astype(compute_dtype)
        vh = v.reshape(sk, n_heads, head_sz).astype(compute_dtype)

        s = jnp.einsum("qhd,khd->hqk", qh, kh,
                       preferred_element_type=jnp.float32)       # (H, sq, sk)
        s = s * scale + bias[None, :, :]                          # additive mask
        s = s - jnp.max(s, axis=-1, keepdims=True)
        p = jnp.exp(s)                                            # f32 softmax
        p = p * pl.reciprocal(jnp.sum(p, axis=-1, keepdims=True), approx=True)

        o = jnp.einsum("hqk,khd->qhd", p.astype(compute_dtype), vh,
                       preferred_element_type=jnp.float32)        # (sq, H, D)
        o = o.reshape(sq, hd).astype(compute_dtype)               # contiguous
        return jnp.dot(o, wo, preferred_element_type=jnp.float32)

    def layer_norm(x, gamma, beta):
        mu = jnp.mean(x, axis=-1, keepdims=True)
        xc = x - mu
        var = jnp.mean(xc * xc, axis=-1, keepdims=True)
        return xc * lax.rsqrt(var + 1e-5) * gamma + beta

    # 1) masked (causal + pad) self-attention + residual + LN1
    h = x_t + mha(x_t, x_t, wq1_ref[...], wk1_ref[...], wv1_ref[...],
                  wo1_ref[...], self_bias, seq_t, seq_t)
    h = layer_norm(h, g1_ref[...], b1_ref[...])

    # 2) cross-attention (query = tgt, key/value = ctx) + residual + LN2
    h = h + mha(h, x_c, wq2_ref[...], wk2_ref[...], wv2_ref[...],
                wo2_ref[...], cross_bias, seq_t, seq_c)
    h = layer_norm(h, g2_ref[...], b2_ref[...])

    # 3) FFN (fc1 + bias, ReLU, fc2 + bias) + residual + LN3
    ff = jnp.dot(h.astype(compute_dtype), wf1_ref[...],
                 preferred_element_type=jnp.float32) + bf1_ref[...]
    ff = jnp.maximum(ff, 0.0)
    ff = jnp.dot(ff.astype(compute_dtype), wf2_ref[...],
                 preferred_element_type=jnp.float32) + bf2_ref[...]
    h = layer_norm(h + ff, g3_ref[...], b3_ref[...])

    out_ref[0] = h.astype(out_ref.dtype)


def _vmem_limit_bytes(seq_t, seq_c, emb, hd, ff_sz, n_heads, wbytes):
    """Rough per-step working-set estimate (bytes), with headroom, capped at
    64 MiB so the same setting is legal on v7x's smaller physical VMEM."""
    sk = max(seq_t, seq_c)
    weights = wbytes * (8 * emb * hd + 2 * emb * ff_sz)      # attn x2 + fc1/fc2
    small = 4 * (2 * ff_sz + 8 * emb)                        # biases + LN (f32)
    io_blocks = 4 * 2 * (2 * seq_t * emb + seq_c * emb       # tgt/out/ctx blocks
                         + 2 * seq_t + seq_c)                # pad vectors
    work = 4 * (2 * n_heads * seq_t * sk                     # scores + probs
                + 3 * sk * hd + 2 * seq_t * hd               # q/k/v + attn out
                + seq_t * ff_sz                              # FFN intermediate
                + 6 * seq_t * emb)                           # residual/LN temps
    est = 2 * weights + small + io_blocks + work             # double-buffering
    return max(32 << 20, min(64 << 20, int(est * 1.25)))


def decoder_layer(ctx, ctx_pad_mask, tgt, tgt_pad_mask, params, *,
                  n_heads, head_sz, compute_dtype=jnp.bfloat16):
    """ctx: (bs, seq_c, emb) f32; tgt: (bs, seq_t, emb) f32;
    *_pad_mask: (bs, seq) {0,1}. Linear weights are pre-transposed (in, out);
    biases / LN params are shaped (1, features) and stay f32."""
    bs, seq_t, emb = tgt.shape
    _, seq_c, _ = ctx.shape
    hd = n_heads * head_sz
    ff_sz = params["wf1"].shape[1]

    # Matmul weights in the MXU operand dtype (bf16 by default): half the HBM
    # traffic / VMEM footprint, no per-step VPU cast inside the kernel.
    wnames = ("wq1", "wk1", "wv1", "wo1", "wq2", "wk2", "wv2", "wo2",
              "wf1", "wf2")
    w = {k: params[k].astype(compute_dtype) for k in wnames}

    # Rank-1 pad info only (O(seq) HBM; 2-D additive bias built in-kernel).
    tgt_row = tgt_pad_mask.astype(jnp.float32)[:, None, :]   # (bs, 1, seq_t)
    tgt_col = tgt_pad_mask.astype(jnp.float32)[:, :, None]   # (bs, seq_t, 1)
    ctx_row = ctx_pad_mask.astype(jnp.float32)[:, None, :]   # (bs, 1, seq_c)

    kernel = functools.partial(decoder_layer_kernel, n_heads=n_heads,
                               head_sz=head_sz, compute_dtype=compute_dtype)

    def batch_spec(shape):
        nd = len(shape)
        return pl.BlockSpec((1,) + tuple(shape[1:]),
                            lambda b, _nd=nd: (b,) + (0,) * (_nd - 1))

    def const_spec(shape):
        nd = len(shape)
        return pl.BlockSpec(tuple(shape), lambda b, _nd=nd: (0,) * _nd)

    inputs = (tgt, ctx, tgt_row, tgt_col, ctx_row,
              w["wq1"], w["wk1"], w["wv1"], w["wo1"],
              w["wq2"], w["wk2"], w["wv2"], w["wo2"],
              params["g1"], params["b1"], params["g2"], params["b2"],
              w["wf1"], params["bf1"], w["wf2"], params["bf2"],
              params["g3"], params["b3"])

    in_specs = ([batch_spec(a.shape) for a in inputs[:5]] +
                [const_spec(a.shape) for a in inputs[5:]])

    vmem_limit = _vmem_limit_bytes(seq_t, seq_c, emb, hd, ff_sz, n_heads,
                                   jnp.dtype(compute_dtype).itemsize)

    return pl.pallas_call(
        kernel,
        out_shape=jax.ShapeDtypeStruct((bs, seq_t, emb), jnp.float32),
        grid=(bs,),
        in_specs=in_specs,
        out_specs=pl.BlockSpec((1, seq_t, emb), lambda b: (b, 0, 0)),
        compiler_params=pltpu.CompilerParams(
            dimension_semantics=("parallel",),
            vmem_limit_bytes=vmem_limit),
    )(*inputs)


def reference_decoder_layer(ctx, ctx_pad_mask, tgt, tgt_pad_mask, params, *,
                            n_heads, head_sz, matmul_dtype=jnp.float32):
    """Pure-JAX reference mirroring the PyTorch DecoderLayer (eval mode).
    matmul_dtype=bf16 mirrors the kernel's mixed-precision policy (bf16 MXU
    operands, f32 accumulation / elementwise) for a tight comparison."""
    bs, seq_t, _ = tgt.shape
    hd = n_heads * head_sz

    def mm(a, b, eq):
        return jnp.einsum(eq, a.astype(matmul_dtype), b.astype(matmul_dtype),
                          preferred_element_type=jnp.float32)

    def mha_ref(xq, xkv, wq, wk, wv, wo, mask):
        sq, sk = xq.shape[1], xkv.shape[1]

        def proj(x, w_, s):
            y = mm(x, w_, "bse,ef->bsf")
            return y.reshape(bs, s, n_heads, head_sz).transpose(0, 2, 1, 3)

        q, k, v = proj(xq, wq, sq), proj(xkv, wk, sk), proj(xkv, wv, sk)
        attn = mm(q, k, "bhqd,bhkd->bhqk") / (head_sz ** 0.5)
        attn = jnp.where(mask, attn, -50000.0)
        attn = jax.nn.softmax(attn, axis=-1)
        out = mm(attn, v, "bhqk,bhkd->bhqd")
        out = out.transpose(0, 2, 1, 3).reshape(bs, sq, hd)
        return mm(out, wo, "bsf,fe->bse")

    def ln(x, g, b):
        mu = x.mean(-1, keepdims=True)
        var = ((x - mu) ** 2).mean(-1, keepdims=True)
        return (x - mu) / jnp.sqrt(var + 1e-5) * g + b

    tp = tgt_pad_mask.astype(bool)
    cp = ctx_pad_mask.astype(bool)
    causal = jnp.tril(jnp.ones((seq_t, seq_t), dtype=bool))
    self_mask = (tp[:, :, None] & tp[:, None, :] & causal[None])[:, None]
    cross_mask = (tp[:, :, None] & cp[:, None, :])[:, None]

    h = tgt + mha_ref(tgt, tgt, params["wq1"], params["wk1"], params["wv1"],
                      params["wo1"], self_mask)
    h = ln(h, params["g1"], params["b1"])
    h = h + mha_ref(h, ctx, params["wq2"], params["wk2"], params["wv2"],
                    params["wo2"], cross_mask)
    h = ln(h, params["g2"], params["b2"])
    ff = jnp.maximum(mm(h, params["wf1"], "bse,ef->bsf") + params["bf1"], 0.0)
    ff = mm(ff, params["wf2"], "bsf,fe->bse") + params["bf2"]
    h = ln(h + ff, params["g3"], params["b3"])
    return h


if __name__ == "__main__":
    # Small but lane-friendly shapes (emb, H*D, ff multiples of 128; seq of 8).
    bs = 2
    seq_t, seq_c = 8, 16
    emb = 128
    n_heads, head_sz = 4, 32
    hd = n_heads * head_sz
    ff_sz = 256

    key = jax.random.PRNGKey(0)
    keys = jax.random.split(key, 20)

    def init_w(k, fan_in, fan_out):
        bound = 1.0 / (fan_in ** 0.5)
        return jax.random.uniform(k, (fan_in, fan_out), jnp.float32, -bound, bound)

    def init_b(k, fan_in, n):
        bound = 1.0 / (fan_in ** 0.5)
        return jax.random.uniform(k, (1, n), jnp.float32, -bound, bound)

    ctx = jax.random.normal(keys[0], (bs, seq_c, emb), dtype=jnp.float32)
    tgt = jax.random.normal(keys[1], (bs, seq_t, emb), dtype=jnp.float32)

    params = {
        # masked self-attention projections (nn.Linear weights, pre-transposed)
        "wq1": init_w(keys[2], emb, hd), "wk1": init_w(keys[3], emb, hd),
        "wv1": init_w(keys[4], emb, hd), "wo1": init_w(keys[5], hd, emb),
        # cross-attention projections
        "wq2": init_w(keys[6], emb, hd), "wk2": init_w(keys[7], emb, hd),
        "wv2": init_w(keys[8], emb, hd), "wo2": init_w(keys[9], hd, emb),
        # feed-forward
        "wf1": init_w(keys[10], emb, ff_sz), "bf1": init_b(keys[11], emb, ff_sz),
        "wf2": init_w(keys[12], ff_sz, emb), "bf2": init_b(keys[13], ff_sz, emb),
        # LayerNorm affine params (perturbed from defaults to exercise the path)
        "g1": 1.0 + 0.1 * jax.random.normal(keys[14], (1, emb), jnp.float32),
        "b1": 0.1 * jax.random.normal(keys[15], (1, emb), jnp.float32),
        "g2": 1.0 + 0.1 * jax.random.normal(keys[16], (1, emb), jnp.float32),
        "b2": 0.1 * jax.random.normal(keys[17], (1, emb), jnp.float32),
        "g3": 1.0 + 0.1 * jax.random.normal(keys[18], (1, emb), jnp.float32),
        "b3": 0.1 * jax.random.normal(keys[19], (1, emb), jnp.float32),
    }

    # Padding masks: batch 0 fully valid; batch 1 has trailing padded tokens.
    tgt_pad_mask = jnp.array([[1] * 8, [1] * 5 + [0] * 3], dtype=jnp.int32)
    ctx_pad_mask = jnp.array([[1] * 16, [1] * 10 + [0] * 6], dtype=jnp.int32)

    out = decoder_layer(ctx, ctx_pad_mask, tgt, tgt_pad_mask, params,
                        n_heads=n_heads, head_sz=head_sz,
                        compute_dtype=jnp.bfloat16)
    out = jax.block_until_ready(out)
    assert out.shape == (bs, seq_t, emb)

    # Compare on valid target rows only (padded rows carry arbitrary values in
    # both kernel and reference; downstream code masks them).
    valid = tgt_pad_mask.astype(jnp.float32)[:, :, None]

    # Tight check vs. a reference mirroring the kernel's mixed-precision policy.
    ref_mp = reference_decoder_layer(ctx, ctx_pad_mask, tgt, tgt_pad_mask,
                                     params, n_heads=n_heads, head_sz=head_sz,
                                     matmul_dtype=jnp.bfloat16)
    assert jnp.allclose(out * valid, ref_mp * valid, atol=1e-2, rtol=1e-2), \
        "mismatch vs mixed-precision reference"

    # Loose sanity check vs. the pure-f32 module semantics.
    ref_f32 = reference_decoder_layer(ctx, ctx_pad_mask, tgt, tgt_pad_mask,
                                      params, n_heads=n_heads, head_sz=head_sz,
                                      matmul_dtype=jnp.float32)
    assert jnp.allclose(out * valid, ref_f32 * valid, atol=1e-1, rtol=1e-1), \
        "mismatch vs f32 reference"

    print("KERNEL_OK")
</pallas_src>

<mosaic_0001>
module attributes {stable_mosaic.version = 11 : i64} {
  func.func @decoder_layer_kernel(%arg0: i32, %arg1: memref<1x8x128xf32, #tpu.memory_space<vmem>>, %arg2: memref<1x16x128xf32, #tpu.memory_space<vmem>>, %arg3: memref<1x1x8xf32, #tpu.memory_space<vmem>>, %arg4: memref<1x8x1xf32, #tpu.memory_space<vmem>>, %arg5: memref<1x1x16xf32, #tpu.memory_space<vmem>>, %arg6: memref<128x128xbf16, #tpu.memory_space<vmem>>, %arg7: memref<128x128xbf16, #tpu.memory_space<vmem>>, %arg8: memref<128x128xbf16, #tpu.memory_space<vmem>>, %arg9: memref<128x128xbf16, #tpu.memory_space<vmem>>, %arg10: memref<128x128xbf16, #tpu.memory_space<vmem>>, %arg11: memref<128x128xbf16, #tpu.memory_space<vmem>>, %arg12: memref<128x128xbf16, #tpu.memory_space<vmem>>, %arg13: memref<128x128xbf16, #tpu.memory_space<vmem>>, %arg14: memref<1x128xf32, #tpu.memory_space<vmem>>, %arg15: memref<1x128xf32, #tpu.memory_space<vmem>>, %arg16: memref<1x128xf32, #tpu.memory_space<vmem>>, %arg17: memref<1x128xf32, #tpu.memory_space<vmem>>, %arg18: memref<128x256xbf16, #tpu.memory_space<vmem>>, %arg19: memref<1x256xf32, #tpu.memory_space<vmem>>, %arg20: memref<256x128xbf16, #tpu.memory_space<vmem>>, %arg21: memref<1x128xf32, #tpu.memory_space<vmem>>, %arg22: memref<1x128xf32, #tpu.memory_space<vmem>>, %arg23: memref<1x128xf32, #tpu.memory_space<vmem>>, %arg24: memref<1x8x128xf32, #tpu.memory_space<vmem>>) attributes {dimension_semantics = [#tpu.dimension_semantics<parallel>], iteration_bounds = array<i64: 2>, scalar_prefetch = 0 : i64, scratch_operands = 0 : i64, tpu.core_type = #tpu.core_type<tc>, window_params = [{transform_indices = @transform_0, window_bounds = array<i64: 1, 8, 128>}, {transform_indices = @transform_1, window_bounds = array<i64: 1, 16, 128>}, {transform_indices = @transform_2, window_bounds = array<i64: 1, 1, 8>}, {transform_indices = @transform_3, window_bounds = array<i64: 1, 8, 1>}, {transform_indices = @transform_4, window_bounds = array<i64: 1, 1, 16>}, {pipeline_mode = #tpu.pipeline_mode<synchronous>, transform_indices = @transform_5, window_bounds = array<i64: 128, 128>}, {pipeline_mode = #tpu.pipeline_mode<synchronous>, transform_indices = @transform_6, window_bounds = array<i64: 128, 128>}, {pipeline_mode = #tpu.pipeline_mode<synchronous>, transform_indices = @transform_7, window_bounds = array<i64: 128, 128>}, {pipeline_mode = #tpu.pipeline_mode<synchronous>, transform_indices = @transform_8, window_bounds = array<i64: 128, 128>}, {pipeline_mode = #tpu.pipeline_mode<synchronous>, transform_indices = @transform_9, window_bounds = array<i64: 128, 128>}, {pipeline_mode = #tpu.pipeline_mode<synchronous>, transform_indices = @transform_10, window_bounds = array<i64: 128, 128>}, {pipeline_mode = #tpu.pipeline_mode<synchronous>, transform_indices = @transform_11, window_bounds = array<i64: 128, 128>}, {pipeline_mode = #tpu.pipeline_mode<synchronous>, transform_indices = @transform_12, window_bounds = array<i64: 128, 128>}, {pipeline_mode = #tpu.pipeline_mode<synchronous>, transform_indices = @transform_13, window_bounds = array<i64: 1, 128>}, {pipeline_mode = #tpu.pipeline_mode<synchronous>, transform_indices = @transform_14, window_bounds = array<i64: 1, 128>}, {pipeline_mode = #tpu.pipeline_mode<synchronous>, transform_indices = @transform_15, window_bounds = array<i64: 1, 128>}, {pipeline_mode = #tpu.pipeline_mode<synchronous>, transform_indices = @transform_16, window_bounds = array<i64: 1, 128>}, {pipeline_mode = #tpu.pipeline_mode<synchronous>, transform_indices = @transform_17, window_bounds = array<i64: 128, 256>}, {pipeline_mode = #tpu.pipeline_mode<synchronous>, transform_indices = @transform_18, window_bounds = array<i64: 1, 256>}, {pipeline_mode = #tpu.pipeline_mode<synchronous>, transform_indices = @transform_19, window_bounds = array<i64: 256, 128>}, {pipeline_mode = #tpu.pipeline_mode<synchronous>, transform_indices = @transform_20, window_bounds = array<i64: 1, 128>}, {pipeline_mode = #tpu.pipeline_mode<synchronous>, transform_indices = @transform_21, window_bounds = array<i64: 1, 128>}, {pipeline_mode = #tpu.pipeline_mode<synchronous>, transform_indices = @transform_22, window_bounds = array<i64: 1, 128>}, {transform_indices = @transform_23, window_bounds = array<i64: 1, 8, 128>}]} {
    %c0 = arith.constant 0 : index
    %c0_0 = arith.constant 0 : index
    %c0_1 = arith.constant 0 : index
    %0 = vector.load %arg1[%c0, %c0_0, %c0_1] : memref<1x8x128xf32, #tpu.memory_space<vmem>>, vector<1x8x128xf32>
    %1 = vector.shape_cast %0 : vector<1x8x128xf32> to vector<8x128xf32>
    %c0_2 = arith.constant 0 : index
    %c0_3 = arith.constant 0 : index
    %c0_4 = arith.constant 0 : index
    %2 = vector.load %arg2[%c0_2, %c0_3, %c0_4] : memref<1x16x128xf32, #tpu.memory_space<vmem>>, vector<1x16x128xf32>
    %3 = vector.shape_cast %2 : vector<1x16x128xf32> to vector<16x128xf32>
    %c0_5 = arith.constant 0 : index
    %c0_6 = arith.constant 0 : index
    %c0_7 = arith.constant 0 : index
    %4 = vector.load %arg4[%c0_5, %c0_6, %c0_7] : memref<1x8x1xf32, #tpu.memory_space<vmem>>, vector<1x8x1xf32>
    %5 = vector.shape_cast %4 : vector<1x8x1xf32> to vector<8x1xf32>
    %cst = arith.constant 5.000000e-01 : f32
    %6 = vector.broadcast %cst : f32 to vector<8x1xf32>
    %7 = arith.cmpf ogt, %5, %6 : vector<8x1xf32>
    %c0_8 = arith.constant 0 : index
    %c0_9 = arith.constant 0 : index
    %c0_10 = arith.constant 0 : index
    %8 = vector.load %arg3[%c0_8, %c0_9, %c0_10] : memref<1x1x8xf32, #tpu.memory_space<vmem>>, vector<1x1x8xf32>
    %9 = vector.shape_cast %8 : vector<1x1x8xf32> to vector<1x8xf32>
    %cst_11 = arith.constant 5.000000e-01 : f32
    %10 = vector.broadcast %cst_11 : f32 to vector<1x8xf32>
    %11 = arith.cmpf ogt, %9, %10 : vector<1x8xf32>
    %c0_12 = arith.constant 0 : index
    %c0_13 = arith.constant 0 : index
    %c0_14 = arith.constant 0 : index
    %12 = vector.load %arg5[%c0_12, %c0_13, %c0_14] : memref<1x1x16xf32, #tpu.memory_space<vmem>>, vector<1x1x16xf32>
    %13 = vector.shape_cast %12 : vector<1x1x16xf32> to vector<1x16xf32>
    %cst_15 = arith.constant 5.000000e-01 : f32
    %14 = vector.broadcast %cst_15 : f32 to vector<1x16xf32>
    %15 = arith.cmpf ogt, %13, %14 : vector<1x16xf32>
    %16 = tpu.iota {dimensions = array<i32: 0>} : vector<8x8xi32>
    %17 = tpu.iota {dimensions = array<i32: 1>} : vector<8x8xi32>
    %18 = vector.broadcast %7 : vector<8x1xi1> to vector<8x8xi1>
    %19 = vector.broadcast %11 : vector<1x8xi1> to vector<8x8xi1>
    %20 = arith.andi %18, %19 : vector<8x8xi1>
    %21 = arith.cmpi sge, %16, %17 : vector<8x8xi32>
    %22 = arith.andi %20, %21 : vector<8x8xi1>
    %cst_16 = arith.constant 0.000000e+00 : f32
    %cst_17 = arith.constant -5.000000e+04 : f32
    %23 = vector.broadcast %cst_16 : f32 to vector<8x8xf32>
    %24 = vector.broadcast %cst_17 : f32 to vector<8x8xf32>
    %25 = arith.select %22, %23, %24 : vector<8x8xi1>, vector<8x8xf32>
    %26 = vector.broadcast %7 : vector<8x1xi1> to vector<8x16xi1>
    %27 = vector.broadcast %15 : vector<1x16xi1> to vector<8x16xi1>
    %28 = arith.andi %26, %27 : vector<8x16xi1>
    %cst_18 = arith.constant 0.000000e+00 : f32
    %cst_19 = arith.constant -5.000000e+04 : f32
    %29 = vector.broadcast %cst_18 : f32 to vector<8x16xf32>
    %30 = vector.broadcast %cst_19 : f32 to vector<8x16xf32>
    %31 = arith.select %28, %29, %30 : vector<8x16xi1>, vector<8x16xf32>
    %c0_20 = arith.constant 0 : index
    %c0_21 = arith.constant 0 : index
    %32 = vector.load %arg6[%c0_20, %c0_21] : memref<128x128xbf16, #tpu.memory_space<vmem>>, vector<128x128xbf16>
    %c0_22 = arith.constant 0 : index
    %c0_23 = arith.constant 0 : index
    %33 = vector.load %arg7[%c0_22, %c0_23] : memref<128x128xbf16, #tpu.memory_space<vmem>>, vector<128x128xbf16>
    %c0_24 = arith.constant 0 : index
    %c0_25 = arith.constant 0 : index
    %34 = vector.load %arg8[%c0_24, %c0_25] : memref<128x128xbf16, #tpu.memory_space<vmem>>, vector<128x128xbf16>
    %c0_26 = arith.constant 0 : index
    %c0_27 = arith.constant 0 : index
    %35 = vector.load %arg9[%c0_26, %c0_27] : memref<128x128xbf16, #tpu.memory_space<vmem>>, vector<128x128xbf16>
    %36 = arith.truncf %1 : vector<8x128xf32> to vector<8x128xbf16>
    %37 = arith.truncf %1 : vector<8x128xf32> to vector<8x128xbf16>
    %cst_28 = arith.constant dense<0.000000e+00> : vector<8x128xf32>
    %38 = tpu.matmul %36, %32, %cst_28 {dimension_numbers = #tpu.dot_dimension_numbers<[1], [0], [0], [1], [0, 0, 1, 1], [], []>} : vector<8x128xbf16>, vector<128x128xbf16>, vector<8x128xf32> -> vector<8x128xf32>
    %cst_29 = arith.constant dense<0.000000e+00> : vector<8x128xf32>
    %39 = tpu.matmul %37, %33, %cst_29 {dimension_numbers = #tpu.dot_dimension_numbers<[1], [0], [0], [1], [0, 0, 1, 1], [], []>} : vector<8x128xbf16>, vector<128x128xbf16>, vector<8x128xf32> -> vector<8x128xf32>
    %cst_30 = arith.constant dense<0.000000e+00> : vector<8x128xf32>
    %40 = tpu.matmul %37, %34, %cst_30 {dimension_numbers = #tpu.dot_dimension_numbers<[1], [0], [0], [1], [0, 0, 1, 1], [], []>} : vector<8x128xbf16>, vector<128x128xbf16>, vector<8x128xf32> -> vector<8x128xf32>
    %41 = vector.shape_cast %38 : vector<8x128xf32> to vector<8x4x32xf32>
    %42 = arith.truncf %41 : vector<8x4x32xf32> to vector<8x4x32xbf16>
    %43 = vector.shape_cast %39 : vector<8x128xf32> to vector<8x4x32xf32>
    %44 = arith.truncf %43 : vector<8x4x32xf32> to vector<8x4x32xbf16>
    %45 = vector.shape_cast %40 : vector<8x128xf32> to vector<8x4x32xf32>
    %46 = arith.truncf %45 : vector<8x4x32xf32> to vector<8x4x32xbf16>
    "tpu.trace_start"() <{level = 10 : i32, message = "qhd,khd->hqk"}> : () -> ()
    %cst_31 = arith.constant dense<0.000000e+00> : vector<4x8x8xf32>
    %47 = tpu.matmul %42, %44, %cst_31 {dimension_numbers = #tpu.dot_dimension_numbers<[2], [2], [0], [0], [0, 1, 0, 0, 1, 0], [1], [1]>} : vector<8x4x32xbf16>, vector<8x4x32xbf16>, vector<4x8x8xf32> -> vector<4x8x8xf32>
    "tpu.trace_stop"() : () -> ()
    %cst_32 = arith.constant 0.176776692 : f32
    %48 = vector.broadcast %cst_32 : f32 to vector<4x8x8xf32>
    %49 = arith.mulf %47, %48 : vector<4x8x8xf32>
    %50 = vector.shape_cast %25 : vector<8x8xf32> to vector<1x8x8xf32>
    %51 = vector.broadcast %50 : vector<1x8x8xf32> to vector<4x8x8xf32>
    %52 = arith.addf %49, %51 : vector<4x8x8xf32>
    %cst_33 = arith.constant dense<0xFF800000> : vector<4x8xf32>
    %53 = vector.multi_reduction <maximumf>, %52, %cst_33 [2] : vector<4x8x8xf32> to vector<4x8xf32>
    %54 = vector.shape_cast %53 : vector<4x8xf32> to vector<4x8x1xf32>
    %55 = vector.broadcast %54 : vector<4x8x1xf32> to vector<4x8x8xf32>
    %56 = arith.subf %52, %55 : vector<4x8x8xf32>
    %57 = math.exp %56 : vector<4x8x8xf32>
    %cst_34 = arith.constant dense<0.000000e+00> : vector<4x8xf32>
    %58 = vector.multi_reduction <add>, %57, %cst_34 [2] : vector<4x8x8xf32> to vector<4x8xf32>
    %59 = vector.shape_cast %58 : vector<4x8xf32> to vector<4x8x1xf32>
    %60 = tpu.reciprocal %59 {approx = true} : vector<4x8x1xf32> -> vector<4x8x1xf32>
    %61 = vector.broadcast %60 : vector<4x8x1xf32> to vector<4x8x8xf32>
    %62 = arith.mulf %57, %61 : vector<4x8x8xf32>
    %63 = arith.truncf %62 : vector<4x8x8xf32> to vector<4x8x8xbf16>
    "tpu.trace_start"() <{level = 10 : i32, message = "hqk,khd->qhd"}> : () -> ()
    %cst_35 = arith.constant dense<0.000000e+00> : vector<4x32x8xf32>
    %64 = tpu.matmul %46, %63, %cst_35 {dimension_numbers = #tpu.dot_dimension_numbers<[0], [2], [2], [1], [0, 1, 0, 2, 1, 1], [1], [0]>} : vector<8x4x32xbf16>, vector<4x8x8xbf16>, vector<4x32x8xf32> -> vector<4x32x8xf32>
    %65 = tpu.transpose %64, [2, 0, 1] : vector<4x32x8xf32> -> vector<8x4x32xf32>
    "tpu.trace_stop"() : () -> ()
    %66 = vector.shape_cast %65 : vector<8x4x32xf32> to vector<8x128xf32>
    %67 = arith.truncf %66 : vector<8x128xf32> to vector<8x128xbf16>
    %cst_36 = arith.constant dense<0.000000e+00> : vector<8x128xf32>
    %68 = tpu.matmul %67, %35, %cst_36 {dimension_numbers = #tpu.dot_dimension_numbers<[1], [0], [0], [1], [0, 0, 1, 1], [], []>} : vector<8x128xbf16>, vector<128x128xbf16>, vector<8x128xf32> -> vector<8x128xf32>
    %69 = arith.addf %1, %68 : vector<8x128xf32>
    %c0_37 = arith.constant 0 : index
    %c0_38 = arith.constant 0 : index
    %70 = vector.load %arg14[%c0_37, %c0_38] : memref<1x128xf32, #tpu.memory_space<vmem>>, vector<1x128xf32>
    %c0_39 = arith.constant 0 : index
    %c0_40 = arith.constant 0 : index
    %71 = vector.load %arg15[%c0_39, %c0_40] : memref<1x128xf32, #tpu.memory_space<vmem>>, vector<1x128xf32>
    %cst_41 = arith.constant dense<0.000000e+00> : vector<8xf32>
    %72 = vector.multi_reduction <add>, %69, %cst_41 [1] : vector<8x128xf32> to vector<8xf32>
    %73 = vector.shape_cast %72 : vector<8xf32> to vector<8x1xf32>
    %cst_42 = arith.constant 1.280000e+02 : f32
    %74 = vector.broadcast %cst_42 : f32 to vector<8x1xf32>
    %75 = arith.divf %73, %74 : vector<8x1xf32>
    %76 = vector.broadcast %75 : vector<8x1xf32> to vector<8x128xf32>
    %77 = arith.subf %69, %76 : vector<8x128xf32>
    %78 = arith.mulf %77, %77 : vector<8x128xf32>
    %cst_43 = arith.constant dense<0.000000e+00> : vector<8xf32>
    %79 = vector.multi_reduction <add>, %78, %cst_43 [1] : vector<8x128xf32> to vector<8xf32>
    %80 = vector.shape_cast %79 : vector<8xf32> to vector<8x1xf32>
    %cst_44 = arith.constant 1.280000e+02 : f32
    %81 = vector.broadcast %cst_44 : f32 to vector<8x1xf32>
    %82 = arith.divf %80, %81 : vector<8x1xf32>
    %cst_45 = arith.constant 9.99999974E-6 : f32
    %83 = vector.broadcast %cst_45 : f32 to vector<8x1xf32>
    %84 = arith.addf %82, %83 : vector<8x1xf32>
    %85 = math.rsqrt %84 : vector<8x1xf32>
    %86 = vector.broadcast %85 : vector<8x1xf32> to vector<8x128xf32>
    %87 = arith.mulf %77, %86 : vector<8x128xf32>
    %88 = vector.broadcast %70 : vector<1x128xf32> to vector<8x128xf32>
    %89 = arith.mulf %87, %88 : vector<8x128xf32>
    %90 = vector.broadcast %71 : vector<1x128xf32> to vector<8x128xf32>
    %91 = arith.addf %89, %90 : vector<8x128xf32>
    %c0_46 = arith.constant 0 : index
    %c0_47 = arith.constant 0 : index
    %92 = vector.load %arg10[%c0_46, %c0_47] : memref<128x128xbf16, #tpu.memory_space<vmem>>, vector<128x128xbf16>
    %c0_48 = arith.constant 0 : index
    %c0_49 = arith.constant 0 : index
    %93 = vector.load %arg11[%c0_48, %c0_49] : memref<128x128xbf16, #tpu.memory_space<vmem>>, vector<128x128xbf16>
    %c0_50 = arith.constant 0 : index
    %c0_51 = arith.constant 0 : index
    %94 = vector.load %arg12[%c0_50, %c0_51] : memref<128x128xbf16, #tpu.memory_space<vmem>>, vector<128x128xbf16>
    %c0_52 = arith.constant 0 : index
    %c0_53 = arith.constant 0 : index
    %95 = vector.load %arg13[%c0_52, %c0_53] : memref<128x128xbf16, #tpu.memory_space<vmem>>, vector<128x128xbf16>
    %96 = arith.truncf %91 : vector<8x128xf32> to vector<8x128xbf16>
    %97 = arith.truncf %3 : vector<16x128xf32> to vector<16x128xbf16>
    %cst_54 = arith.constant dense<0.000000e+00> : vector<8x128xf32>
    %98 = tpu.matmul %96, %92, %cst_54 {dimension_numbers = #tpu.dot_dimension_numbers<[1], [0], [0], [1], [0, 0, 1, 1], [], []>} : vector<8x128xbf16>, vector<128x128xbf16>, vector<8x128xf32> -> vector<8x128xf32>
    %cst_55 = arith.constant dense<0.000000e+00> : vector<16x128xf32>
    %99 = tpu.matmul %97, %93, %cst_55 {dimension_numbers = #tpu.dot_dimension_numbers<[1], [0], [0], [1], [0, 0, 1, 1], [], []>} : vector<16x128xbf16>, vector<128x128xbf16>, vector<16x128xf32> -> vector<16x128xf32>
    %cst_56 = arith.constant dense<0.000000e+00> : vector<16x128xf32>
    %100 = tpu.matmul %97, %94, %cst_56 {dimension_numbers = #tpu.dot_dimension_numbers<[1], [0], [0], [1], [0, 0, 1, 1], [], []>} : vector<16x128xbf16>, vector<128x128xbf16>, vector<16x128xf32> -> vector<16x128xf32>
    %101 = vector.shape_cast %98 : vector<8x128xf32> to vector<8x4x32xf32>
    %102 = arith.truncf %101 : vector<8x4x32xf32> to vector<8x4x32xbf16>
    %103 = vector.shape_cast %99 : vector<16x128xf32> to vector<16x4x32xf32>
    %104 = arith.truncf %103 : vector<16x4x32xf32> to vector<16x4x32xbf16>
    %105 = vector.shape_cast %100 : vector<16x128xf32> to vector<16x4x32xf32>
    %106 = arith.truncf %105 : vector<16x4x32xf32> to vector<16x4x32xbf16>
    "tpu.trace_start"() <{level = 10 : i32, message = "qhd,khd->hqk"}> : () -> ()
    %cst_57 = arith.constant dense<0.000000e+00> : vector<4x8x16xf32>
    %107 = tpu.matmul %102, %104, %cst_57 {dimension_numbers = #tpu.dot_dimension_numbers<[2], [2], [0], [0], [0, 1, 0, 0, 1, 0], [1], [1]>} : vector<8x4x32xbf16>, vector<16x4x32xbf16>, vector<4x8x16xf32> -> vector<4x8x16xf32>
    "tpu.trace_stop"() : () -> ()
    %cst_58 = arith.constant 0.176776692 : f32
    %108 = vector.broadcast %cst_58 : f32 to vector<4x8x16xf32>
    %109 = arith.mulf %107, %108 : vector<4x8x16xf32>
    %110 = vector.shape_cast %31 : vector<8x16xf32> to vector<1x8x16xf32>
    %111 = vector.broadcast %110 : vector<1x8x16xf32> to vector<4x8x16xf32>
    %112 = arith.addf %109, %111 : vector<4x8x16xf32>
    %cst_59 = arith.constant dense<0xFF800000> : vector<4x8xf32>
    %113 = vector.multi_reduction <maximumf>, %112, %cst_59 [2] : vector<4x8x16xf32> to vector<4x8xf32>
    %114 = vector.shape_cast %113 : vector<4x8xf32> to vector<4x8x1xf32>
    %115 = vector.broadcast %114 : vector<4x8x1xf32> to vector<4x8x16xf32>
    %116 = arith.subf %112, %115 : vector<4x8x16xf32>
    %117 = math.exp %116 : vector<4x8x16xf32>
    %cst_60 = arith.constant dense<0.000000e+00> : vector<4x8xf32>
    %118 = vector.multi_reduction <add>, %117, %cst_60 [2] : vector<4x8x16xf32> to vector<4x8xf32>
    %119 = vector.shape_cast %118 : vector<4x8xf32> to vector<4x8x1xf32>
    %120 = tpu.reciprocal %119 {approx = true} : vector<4x8x1xf32> -> vector<4x8x1xf32>
    %121 = vector.broadcast %120 : vector<4x8x1xf32> to vector<4x8x16xf32>
    %122 = arith.mulf %117, %121 : vector<4x8x16xf32>
    %123 = arith.truncf %122 : vector<4x8x16xf32> to vector<4x8x16xbf16>
    "tpu.trace_start"() <{level = 10 : i32, message = "hqk,khd->qhd"}> : () -> ()
    %cst_61 = arith.constant dense<0.000000e+00> : vector<4x32x8xf32>
    %124 = tpu.matmul %106, %123, %cst_61 {dimension_numbers = #tpu.dot_dimension_numbers<[0], [2], [2], [1], [0, 1, 0, 2, 1, 1], [1], [0]>} : vector<16x4x32xbf16>, vector<4x8x16xbf16>, vector<4x32x8xf32> -> vector<4x32x8xf32>
    %125 = tpu.transpose %124, [2, 0, 1] : vector<4x32x8xf32> -> vector<8x4x32xf32>
    "tpu.trace_stop"() : () -> ()
    %126 = vector.shape_cast %125 : vector<8x4x32xf32> to vector<8x128xf32>
    %127 = arith.truncf %126 : vector<8x128xf32> to vector<8x128xbf16>
    %cst_62 = arith.constant dense<0.000000e+00> : vector<8x128xf32>
    %128 = tpu.matmul %127, %95, %cst_62 {dimension_numbers = #tpu.dot_dimension_numbers<[1], [0], [0], [1], [0, 0, 1, 1], [], []>} : vector<8x128xbf16>, vector<128x128xbf16>, vector<8x128xf32> -> vector<8x128xf32>
    %129 = arith.addf %91, %128 : vector<8x128xf32>
    %c0_63 = arith.constant 0 : index
    %c0_64 = arith.constant 0 : index
    %130 = vector.load %arg16[%c0_63, %c0_64] : memref<1x128xf32, #tpu.memory_space<vmem>>, vector<1x128xf32>
    %c0_65 = arith.constant 0 : index
    %c0_66 = arith.constant 0 : index
    %131 = vector.load %arg17[%c0_65, %c0_66] : memref<1x128xf32, #tpu.memory_space<vmem>>, vector<1x128xf32>
    %cst_67 = arith.constant dense<0.000000e+00> : vector<8xf32>
    %132 = vector.multi_reduction <add>, %129, %cst_67 [1] : vector<8x128xf32> to vector<8xf32>
    %133 = vector.shape_cast %132 : vector<8xf32> to vector<8x1xf32>
    %cst_68 = arith.constant 1.280000e+02 : f32
    %134 = vector.broadcast %cst_68 : f32 to vector<8x1xf32>
    %135 = arith.divf %133, %134 : vector<8x1xf32>
    %136 = vector.broadcast %135 : vector<8x1xf32> to vector<8x128xf32>
    %137 = arith.subf %129, %136 : vector<8x128xf32>
    %138 = arith.mulf %137, %137 : vector<8x128xf32>
    %cst_69 = arith.constant dense<0.000000e+00> : vector<8xf32>
    %139 = vector.multi_reduction <add>, %138, %cst_69 [1] : vector<8x128xf32> to vector<8xf32>
    %140 = vector.shape_cast %139 : vector<8xf32> to vector<8x1xf32>
    %cst_70 = arith.constant 1.280000e+02 : f32
    %141 = vector.broadcast %cst_70 : f32 to vector<8x1xf32>
    %142 = arith.divf %140, %141 : vector<8x1xf32>
    %cst_71 = arith.constant 9.99999974E-6 : f32
    %143 = vector.broadcast %cst_71 : f32 to vector<8x1xf32>
    %144 = arith.addf %142, %143 : vector<8x1xf32>
    %145 = math.rsqrt %144 : vector<8x1xf32>
    %146 = vector.broadcast %145 : vector<8x1xf32> to vector<8x128xf32>
    %147 = arith.mulf %137, %146 : vector<8x128xf32>
    %148 = vector.broadcast %130 : vector<1x128xf32> to vector<8x128xf32>
    %149 = arith.mulf %147, %148 : vector<8x128xf32>
    %150 = vector.broadcast %131 : vector<1x128xf32> to vector<8x128xf32>
    %151 = arith.addf %149, %150 : vector<8x128xf32>
    %152 = arith.truncf %151 : vector<8x128xf32> to vector<8x128xbf16>
    %c0_72 = arith.constant 0 : index
    %c0_73 = arith.constant 0 : index
    %153 = vector.load %arg18[%c0_72, %c0_73] : memref<128x256xbf16, #tpu.memory_space<vmem>>, vector<128x256xbf16>
    %cst_74 = arith.constant dense<0.000000e+00> : vector<8x256xf32>
    %154 = tpu.matmul %152, %153, %cst_74 {dimension_numbers = #tpu.dot_dimension_numbers<[1], [0], [0], [1], [0, 0, 1, 1], [], []>} : vector<8x128xbf16>, vector<128x256xbf16>, vector<8x256xf32> -> vector<8x256xf32>
    %c0_75 = arith.constant 0 : index
    %c0_76 = arith.constant 0 : index
    %155 = vector.load %arg19[%c0_75, %c0_76] : memref<1x256xf32, #tpu.memory_space<vmem>>, vector<1x256xf32>
    %156 = vector.broadcast %155 : vector<1x256xf32> to vector<8x256xf32>
    %157 = arith.addf %154, %156 : vector<8x256xf32>
    %cst_77 = arith.constant 0.000000e+00 : f32
    %158 = vector.broadcast %cst_77 : f32 to vector<8x256xf32>
    %159 = arith.maximumf %157, %158 : vector<8x256xf32>
    %160 = arith.truncf %159 : vector<8x256xf32> to vector<8x256xbf16>
    %c0_78 = arith.constant 0 : index
    %c0_79 = arith.constant 0 : index
    %161 = vector.load %arg20[%c0_78, %c0_79] : memref<256x128xbf16, #tpu.memory_space<vmem>>, vector<256x128xbf16>
    %cst_80 = arith.constant dense<0.000000e+00> : vector<8x128xf32>
    %162 = tpu.matmul %160, %161, %cst_80 {dimension_numbers = #tpu.dot_dimension_numbers<[1], [0], [0], [1], [0, 0, 1, 1], [], []>} : vector<8x256xbf16>, vector<256x128xbf16>, vector<8x128xf32> -> vector<8x128xf32>
    %c0_81 = arith.constant 0 : index
    %c0_82 = arith.constant 0 : index
    %163 = vector.load %arg21[%c0_81, %c0_82] : memref<1x128xf32, #tpu.memory_space<vmem>>, vector<1x128xf32>
    %164 = vector.broadcast %163 : vector<1x128xf32> to vector<8x128xf32>
    %165 = arith.addf %162, %164 : vector<8x128xf32>
    %166 = arith.addf %151, %165 : vector<8x128xf32>
    %c0_83 = arith.constant 0 : index
    %c0_84 = arith.constant 0 : index
    %167 = vector.load %arg22[%c0_83, %c0_84] : memref<1x128xf32, #tpu.memory_space<vmem>>, vector<1x128xf32>
    %c0_85 = arith.constant 0 : index
    %c0_86 = arith.constant 0 : index
    %168 = vector.load %arg23[%c0_85, %c0_86] : memref<1x128xf32, #tpu.memory_space<vmem>>, vector<1x128xf32>
    %cst_87 = arith.constant dense<0.000000e+00> : vector<8xf32>
    %169 = vector.multi_reduction <add>, %166, %cst_87 [1] : vector<8x128xf32> to vector<8xf32>
    %170 = vector.shape_cast %169 : vector<8xf32> to vector<8x1xf32>
    %cst_88 = arith.constant 1.280000e+02 : f32
    %171 = vector.broadcast %cst_88 : f32 to vector<8x1xf32>
    %172 = arith.divf %170, %171 : vector<8x1xf32>
    %173 = vector.broadcast %172 : vector<8x1xf32> to vector<8x128xf32>
    %174 = arith.subf %166, %173 : vector<8x128xf32>
    %175 = arith.mulf %174, %174 : vector<8x128xf32>
    %cst_89 = arith.constant dense<0.000000e+00> : vector<8xf32>
    %176 = vector.multi_reduction <add>, %175, %cst_89 [1] : vector<8x128xf32> to vector<8xf32>
    %177 = vector.shape_cast %176 : vector<8xf32> to vector<8x1xf32>
    %cst_90 = arith.constant 1.280000e+02 : f32
    %178 = vector.broadcast %cst_90 : f32 to vector<8x1xf32>
    %179 = arith.divf %177, %178 : vector<8x1xf32>
    %cst_91 = arith.constant 9.99999974E-6 : f32
    %180 = vector.broadcast %cst_91 : f32 to vector<8x1xf32>
    %181 = arith.addf %179, %180 : vector<8x1xf32>
    %182 = math.rsqrt %181 : vector<8x1xf32>
    %183 = vector.broadcast %182 : vector<8x1xf32> to vector<8x128xf32>
    %184 = arith.mulf %174, %183 : vector<8x128xf32>
    %185 = vector.broadcast %167 : vector<1x128xf32> to vector<8x128xf32>
    %186 = arith.mulf %184, %185 : vector<8x128xf32>
    %187 = vector.broadcast %168 : vector<1x128xf32> to vector<8x128xf32>
    %188 = arith.addf %186, %187 : vector<8x128xf32>
    %c0_92 = arith.constant 0 : index
    %c0_93 = arith.constant 0 : index
    %c0_94 = arith.constant 0 : index
    %189 = vector.load %arg24[%c0_92, %c0_93, %c0_94] : memref<1x8x128xf32, #tpu.memory_space<vmem>>, vector<1x8x128xf32>
    %190 = vector.shape_cast %189 : vector<1x8x128xf32> to vector<8x128xf32>
    %191 = vector.shape_cast %188 : vector<8x128xf32> to vector<1x8x128xf32>
    tpu.vector_store %arg24[%c0_92, %c0_93, %c0_94], %191 {strides = array<i32>} : memref<1x8x128xf32, #tpu.memory_space<vmem>>, vector<1x8x128xf32>,
    return
  }
  func.func @transform_0(%arg0: i32) -> (i32, i32, i32) {
    %c0_i32 = arith.constant 0 : i32
    %c0_i32_0 = arith.constant 0 : i32
    %c0_i32_1 = arith.constant 0 : i32
    return %arg0, %c0_i32, %c0_i32_0 : i32, i32, i32
  }
  func.func @transform_1(%arg0: i32) -> (i32, i32, i32) {
    %c0_i32 = arith.constant 0 : i32
    %c0_i32_0 = arith.constant 0 : i32
    %c0_i32_1 = arith.constant 0 : i32
    return %arg0, %c0_i32, %c0_i32_0 : i32, i32, i32
  }
  func.func @transform_2(%arg0: i32) -> (i32, i32, i32) {
    %c0_i32 = arith.constant 0 : i32
    %c0_i32_0 = arith.constant 0 : i32
    %c0_i32_1 = arith.constant 0 : i32
    return %arg0, %c0_i32, %c0_i32_0 : i32, i32, i32
  }
  func.func @transform_3(%arg0: i32) -> (i32, i32, i32) {
    %c0_i32 = arith.constant 0 : i32
    %c0_i32_0 = arith.constant 0 : i32
    %c0_i32_1 = arith.constant 0 : i32
    return %arg0, %c0_i32, %c0_i32_0 : i32, i32, i32
  }
  func.func @transform_4(%arg0: i32) -> (i32, i32, i32) {
    %c0_i32 = arith.constant 0 : i32
    %c0_i32_0 = arith.constant 0 : i32
    %c0_i32_1 = arith.constant 0 : i32
    return %arg0, %c0_i32, %c0_i32_0 : i32, i32, i32
  }
  func.func @transform_5(%arg0: i32) -> (i32, i32) {
    %c0_i32 = arith.constant 0 : i32
    %c0_i32_0 = arith.constant 0 : i32
    %c0_i32_1 = arith.constant 0 : i32
    return %c0_i32, %c0_i32_0 : i32, i32
  }
  func.func @transform_6(%arg0: i32) -> (i32, i32) {
    %c0_i32 = arith.constant 0 : i32
    %c0_i32_0 = arith.constant 0 : i32
    %c0_i32_1 = arith.constant 0 : i32
    return %c0_i32, %c0_i32_0 : i32, i32
  }
  func.func @transform_7(%arg0: i32) -> (i32, i32) {
    %c0_i32 = arith.constant 0 : i32
    %c0_i32_0 = arith.constant 0 : i32
    %c0_i32_1 = arith.constant 0 : i32
    return %c0_i32, %c0_i32_0 : i32, i32
  }
  func.func @transform_8(%arg0: i32) -> (i32, i32) {
    %c0_i32 = arith.constant 0 : i32
    %c0_i32_0 = arith.constant 0 : i32
    %c0_i32_1 = arith.constant 0 : i32
    return %c0_i32, %c0_i32_0 : i32, i32
  }
  func.func @transform_9(%arg0: i32) -> (i32, i32) {
    %c0_i32 = arith.constant 0 : i32
    %c0_i32_0 = arith.constant 0 : i32
    %c0_i32_1 = arith.constant 0 : i32
    return %c0_i32, %c0_i32_0 : i32, i32
  }
  func.func @transform_10(%arg0: i32) -> (i32, i32) {
    %c0_i32 = arith.constant 0 : i32
    %c0_i32_0 = arith.constant 0 : i32
    %c0_i32_1 = arith.constant 0 : i32
    return %c0_i32, %c0_i32_0 : i32, i32
  }
  func.func @transform_11(%arg0: i32) -> (i32, i32) {
    %c0_i32 = arith.constant 0 : i32
    %c0_i32_0 = arith.constant 0 : i32
    %c0_i32_1 = arith.constant 0 : i32
    return %c0_i32, %c0_i32_0 : i32, i32
  }
  func.func @transform_12(%arg0: i32) -> (i32, i32) {
    %c0_i32 = arith.constant 0 : i32
    %c0_i32_0 = arith.constant 0 : i32
    %c0_i32_1 = arith.constant 0 : i32
    return %c0_i32, %c0_i32_0 : i32, i32
  }
  func.func @transform_13(%arg0: i32) -> (i32, i32) {
    %c0_i32 = arith.constant 0 : i32
    %c0_i32_0 = arith.constant 0 : i32
    %c0_i32_1 = arith.constant 0 : i32
    return %c0_i32, %c0_i32_0 : i32, i32
  }
  func.func @transform_14(%arg0: i32) -> (i32, i32) {
    %c0_i32 = arith.constant 0 : i32
    %c0_i32_0 = arith.constant 0 : i32
    %c0_i32_1 = arith.constant 0 : i32
    return %c0_i32, %c0_i32_0 : i32, i32
  }
  func.func @transform_15(%arg0: i32) -> (i32, i32) {
    %c0_i32 = arith.constant 0 : i32
    %c0_i32_0 = arith.constant 0 : i32
    %c0_i32_1 = arith.constant 0 : i32
    return %c0_i32, %c0_i32_0 : i32, i32
  }
  func.func @transform_16(%arg0: i32) -> (i32, i32) {
    %c0_i32 = arith.constant 0 : i32
    %c0_i32_0 = arith.constant 0 : i32
    %c0_i32_1 = arith.constant 0 : i32
    return %c0_i32, %c0_i32_0 : i32, i32
  }
  func.func @transform_17(%arg0: i32) -> (i32, i32) {
    %c0_i32 = arith.constant 0 : i32
    %c0_i32_0 = arith.constant 0 : i32
    %c0_i32_1 = arith.constant 0 : i32
    return %c0_i32, %c0_i32_0 : i32, i32
  }
  func.func @transform_18(%arg0: i32) -> (i32, i32) {
    %c0_i32 = arith.constant 0 : i32
    %c0_i32_0 = arith.constant 0 : i32
    %c0_i32_1 = arith.constant 0 : i32
    return %c0_i32, %c0_i32_0 : i32, i32
  }
  func.func @transform_19(%arg0: i32) -> (i32, i32) {
    %c0_i32 = arith.constant 0 : i32
    %c0_i32_0 = arith.constant 0 : i32
    %c0_i32_1 = arith.constant 0 : i32
    return %c0_i32, %c0_i32_0 : i32, i32
  }
  func.func @transform_20(%arg0: i32) -> (i32, i32) {
    %c0_i32 = arith.constant 0 : i32
    %c0_i32_0 = arith.constant 0 : i32
    %c0_i32_1 = arith.constant 0 : i32
    return %c0_i32, %c0_i32_0 : i32, i32
  }
  func.func @transform_21(%arg0: i32) -> (i32, i32) {
    %c0_i32 = arith.constant 0 : i32
    %c0_i32_0 = arith.constant 0 : i32
    %c0_i32_1 = arith.constant 0 : i32
    return %c0_i32, %c0_i32_0 : i32, i32
  }
  func.func @transform_22(%arg0: i32) -> (i32, i32) {
    %c0_i32 = arith.constant 0 : i32
    %c0_i32_0 = arith.constant 0 : i32
    %c0_i32_1 = arith.constant 0 : i32
    return %c0_i32, %c0_i32_0 : i32, i32
  }
  func.func @transform_23(%arg0: i32) -> (i32, i32, i32) {
    %c0_i32 = arith.constant 0 : i32
    %c0_i32_0 = arith.constant 0 : i32
    %c0_i32_1 = arith.constant 0 : i32
    return %arg0, %c0_i32, %c0_i32_0 : i32, i32, i32
  }
}

</mosaic_0001>

<llo_original>
// kernel: tpu_custom_call.1
$region0: #{tpu_custom_call.1}
  #allocation0 [shape = 'u32[]', space=smem, size = 0x4, offset = 0x4, fixed_abs, tag = 'smem constant byte address 0x4 - core index']
  #allocation1 [shape = 'u32[144,128]{1,0:T(1,128)}', space=vmem, size = 0x12000, scoped, tag = 'internal scratch']
  %s0 = inlined_call_operand.vmem [shape: f32[2,8,128], index: 0, kind: input, shape index: {}]
  %s1 = inlined_call_operand.hbm [shape: f32[2,16,128], index: 1, kind: input, shape index: {}]
  %s2 = inlined_call_operand.vmem [shape: f32[2,1,8], index: 2, kind: input, shape index: {}]
  %s3 = inlined_call_operand.vmem [shape: f32[2,8,1], index: 3, kind: input, shape index: {}]
  %s4 = inlined_call_operand.vmem [shape: f32[2,1,16], index: 4, kind: input, shape index: {}]
  %s5 = inlined_call_operand.hbm [shape: bf16[128,128], index: 5, kind: input, shape index: {}]
  %s6 = inlined_call_operand.hbm [shape: bf16[128,128], index: 6, kind: input, shape index: {}]
  %s7 = inlined_call_operand.hbm [shape: bf16[128,128], index: 7, kind: input, shape index: {}]
  %s8 = inlined_call_operand.hbm [shape: bf16[128,128], index: 8, kind: input, shape index: {}]
  %s9 = inlined_call_operand.hbm [shape: bf16[128,128], index: 9, kind: input, shape index: {}]
  %s10 = inlined_call_operand.hbm [shape: bf16[128,128], index: 10, kind: input, shape index: {}]
  %s11 = inlined_call_operand.hbm [shape: bf16[128,128], index: 11, kind: input, shape index: {}]
  %s12 = inlined_call_operand.hbm [shape: bf16[128,128], index: 12, kind: input, shape index: {}]
  %s13 = inlined_call_operand.vmem [shape: f32[1,128], index: 13, kind: input, shape index: {}]
  %s14 = inlined_call_operand.vmem [shape: f32[1,128], index: 14, kind: input, shape index: {}]
  %s15 = inlined_call_operand.vmem [shape: f32[1,128], index: 15, kind: input, shape index: {}]
  %s16 = inlined_call_operand.vmem [shape: f32[1,128], index: 16, kind: input, shape index: {}]
  %s17 = inlined_call_operand.hbm [shape: bf16[128,256], index: 17, kind: input, shape index: {}]
  %s18 = inlined_call_operand.vmem [shape: f32[1,256], index: 18, kind: input, shape index: {}]
  %s19 = inlined_call_operand.hbm [shape: bf16[256,128], index: 19, kind: input, shape index: {}]
  %s20 = inlined_call_operand.vmem [shape: f32[1,128], index: 20, kind: input, shape index: {}]
  %s21 = inlined_call_operand.vmem [shape: f32[1,128], index: 21, kind: input, shape index: {}]
  %s22 = inlined_call_operand.vmem [shape: f32[1,128], index: 22, kind: input, shape index: {}]
  %s23 = inlined_call_operand.hbm [shape: f32[2,8,128], index: 23, kind: output, shape index: {}]
  %s24 = sld [smem:[#allocation0]]
  $region169: #{tpu_custom_call.1} parent=0
    _
  %s26 = ssub.s32 1, %s24
  %s27 = scalar_select 0, %s26, %s24
  $region1: #{tpu_custom_call.1} parent=0
    #allocation2 [shape = 'u8[16384]{0}', space=vmem, size = 0x4000, scoped, tag = 'input window, operand 1']
    #allocation3 [shape = 's32[2]{0}', space=sflag, size = 0x8, scoped, tag = 'scoped memory for tpu_custom_call.1']
    #allocation4 [shape = 's32[2]{0}', space=sflag, size = 0x8, scoped, tag = 'scoped memory for tpu_custom_call.1']
    #allocation5 [shape = 'u8[32768]{0}', space=vmem, size = 0x8000, scoped, tag = 'input window, operand 5, single buffered']
    #allocation6 [shape = 's32[1]{0}', space=sflag, size = 0x4, scoped, tag = 'scoped memory for tpu_custom_call.1']
    #allocation7 [shape = 'u8[32768]{0}', space=vmem, size = 0x8000, scoped, tag = 'input window, operand 6, single buffered']
    #allocation8 [shape = 'u8[32768]{0}', space=vmem, size = 0x8000, scoped, tag = 'input window, operand 7, single buffered']
    #allocation9 [shape = 's32[1]{0}', space=sflag, size = 0x4, scoped, tag = 'scoped memory for tpu_custom_call.1']
    #allocation10 [shape = 'u8[32768]{0}', space=vmem, size = 0x8000, scoped, tag = 'input window, operand 8, single buffered']
    #allocation11 [shape = 'u8[32768]{0}', space=vmem, size = 0x8000, scoped, tag = 'input window, operand 9, single buffered']
    #allocation12 [shape = 's32[1]{0}', space=sflag, size = 0x4, scoped, tag = 'scoped memory for tpu_custom_call.1']
    #allocation13 [shape = 'u8[32768]{0}', space=vmem, size = 0x8000, scoped, tag = 'input window, operand 10, single buffered']
    #allocation14 [shape = 'u8[32768]{0}', space=vmem, size = 0x8000, scoped, tag = 'input window, operand 11, single buffered']
    #allocation15 [shape = 's32[1]{0}', space=sflag, size = 0x4, scoped, tag = 'scoped memory for tpu_custom_call.1']
    #allocation16 [shape = 'u8[32768]{0}', space=vmem, size = 0x8000, scoped, tag = 'input window, operand 12, single buffered']
    #allocation17 [shape = 'u8[65536]{0}', space=vmem, size = 0x10000, scoped, tag = 'input window, operand 17, single buffered']
    #allocation18 [shape = 's32[1]{0}', space=sflag, size = 0x4, scoped, tag = 'scoped memory for tpu_custom_call.1']
    #allocation19 [shape = 'u8[65536]{0}', space=vmem, size = 0x10000, scoped, tag = 'input window, operand 19, single buffered']
    #allocation20 [shape = 'u8[8192]{0}', space=vmem, size = 0x2000, scoped, tag = 'output window, operand 0']
    %28 = vsyncpa [#allocation3], 0
    %s29 = scalar_lea.sflag [#allocation3], 1
    %30 = vsyncpa %s29, 0
    %31 = vsyncpa [#allocation6], 0
    %32 = vsyncpa [#allocation9], 0
    %33 = vsyncpa [#allocation12], 0
    %34 = vsyncpa [#allocation15], 0
    %35 = vsyncpa [#allocation18], 0
    %36 = vsyncpa [#allocation4], 0
    %s37 = scalar_lea.sflag [#allocation4], 1
    %38 = vsyncpa %s37, 0
    loop: start=0, step=1, limit=4
    $region2: #{tpu_custom_call.1} parent=1 // loop_pre_header
      _
    $region3: #{tpu_custom_call.1} parent=1 // loop_header
      %s40 = sphi 0, %s44
      %p41 = scmp.ge.s32.totalorder %s40, 4
      %s50 = sphi 0, %s52
      %s53 = sphi 0, %s50
      %s54 = sphi 0, %s53
      %s70 = sphi 0, %s54
      %s76 = sphi 0, %s78
      %s79 = sphi 0, %s76
      %s80 = sphi 0, %s79
      %s96 = sphi 0, %s80
      %s102 = sphi 0, %s104
      %s105 = sphi 0, %s102
      %s106 = sphi 0, %s105
      %s122 = sphi 0, %s106
      %s128 = sphi 0, %s130
      %s131 = sphi 0, %s128
      %s132 = sphi 0, %s131
      %s148 = sphi 0, %s132
      %s154 = sphi 0, %s156
      %s157 = sphi 0, %s154
      %s158 = sphi 0, %s157
      %s174 = sphi 0, %s158
      %s178 = sphi 0, %s178
      %s180 = sphi 0, %s178
      %s181 = sphi 0, %s180
      %s195 = sphi 0, %s181
      %s199 = sphi 0, %s199
      %s201 = sphi 0, %s199
      %s202 = sphi 0, %s201
      %s216 = sphi 0, %s202
      %s220 = sphi 0, %s220
      %s222 = sphi 0, %s220
      %s223 = sphi 0, %s222
      %s237 = sphi 0, %s223
      %s241 = sphi 0, %s241
      %s243 = sphi 0, %s241
      %s244 = sphi 0, %s243
      %s258 = sphi 0, %s244
      %s262 = sphi 0, %s262
      %s264 = sphi 0, %s262
      %s265 = sphi 0, %s264
      %s279 = sphi 0, %s265
      %s283 = sphi 0, %s283
      %s285 = sphi 0, %s283
      %s286 = sphi 0, %s285
      %s300 = sphi 0, %s286
      %s304 = sphi 0, %s304
      %s306 = sphi 0, %s304
      %s307 = sphi 0, %s306
      %s321 = sphi 0, %s307
      %s325 = sphi 0, %s325
      %s327 = sphi 0, %s325
      %s328 = sphi 0, %s327
      %s342 = sphi 0, %s328
      %s346 = sphi 0, %s346
      %s348 = sphi 0, %s346
      %s349 = sphi 0, %s348
      %s363 = sphi 0, %s349
      %s367 = sphi 0, %s367
      %s369 = sphi 0, %s367
      %s370 = sphi 0, %s369
      %s384 = sphi 0, %s370
      %s388 = sphi 0, %s388
      %s390 = sphi 0, %s388
      %s391 = sphi 0, %s390
      %s405 = sphi 0, %s391
      %s409 = sphi 0, %s409
      %s411 = sphi 0, %s409
      %s412 = sphi 0, %s411
      %s426 = sphi 0, %s412
      %s430 = sphi 0, %s430
      %s432 = sphi 0, %s430
      %s433 = sphi 0, %s432
      %s447 = sphi 0, %s433
      %s451 = sphi 0, %s451
      %s453 = sphi 0, %s451
      %s454 = sphi 0, %s453
      %s468 = sphi 0, %s454
      %s472 = sphi 0, %s472
      %s474 = sphi 0, %s472
      %s475 = sphi 0, %s474
      %s489 = sphi 0, %s475
      %s493 = sphi 0, %s493
      %s495 = sphi 0, %s493
      %s496 = sphi 0, %s495
      %s510 = sphi 0, %s496
      %s514 = sphi 0, %s514
      %s516 = sphi 0, %s514
      %s517 = sphi 0, %s516
      %s531 = sphi 0, %s517
      %s535 = sphi 0, %s535
      %s537 = sphi 0, %s535
      %s538 = sphi 0, %s537
      %s552 = sphi 0, %s538
      %s558 = sphi 0, %s560
      %s561 = sphi 0, %s558
      %s562 = sphi 0, %s561
      %s578 = sphi 0, %s562
    $region4: #{tpu_custom_call.1} parent=1 // loop_header_branch
      %43 = sbr.rel (%p41) target = $region8
    $region5: #{tpu_custom_call.1} parent=1 // loop_body
      %s45 = ssub.s32 %s40, 1
      %s46 = ssub.s32 %s40, 2
      %s47 = sadd.s32 %s40, 1
      %s48 = ssub.s32 %s40, %s47
      %p49 = scmp.eq.s32.totalorder %s48, 0
      %s51 = sadd.s32 %s50, 1
      %s52 = scalar_select %p49, %s50, %s51
      %p55 = pneg %p49
      %p56 = scmp.eq.s32.totalorder %s40, 1
      %p57 = por %p55, %p56
      %p58 = scmp.ne.s32.totalorder %s50, %s53
      %p59 = scmp.eq.s32.totalorder %s40, 0
      %p60 = por %p58, %p59
      %p61 = scmp.ne.s32.totalorder %s50, %s53
      %p62 = scmp.eq.s32.totalorder %s45, 1
      %p63 = por %p61, %p62
      %p64 = scmp.ne.s32.totalorder %s53, %s54
      %p65 = scmp.eq.s32.totalorder %s45, 0
      %p66 = por %p64, %p65
      %p67 = scmp.ne.s32.totalorder %s53, %s54
      %p68 = scmp.eq.s32.totalorder %s46, 1
      %p69 = por %p67, %p68
      %p71 = scmp.ne.s32.totalorder %s54, %s70
      %p72 = scmp.eq.s32.totalorder %s46, 0
      %p73 = por %p71, %p72
      %s74 = ssub.s32 %s40, %s47
      %p75 = scmp.eq.s32.totalorder %s74, 0
      %s77 = sadd.s32 %s76, 1
      %s78 = scalar_select %p75, %s76, %s77
      %p81 = pneg %p75
      %p82 = scmp.eq.s32.totalorder %s40, 1
      %p83 = por %p81, %p82
      %p84 = scmp.ne.s32.totalorder %s76, %s79
      %p85 = scmp.eq.s32.totalorder %s40, 0
      %p86 = por %p84, %p85
      %p87 = scmp.ne.s32.totalorder %s76, %s79
      %p88 = scmp.eq.s32.totalorder %s45, 1
      %p89 = por %p87, %p88
      %p90 = scmp.ne.s32.totalorder %s79, %s80
      %p91 = scmp.eq.s32.totalorder %s45, 0
      %p92 = por %p90, %p91
      %p93 = scmp.ne.s32.totalorder %s79, %s80
      %p94 = scmp.eq.s32.totalorder %s46, 1
      %p95 = por %p93, %p94
      %p97 = scmp.ne.s32.totalorder %s80, %s96
      %p98 = scmp.eq.s32.totalorder %s46, 0
      %p99 = por %p97, %p98
      %s100 = ssub.s32 %s40, %s47
      %p101 = scmp.eq.s32.totalorder %s100, 0
      %s103 = sadd.s32 %s102, 1
      %s104 = scalar_select %p101, %s102, %s103
      %p107 = pneg %p101
      %p108 = scmp.eq.s32.totalorder %s40, 1
      %p109 = por %p107, %p108
      %p110 = scmp.ne.s32.totalorder %s102, %s105
      %p111 = scmp.eq.s32.totalorder %s40, 0
      %p112 = por %p110, %p111
      %p113 = scmp.ne.s32.totalorder %s102, %s105
      %p114 = scmp.eq.s32.totalorder %s45, 1
      %p115 = por %p113, %p114
      %p116 = scmp.ne.s32.totalorder %s105, %s106
      %p117 = scmp.eq.s32.totalorder %s45, 0
      %p118 = por %p116, %p117
      %p119 = scmp.ne.s32.totalorder %s105, %s106
      %p120 = scmp.eq.s32.totalorder %s46, 1
      %p121 = por %p119, %p120
      %p123 = scmp.ne.s32.totalorder %s106, %s122
      %p124 = scmp.eq.s32.totalorder %s46, 0
      %p125 = por %p123, %p124
      %s126 = ssub.s32 %s40, %s47
      %p127 = scmp.eq.s32.totalorder %s126, 0
      %s129 = sadd.s32 %s128, 1
      %s130 = scalar_select %p127, %s128, %s129
      %p133 = pneg %p127
      %p134 = scmp.eq.s32.totalorder %s40, 1
      %p135 = por %p133, %p134
      %p136 = scmp.ne.s32.totalorder %s128, %s131
      %p137 = scmp.eq.s32.totalorder %s40, 0
      %p138 = por %p136, %p137
      %p139 = scmp.ne.s32.totalorder %s128, %s131
      %p140 = scmp.eq.s32.totalorder %s45, 1
      %p141 = por %p139, %p140
      %p142 = scmp.ne.s32.totalorder %s131, %s132
      %p143 = scmp.eq.s32.totalorder %s45, 0
      %p144 = por %p142, %p143
      %p145 = scmp.ne.s32.totalorder %s131, %s132
      %p146 = scmp.eq.s32.totalorder %s46, 1
      %p147 = por %p145, %p146
      %p149 = scmp.ne.s32.totalorder %s132, %s148
      %p150 = scmp.eq.s32.totalorder %s46, 0
      %p151 = por %p149, %p150
      %s152 = ssub.s32 %s40, %s47
      %p153 = scmp.eq.s32.totalorder %s152, 0
      %s155 = sadd.s32 %s154, 1
      %s156 = scalar_select %p153, %s154, %s155
      %p159 = pneg %p153
      %p160 = scmp.eq.s32.totalorder %s40, 1
      %p161 = por %p159, %p160
      %p162 = scmp.ne.s32.totalorder %s154, %s157
      %p163 = scmp.eq.s32.totalorder %s40, 0
      %p164 = por %p162, %p163
      %p165 = scmp.ne.s32.totalorder %s154, %s157
      %p166 = scmp.eq.s32.totalorder %s45, 1
      %p167 = por %p165, %p166
      %p168 = scmp.ne.s32.totalorder %s157, %s158
      %p169 = scmp.eq.s32.totalorder %s45, 0
      %p170 = por %p168, %p169
      %p171 = scmp.ne.s32.totalorder %s157, %s158
      %p172 = scmp.eq.s32.totalorder %s46, 1
      %p173 = por %p171, %p172
      %p175 = scmp.ne.s32.totalorder %s158, %s174
      %p176 = scmp.eq.s32.totalorder %s46, 0
      %p177 = por %p175, %p176
      %s179 = sadd.s32 %s178, 1
      %p182 = scmp.eq.s32.totalorder %s40, 1
      %p183 = scmp.ne.s32.totalorder %s178, %s180
      %p184 = scmp.eq.s32.totalorder %s40, 0
      %p185 = por %p183, %p184
      %p186 = scmp.ne.s32.totalorder %s178, %s180
      %p187 = scmp.eq.s32.totalorder %s45, 1
      %p188 = por %p186, %p187
      %p189 = scmp.ne.s32.totalorder %s180, %s181
      %p190 = scmp.eq.s32.totalorder %s45, 0
      %p191 = por %p189, %p190
      %p192 = scmp.ne.s32.totalorder %s180, %s181
      %p193 = scmp.eq.s32.totalorder %s46, 1
      %p194 = por %p192, %p193
      %p196 = scmp.ne.s32.totalorder %s181, %s195
      %p197 = scmp.eq.s32.totalorder %s46, 0
      %p198 = por %p196, %p197
      %s200 = sadd.s32 %s199, 1
      %p203 = scmp.eq.s32.totalorder %s40, 1
      %p204 = scmp.ne.s32.totalorder %s199, %s201
      %p205 = scmp.eq.s32.totalorder %s40, 0
      %p206 = por %p204, %p205
      %p207 = scmp.ne.s32.totalorder %s199, %s201
      %p208 = scmp.eq.s32.totalorder %s45, 1
      %p209 = por %p207, %p208
      %p210 = scmp.ne.s32.totalorder %s201, %s202
      %p211 = scmp.eq.s32.totalorder %s45, 0
      %p212 = por %p210, %p211
      %p213 = scmp.ne.s32.totalorder %s201, %s202
      %p214 = scmp.eq.s32.totalorder %s46, 1
      %p215 = por %p213, %p214
      %p217 = scmp.ne.s32.totalorder %s202, %s216
      %p218 = scmp.eq.s32.totalorder %s46, 0
      %p219 = por %p217, %p218
      %s221 = sadd.s32 %s220, 1
      %p224 = scmp.eq.s32.totalorder %s40, 1
      %p225 = scmp.ne.s32.totalorder %s220, %s222
      %p226 = scmp.eq.s32.totalorder %s40, 0
      %p227 = por %p225, %p226
      %p228 = scmp.ne.s32.totalorder %s220, %s222
      %p229 = scmp.eq.s32.totalorder %s45, 1
      %p230 = por %p228, %p229
      %p231 = scmp.ne.s32.totalorder %s222, %s223
      %p232 = scmp.eq.s32.totalorder %s45, 0
      %p233 = por %p231, %p232
      %p234 = scmp.ne.s32.totalorder %s222, %s223
      %p235 = scmp.eq.s32.totalorder %s46, 1
      %p236 = por %p234, %p235
      %p238 = scmp.ne.s32.totalorder %s223, %s237
      %p239 = scmp.eq.s32.totalorder %s46, 0
      %p240 = por %p238, %p239
      %s242 = sadd.s32 %s241, 1
      %p245 = scmp.eq.s32.totalorder %s40, 1
      %p246 = scmp.ne.s32.totalorder %s241, %s243
      %p247 = scmp.eq.s32.totalorder %s40, 0
      %p248 = por %p246, %p247
      %p249 = scmp.ne.s32.totalorder %s241, %s243
      %p250 = scmp.eq.s32.totalorder %s45, 1
      %p251 = por %p249, %p250
      %p252 = scmp.ne.s32.totalorder %s243, %s244
      %p253 = scmp.eq.s32.totalorder %s45, 0
      %p254 = por %p252, %p253
      %p255 = scmp.ne.s32.totalorder %s243, %s244
      %p256 = scmp.eq.s32.totalorder %s46, 1
      %p257 = por %p255, %p256
      %p259 = scmp.ne.s32.totalorder %s244, %s258
      %p260 = scmp.eq.s32.totalorder %s46, 0
      %p261 = por %p259, %p260
      %s263 = sadd.s32 %s262, 1
      %p266 = scmp.eq.s32.totalorder %s40, 1
      %p267 = scmp.ne.s32.totalorder %s262, %s264
      %p268 = scmp.eq.s32.totalorder %s40, 0
      %p269 = por %p267, %p268
      %p270 = scmp.ne.s32.totalorder %s262, %s264
      %p271 = scmp.eq.s32.totalorder %s45, 1
      %p272 = por %p270, %p271
      %p273 = scmp.ne.s32.totalorder %s264, %s265
      %p274 = scmp.eq.s32.totalorder %s45, 0
      %p275 = por %p273, %p274
      %p276 = scmp.ne.s32.totalorder %s264, %s265
      %p277 = scmp.eq.s32.totalorder %s46, 1
      %p278 = por %p276, %p277
      %p280 = scmp.ne.s32.totalorder %s265, %s279
      %p281 = scmp.eq.s32.totalorder %s46, 0
      %p282 = por %p280, %p281
      %s284 = sadd.s32 %s283, 1
      %p287 = scmp.eq.s32.totalorder %s40, 1
      %p288 = scmp.ne.s32.totalorder %s283, %s285
      %p289 = scmp.eq.s32.totalorder %s40, 0
      %p290 = por %p288, %p289
      %p291 = scmp.ne.s32.totalorder %s283, %s285
      %p292 = scmp.eq.s32.totalorder %s45, 1
      %p293 = por %p291, %p292
      %p294 = scmp.ne.s32.totalorder %s285, %s286
      %p295 = scmp.eq.s32.totalorder %s45, 0
      %p296 = por %p294, %p295
      %p297 = scmp.ne.s32.totalorder %s285, %s286
      %p298 = scmp.eq.s32.totalorder %s46, 1
      %p299 = por %p297, %p298
      %p301 = scmp.ne.s32.totalorder %s286, %s300
      %p302 = scmp.eq.s32.totalorder %s46, 0
      %p303 = por %p301, %p302
      %s305 = sadd.s32 %s304, 1
      %p308 = scmp.eq.s32.totalorder %s40, 1
      %p309 = scmp.ne.s32.totalorder %s304, %s306
      %p310 = scmp.eq.s32.totalorder %s40, 0
      %p311 = por %p309, %p310
      %p312 = scmp.ne.s32.totalorder %s304, %s306
      %p313 = scmp.eq.s32.totalorder %s45, 1
      %p314 = por %p312, %p313
      %p315 = scmp.ne.s32.totalorder %s306, %s307
      %p316 = scmp.eq.s32.totalorder %s45, 0
      %p317 = por %p315, %p316
      %p318 = scmp.ne.s32.totalorder %s306, %s307
      %p319 = scmp.eq.s32.totalorder %s46, 1
      %p320 = por %p318, %p319
      %p322 = scmp.ne.s32.totalorder %s307, %s321
      %p323 = scmp.eq.s32.totalorder %s46, 0
      %p324 = por %p322, %p323
      %s326 = sadd.s32 %s325, 1
      %p329 = scmp.eq.s32.totalorder %s40, 1
      %p330 = scmp.ne.s32.totalorder %s325, %s327
      %p331 = scmp.eq.s32.totalorder %s40, 0
      %p332 = por %p330, %p331
      %p333 = scmp.ne.s32.totalorder %s325, %s327
      %p334 = scmp.eq.s32.totalorder %s45, 1
      %p335 = por %p333, %p334
      %p336 = scmp.ne.s32.totalorder %s327, %s328
      %p337 = scmp.eq.s32.totalorder %s45, 0
      %p338 = por %p336, %p337
      %p339 = scmp.ne.s32.totalorder %s327, %s328
      %p340 = scmp.eq.s32.totalorder %s46, 1
      %p341 = por %p339, %p340
      %p343 = scmp.ne.s32.totalorder %s328, %s342
      %p344 = scmp.eq.s32.totalorder %s46, 0
      %p345 = por %p343, %p344
      %s347 = sadd.s32 %s346, 1
      %p350 = scmp.eq.s32.totalorder %s40, 1
      %p351 = scmp.ne.s32.totalorder %s346, %s348
      %p352 = scmp.eq.s32.totalorder %s40, 0
      %p353 = por %p351, %p352
      %p354 = scmp.ne.s32.totalorder %s346, %s348
      %p355 = scmp.eq.s32.totalorder %s45, 1
      %p356 = por %p354, %p355
      %p357 = scmp.ne.s32.totalorder %s348, %s349
      %p358 = scmp.eq.s32.totalorder %s45, 0
      %p359 = por %p357, %p358
      %p360 = scmp.ne.s32.totalorder %s348, %s349
      %p361 = scmp.eq.s32.totalorder %s46, 1
      %p362 = por %p360, %p361
      %p364 = scmp.ne.s32.totalorder %s349, %s363
      %p365 = scmp.eq.s32.totalorder %s46, 0
      %p366 = por %p364, %p365
      %s368 = sadd.s32 %s367, 1
      %p371 = scmp.eq.s32.totalorder %s40, 1
      %p372 = scmp.ne.s32.totalorder %s367, %s369
      %p373 = scmp.eq.s32.totalorder %s40, 0
      %p374 = por %p372, %p373
      %p375 = scmp.ne.s32.totalorder %s367, %s369
      %p376 = scmp.eq.s32.totalorder %s45, 1
      %p377 = por %p375, %p376
      %p378 = scmp.ne.s32.totalorder %s369, %s370
      %p379 = scmp.eq.s32.totalorder %s45, 0
      %p380 = por %p378, %p379
      %p381 = scmp.ne.s32.totalorder %s369, %s370
      %p382 = scmp.eq.s32.totalorder %s46, 1
      %p383 = por %p381, %p382
      %p385 = scmp.ne.s32.totalorder %s370, %s384
      %p386 = scmp.eq.s32.totalorder %s46, 0
      %p387 = por %p385, %p386
      %s389 = sadd.s32 %s388, 1
      %p392 = scmp.eq.s32.totalorder %s40, 1
      %p393 = scmp.ne.s32.totalorder %s388, %s390
      %p394 = scmp.eq.s32.totalorder %s40, 0
      %p395 = por %p393, %p394
      %p396 = scmp.ne.s32.totalorder %s388, %s390
      %p397 = scmp.eq.s32.totalorder %s45, 1
      %p398 = por %p396, %p397
      %p399 = scmp.ne.s32.totalorder %s390, %s391
      %p400 = scmp.eq.s32.totalorder %s45, 0
      %p401 = por %p399, %p400
      %p402 = scmp.ne.s32.totalorder %s390, %s391
      %p403 = scmp.eq.s32.totalorder %s46, 1
      %p404 = por %p402, %p403
      %p406 = scmp.ne.s32.totalorder %s391, %s405
      %p407 = scmp.eq.s32.totalorder %s46, 0
      %p408 = por %p406, %p407
      %s410 = sadd.s32 %s409, 1
      %p413 = scmp.eq.s32.totalorder %s40, 1
      %p414 = scmp.ne.s32.totalorder %s409, %s411
      %p415 = scmp.eq.s32.totalorder %s40, 0
      %p416 = por %p414, %p415
      %p417 = scmp.ne.s32.totalorder %s409, %s411
      %p418 = scmp.eq.s32.totalorder %s45, 1
      %p419 = por %p417, %p418
      %p420 = scmp.ne.s32.totalorder %s411, %s412
      %p421 = scmp.eq.s32.totalorder %s45, 0
      %p422 = por %p420, %p421
      %p423 = scmp.ne.s32.totalorder %s411, %s412
      %p424 = scmp.eq.s32.totalorder %s46, 1
      %p425 = por %p423, %p424
      %p427 = scmp.ne.s32.totalorder %s412, %s426
      %p428 = scmp.eq.s32.totalorder %s46, 0
      %p429 = por %p427, %p428
      %s431 = sadd.s32 %s430, 1
      %p434 = scmp.eq.s32.totalorder %s40, 1
      %p435 = scmp.ne.s32.totalorder %s430, %s432
      %p436 = scmp.eq.s32.totalorder %s40, 0
      %p437 = por %p435, %p436
      %p438 = scmp.ne.s32.totalorder %s430, %s432
      %p439 = scmp.eq.s32.totalorder %s45, 1
      %p440 = por %p438, %p439
      %p441 = scmp.ne.s32.totalorder %s432, %s433
      %p442 = scmp.eq.s32.totalorder %s45, 0
      %p443 = por %p441, %p442
      %p444 = scmp.ne.s32.totalorder %s432, %s433
      %p445 = scmp.eq.s32.totalorder %s46, 1
      %p446 = por %p444, %p445
      %p448 = scmp.ne.s32.totalorder %s433, %s447
      %p449 = scmp.eq.s32.totalorder %s46, 0
      %p450 = por %p448, %p449
      %s452 = sadd.s32 %s451, 1
      %p455 = scmp.eq.s32.totalorder %s40, 1
      %p456 = scmp.ne.s32.totalorder %s451, %s453
      %p457 = scmp.eq.s32.totalorder %s40, 0
      %p458 = por %p456, %p457
      %p459 = scmp.ne.s32.totalorder %s451, %s453
      %p460 = scmp.eq.s32.totalorder %s45, 1
      %p461 = por %p459, %p460
      %p462 = scmp.ne.s32.totalorder %s453, %s454
      %p463 = scmp.eq.s32.totalorder %s45, 0
      %p464 = por %p462, %p463
      %p465 = scmp.ne.s32.totalorder %s453, %s454
      %p466 = scmp.eq.s32.totalorder %s46, 1
      %p467 = por %p465, %p466
      %p469 = scmp.ne.s32.totalorder %s454, %s468
      %p470 = scmp.eq.s32.totalorder %s46, 0
      %p471 = por %p469, %p470
      %s473 = sadd.s32 %s472, 1
      %p476 = scmp.eq.s32.totalorder %s40, 1
      %p477 = scmp.ne.s32.totalorder %s472, %s474
      %p478 = scmp.eq.s32.totalorder %s40, 0
      %p479 = por %p477, %p478
      %p480 = scmp.ne.s32.totalorder %s472, %s474
      %p481 = scmp.eq.s32.totalorder %s45, 1
      %p482 = por %p480, %p481
      %p483 = scmp.ne.s32.totalorder %s474, %s475
      %p484 = scmp.eq.s32.totalorder %s45, 0
      %p485 = por %p483, %p484
      %p486 = scmp.ne.s32.totalorder %s474, %s475
      %p487 = scmp.eq.s32.totalorder %s46, 1
      %p488 = por %p486, %p487
      %p490 = scmp.ne.s32.totalorder %s475, %s489
      %p491 = scmp.eq.s32.totalorder %s46, 0
      %p492 = por %p490, %p491
      %s494 = sadd.s32 %s493, 1
      %p497 = scmp.eq.s32.totalorder %s40, 1
      %p498 = scmp.ne.s32.totalorder %s493, %s495
      %p499 = scmp.eq.s32.totalorder %s40, 0
      %p500 = por %p498, %p499
      %p501 = scmp.ne.s32.totalorder %s493, %s495
      %p502 = scmp.eq.s32.totalorder %s45, 1
      %p503 = por %p501, %p502
      %p504 = scmp.ne.s32.totalorder %s495, %s496
      %p505 = scmp.eq.s32.totalorder %s45, 0
      %p506 = por %p504, %p505
      %p507 = scmp.ne.s32.totalorder %s495, %s496
      %p508 = scmp.eq.s32.totalorder %s46, 1
      %p509 = por %p507, %p508
      %p511 = scmp.ne.s32.totalorder %s496, %s510
      %p512 = scmp.eq.s32.totalorder %s46, 0
      %p513 = por %p511, %p512
      %s515 = sadd.s32 %s514, 1
      %p518 = scmp.eq.s32.totalorder %s40, 1
      %p519 = scmp.ne.s32.totalorder %s514, %s516
      %p520 = scmp.eq.s32.totalorder %s40, 0
      %p521 = por %p519, %p520
      %p522 = scmp.ne.s32.totalorder %s514, %s516
      %p523 = scmp.eq.s32.totalorder %s45, 1
      %p524 = por %p522, %p523
      %p525 = scmp.ne.s32.totalorder %s516, %s517
      %p526 = scmp.eq.s32.totalorder %s45, 0
      %p527 = por %p525, %p526
      %p528 = scmp.ne.s32.totalorder %s516, %s517
      %p529 = scmp.eq.s32.totalorder %s46, 1
      %p530 = por %p528, %p529
      %p532 = scmp.ne.s32.totalorder %s517, %s531
      %p533 = scmp.eq.s32.totalorder %s46, 0
      %p534 = por %p532, %p533
      %s536 = sadd.s32 %s535, 1
      %p539 = scmp.eq.s32.totalorder %s40, 1
      %p540 = scmp.ne.s32.totalorder %s535, %s537
      %p541 = scmp.eq.s32.totalorder %s40, 0
      %p542 = por %p540, %p541
      %p543 = scmp.ne.s32.totalorder %s535, %s537
      %p544 = scmp.eq.s32.totalorder %s45, 1
      %p545 = por %p543, %p544
      %p546 = scmp.ne.s32.totalorder %s537, %s538
      %p547 = scmp.eq.s32.totalorder %s45, 0
      %p548 = por %p546, %p547
      %p549 = scmp.ne.s32.totalorder %s537, %s538
      %p550 = scmp.eq.s32.totalorder %s46, 1
      %p551 = por %p549, %p550
      %p553 = scmp.ne.s32.totalorder %s538, %s552
      %p554 = scmp.eq.s32.totalorder %s46, 0
      %p555 = por %p553, %p554
      %s556 = ssub.s32 %s40, %s47
      %p557 = scmp.eq.s32.totalorder %s556, 0
      %s559 = sadd.s32 %s558, 1
      %s560 = scalar_select %p557, %s558, %s559
      %p563 = pneg %p557
      %p564 = scmp.eq.s32.totalorder %s40, 1
      %p565 = por %p563, %p564
      %p566 = scmp.ne.s32.totalorder %s558, %s561
      %p567 = scmp.eq.s32.totalorder %s40, 0
      %p568 = por %p566, %p567
      %p569 = scmp.ne.s32.totalorder %s558, %s561
      %p570 = scmp.eq.s32.totalorder %s45, 1
      %p571 = por %p569, %p570
      %p572 = scmp.ne.s32.totalorder %s561, %s562
      %p573 = scmp.eq.s32.totalorder %s45, 0
      %p574 = por %p572, %p573
      %p575 = scmp.ne.s32.totalorder %s561, %s562
      %p576 = scmp.eq.s32.totalorder %s46, 1
      %p577 = por %p575, %p576
      %p579 = scmp.ne.s32.totalorder %s562, %s578
      %p580 = scmp.eq.s32.totalorder %s46, 0
      %p581 = por %p579, %p580
      %p582 = scmp.le.s32.totalorder 1, %s40
      %p583 = scmp.lt.s32.totalorder %s40, 3
      %p584 = pnand %p582, %p583
      %p585 = pneg %p584
      // Predicated region
      $region9: #{tpu_custom_call.1} parent=5 // pred_check
        _
      $region10: #{tpu_custom_call.1} parent=5 // pred_check_branch
        %587 = sbr.rel (%p584) target = $region12
      $region11: #{tpu_custom_call.1} parent=5 // pred_region
        %s588 = ssub.s32 %s40, 1
        // Predicated region
        $region13: #{tpu_custom_call.1} parent=11 // pred_check
          %p589 = pneg %p191
        $region14: #{tpu_custom_call.1} parent=11 // pred_check_branch
          %591 = sbr.rel (%p589) target = $region16
        $region15: #{tpu_custom_call.1} parent=11 // pred_region
          %s593 = ssub.s32 1024, 1024
          %594 = vsyncadd [#allocation6], %s593
          %s595 = sshll.u32 [#allocation5], 4
          %s596 = int_to_ptr.vmem [resolvable:$true] %s595
          %601 = dma.hbm_to_vmem [thread:$0]  %s5, 1024, %s596, [#allocation6], 64, 64, 4
        $region16: #{tpu_custom_call.1} parent=11 // pred_fallthru
          _
        // Predicated region
        $region17: #{tpu_custom_call.1} parent=11 // pred_check
          %p602 = pneg %p212
        $region18: #{tpu_custom_call.1} parent=11 // pred_check_branch
          %604 = sbr.rel (%p602) target = $region20
        $region19: #{tpu_custom_call.1} parent=11 // pred_region
          %s606 = ssub.s32 1024, 1024
          %607 = vsyncadd [#allocation6], %s606
          %s608 = sshll.u32 [#allocation7], 4
          %s609 = int_to_ptr.vmem [resolvable:$true] %s608
          %614 = dma.hbm_to_vmem [thread:$0]  %s6, 1024, %s609, [#allocation6], 64, 64, 4
        $region20: #{tpu_custom_call.1} parent=11 // pred_fallthru
          _
        // Predicated region
        $region21: #{tpu_custom_call.1} parent=11 // pred_check
          %p615 = pneg %p233
        $region22: #{tpu_custom_call.1} parent=11 // pred_check_branch
          %617 = sbr.rel (%p615) target = $region24
        $region23: #{tpu_custom_call.1} parent=11 // pred_region
          %s619 = ssub.s32 1024, 1024
          %620 = vsyncadd [#allocation9], %s619
          %s621 = sshll.u32 [#allocation8], 4
          %s622 = int_to_ptr.vmem [resolvable:$true] %s621
          %627 = dma.hbm_to_vmem [thread:$0]  %s7, 1024, %s622, [#allocation9], 64, 64, 4
        $region24: #{tpu_custom_call.1} parent=11 // pred_fallthru
          _
        // Predicated region
        $region25: #{tpu_custom_call.1} parent=11 // pred_check
          %p628 = pneg %p254
        $region26: #{tpu_custom_call.1} parent=11 // pred_check_branch
          %630 = sbr.rel (%p628) target = $region28
        $region27: #{tpu_custom_call.1} parent=11 // pred_region
          %s632 = ssub.s32 1024, 1024
          %633 = vsyncadd [#allocation9], %s632
          %s634 = sshll.u32 [#allocation10], 4
          %s635 = int_to_ptr.vmem [resolvable:$true] %s634
          %640 = dma.hbm_to_vmem [thread:$0]  %s8, 1024, %s635, [#allocation9], 64, 64, 4
        $region28: #{tpu_custom_call.1} parent=11 // pred_fallthru
          _
        // Predicated region
        $region29: #{tpu_custom_call.1} parent=11 // pred_check
          %p641 = pneg %p275
        $region30: #{tpu_custom_call.1} parent=11 // pred_check_branch
          %643 = sbr.rel (%p641) target = $region32
        $region31: #{tpu_custom_call.1} parent=11 // pred_region
          %s645 = ssub.s32 1024, 1024
          %646 = vsyncadd [#allocation12], %s645
          %s647 = sshll.u32 [#allocation11], 4
          %s648 = int_to_ptr.vmem [resolvable:$true] %s647
          %653 = dma.hbm_to_vmem [thread:$0]  %s9, 1024, %s648, [#allocation12], 64, 64, 4
        $region32: #{tpu_custom_call.1} parent=11 // pred_fallthru
          _
        // Predicated region
        $region33: #{tpu_custom_call.1} parent=11 // pred_check
          %p654 = pneg %p296
        $region34: #{tpu_custom_call.1} parent=11 // pred_check_branch
          %656 = sbr.rel (%p654) target = $region36
        $region35: #{tpu_custom_call.1} parent=11 // pred_region
          %s658 = ssub.s32 1024, 1024
          %659 = vsyncadd [#allocation12], %s658
          %s660 = sshll.u32 [#allocation13], 4
          %s661 = int_to_ptr.vmem [resolvable:$true] %s660
          %666 = dma.hbm_to_vmem [thread:$0]  %s10, 1024, %s661, [#allocation12], 64, 64, 4
        $region36: #{tpu_custom_call.1} parent=11 // pred_fallthru
          _
        // Predicated region
        $region37: #{tpu_custom_call.1} parent=11 // pred_check
          %p667 = pneg %p317
        $region38: #{tpu_custom_call.1} parent=11 // pred_check_branch
          %669 = sbr.rel (%p667) target = $region40
        $region39: #{tpu_custom_call.1} parent=11 // pred_region
          %s671 = ssub.s32 1024, 1024
          %672 = vsyncadd [#allocation15], %s671
          %s673 = sshll.u32 [#allocation14], 4
          %s674 = int_to_ptr.vmem [resolvable:$true] %s673
          %679 = dma.hbm_to_vmem [thread:$0]  %s11, 1024, %s674, [#allocation15], 64, 64, 4
        $region40: #{tpu_custom_call.1} parent=11 // pred_fallthru
          _
        // Predicated region
        $region41: #{tpu_custom_call.1} parent=11 // pred_check
          %p680 = pneg %p338
        $region42: #{tpu_custom_call.1} parent=11 // pred_check_branch
          %682 = sbr.rel (%p680) target = $region44
        $region43: #{tpu_custom_call.1} parent=11 // pred_region
          %s684 = ssub.s32 1024, 1024
          %685 = vsyncadd [#allocation15], %s684
          %s686 = sshll.u32 [#allocation16], 4
          %s687 = int_to_ptr.vmem [resolvable:$true] %s686
          %692 = dma.hbm_to_vmem [thread:$0]  %s12, 1024, %s687, [#allocation15], 64, 64, 4
        $region44: #{tpu_custom_call.1} parent=11 // pred_fallthru
          _
        // Predicated region
        $region45: #{tpu_custom_call.1} parent=11 // pred_check
          %p693 = pneg %p359
        $region46: #{tpu_custom_call.1} parent=11 // pred_check_branch
          %695 = sbr.rel (%p693) target = $region48
        $region47: #{tpu_custom_call.1} parent=11 // pred_region
          _
        $region48: #{tpu_custom_call.1} parent=11 // pred_fallthru
          _
        // Predicated region
        $region49: #{tpu_custom_call.1} parent=11 // pred_check
          %p696 = pneg %p380
        $region50: #{tpu_custom_call.1} parent=11 // pred_check_branch
          %698 = sbr.rel (%p696) target = $region52
        $region51: #{tpu_custom_call.1} parent=11 // pred_region
          _
        $region52: #{tpu_custom_call.1} parent=11 // pred_fallthru
          _
        // Predicated region
        $region53: #{tpu_custom_call.1} parent=11 // pred_check
          %p699 = pneg %p401
        $region54: #{tpu_custom_call.1} parent=11 // pred_check_branch
          %701 = sbr.rel (%p699) target = $region56
        $region55: #{tpu_custom_call.1} parent=11 // pred_region
          _
        $region56: #{tpu_custom_call.1} parent=11 // pred_fallthru
          _
        // Predicated region
        $region57: #{tpu_custom_call.1} parent=11 // pred_check
          %p702 = pneg %p422
        $region58: #{tpu_custom_call.1} parent=11 // pred_check_branch
          %704 = sbr.rel (%p702) target = $region60
        $region59: #{tpu_custom_call.1} parent=11 // pred_region
          _
        $region60: #{tpu_custom_call.1} parent=11 // pred_fallthru
          _
        // Predicated region
        $region61: #{tpu_custom_call.1} parent=11 // pred_check
          %p705 = pneg %p443
        $region62: #{tpu_custom_call.1} parent=11 // pred_check_branch
          %707 = sbr.rel (%p705) target = $region64
        $region63: #{tpu_custom_call.1} parent=11 // pred_region
          %s709 = ssub.s32 2048, 2048
          %710 = vsyncadd [#allocation18], %s709
          %s711 = sshll.u32 [#allocation17], 4
          %s712 = int_to_ptr.vmem [resolvable:$true] %s711
          %717 = dma.hbm_to_vmem [thread:$0]  %s17, 2048, %s712, [#allocation18], 128, 128, 8
        $region64: #{tpu_custom_call.1} parent=11 // pred_fallthru
          _
        // Predicated region
        $region65: #{tpu_custom_call.1} parent=11 // pred_check
          %p718 = pneg %p464
        $region66: #{tpu_custom_call.1} parent=11 // pred_check_branch
          %720 = sbr.rel (%p718) target = $region68
        $region67: #{tpu_custom_call.1} parent=11 // pred_region
          _
        $region68: #{tpu_custom_call.1} parent=11 // pred_fallthru
          _
        // Predicated region
        $region69: #{tpu_custom_call.1} parent=11 // pred_check
          %p721 = pneg %p485
        $region70: #{tpu_custom_call.1} parent=11 // pred_check_branch
          %723 = sbr.rel (%p721) target = $region72
        $region71: #{tpu_custom_call.1} parent=11 // pred_region
          %s725 = ssub.s32 2048, 2048
          %726 = vsyncadd [#allocation18], %s725
          %s727 = sshll.u32 [#allocation19], 4
          %s728 = int_to_ptr.vmem [resolvable:$true] %s727
          %733 = dma.hbm_to_vmem [thread:$0]  %s19, 2048, %s728, [#allocation18], 64, 64, 4
        $region72: #{tpu_custom_call.1} parent=11 // pred_fallthru
          _
        // Predicated region
        $region73: #{tpu_custom_call.1} parent=11 // pred_check
          %p734 = pneg %p506
        $region74: #{tpu_custom_call.1} parent=11 // pred_check_branch
          %736 = sbr.rel (%p734) target = $region76
        $region75: #{tpu_custom_call.1} parent=11 // pred_region
          _
        $region76: #{tpu_custom_call.1} parent=11 // pred_fallthru
          _
        // Predicated region
        $region77: #{tpu_custom_call.1} parent=11 // pred_check
          %p737 = pneg %p527
        $region78: #{tpu_custom_call.1} parent=11 // pred_check_branch
          %739 = sbr.rel (%p737) target = $region80
        $region79: #{tpu_custom_call.1} parent=11 // pred_region
          _
        $region80: #{tpu_custom_call.1} parent=11 // pred_fallthru
          _
        // Predicated region
        $region81: #{tpu_custom_call.1} parent=11 // pred_check
          %p740 = pneg %p548
        $region82: #{tpu_custom_call.1} parent=11 // pred_check_branch
          %742 = sbr.rel (%p740) target = $region84
        $region83: #{tpu_custom_call.1} parent=11 // pred_region
          _
        $region84: #{tpu_custom_call.1} parent=11 // pred_fallthru
          _
      $region12: #{tpu_custom_call.1} parent=5 // pred_fallthru
        _
      %p743 = scmp.lt.s32.totalorder %s40, 2
      // Predicated region
      $region85: #{tpu_custom_call.1} parent=5 // pred_check
        %p744 = pneg %p743
      $region86: #{tpu_custom_call.1} parent=5 // pred_check_branch
        %746 = sbr.rel (%p744) target = $region88
      $region87: #{tpu_custom_call.1} parent=5 // pred_region
        // Predicated region
        $region89: #{tpu_custom_call.1} parent=87 // pred_check
          %p747 = pneg %p60
        $region90: #{tpu_custom_call.1} parent=87 // pred_check_branch
          %749 = sbr.rel (%p747) target = $region92
        $region91: #{tpu_custom_call.1} parent=87 // pred_region
          %p750 = scmp.lt.s32.totalorder %s40, 1
          %s751 = scalar_select %p750, %s40, 1
          %s752 = smul.addr %s751, 8
          %s753 = scalar_lea.vmem %s0, %s752
        $region92: #{tpu_custom_call.1} parent=87 // pred_fallthru
          _
        // Predicated region
        $region93: #{tpu_custom_call.1} parent=87 // pred_check
          %p754 = pneg %p86
        $region94: #{tpu_custom_call.1} parent=87 // pred_check_branch
          %756 = sbr.rel (%p754) target = $region96
        $region95: #{tpu_custom_call.1} parent=87 // pred_region
          %s757 = sand.u32 %s76, 1
          %s758 = scalar_lea.sflag [#allocation3], %s757
          %s759 = sand.u32 %s76, 1
          %s760 = smul.addr %s759, 16
          %s761 = scalar_lea.vmem [#allocation2], %s760
          %s763 = ssub.s32 256, 256
          %764 = vsyncadd %s758, %s763
          %s765 = smul.addr %s40, 2
          %s766 = smul.addr %s765, 128
          %s767 = scalar_lea.hbm %s1, %s766
          %s768 = sshll.u32 %s761, 4
          %s769 = int_to_ptr.vmem [resolvable:$true] %s768
          %774 = dma.hbm_to_vmem [thread:$0]  %s767, 256, %s769, %s758, 128, 128, 8
        $region96: #{tpu_custom_call.1} parent=87 // pred_fallthru
          _
        // Predicated region
        $region97: #{tpu_custom_call.1} parent=87 // pred_check
          %p775 = pneg %p112
        $region98: #{tpu_custom_call.1} parent=87 // pred_check_branch
          %777 = sbr.rel (%p775) target = $region100
        $region99: #{tpu_custom_call.1} parent=87 // pred_region
          %p778 = scmp.lt.s32.totalorder %s40, 1
          %s779 = scalar_select %p778, %s40, 1
          %s780 = scalar_lea.vmem %s2, %s779
        $region100: #{tpu_custom_call.1} parent=87 // pred_fallthru
          _
        // Predicated region
        $region101: #{tpu_custom_call.1} parent=87 // pred_check
          %p781 = pneg %p138
        $region102: #{tpu_custom_call.1} parent=87 // pred_check_branch
          %783 = sbr.rel (%p781) target = $region104
        $region103: #{tpu_custom_call.1} parent=87 // pred_region
          %p784 = scmp.lt.s32.totalorder %s40, 1
          %s785 = scalar_select %p784, %s40, 1
          %s786 = smul.addr %s785, 8
          %s787 = scalar_lea.vmem %s3, %s786
        $region104: #{tpu_custom_call.1} parent=87 // pred_fallthru
          _
        // Predicated region
        $region105: #{tpu_custom_call.1} parent=87 // pred_check
          %p788 = pneg %p164
        $region106: #{tpu_custom_call.1} parent=87 // pred_check_branch
          %790 = sbr.rel (%p788) target = $region108
        $region107: #{tpu_custom_call.1} parent=87 // pred_region
          %p791 = scmp.lt.s32.totalorder %s40, 1
          %s792 = scalar_select %p791, %s40, 1
          %s793 = scalar_lea.vmem %s4, %s792
        $region108: #{tpu_custom_call.1} parent=87 // pred_fallthru
          _
      $region88: #{tpu_custom_call.1} parent=5 // pred_fallthru
        _
      %p794 = scmp.le.s32.totalorder 1, %s40
      %p795 = scmp.lt.s32.totalorder %s40, 3
      %p796 = pnand %p794, %p795
      %p797 = pneg %p796
      // Predicated region
      $region109: #{tpu_custom_call.1} parent=5 // pred_check
        _
      $region110: #{tpu_custom_call.1} parent=5 // pred_check_branch
        %799 = sbr.rel (%p796) target = $region112
      $region111: #{tpu_custom_call.1} parent=5 // pred_region
        %s800 = ssub.s32 %s40, 1
        %s801 = sand.u32 %s79, 1
        %s802 = scalar_lea.sflag [#allocation3], %s801
        %s803 = sand.u32 %s79, 1
        %s804 = smul.addr %s803, 16
        %s805 = scalar_lea.vmem [#allocation2], %s804
        // Predicated region
        $region113: #{tpu_custom_call.1} parent=111 // pred_check
          %p806 = pneg %p92
        $region114: #{tpu_custom_call.1} parent=111 // pred_check_branch
          %808 = sbr.rel (%p806) target = $region116
        $region115: #{tpu_custom_call.1} parent=111 // pred_region
          %809 = dma.done %s802, 256
        $region116: #{tpu_custom_call.1} parent=111 // pred_fallthru
          _
        // Predicated region
        $region117: #{tpu_custom_call.1} parent=111 // pred_check
          %p810 = pneg %p191
        $region118: #{tpu_custom_call.1} parent=111 // pred_check_branch
          %812 = sbr.rel (%p810) target = $region120
        $region119: #{tpu_custom_call.1} parent=111 // pred_region
          %813 = dma.done [#allocation6], 1024
        $region120: #{tpu_custom_call.1} parent=111 // pred_fallthru
          _
        // Predicated region
        $region121: #{tpu_custom_call.1} parent=111 // pred_check
          %p814 = pneg %p212
        $region122: #{tpu_custom_call.1} parent=111 // pred_check_branch
          %816 = sbr.rel (%p814) target = $region124
        $region123: #{tpu_custom_call.1} parent=111 // pred_region
          %817 = dma.done [#allocation6], 1024
        $region124: #{tpu_custom_call.1} parent=111 // pred_fallthru
          _
        // Predicated region
        $region125: #{tpu_custom_call.1} parent=111 // pred_check
          %p818 = pneg %p233
        $region126: #{tpu_custom_call.1} parent=111 // pred_check_branch
          %820 = sbr.rel (%p818) target = $region128
        $region127: #{tpu_custom_call.1} parent=111 // pred_region
          %821 = dma.done [#allocation9], 1024
        $region128: #{tpu_custom_call.1} parent=111 // pred_fallthru
          _
        // Predicated region
        $region129: #{tpu_custom_call.1} parent=111 // pred_check
          %p822 = pneg %p254
        $region130: #{tpu_custom_call.1} parent=111 // pred_check_branch
          %824 = sbr.rel (%p822) target = $region132
        $region131: #{tpu_custom_call.1} parent=111 // pred_region
          %825 = dma.done [#allocation9], 1024
        $region132: #{tpu_custom_call.1} parent=111 // pred_fallthru
          _
        // Predicated region
        $region133: #{tpu_custom_call.1} parent=111 // pred_check
          %p826 = pneg %p275
        $region134: #{tpu_custom_call.1} parent=111 // pred_check_branch
          %828 = sbr.rel (%p826) target = $region136
        $region135: #{tpu_custom_call.1} parent=111 // pred_region
          %829 = dma.done [#allocation12], 1024
        $region136: #{tpu_custom_call.1} parent=111 // pred_fallthru
          _
        // Predicated region
        $region137: #{tpu_custom_call.1} parent=111 // pred_check
          %p830 = pneg %p296
        $region138: #{tpu_custom_call.1} parent=111 // pred_check_branch
          %832 = sbr.rel (%p830) target = $region140
        $region139: #{tpu_custom_call.1} parent=111 // pred_region
          %833 = dma.done [#allocation12], 1024
        $region140: #{tpu_custom_call.1} parent=111 // pred_fallthru
          _
        // Predicated region
        $region141: #{tpu_custom_call.1} parent=111 // pred_check
          %p834 = pneg %p317
        $region142: #{tpu_custom_call.1} parent=111 // pred_check_branch
          %836 = sbr.rel (%p834) target = $region144
        $region143: #{tpu_custom_call.1} parent=111 // pred_region
          %837 = dma.done [#allocation15], 1024
        $region144: #{tpu_custom_call.1} parent=111 // pred_fallthru
          _
        // Predicated region
        $region145: #{tpu_custom_call.1} parent=111 // pred_check
          %p838 = pneg %p338
        $region146: #{tpu_custom_call.1} parent=111 // pred_check_branch
          %840 = sbr.rel (%p838) target = $region148
        $region147: #{tpu_custom_call.1} parent=111 // pred_region
          %841 = dma.done [#allocation15], 1024
        $region148: #{tpu_custom_call.1} parent=111 // pred_fallthru
          _
        // Predicated region
        $region149: #{tpu_custom_call.1} parent=111 // pred_check
          %p842 = pneg %p443
        $region150: #{tpu_custom_call.1} parent=111 // pred_check_branch
          %844 = sbr.rel (%p842) target = $region152
        $region151: #{tpu_custom_call.1} parent=111 // pred_region
          %845 = dma.done [#allocation18], 2048
        $region152: #{tpu_custom_call.1} parent=111 // pred_fallthru
          _
        // Predicated region
        $region153: #{tpu_custom_call.1} parent=111 // pred_check
          %p846 = pneg %p485
        $region154: #{tpu_custom_call.1} parent=111 // pred_check_branch
          %848 = sbr.rel (%p846) target = $region156
        $region155: #{tpu_custom_call.1} parent=111 // pred_region
          %849 = dma.done [#allocation18], 2048
        $region156: #{tpu_custom_call.1} parent=111 // pred_fallthru
          _
        %p850 = scmp.lt.s32.totalorder %s45, 1
        %s851 = scalar_select %p850, %s45, 1
        %s852 = smul.addr %s851, 8
        %s853 = scalar_lea.vmem %s0, %s852
        %p854 = pneg %p66
        %p855 = pneg %p63
        %s856 = sand.u32 %s79, 1
        %s857 = scalar_lea.sflag [#allocation3], %s856
        %s858 = sand.u32 %s79, 1
        %s859 = smul.addr %s858, 16
        %s860 = scalar_lea.vmem [#allocation2], %s859
        %p861 = pneg %p92
        %p862 = pneg %p89
        %p863 = scmp.lt.s32.totalorder %s45, 1
        %s864 = scalar_select %p863, %s45, 1
        %s865 = scalar_lea.vmem %s2, %s864
        %p866 = pneg %p118
        %p867 = pneg %p115
        %p868 = scmp.lt.s32.totalorder %s45, 1
        %s869 = scalar_select %p868, %s45, 1
        %s870 = smul.addr %s869, 8
        %s871 = scalar_lea.vmem %s3, %s870
        %p872 = pneg %p144
        %p873 = pneg %p141
        %p874 = scmp.lt.s32.totalorder %s45, 1
        %s875 = scalar_select %p874, %s45, 1
        %s876 = scalar_lea.vmem %s4, %s875
        %p877 = pneg %p170
        %p878 = pneg %p167
        %p879 = pneg %p191
        %p880 = pneg %p188
        %p881 = pneg %p212
        %p882 = pneg %p209
        %p883 = pneg %p233
        %p884 = pneg %p230
        %p885 = pneg %p254
        %p886 = pneg %p251
        %p887 = pneg %p275
        %p888 = pneg %p272
        %p889 = pneg %p296
        %p890 = pneg %p293
        %p891 = pneg %p317
        %p892 = pneg %p314
        %p893 = pneg %p338
        %p894 = pneg %p335
        %p895 = pneg %p359
        %p896 = pneg %p356
        %p897 = pneg %p380
        %p898 = pneg %p377
        %p899 = pneg %p401
        %p900 = pneg %p398
        %p901 = pneg %p422
        %p902 = pneg %p419
        %p903 = pneg %p443
        %p904 = pneg %p440
        %p905 = pneg %p464
        %p906 = pneg %p461
        %p907 = pneg %p485
        %p908 = pneg %p482
        %p909 = pneg %p506
        %p910 = pneg %p503
        %p911 = pneg %p527
        %p912 = pneg %p524
        %p913 = pneg %p548
        %p914 = pneg %p545
        %p915 = pneg %p574
        %p916 = pneg %p571
        %s917 = sand.u32 %s561, 1
        %s918 = scalar_lea.sflag [#allocation4], %s917
        %s919 = sand.u32 %s561, 1
        %s920 = smul.addr %s919, 8
        %s921 = scalar_lea.vmem [#allocation20], %s920
        %p922 = scmp.lt.s32.totalorder %s45, 1
        %s923 = scalar_select %p922, %s45, 1
        %s924 = smul.addr %s923, 8
        %s925 = scalar_lea.vmem %s0, %s924
        %p926 = scmp.lt.s32.totalorder %s45, 1
        %s927 = scalar_select %p926, %s45, 1
        %s928 = scalar_lea.vmem %s2, %s927
        %p929 = scmp.lt.s32.totalorder %s45, 1
        %s930 = scalar_select %p929, %s45, 1
        %s931 = smul.addr %s930, 8
        %s932 = scalar_lea.vmem %s3, %s931
        %p933 = scmp.lt.s32.totalorder %s45, 1
        %s934 = scalar_select %p933, %s45, 1
        %s935 = scalar_lea.vmem %s4, %s934
        %v937 = vld [vmem:[%s925] sm:$0xff]
        %v938 = vld [vmem:[%s805] sm:$0xff]
        %v939 = vld [vmem:[%s805 + $0x8] sm:$0xff]
        %v940 = vld [vmem:[%s932] sm:$0xff]
        %vm941 = vcmp.gt.f32.partialorder %v940, 0.5
        %v942 = vld [vmem:[%s928] sm:$0x1]
        %vm943 = vcmp.gt.f32.partialorder %v942, 0.5
        %v944 = vld [vmem:[%s935] sm:$0x1]
        %vm945 = vcmp.gt.f32.partialorder %v944, 0.5
        %v946 = vlaneseq
        %v947 = vshrl.u32 %v946, 7
        %v948 = vlaneseq
        %v949 = vand.u32 %v948, 127
        %v950 = vsel %vm941, 1, 0
        %951 = vset.pattern.permute.xlu0 0
        %952 = vperm.xlu0 %951, %v950
        %v953 = vpop.permute.xlu0 %952
        %vm954 = vcmp.eq.s32.totalorder %v953, 1
        %v955 = vsel %vm943, 1, 0
        %v956 = vlaneseq
        %v957 = vshrl.u32 %v956, 7
        %v958 = vsub.s32 0, %v957
        %v959 = vrot.slane %v955, %v958
        %vm960 = vcmp.eq.s32.totalorder %v959, 1
        %vm961 = vmand %vm954, %vm960
        %vm962 = vcmp.ge.s32.totalorder %v947, %v949
        %vm963 = vmand %vm961, %vm962
        %v964 = vsel %vm963, 0.0, -50000.0
        %v965 = vsel %vm945, 1, 0
        %v966 = vlaneseq
        %v967 = vshrl.u32 %v966, 7
        %v968 = vsub.s32 0, %v967
        %v969 = vrot.slane %v965, %v968
        %vm970 = vcmp.eq.s32.totalorder %v969, 1
        %vm971 = vmand %vm954, %vm970
        %v972 = vsel %vm971, 0.0, -50000.0
        %v973 = vld [vmem:[#allocation5] sm:$0xf]
        %v974 = vld [vmem:[#allocation5 + $0x4] sm:$0xf]
        %v975 = vld [vmem:[#allocation5 + $0x8] sm:$0xf]
        %v976 = vld [vmem:[#allocation5 + $0xc] sm:$0xf]
        %v977 = vld [vmem:[#allocation5 + $0x10] sm:$0xf]
        %v978 = vld [vmem:[#allocation5 + $0x14] sm:$0xf]
        %v979 = vld [vmem:[#allocation5 + $0x18] sm:$0xf]
        %v980 = vld [vmem:[#allocation5 + $0x1c] sm:$0xf]
        %v981 = vld [vmem:[#allocation5 + $0x20] sm:$0xf]
        %v982 = vld [vmem:[#allocation5 + $0x24] sm:$0xf]
        %v983 = vld [vmem:[#allocation5 + $0x28] sm:$0xf]
        %v984 = vld [vmem:[#allocation5 + $0x2c] sm:$0xf]
        %v985 = vld [vmem:[#allocation5 + $0x30] sm:$0xf]
        %v986 = vld [vmem:[#allocation5 + $0x34] sm:$0xf]
        %v987 = vld [vmem:[#allocation5 + $0x38] sm:$0xf]
        %v988 = vld [vmem:[#allocation5 + $0x3c] sm:$0xf]
        %v989 = vld [vmem:[#allocation7] sm:$0xf]
        %v990 = vld [vmem:[#allocation7 + $0x4] sm:$0xf]
        %v991 = vld [vmem:[#allocation7 + $0x8] sm:$0xf]
        %v992 = vld [vmem:[#allocation7 + $0xc] sm:$0xf]
        %v993 = vld [vmem:[#allocation7 + $0x10] sm:$0xf]
        %v994 = vld [vmem:[#allocation7 + $0x14] sm:$0xf]
        %v995 = vld [vmem:[#allocation7 + $0x18] sm:$0xf]
        %v996 = vld [vmem:[#allocation7 + $0x1c] sm:$0xf]
        %v997 = vld [vmem:[#allocation7 + $0x20] sm:$0xf]
        %v998 = vld [vmem:[#allocation7 + $0x24] sm:$0xf]
        %v999 = vld [vmem:[#allocation7 + $0x28] sm:$0xf]
        %v1000 = vld [vmem:[#allocation7 + $0x2c] sm:$0xf]
        %v1001 = vld [vmem:[#allocation7 + $0x30] sm:$0xf]
        %v1002 = vld [vmem:[#allocation7 + $0x34] sm:$0xf]
        %v1003 = vld [vmem:[#allocation7 + $0x38] sm:$0xf]
        %v1004 = vld [vmem:[#allocation7 + $0x3c] sm:$0xf]
        %v1005 = vld [vmem:[#allocation8] sm:$0xf]
        %v1006 = vld [vmem:[#allocation8 + $0x4] sm:$0xf]
        %v1007 = vld [vmem:[#allocation8 + $0x8] sm:$0xf]
        %v1008 = vld [vmem:[#allocation8 + $0xc] sm:$0xf]
        %v1009 = vld [vmem:[#allocation8 + $0x10] sm:$0xf]
        %v1010 = vld [vmem:[#allocation8 + $0x14] sm:$0xf]
        %v1011 = vld [vmem:[#allocation8 + $0x18] sm:$0xf]
        %v1012 = vld [vmem:[#allocation8 + $0x1c] sm:$0xf]
        %v1013 = vld [vmem:[#allocation8 + $0x20] sm:$0xf]
        %v1014 = vld [vmem:[#allocation8 + $0x24] sm:$0xf]
        %v1015 = vld [vmem:[#allocation8 + $0x28] sm:$0xf]
        %v1016 = vld [vmem:[#allocation8 + $0x2c] sm:$0xf]
        %v1017 = vld [vmem:[#allocation8 + $0x30] sm:$0xf]
        %v1018 = vld [vmem:[#allocation8 + $0x34] sm:$0xf]
        %v1019 = vld [vmem:[#allocation8 + $0x38] sm:$0xf]
        %v1020 = vld [vmem:[#allocation8 + $0x3c] sm:$0xf]
        %v1021 = vld [vmem:[#allocation10] sm:$0xf]
        %v1022 = vld [vmem:[#allocation10 + $0x4] sm:$0xf]
        %v1023 = vld [vmem:[#allocation10 + $0x8] sm:$0xf]
        %v1024 = vld [vmem:[#allocation10 + $0xc] sm:$0xf]
        %v1025 = vld [vmem:[#allocation10 + $0x10] sm:$0xf]
        %v1026 = vld [vmem:[#allocation10 + $0x14] sm:$0xf]
        %v1027 = vld [vmem:[#allocation10 + $0x18] sm:$0xf]
        %v1028 = vld [vmem:[#allocation10 + $0x1c] sm:$0xf]
        %v1029 = vld [vmem:[#allocation10 + $0x20] sm:$0xf]
        %v1030 = vld [vmem:[#allocation10 + $0x24] sm:$0xf]
        %v1031 = vld [vmem:[#allocation10 + $0x28] sm:$0xf]
        %v1032 = vld [vmem:[#allocation10 + $0x2c] sm:$0xf]
        %v1033 = vld [vmem:[#allocation10 + $0x30] sm:$0xf]
        %v1034 = vld [vmem:[#allocation10 + $0x34] sm:$0xf]
        %v1035 = vld [vmem:[#allocation10 + $0x38] sm:$0xf]
        %v1036 = vld [vmem:[#allocation10 + $0x3c] sm:$0xf]
        %v1037 = vpack.c.bf16 %v937, %v937
        %v1054 = vunpack.c.l.b16 %v973
        %v1055 = vunpack.c.l.b16 %v974
        %v1056 = vunpack.c.l.b16 %v975
        %v1057 = vunpack.c.l.b16 %v976
        %v1058 = vunpack.c.l.b16 %v977
        %v1059 = vunpack.c.l.b16 %v978
        %v1060 = vunpack.c.l.b16 %v979
        %v1061 = vunpack.c.l.b16 %v980
        %v1062 = vunpack.c.l.b16 %v981
        %v1063 = vunpack.c.l.b16 %v982
        %v1064 = vunpack.c.l.b16 %v983
        %v1065 = vunpack.c.l.b16 %v984
        %v1066 = vunpack.c.l.b16 %v985
        %v1067 = vunpack.c.l.b16 %v986
        %v1068 = vunpack.c.l.b16 %v987
        %v1069 = vunpack.c.l.b16 %v988
        %v1070 = vpack.c.b16 %v1055, %v1054
        %v1071 = vpack.c.b16 %v1057, %v1056
        %v1072 = vpack.c.b16 %v1059, %v1058
        %v1073 = vpack.c.b16 %v1061, %v1060
        %v1074 = vpack.c.b16 %v1063, %v1062
        %v1075 = vpack.c.b16 %v1065, %v1064
        %v1076 = vpack.c.b16 %v1067, %v1066
        %v1077 = vpack.c.b16 %v1069, %v1068
        %1086 = vmatprep.subr.bf16.mxu0 0
        %1087 = vmatpush1.bf16.msra.mxu0 %v1077
        %1088 = vmatprep.subr.bf16.mxu0 0
        %1089 = vmatpush1.bf16.msra.mxu0 %v1076
        %1090 = vmatprep.subr.bf16.mxu0 0
        %1091 = vmatpush1.bf16.msra.mxu0 %v1075
        %1092 = vmatprep.subr.bf16.mxu0 0
        %1093 = vmatpush1.bf16.msra.mxu0 %v1074
        %1094 = vmatprep.subr.bf16.mxu0 0
        %1095 = vmatpush1.bf16.msra.mxu0 %v1073
        %1096 = vmatprep.subr.bf16.mxu0 0
        %1097 = vmatpush1.bf16.msra.mxu0 %v1072
        %1098 = vmatprep.subr.bf16.mxu0 0
        %1099 = vmatpush1.bf16.msra.mxu0 %v1071
        %1100 = vmatprep.subr.bf16.mxu0 0
        %1101 = vmatpush1.bf16.msra.mxu0 %v1070
        %1102 = vmatprep.subr.bf16.mxu0 0
        %1103 = vmatpush2.bf16.msra.mxu0 0
        %1104 = vmatprep.subr.bf16.mxu0 0
        %1105 = vmatpush2.bf16.msra.mxu0 0
        %1106 = vmatprep.subr.bf16.mxu0 0
        %1107 = vmatpush2.bf16.msra.mxu0 0
        %1108 = vmatprep.subr.bf16.mxu0 0
        %1109 = vmatpush2.bf16.msra.mxu0 0
        %1110 = vmatprep.subr.bf16.mxu0 0
        %1111 = vmatpush2.bf16.msra.mxu0 0
        %1112 = vmatprep.subr.bf16.mxu0 0
        %1113 = vmatpush2.bf16.msra.mxu0 0
        %1114 = vmatprep.subr.bf16.mxu0 0
        %1115 = vmatpush2.bf16.msra.mxu0 0
        %1116 = vmatprep.subr.bf16.mxu0 0
        %1117 = vmatpush2.bf16.msra.mxu0 0
        %1118 = vmatprep.mubr.bf16.mxu0 0
        %1119 = vmatmul.mubr.bf16.gmra.mxu0 %v1037
        %v1120 = vpop.f32.mrf.mxu0
        %v1121 = vadd.f32 0.0, %v1120
        %v1122 = vpop.f32.mrf.mxu0
        %v1123 = vpop.f32.mrf.mxu0
        %v1124 = vpop.f32.mrf.mxu0
        %1125 = vdwg.mxu0
        %v1142 = vunpack.c.l.b16 %v989
        %v1143 = vunpack.c.l.b16 %v990
        %v1144 = vunpack.c.l.b16 %v991
        %v1145 = vunpack.c.l.b16 %v992
        %v1146 = vunpack.c.l.b16 %v993
        %v1147 = vunpack.c.l.b16 %v994
        %v1148 = vunpack.c.l.b16 %v995
        %v1149 = vunpack.c.l.b16 %v996
        %v1150 = vunpack.c.l.b16 %v997
        %v1151 = vunpack.c.l.b16 %v998
        %v1152 = vunpack.c.l.b16 %v999
        %v1153 = vunpack.c.l.b16 %v1000
        %v1154 = vunpack.c.l.b16 %v1001
        %v1155 = vunpack.c.l.b16 %v1002
        %v1156 = vunpack.c.l.b16 %v1003
        %v1157 = vunpack.c.l.b16 %v1004
        %v1158 = vpack.c.b16 %v1143, %v1142
        %v1159 = vpack.c.b16 %v1145, %v1144
        %v1160 = vpack.c.b16 %v1147, %v1146
        %v1161 = vpack.c.b16 %v1149, %v1148
        %v1162 = vpack.c.b16 %v1151, %v1150
        %v1163 = vpack.c.b16 %v1153, %v1152
        %v1164 = vpack.c.b16 %v1155, %v1154
        %v1165 = vpack.c.b16 %v1157, %v1156
        %1174 = vmatprep.subr.bf16.mxu0 0
        %1175 = vmatpush1.bf16.msra.mxu0 %v1165
        %1176 = vmatprep.subr.bf16.mxu0 0
        %1177 = vmatpush1.bf16.msra.mxu0 %v1164
        %1178 = vmatprep.subr.bf16.mxu0 0
        %1179 = vmatpush1.bf16.msra.mxu0 %v1163
        %1180 = vmatprep.subr.bf16.mxu0 0
        %1181 = vmatpush1.bf16.msra.mxu0 %v1162
        %1182 = vmatprep.subr.bf16.mxu0 0
        %1183 = vmatpush1.bf16.msra.mxu0 %v1161
        %1184 = vmatprep.subr.bf16.mxu0 0
        %1185 = vmatpush1.bf16.msra.mxu0 %v1160
        %1186 = vmatprep.subr.bf16.mxu0 0
        %1187 = vmatpush1.bf16.msra.mxu0 %v1159
        %1188 = vmatprep.subr.bf16.mxu0 0
        %1189 = vmatpush1.bf16.msra.mxu0 %v1158
        %1190 = vmatprep.subr.bf16.mxu0 0
        %1191 = vmatpush2.bf16.msra.mxu0 0
        %1192 = vmatprep.subr.bf16.mxu0 0
        %1193 = vmatpush2.bf16.msra.mxu0 0
        %1194 = vmatprep.subr.bf16.mxu0 0
        %1195 = vmatpush2.bf16.msra.mxu0 0
        %1196 = vmatprep.subr.bf16.mxu0 0
        %1197 = vmatpush2.bf16.msra.mxu0 0
        %1198 = vmatprep.subr.bf16.mxu0 0
        %1199 = vmatpush2.bf16.msra.mxu0 0
        %1200 = vmatprep.subr.bf16.mxu0 0
        %1201 = vmatpush2.bf16.msra.mxu0 0
        %1202 = vmatprep.subr.bf16.mxu0 0
        %1203 = vmatpush2.bf16.msra.mxu0 0
        %1204 = vmatprep.subr.bf16.mxu0 0
        %1205 = vmatpush2.bf16.msra.mxu0 0
        %1206 = vmatprep.mubr.bf16.mxu0 0
        %1207 = vmatmul.mubr.bf16.gmra.mxu0 %v1037
        %v1208 = vpop.f32.mrf.mxu0
        %v1209 = vadd.f32 0.0, %v1208
        %v1210 = vpop.f32.mrf.mxu0
        %v1211 = vpop.f32.mrf.mxu0
        %v1212 = vpop.f32.mrf.mxu0
        %1213 = vdwg.mxu0
        %v1230 = vunpack.c.l.b16 %v1005
        %v1231 = vunpack.c.l.b16 %v1006
        %v1232 = vunpack.c.l.b16 %v1007
        %v1233 = vunpack.c.l.b16 %v1008
        %v1234 = vunpack.c.l.b16 %v1009
        %v1235 = vunpack.c.l.b16 %v1010
        %v1236 = vunpack.c.l.b16 %v1011
        %v1237 = vunpack.c.l.b16 %v1012
        %v1238 = vunpack.c.l.b16 %v1013
        %v1239 = vunpack.c.l.b16 %v1014
        %v1240 = vunpack.c.l.b16 %v1015
        %v1241 = vunpack.c.l.b16 %v1016
        %v1242 = vunpack.c.l.b16 %v1017
        %v1243 = vunpack.c.l.b16 %v1018
        %v1244 = vunpack.c.l.b16 %v1019
        %v1245 = vunpack.c.l.b16 %v1020
        %v1246 = vpack.c.b16 %v1231, %v1230
        %v1247 = vpack.c.b16 %v1233, %v1232
        %v1248 = vpack.c.b16 %v1235, %v1234
        %v1249 = vpack.c.b16 %v1237, %v1236
        %v1250 = vpack.c.b16 %v1239, %v1238
        %v1251 = vpack.c.b16 %v1241, %v1240
        %v1252 = vpack.c.b16 %v1243, %v1242
        %v1253 = vpack.c.b16 %v1245, %v1244
        %1262 = vmatprep.subr.bf16.mxu0 0
        %1263 = vmatpush1.bf16.msra.mxu0 %v1253
        %1264 = vmatprep.subr.bf16.mxu0 0
        %1265 = vmatpush1.bf16.msra.mxu0 %v1252
        %1266 = vmatprep.subr.bf16.mxu0 0
        %1267 = vmatpush1.bf16.msra.mxu0 %v1251
        %1268 = vmatprep.subr.bf16.mxu0 0
        %1269 = vmatpush1.bf16.msra.mxu0 %v1250
        %1270 = vmatprep.subr.bf16.mxu0 0
        %1271 = vmatpush1.bf16.msra.mxu0 %v1249
        %1272 = vmatprep.subr.bf16.mxu0 0
        %1273 = vmatpush1.bf16.msra.mxu0 %v1248
        %1274 = vmatprep.subr.bf16.mxu0 0
        %1275 = vmatpush1.bf16.msra.mxu0 %v1247
        %1276 = vmatprep.subr.bf16.mxu0 0
        %1277 = vmatpush1.bf16.msra.mxu0 %v1246
        %1278 = vmatprep.subr.bf16.mxu0 0
        %1279 = vmatpush2.bf16.msra.mxu0 0
        %1280 = vmatprep.subr.bf16.mxu0 0
        %1281 = vmatpush2.bf16.msra.mxu0 0
        %1282 = vmatprep.subr.bf16.mxu0 0
        %1283 = vmatpush2.bf16.msra.mxu0 0
        %1284 = vmatprep.subr.bf16.mxu0 0
        %1285 = vmatpush2.bf16.msra.mxu0 0
        %1286 = vmatprep.subr.bf16.mxu0 0
        %1287 = vmatpush2.bf16.msra.mxu0 0
        %1288 = vmatprep.subr.bf16.mxu0 0
        %1289 = vmatpush2.bf16.msra.mxu0 0
        %1290 = vmatprep.subr.bf16.mxu0 0
        %1291 = vmatpush2.bf16.msra.mxu0 0
        %1292 = vmatprep.subr.bf16.mxu0 0
        %1293 = vmatpush2.bf16.msra.mxu0 0
        %1294 = vmatprep.mubr.bf16.mxu0 0
        %1295 = vmatmul.mubr.bf16.gmra.mxu0 %v1037
        %v1296 = vpop.f32.mrf.mxu0
        %v1297 = vadd.f32 0.0, %v1296
        %v1298 = vpop.f32.mrf.mxu0
        %v1299 = vpop.f32.mrf.mxu0
        %v1300 = vpop.f32.mrf.mxu0
        %1301 = vdwg.mxu0
        %1303 = vrot.lane.b32.xlu0 %v1121, 96
        %v1304 = vpop.permute.xlu0 %1303
        %1306 = vrot.lane.b32.xlu0 %v1121, 64
        %v1307 = vpop.permute.xlu0 %1306
        %1309 = vrot.lane.b32.xlu0 %v1121, 32
        %v1310 = vpop.permute.xlu0 %1309
        %v1312 = vcombine.low %v1121, %v1307
        %v1313 = vcombine.high %v1121, %v1307
        %v1315 = vunpack.c.l.s4 1983009808
        %v1316 = vunpack.c.0.s8 %v1315
        %v1317 = vlaneseq
        %v1318 = vshrl.u32 %v1317, 7
        %v1319 = vsub.s32 %v1316, %v1318
        %v1320 = vrot.slane %v1312, %v1319
        %v1322 = vunpack.c.l.s4 1983009808
        %v1323 = vunpack.c.0.s8 %v1322
        %v1324 = vlaneseq
        %v1325 = vshrl.u32 %v1324, 7
        %v1326 = vsub.s32 %v1323, %v1325
        %v1327 = vrot.slane %v1313, %v1326
        %v1328 = vcombine.low %v1304, %v1310
        %v1329 = vcombine.high %v1304, %v1310
        %v1331 = vunpack.c.l.s4 1983009808
        %v1332 = vunpack.c.0.s8 %v1331
        %v1333 = vlaneseq
        %v1334 = vshrl.u32 %v1333, 7
        %v1335 = vsub.s32 %v1332, %v1334
        %v1336 = vrot.slane %v1328, %v1335
        %v1338 = vunpack.c.l.s4 1983009808
        %v1339 = vunpack.c.0.s8 %v1338
        %v1340 = vlaneseq
        %v1341 = vshrl.u32 %v1340, 7
        %v1342 = vsub.s32 %v1339, %v1341
        %v1343 = vrot.slane %v1329, %v1342
        %v1344 = vcombine.low %v1320, %v1336
        %v1345 = vcombine.high %v1320, %v1336
        %v1347 = vunpack.c.l.s4 1934713408
        %v1348 = vunpack.c.0.s8 %v1347
        %v1349 = vlaneseq
        %v1350 = vshrl.u32 %v1349, 7
        %v1351 = vsub.s32 %v1348, %v1350
        %v1352 = vrot.slane %v1344, %v1351
        %v1354 = vunpack.c.l.s4 1934713408
        %v1355 = vunpack.c.0.s8 %v1354
        %v1356 = vlaneseq
        %v1357 = vshrl.u32 %v1356, 7
        %v1358 = vsub.s32 %v1355, %v1357
        %v1359 = vrot.slane %v1345, %v1358
        %v1360 = vcombine.low %v1327, %v1343
        %v1361 = vcombine.high %v1327, %v1343
        %v1363 = vunpack.c.l.s4 1934713408
        %v1364 = vunpack.c.0.s8 %v1363
        %v1365 = vlaneseq
        %v1366 = vshrl.u32 %v1365, 7
        %v1367 = vsub.s32 %v1364, %v1366
        %v1368 = vrot.slane %v1360, %v1367
        %v1370 = vunpack.c.l.s4 1934713408
        %v1371 = vunpack.c.0.s8 %v1370
        %v1372 = vlaneseq
        %v1373 = vshrl.u32 %v1372, 7
        %v1374 = vsub.s32 %v1371, %v1373
        %v1375 = vrot.slane %v1361, %v1374
        %v1376 = vcombine.high %v1352, 0.0
        %v1377 = vcombine.high %v1359, 0.0
        %v1378 = vcombine.high %v1368, 0.0
        %v1379 = vcombine.high %v1375, 0.0
        %v1380 = vpack.c.bf16 %v1352, %v1352
        %v1381 = vpack.c.bf16 %v1376, %v1376
        %v1382 = vpack.c.bf16 %v1359, %v1359
        %v1383 = vpack.c.bf16 %v1377, %v1377
        %v1384 = vpack.c.bf16 %v1368, %v1368
        %v1385 = vpack.c.bf16 %v1378, %v1378
        %v1386 = vpack.c.bf16 %v1375, %v1375
        %v1387 = vpack.c.bf16 %v1379, %v1379
        %1389 = vrot.lane.b32.xlu0 %v1209, 96
        %v1390 = vpop.permute.xlu0 %1389
        %1392 = vrot.lane.b32.xlu0 %v1209, 64
        %v1393 = vpop.permute.xlu0 %1392
        %1395 = vrot.lane.b32.xlu0 %v1209, 32
        %v1396 = vpop.permute.xlu0 %1395
        %v1398 = vcombine.low %v1209, %v1393
        %v1399 = vcombine.high %v1209, %v1393
        %v1401 = vunpack.c.l.s4 1983009808
        %v1402 = vunpack.c.0.s8 %v1401
        %v1403 = vlaneseq
        %v1404 = vshrl.u32 %v1403, 7
        %v1405 = vsub.s32 %v1402, %v1404
        %v1406 = vrot.slane %v1398, %v1405
        %v1408 = vunpack.c.l.s4 1983009808
        %v1409 = vunpack.c.0.s8 %v1408
        %v1410 = vlaneseq
        %v1411 = vshrl.u32 %v1410, 7
        %v1412 = vsub.s32 %v1409, %v1411
        %v1413 = vrot.slane %v1399, %v1412
        %v1414 = vcombine.low %v1390, %v1396
        %v1415 = vcombine.high %v1390, %v1396
        %v1417 = vunpack.c.l.s4 1983009808
        %v1418 = vunpack.c.0.s8 %v1417
        %v1419 = vlaneseq
        %v1420 = vshrl.u32 %v1419, 7
        %v1421 = vsub.s32 %v1418, %v1420
        %v1422 = vrot.slane %v1414, %v1421
        %v1424 = vunpack.c.l.s4 1983009808
        %v1425 = vunpack.c.0.s8 %v1424
        %v1426 = vlaneseq
        %v1427 = vshrl.u32 %v1426, 7
        %v1428 = vsub.s32 %v1425, %v1427
        %v1429 = vrot.slane %v1415, %v1428
        %v1430 = vcombine.low %v1406, %v1422
        %v1431 = vcombine.high %v1406, %v1422
        %v1433 = vunpack.c.l.s4 1934713408
        %v1434 = vunpack.c.0.s8 %v1433
        %v1435 = vlaneseq
        %v1436 = vshrl.u32 %v1435, 7
        %v1437 = vsub.s32 %v1434, %v1436
        %v1438 = vrot.slane %v1430, %v1437
        %v1440 = vunpack.c.l.s4 1934713408
        %v1441 = vunpack.c.0.s8 %v1440
        %v1442 = vlaneseq
        %v1443 = vshrl.u32 %v1442, 7
        %v1444 = vsub.s32 %v1441, %v1443
        %v1445 = vrot.slane %v1431, %v1444
        %v1446 = vcombine.low %v1413, %v1429
        %v1447 = vcombine.high %v1413, %v1429
        %v1449 = vunpack.c.l.s4 1934713408
        %v1450 = vunpack.c.0.s8 %v1449
        %v1451 = vlaneseq
        %v1452 = vshrl.u32 %v1451, 7
        %v1453 = vsub.s32 %v1450, %v1452
        %v1454 = vrot.slane %v1446, %v1453
        %v1456 = vunpack.c.l.s4 1934713408
        %v1457 = vunpack.c.0.s8 %v1456
        %v1458 = vlaneseq
        %v1459 = vshrl.u32 %v1458, 7
        %v1460 = vsub.s32 %v1457, %v1459
        %v1461 = vrot.slane %v1447, %v1460
        %v1462 = vcombine.high %v1438, 0.0
        %v1463 = vcombine.high %v1445, 0.0
        %v1464 = vcombine.high %v1454, 0.0
        %v1465 = vcombine.high %v1461, 0.0
        %v1466 = vpack.c.bf16 %v1438, %v1438
        %v1467 = vpack.c.bf16 %v1462, %v1462
        %v1468 = vpack.c.bf16 %v1445, %v1445
        %v1469 = vpack.c.bf16 %v1463, %v1463
        %v1470 = vpack.c.bf16 %v1454, %v1454
        %v1471 = vpack.c.bf16 %v1464, %v1464
        %v1472 = vpack.c.bf16 %v1461, %v1461
        %v1473 = vpack.c.bf16 %v1465, %v1465
        %1475 = vrot.lane.b32.xlu0 %v1297, 96
        %v1476 = vpop.permute.xlu0 %1475
        %1478 = vrot.lane.b32.xlu0 %v1297, 64
        %v1479 = vpop.permute.xlu0 %1478
        %1481 = vrot.lane.b32.xlu0 %v1297, 32
        %v1482 = vpop.permute.xlu0 %1481
        %v1484 = vcombine.low %v1297, %v1479
        %v1485 = vcombine.high %v1297, %v1479
        %v1487 = vunpack.c.l.s4 1983009808
        %v1488 = vunpack.c.0.s8 %v1487
        %v1489 = vlaneseq
        %v1490 = vshrl.u32 %v1489, 7
        %v1491 = vsub.s32 %v1488, %v1490
        %v1492 = vrot.slane %v1484, %v1491
        %v1494 = vunpack.c.l.s4 1983009808
        %v1495 = vunpack.c.0.s8 %v1494
        %v1496 = vlaneseq
        %v1497 = vshrl.u32 %v1496, 7
        %v1498 = vsub.s32 %v1495, %v1497
        %v1499 = vrot.slane %v1485, %v1498
        %v1500 = vcombine.low %v1476, %v1482
        %v1501 = vcombine.high %v1476, %v1482
        %v1503 = vunpack.c.l.s4 1983009808
        %v1504 = vunpack.c.0.s8 %v1503
        %v1505 = vlaneseq
        %v1506 = vshrl.u32 %v1505, 7
        %v1507 = vsub.s32 %v1504, %v1506
        %v1508 = vrot.slane %v1500, %v1507
        %v1510 = vunpack.c.l.s4 1983009808
        %v1511 = vunpack.c.0.s8 %v1510
        %v1512 = vlaneseq
        %v1513 = vshrl.u32 %v1512, 7
        %v1514 = vsub.s32 %v1511, %v1513
        %v1515 = vrot.slane %v1501, %v1514
        %v1516 = vcombine.low %v1492, %v1508
        %v1517 = vcombine.high %v1492, %v1508
        %v1519 = vunpack.c.l.s4 1934713408
        %v1520 = vunpack.c.0.s8 %v1519
        %v1521 = vlaneseq
        %v1522 = vshrl.u32 %v1521, 7
        %v1523 = vsub.s32 %v1520, %v1522
        %v1524 = vrot.slane %v1516, %v1523
        %v1526 = vunpack.c.l.s4 1934713408
        %v1527 = vunpack.c.0.s8 %v1526
        %v1528 = vlaneseq
        %v1529 = vshrl.u32 %v1528, 7
        %v1530 = vsub.s32 %v1527, %v1529
        %v1531 = vrot.slane %v1517, %v1530
        %v1532 = vcombine.low %v1499, %v1515
        %v1533 = vcombine.high %v1499, %v1515
        %v1535 = vunpack.c.l.s4 1934713408
        %v1536 = vunpack.c.0.s8 %v1535
        %v1537 = vlaneseq
        %v1538 = vshrl.u32 %v1537, 7
        %v1539 = vsub.s32 %v1536, %v1538
        %v1540 = vrot.slane %v1532, %v1539
        %v1542 = vunpack.c.l.s4 1934713408
        %v1543 = vunpack.c.0.s8 %v1542
        %v1544 = vlaneseq
        %v1545 = vshrl.u32 %v1544, 7
        %v1546 = vsub.s32 %v1543, %v1545
        %v1547 = vrot.slane %v1533, %v1546
        %v1548 = vcombine.high %v1524, 0.0
        %v1549 = vcombine.high %v1531, 0.0
        %v1550 = vcombine.high %v1540, 0.0
        %v1551 = vcombine.high %v1547, 0.0
        %v1552 = vpack.c.bf16 %v1524, %v1524
        %v1553 = vpack.c.bf16 %v1548, %v1548
        %v1554 = vpack.c.bf16 %v1531, %v1531
        %v1555 = vpack.c.bf16 %v1549, %v1549
        %v1556 = vpack.c.bf16 %v1540, %v1540
        %v1557 = vpack.c.bf16 %v1550, %v1550
        %v1558 = vpack.c.bf16 %v1547, %v1547
        %v1559 = vpack.c.bf16 %v1551, %v1551
        %v1560 = vcombine.low %v1380, %v1384
        %v1562 = vunpack.c.l.s4 1983009808
        %v1563 = vunpack.c.0.s8 %v1562
        %v1564 = vlaneseq
        %v1565 = vshrl.u32 %v1564, 7
        %v1566 = vsub.s32 %v1563, %v1565
        %v1567 = vrot.slane %v1560, %v1566
        %v1568 = vcombine.low %v1382, %v1386
        %v1570 = vunpack.c.l.s4 1983009808
        %v1571 = vunpack.c.0.s8 %v1570
        %v1572 = vlaneseq
        %v1573 = vshrl.u32 %v1572, 7
        %v1574 = vsub.s32 %v1571, %v1573
        %v1575 = vrot.slane %v1568, %v1574
        %v1576 = vcombine.low %v1567, %v1575
        %v1578 = vunpack.c.l.s4 1934713408
        %v1579 = vunpack.c.0.s8 %v1578
        %v1580 = vlaneseq
        %v1581 = vshrl.u32 %v1580, 7
        %v1582 = vsub.s32 %v1579, %v1581
        %v1583 = vrot.slane %v1576, %v1582
        %v1584 = vcombine.high %v1583, 0
        %v1585 = vcombine.low %v1381, %v1385
        %v1587 = vunpack.c.l.s4 1983009808
        %v1588 = vunpack.c.0.s8 %v1587
        %v1589 = vlaneseq
        %v1590 = vshrl.u32 %v1589, 7
        %v1591 = vsub.s32 %v1588, %v1590
        %v1592 = vrot.slane %v1585, %v1591
        %v1593 = vcombine.low %v1383, %v1387
        %v1595 = vunpack.c.l.s4 1983009808
        %v1596 = vunpack.c.0.s8 %v1595
        %v1597 = vlaneseq
        %v1598 = vshrl.u32 %v1597, 7
        %v1599 = vsub.s32 %v1596, %v1598
        %v1600 = vrot.slane %v1593, %v1599
        %v1601 = vcombine.low %v1592, %v1600
        %v1603 = vunpack.c.l.s4 1934713408
        %v1604 = vunpack.c.0.s8 %v1603
        %v1605 = vlaneseq
        %v1606 = vshrl.u32 %v1605, 7
        %v1607 = vsub.s32 %v1604, %v1606
        %v1608 = vrot.slane %v1601, %v1607
        %v1609 = vcombine.high %v1608, 0
        %v1612 = vpack.i.b16 %v1608, %v1583
        %v1613 = vshrl.u32 %v1583, 16
        %v1614 = vshrl.u32 %v1608, 16
        %v1615 = vpack.i.b16 %v1614, %v1613
        %v1618 = vpack.i.b16 %v1609, %v1584
        %v1619 = vshrl.u32 %v1584, 16
        %v1620 = vshrl.u32 %v1609, 16
        %v1621 = vpack.i.b16 %v1620, %v1619
        %1622 = vxpose.xlu0.c.b16.start [1/8] %v1466, 128
        %1623 = vxpose.xlu0.c.b16.cont [2/8] 0, 128
        %1624 = vxpose.xlu0.c.b16.cont [3/8] 0, 128
        %1625 = vxpose.xlu0.c.b16.cont [4/8] 0, 128
        %1626 = vxpose.xlu0.c.b16.cont [5/8] 0, 128
        %1627 = vxpose.xlu0.c.b16.cont [6/8] 0, 128
        %1628 = vxpose.xlu0.c.b16.cont [7/8] 0, 128
        %1629 = vxpose.xlu0.c.b16.end [8/8] 0, 128
        %v1630 = vpop.trf.xlu0
        %v1631 = vpop.trf.xlu0
        %v1632 = vpop.trf.xlu0
        %v1633 = vpop.trf.xlu0
        %v1634 = vpop.trf.xlu0
        %v1635 = vpop.trf.xlu0
        %v1636 = vpop.trf.xlu0
        %v1637 = vpop.trf.xlu0
        %1638 = vxpose.xlu0.c.b16.start [1/8] %v1467, 128
        %1639 = vxpose.xlu0.c.b16.cont [2/8] 0, 128
        %1640 = vxpose.xlu0.c.b16.cont [3/8] 0, 128
        %1641 = vxpose.xlu0.c.b16.cont [4/8] 0, 128
        %1642 = vxpose.xlu0.c.b16.cont [5/8] 0, 128
        %1643 = vxpose.xlu0.c.b16.cont [6/8] 0, 128
        %1644 = vxpose.xlu0.c.b16.cont [7/8] 0, 128
        %1645 = vxpose.xlu0.c.b16.end [8/8] 0, 128
        %v1646 = vpop.trf.xlu0
        %v1647 = vpop.trf.xlu0
        %v1648 = vpop.trf.xlu0
        %v1649 = vpop.trf.xlu0
        %v1650 = vpop.trf.xlu0
        %v1651 = vpop.trf.xlu0
        %v1652 = vpop.trf.xlu0
        %v1653 = vpop.trf.xlu0
        %1654 = vxpose.xlu0.c.b16.start [1/8] %v1468, 128
        %1655 = vxpose.xlu0.c.b16.cont [2/8] 0, 128
        %1656 = vxpose.xlu0.c.b16.cont [3/8] 0, 128
        %1657 = vxpose.xlu0.c.b16.cont [4/8] 0, 128
        %1658 = vxpose.xlu0.c.b16.cont [5/8] 0, 128
        %1659 = vxpose.xlu0.c.b16.cont [6/8] 0, 128
        %1660 = vxpose.xlu0.c.b16.cont [7/8] 0, 128
        %1661 = vxpose.xlu0.c.b16.end [8/8] 0, 128
        %v1662 = vpop.trf.xlu0
        %v1663 = vpop.trf.xlu0
        %v1664 = vpop.trf.xlu0
        %v1665 = vpop.trf.xlu0
        %v1666 = vpop.trf.xlu0
        %v1667 = vpop.trf.xlu0
        %v1668 = vpop.trf.xlu0
        %v1669 = vpop.trf.xlu0
        %1670 = vxpose.xlu0.c.b16.start [1/8] %v1469, 128
        %1671 = vxpose.xlu0.c.b16.cont [2/8] 0, 128
        %1672 = vxpose.xlu0.c.b16.cont [3/8] 0, 128
        %1673 = vxpose.xlu0.c.b16.cont [4/8] 0, 128
        %1674 = vxpose.xlu0.c.b16.cont [5/8] 0, 128
        %1675 = vxpose.xlu0.c.b16.cont [6/8] 0, 128
        %1676 = vxpose.xlu0.c.b16.cont [7/8] 0, 128
        %1677 = vxpose.xlu0.c.b16.end [8/8] 0, 128
        %v1678 = vpop.trf.xlu0
        %v1679 = vpop.trf.xlu0
        %v1680 = vpop.trf.xlu0
        %v1681 = vpop.trf.xlu0
        %v1682 = vpop.trf.xlu0
        %v1683 = vpop.trf.xlu0
        %v1684 = vpop.trf.xlu0
        %v1685 = vpop.trf.xlu0
        %1686 = vxpose.xlu0.c.b16.start [1/8] %v1470, 128
        %1687 = vxpose.xlu0.c.b16.cont [2/8] 0, 128
        %1688 = vxpose.xlu0.c.b16.cont [3/8] 0, 128
        %1689 = vxpose.xlu0.c.b16.cont [4/8] 0, 128
        %1690 = vxpose.xlu0.c.b16.cont [5/8] 0, 128
        %1691 = vxpose.xlu0.c.b16.cont [6/8] 0, 128
        %1692 = vxpose.xlu0.c.b16.cont [7/8] 0, 128
        %1693 = vxpose.xlu0.c.b16.end [8/8] 0, 128
        %v1694 = vpop.trf.xlu0
        %v1695 = vpop.trf.xlu0
        %v1696 = vpop.trf.xlu0
        %v1697 = vpop.trf.xlu0
        %v1698 = vpop.trf.xlu0
        %v1699 = vpop.trf.xlu0
        %v1700 = vpop.trf.xlu0
        %v1701 = vpop.trf.xlu0
        %1702 = vxpose.xlu0.c.b16.start [1/8] %v1471, 128
        %1703 = vxpose.xlu0.c.b16.cont [2/8] 0, 128
        %1704 = vxpose.xlu0.c.b16.cont [3/8] 0, 128
        %1705 = vxpose.xlu0.c.b16.cont [4/8] 0, 128
        %1706 = vxpose.xlu0.c.b16.cont [5/8] 0, 128
        %1707 = vxpose.xlu0.c.b16.cont [6/8] 0, 128
        %1708 = vxpose.xlu0.c.b16.cont [7/8] 0, 128
        %1709 = vxpose.xlu0.c.b16.end [8/8] 0, 128
        %v1710 = vpop.trf.xlu0
        %v1711 = vpop.trf.xlu0
        %v1712 = vpop.trf.xlu0
        %v1713 = vpop.trf.xlu0
        %v1714 = vpop.trf.xlu0
        %v1715 = vpop.trf.xlu0
        %v1716 = vpop.trf.xlu0
        %v1717 = vpop.trf.xlu0
        %1718 = vxpose.xlu0.c.b16.start [1/8] %v1472, 128
        %1719 = vxpose.xlu0.c.b16.cont [2/8] 0, 128
        %1720 = vxpose.xlu0.c.b16.cont [3/8] 0, 128
        %1721 = vxpose.xlu0.c.b16.cont [4/8] 0, 128
        %1722 = vxpose.xlu0.c.b16.cont [5/8] 0, 128
        %1723 = vxpose.xlu0.c.b16.cont [6/8] 0, 128
        %1724 = vxpose.xlu0.c.b16.cont [7/8] 0, 128
        %1725 = vxpose.xlu0.c.b16.end [8/8] 0, 128
        %v1726 = vpop.trf.xlu0
        %v1727 = vpop.trf.xlu0
        %v1728 = vpop.trf.xlu0
        %v1729 = vpop.trf.xlu0
        %v1730 = vpop.trf.xlu0
        %v1731 = vpop.trf.xlu0
        %v1732 = vpop.trf.xlu0
        %v1733 = vpop.trf.xlu0
        %1734 = vxpose.xlu0.c.b16.start [1/8] %v1473, 128
        %1735 = vxpose.xlu0.c.b16.cont [2/8] 0, 128
        %1736 = vxpose.xlu0.c.b16.cont [3/8] 0, 128
        %1737 = vxpose.xlu0.c.b16.cont [4/8] 0, 128
        %1738 = vxpose.xlu0.c.b16.cont [5/8] 0, 128
        %1739 = vxpose.xlu0.c.b16.cont [6/8] 0, 128
        %1740 = vxpose.xlu0.c.b16.cont [7/8] 0, 128
        %1741 = vxpose.xlu0.c.b16.end [8/8] 0, 128
        %v1742 = vpop.trf.xlu0
        %v1743 = vpop.trf.xlu0
        %v1744 = vpop.trf.xlu0
        %v1745 = vpop.trf.xlu0
        %v1746 = vpop.trf.xlu0
        %v1747 = vpop.trf.xlu0
        %v1748 = vpop.trf.xlu0
        %v1749 = vpop.trf.xlu0
        %v1752 = vpack.i.b16 %v1646, %v1630
        %v1754 = vshrl.u32 %v1630, 16
        %v1755 = vshrl.u32 %v1646, 16
        %v1756 = vpack.i.b16 %v1755, %v1754
        %v1760 = vpack.i.b16 %v1678, %v1662
        %v1762 = vshrl.u32 %v1662, 16
        %v1763 = vshrl.u32 %v1678, 16
        %v1764 = vpack.i.b16 %v1763, %v1762
        %v1768 = vpack.i.b16 %v1710, %v1694
        %v1770 = vshrl.u32 %v1694, 16
        %v1771 = vshrl.u32 %v1710, 16
        %v1772 = vpack.i.b16 %v1771, %v1770
        %v1776 = vpack.i.b16 %v1742, %v1726
        %v1778 = vshrl.u32 %v1726, 16
        %v1779 = vshrl.u32 %v1742, 16
        %v1780 = vpack.i.b16 %v1779, %v1778
        %v1784 = vpack.i.b16 %v1647, %v1631
        %v1786 = vshrl.u32 %v1631, 16
        %v1787 = vshrl.u32 %v1647, 16
        %v1788 = vpack.i.b16 %v1787, %v1786
        %v1792 = vpack.i.b16 %v1679, %v1663
        %v1794 = vshrl.u32 %v1663, 16
        %v1795 = vshrl.u32 %v1679, 16
        %v1796 = vpack.i.b16 %v1795, %v1794
        %v1800 = vpack.i.b16 %v1711, %v1695
        %v1802 = vshrl.u32 %v1695, 16
        %v1803 = vshrl.u32 %v1711, 16
        %v1804 = vpack.i.b16 %v1803, %v1802
        %v1808 = vpack.i.b16 %v1743, %v1727
        %v1810 = vshrl.u32 %v1727, 16
        %v1811 = vshrl.u32 %v1743, 16
        %v1812 = vpack.i.b16 %v1811, %v1810
        %v1814 = vcombine.low %v1752, %v1768
        %v1815 = vcombine.high %v1752, %v1768
        %v1817 = vunpack.c.l.s4 1983009808
        %v1818 = vunpack.c.0.s8 %v1817
        %v1819 = vlaneseq
        %v1820 = vshrl.u32 %v1819, 7
        %v1821 = vsub.s32 %v1818, %v1820
        %v1822 = vrot.slane %v1814, %v1821
        %v1824 = vunpack.c.l.s4 1983009808
        %v1825 = vunpack.c.0.s8 %v1824
        %v1826 = vlaneseq
        %v1827 = vshrl.u32 %v1826, 7
        %v1828 = vsub.s32 %v1825, %v1827
        %v1829 = vrot.slane %v1815, %v1828
        %v1830 = vcombine.low %v1760, %v1776
        %v1831 = vcombine.high %v1760, %v1776
        %v1833 = vunpack.c.l.s4 1983009808
        %v1834 = vunpack.c.0.s8 %v1833
        %v1835 = vlaneseq
        %v1836 = vshrl.u32 %v1835, 7
        %v1837 = vsub.s32 %v1834, %v1836
        %v1838 = vrot.slane %v1830, %v1837
        %v1840 = vunpack.c.l.s4 1983009808
        %v1841 = vunpack.c.0.s8 %v1840
        %v1842 = vlaneseq
        %v1843 = vshrl.u32 %v1842, 7
        %v1844 = vsub.s32 %v1841, %v1843
        %v1845 = vrot.slane %v1831, %v1844
        %v1846 = vcombine.low %v1822, %v1838
        %v1847 = vcombine.high %v1822, %v1838
        %v1849 = vunpack.c.l.s4 1934713408
        %v1850 = vunpack.c.0.s8 %v1849
        %v1851 = vlaneseq
        %v1852 = vshrl.u32 %v1851, 7
        %v1853 = vsub.s32 %v1850, %v1852
        %v1854 = vrot.slane %v1846, %v1853
        %v1856 = vunpack.c.l.s4 1934713408
        %v1857 = vunpack.c.0.s8 %v1856
        %v1858 = vlaneseq
        %v1859 = vshrl.u32 %v1858, 7
        %v1860 = vsub.s32 %v1857, %v1859
        %v1861 = vrot.slane %v1847, %v1860
        %v1862 = vcombine.low %v1829, %v1845
        %v1863 = vcombine.high %v1829, %v1845
        %v1865 = vunpack.c.l.s4 1934713408
        %v1866 = vunpack.c.0.s8 %v1865
        %v1867 = vlaneseq
        %v1868 = vshrl.u32 %v1867, 7
        %v1869 = vsub.s32 %v1866, %v1868
        %v1870 = vrot.slane %v1862, %v1869
        %v1872 = vunpack.c.l.s4 1934713408
        %v1873 = vunpack.c.0.s8 %v1872
        %v1874 = vlaneseq
        %v1875 = vshrl.u32 %v1874, 7
        %v1876 = vsub.s32 %v1873, %v1875
        %v1877 = vrot.slane %v1863, %v1876
        %v1878 = vcombine.high %v1854, 0
        %v1879 = vcombine.high %v1861, 0
        %v1880 = vcombine.high %v1870, 0
        %v1881 = vcombine.high %v1877, 0
        %v1882 = vcombine.low %v1756, %v1772
        %v1883 = vcombine.high %v1756, %v1772
        %v1885 = vunpack.c.l.s4 1983009808
        %v1886 = vunpack.c.0.s8 %v1885
        %v1887 = vlaneseq
        %v1888 = vshrl.u32 %v1887, 7
        %v1889 = vsub.s32 %v1886, %v1888
        %v1890 = vrot.slane %v1882, %v1889
        %v1892 = vunpack.c.l.s4 1983009808
        %v1893 = vunpack.c.0.s8 %v1892
        %v1894 = vlaneseq
        %v1895 = vshrl.u32 %v1894, 7
        %v1896 = vsub.s32 %v1893, %v1895
        %v1897 = vrot.slane %v1883, %v1896
        %v1898 = vcombine.low %v1764, %v1780
        %v1899 = vcombine.high %v1764, %v1780
        %v1901 = vunpack.c.l.s4 1983009808
        %v1902 = vunpack.c.0.s8 %v1901
        %v1903 = vlaneseq
        %v1904 = vshrl.u32 %v1903, 7
        %v1905 = vsub.s32 %v1902, %v1904
        %v1906 = vrot.slane %v1898, %v1905
        %v1908 = vunpack.c.l.s4 1983009808
        %v1909 = vunpack.c.0.s8 %v1908
        %v1910 = vlaneseq
        %v1911 = vshrl.u32 %v1910, 7
        %v1912 = vsub.s32 %v1909, %v1911
        %v1913 = vrot.slane %v1899, %v1912
        %v1914 = vcombine.low %v1890, %v1906
        %v1915 = vcombine.high %v1890, %v1906
        %v1917 = vunpack.c.l.s4 1934713408
        %v1918 = vunpack.c.0.s8 %v1917
        %v1919 = vlaneseq
        %v1920 = vshrl.u32 %v1919, 7
        %v1921 = vsub.s32 %v1918, %v1920
        %v1922 = vrot.slane %v1914, %v1921
        %v1924 = vunpack.c.l.s4 1934713408
        %v1925 = vunpack.c.0.s8 %v1924
        %v1926 = vlaneseq
        %v1927 = vshrl.u32 %v1926, 7
        %v1928 = vsub.s32 %v1925, %v1927
        %v1929 = vrot.slane %v1915, %v1928
        %v1930 = vcombine.low %v1897, %v1913
        %v1931 = vcombine.high %v1897, %v1913
        %v1933 = vunpack.c.l.s4 1934713408
        %v1934 = vunpack.c.0.s8 %v1933
        %v1935 = vlaneseq
        %v1936 = vshrl.u32 %v1935, 7
        %v1937 = vsub.s32 %v1934, %v1936
        %v1938 = vrot.slane %v1930, %v1937
        %v1940 = vunpack.c.l.s4 1934713408
        %v1941 = vunpack.c.0.s8 %v1940
        %v1942 = vlaneseq
        %v1943 = vshrl.u32 %v1942, 7
        %v1944 = vsub.s32 %v1941, %v1943
        %v1945 = vrot.slane %v1931, %v1944
        %v1946 = vcombine.high %v1922, 0
        %v1947 = vcombine.high %v1929, 0
        %v1948 = vcombine.high %v1938, 0
        %v1949 = vcombine.high %v1945, 0
        %v1950 = vcombine.low %v1784, %v1800
        %v1951 = vcombine.high %v1784, %v1800
        %v1953 = vunpack.c.l.s4 1983009808
        %v1954 = vunpack.c.0.s8 %v1953
        %v1955 = vlaneseq
        %v1956 = vshrl.u32 %v1955, 7
        %v1957 = vsub.s32 %v1954, %v1956
        %v1958 = vrot.slane %v1950, %v1957
        %v1960 = vunpack.c.l.s4 1983009808
        %v1961 = vunpack.c.0.s8 %v1960
        %v1962 = vlaneseq
        %v1963 = vshrl.u32 %v1962, 7
        %v1964 = vsub.s32 %v1961, %v1963
        %v1965 = vrot.slane %v1951, %v1964
        %v1966 = vcombine.low %v1792, %v1808
        %v1967 = vcombine.high %v1792, %v1808
        %v1969 = vunpack.c.l.s4 1983009808
        %v1970 = vunpack.c.0.s8 %v1969
        %v1971 = vlaneseq
        %v1972 = vshrl.u32 %v1971, 7
        %v1973 = vsub.s32 %v1970, %v1972
        %v1974 = vrot.slane %v1966, %v1973
        %v1976 = vunpack.c.l.s4 1983009808
        %v1977 = vunpack.c.0.s8 %v1976
        %v1978 = vlaneseq
        %v1979 = vshrl.u32 %v1978, 7
        %v1980 = vsub.s32 %v1977, %v1979
        %v1981 = vrot.slane %v1967, %v1980
        %v1982 = vcombine.low %v1958, %v1974
        %v1983 = vcombine.high %v1958, %v1974
        %v1985 = vunpack.c.l.s4 1934713408
        %v1986 = vunpack.c.0.s8 %v1985
        %v1987 = vlaneseq
        %v1988 = vshrl.u32 %v1987, 7
        %v1989 = vsub.s32 %v1986, %v1988
        %v1990 = vrot.slane %v1982, %v1989
        %v1992 = vunpack.c.l.s4 1934713408
        %v1993 = vunpack.c.0.s8 %v1992
        %v1994 = vlaneseq
        %v1995 = vshrl.u32 %v1994, 7
        %v1996 = vsub.s32 %v1993, %v1995
        %v1997 = vrot.slane %v1983, %v1996
        %v1998 = vcombine.low %v1965, %v1981
        %v1999 = vcombine.high %v1965, %v1981
        %v2001 = vunpack.c.l.s4 1934713408
        %v2002 = vunpack.c.0.s8 %v2001
        %v2003 = vlaneseq
        %v2004 = vshrl.u32 %v2003, 7
        %v2005 = vsub.s32 %v2002, %v2004
        %v2006 = vrot.slane %v1998, %v2005
        %v2008 = vunpack.c.l.s4 1934713408
        %v2009 = vunpack.c.0.s8 %v2008
        %v2010 = vlaneseq
        %v2011 = vshrl.u32 %v2010, 7
        %v2012 = vsub.s32 %v2009, %v2011
        %v2013 = vrot.slane %v1999, %v2012
        %v2014 = vcombine.high %v1990, 0
        %v2015 = vcombine.high %v1997, 0
        %v2016 = vcombine.high %v2006, 0
        %v2017 = vcombine.high %v2013, 0
        %v2018 = vcombine.low %v1788, %v1804
        %v2019 = vcombine.high %v1788, %v1804
        %v2021 = vunpack.c.l.s4 1983009808
        %v2022 = vunpack.c.0.s8 %v2021
        %v2023 = vlaneseq
        %v2024 = vshrl.u32 %v2023, 7
        %v2025 = vsub.s32 %v2022, %v2024
        %v2026 = vrot.slane %v2018, %v2025
        %v2028 = vunpack.c.l.s4 1983009808
        %v2029 = vunpack.c.0.s8 %v2028
        %v2030 = vlaneseq
        %v2031 = vshrl.u32 %v2030, 7
        %v2032 = vsub.s32 %v2029, %v2031
        %v2033 = vrot.slane %v2019, %v2032
        %v2034 = vcombine.low %v1796, %v1812
        %v2035 = vcombine.high %v1796, %v1812
        %v2037 = vunpack.c.l.s4 1983009808
        %v2038 = vunpack.c.0.s8 %v2037
        %v2039 = vlaneseq
        %v2040 = vshrl.u32 %v2039, 7
        %v2041 = vsub.s32 %v2038, %v2040
        %v2042 = vrot.slane %v2034, %v2041
        %v2044 = vunpack.c.l.s4 1983009808
        %v2045 = vunpack.c.0.s8 %v2044
        %v2046 = vlaneseq
        %v2047 = vshrl.u32 %v2046, 7
        %v2048 = vsub.s32 %v2045, %v2047
        %v2049 = vrot.slane %v2035, %v2048
        %v2050 = vcombine.low %v2026, %v2042
        %v2051 = vcombine.high %v2026, %v2042
        %v2053 = vunpack.c.l.s4 1934713408
        %v2054 = vunpack.c.0.s8 %v2053
        %v2055 = vlaneseq
        %v2056 = vshrl.u32 %v2055, 7
        %v2057 = vsub.s32 %v2054, %v2056
        %v2058 = vrot.slane %v2050, %v2057
        %v2060 = vunpack.c.l.s4 1934713408
        %v2061 = vunpack.c.0.s8 %v2060
        %v2062 = vlaneseq
        %v2063 = vshrl.u32 %v2062, 7
        %v2064 = vsub.s32 %v2061, %v2063
        %v2065 = vrot.slane %v2051, %v2064
        %v2066 = vcombine.low %v2033, %v2049
        %v2067 = vcombine.high %v2033, %v2049
        %v2069 = vunpack.c.l.s4 1934713408
        %v2070 = vunpack.c.0.s8 %v2069
        %v2071 = vlaneseq
        %v2072 = vshrl.u32 %v2071, 7
        %v2073 = vsub.s32 %v2070, %v2072
        %v2074 = vrot.slane %v2066, %v2073
        %v2076 = vunpack.c.l.s4 1934713408
        %v2077 = vunpack.c.0.s8 %v2076
        %v2078 = vlaneseq
        %v2079 = vshrl.u32 %v2078, 7
        %v2080 = vsub.s32 %v2077, %v2079
        %v2081 = vrot.slane %v2067, %v2080
        %v2082 = vcombine.high %v2058, 0
        %v2083 = vcombine.high %v2065, 0
        %v2084 = vcombine.high %v2074, 0
        %v2085 = vcombine.high %v2081, 0
        %2086 = vxpose.xlu0.c.b16.start [1/8] %v1854, 128
        %2087 = vxpose.xlu0.c.b16.cont [2/8] 0, 128
        %2088 = vxpose.xlu0.c.b16.cont [3/8] 0, 128
        %2089 = vxpose.xlu0.c.b16.cont [4/8] 0, 128
        %2090 = vxpose.xlu0.c.b16.cont [5/8] 0, 128
        %2091 = vxpose.xlu0.c.b16.cont [6/8] 0, 128
        %2092 = vxpose.xlu0.c.b16.cont [7/8] 0, 128
        %2093 = vxpose.xlu0.c.b16.end [8/8] 0, 128
        %v2094 = vpop.trf.xlu0
        %v2095 = vpop.trf.xlu0
        %v2096 = vpop.trf.xlu0
        %v2097 = vpop.trf.xlu0
        %v2098 = vpop.trf.xlu0
        %v2099 = vpop.trf.xlu0
        %v2100 = vpop.trf.xlu0
        %v2101 = vpop.trf.xlu0
        %2102 = vxpose.xlu0.c.b16.start [1/8] %v1922, 128
        %2103 = vxpose.xlu0.c.b16.cont [2/8] 0, 128
        %2104 = vxpose.xlu0.c.b16.cont [3/8] 0, 128
        %2105 = vxpose.xlu0.c.b16.cont [4/8] 0, 128
        %2106 = vxpose.xlu0.c.b16.cont [5/8] 0, 128
        %2107 = vxpose.xlu0.c.b16.cont [6/8] 0, 128
        %2108 = vxpose.xlu0.c.b16.cont [7/8] 0, 128
        %2109 = vxpose.xlu0.c.b16.end [8/8] 0, 128
        %v2110 = vpop.trf.xlu0
        %v2111 = vpop.trf.xlu0
        %v2112 = vpop.trf.xlu0
        %v2113 = vpop.trf.xlu0
        %v2114 = vpop.trf.xlu0
        %v2115 = vpop.trf.xlu0
        %v2116 = vpop.trf.xlu0
        %v2117 = vpop.trf.xlu0
        %2118 = vxpose.xlu0.c.b16.start [1/8] %v1878, 128
        %2119 = vxpose.xlu0.c.b16.cont [2/8] 0, 128
        %2120 = vxpose.xlu0.c.b16.cont [3/8] 0, 128
        %2121 = vxpose.xlu0.c.b16.cont [4/8] 0, 128
        %2122 = vxpose.xlu0.c.b16.cont [5/8] 0, 128
        %2123 = vxpose.xlu0.c.b16.cont [6/8] 0, 128
        %2124 = vxpose.xlu0.c.b16.cont [7/8] 0, 128
        %2125 = vxpose.xlu0.c.b16.end [8/8] 0, 128
        %v2126 = vpop.trf.xlu0
        %v2127 = vpop.trf.xlu0
        %v2128 = vpop.trf.xlu0
        %v2129 = vpop.trf.xlu0
        %v2130 = vpop.trf.xlu0
        %v2131 = vpop.trf.xlu0
        %v2132 = vpop.trf.xlu0
        %v2133 = vpop.trf.xlu0
        %2134 = vxpose.xlu0.c.b16.start [1/8] %v1946, 128
        %2135 = vxpose.xlu0.c.b16.cont [2/8] 0, 128
        %2136 = vxpose.xlu0.c.b16.cont [3/8] 0, 128
        %2137 = vxpose.xlu0.c.b16.cont [4/8] 0, 128
        %2138 = vxpose.xlu0.c.b16.cont [5/8] 0, 128
        %2139 = vxpose.xlu0.c.b16.cont [6/8] 0, 128
        %2140 = vxpose.xlu0.c.b16.cont [7/8] 0, 128
        %2141 = vxpose.xlu0.c.b16.end [8/8] 0, 128
        %v2142 = vpop.trf.xlu0
        %v2143 = vpop.trf.xlu0
        %v2144 = vpop.trf.xlu0
        %v2145 = vpop.trf.xlu0
        %v2146 = vpop.trf.xlu0
        %v2147 = vpop.trf.xlu0
        %v2148 = vpop.trf.xlu0
        %v2149 = vpop.trf.xlu0
        %2150 = vxpose.xlu0.c.b16.start [1/8] %v1861, 128
        %2151 = vxpose.xlu0.c.b16.cont [2/8] 0, 128
        %2152 = vxpose.xlu0.c.b16.cont [3/8] 0, 128
        %2153 = vxpose.xlu0.c.b16.cont [4/8] 0, 128
        %2154 = vxpose.xlu0.c.b16.cont [5/8] 0, 128
        %2155 = vxpose.xlu0.c.b16.cont [6/8] 0, 128
        %2156 = vxpose.xlu0.c.b16.cont [7/8] 0, 128
        %2157 = vxpose.xlu0.c.b16.end [8/8] 0, 128
        %v2158 = vpop.trf.xlu0
        %v2159 = vpop.trf.xlu0
        %v2160 = vpop.trf.xlu0
        %v2161 = vpop.trf.xlu0
        %v2162 = vpop.trf.xlu0
        %v2163 = vpop.trf.xlu0
        %v2164 = vpop.trf.xlu0
        %v2165 = vpop.trf.xlu0
        %2166 = vxpose.xlu0.c.b16.start [1/8] %v1929, 128
        %2167 = vxpose.xlu0.c.b16.cont [2/8] 0, 128
        %2168 = vxpose.xlu0.c.b16.cont [3/8] 0, 128
        %2169 = vxpose.xlu0.c.b16.cont [4/8] 0, 128
        %2170 = vxpose.xlu0.c.b16.cont [5/8] 0, 128
        %2171 = vxpose.xlu0.c.b16.cont [6/8] 0, 128
        %2172 = vxpose.xlu0.c.b16.cont [7/8] 0, 128
        %2173 = vxpose.xlu0.c.b16.end [8/8] 0, 128
        %v2174 = vpop.trf.xlu0
        %v2175 = vpop.trf.xlu0
        %v2176 = vpop.trf.xlu0
        %v2177 = vpop.trf.xlu0
        %v2178 = vpop.trf.xlu0
        %v2179 = vpop.trf.xlu0
        %v2180 = vpop.trf.xlu0
        %v2181 = vpop.trf.xlu0
        %2182 = vxpose.xlu0.c.b16.start [1/8] %v1879, 128
        %2183 = vxpose.xlu0.c.b16.cont [2/8] 0, 128
        %2184 = vxpose.xlu0.c.b16.cont [3/8] 0, 128
        %2185 = vxpose.xlu0.c.b16.cont [4/8] 0, 128
        %2186 = vxpose.xlu0.c.b16.cont [5/8] 0, 128
        %2187 = vxpose.xlu0.c.b16.cont [6/8] 0, 128
        %2188 = vxpose.xlu0.c.b16.cont [7/8] 0, 128
        %2189 = vxpose.xlu0.c.b16.end [8/8] 0, 128
        %v2190 = vpop.trf.xlu0
        %v2191 = vpop.trf.xlu0
        %v2192 = vpop.trf.xlu0
        %v2193 = vpop.trf.xlu0
        %v2194 = vpop.trf.xlu0
        %v2195 = vpop.trf.xlu0
        %v2196 = vpop.trf.xlu0
        %v2197 = vpop.trf.xlu0
        %2198 = vxpose.xlu0.c.b16.start [1/8] %v1947, 128
        %2199 = vxpose.xlu0.c.b16.cont [2/8] 0, 128
        %2200 = vxpose.xlu0.c.b16.cont [3/8] 0, 128
        %2201 = vxpose.xlu0.c.b16.cont [4/8] 0, 128
        %2202 = vxpose.xlu0.c.b16.cont [5/8] 0, 128
        %2203 = vxpose.xlu0.c.b16.cont [6/8] 0, 128
        %2204 = vxpose.xlu0.c.b16.cont [7/8] 0, 128
        %2205 = vxpose.xlu0.c.b16.end [8/8] 0, 128
        %v2206 = vpop.trf.xlu0
        %v2207 = vpop.trf.xlu0
        %v2208 = vpop.trf.xlu0
        %v2209 = vpop.trf.xlu0
        %v2210 = vpop.trf.xlu0
        %v2211 = vpop.trf.xlu0
        %v2212 = vpop.trf.xlu0
        %v2213 = vpop.trf.xlu0
        %2214 = vxpose.xlu0.c.b16.start [1/8] %v1870, 128
        %2215 = vxpose.xlu0.c.b16.cont [2/8] 0, 128
        %2216 = vxpose.xlu0.c.b16.cont [3/8] 0, 128
        %2217 = vxpose.xlu0.c.b16.cont [4/8] 0, 128
        %2218 = vxpose.xlu0.c.b16.cont [5/8] 0, 128
        %2219 = vxpose.xlu0.c.b16.cont [6/8] 0, 128
        %2220 = vxpose.xlu0.c.b16.cont [7/8] 0, 128
        %2221 = vxpose.xlu0.c.b16.end [8/8] 0, 128
        %v2222 = vpop.trf.xlu0
        %v2223 = vpop.trf.xlu0
        %v2224 = vpop.trf.xlu0
        %v2225 = vpop.trf.xlu0
        %v2226 = vpop.trf.xlu0
        %v2227 = vpop.trf.xlu0
        %v2228 = vpop.trf.xlu0
        %v2229 = vpop.trf.xlu0
        %2230 = vxpose.xlu0.c.b16.start [1/8] %v1938, 128
        %2231 = vxpose.xlu0.c.b16.cont [2/8] 0, 128
        %2232 = vxpose.xlu0.c.b16.cont [3/8] 0, 128
        %2233 = vxpose.xlu0.c.b16.cont [4/8] 0, 128
        %2234 = vxpose.xlu0.c.b16.cont [5/8] 0, 128
        %2235 = vxpose.xlu0.c.b16.cont [6/8] 0, 128
        %2236 = vxpose.xlu0.c.b16.cont [7/8] 0, 128
        %2237 = vxpose.xlu0.c.b16.end [8/8] 0, 128
        %v2238 = vpop.trf.xlu0
        %v2239 = vpop.trf.xlu0
        %v2240 = vpop.trf.xlu0
        %v2241 = vpop.trf.xlu0
        %v2242 = vpop.trf.xlu0
        %v2243 = vpop.trf.xlu0
        %v2244 = vpop.trf.xlu0
        %v2245 = vpop.trf.xlu0
        %2246 = vxpose.xlu0.c.b16.start [1/8] %v1880, 128
        %2247 = vxpose.xlu0.c.b16.cont [2/8] 0, 128
        %2248 = vxpose.xlu0.c.b16.cont [3/8] 0, 128
        %2249 = vxpose.xlu0.c.b16.cont [4/8] 0, 128
        %2250 = vxpose.xlu0.c.b16.cont [5/8] 0, 128
        %2251 = vxpose.xlu0.c.b16.cont [6/8] 0, 128
        %2252 = vxpose.xlu0.c.b16.cont [7/8] 0, 128
        %2253 = vxpose.xlu0.c.b16.end [8/8] 0, 128
        %v2254 = vpop.trf.xlu0
        %v2255 = vpop.trf.xlu0
        %v2256 = vpop.trf.xlu0
        %v2257 = vpop.trf.xlu0
        %v2258 = vpop.trf.xlu0
        %v2259 = vpop.trf.xlu0
        %v2260 = vpop.trf.xlu0
        %v2261 = vpop.trf.xlu0
        %2262 = vxpose.xlu0.c.b16.start [1/8] %v1948, 128
        %2263 = vxpose.xlu0.c.b16.cont [2/8] 0, 128
        %2264 = vxpose.xlu0.c.b16.cont [3/8] 0, 128
        %2265 = vxpose.xlu0.c.b16.cont [4/8] 0, 128
        %2266 = vxpose.xlu0.c.b16.cont [5/8] 0, 128
        %2267 = vxpose.xlu0.c.b16.cont [6/8] 0, 128
        %2268 = vxpose.xlu0.c.b16.cont [7/8] 0, 128
        %2269 = vxpose.xlu0.c.b16.end [8/8] 0, 128
        %v2270 = vpop.trf.xlu0
        %v2271 = vpop.trf.xlu0
        %v2272 = vpop.trf.xlu0
        %v2273 = vpop.trf.xlu0
        %v2274 = vpop.trf.xlu0
        %v2275 = vpop.trf.xlu0
        %v2276 = vpop.trf.xlu0
        %v2277 = vpop.trf.xlu0
        %2278 = vxpose.xlu0.c.b16.start [1/8] %v1877, 128
        %2279 = vxpose.xlu0.c.b16.cont [2/8] 0, 128
        %2280 = vxpose.xlu0.c.b16.cont [3/8] 0, 128
        %2281 = vxpose.xlu0.c.b16.cont [4/8] 0, 128
        %2282 = vxpose.xlu0.c.b16.cont [5/8] 0, 128
        %2283 = vxpose.xlu0.c.b16.cont [6/8] 0, 128
        %2284 = vxpose.xlu0.c.b16.cont [7/8] 0, 128
        %2285 = vxpose.xlu0.c.b16.end [8/8] 0, 128
        %v2286 = vpop.trf.xlu0
        %v2287 = vpop.trf.xlu0
        %v2288 = vpop.trf.xlu0
        %v2289 = vpop.trf.xlu0
        %v2290 = vpop.trf.xlu0
        %v2291 = vpop.trf.xlu0
        %v2292 = vpop.trf.xlu0
        %v2293 = vpop.trf.xlu0
        %2294 = vxpose.xlu0.c.b16.start [1/8] %v1945, 128
        %2295 = vxpose.xlu0.c.b16.cont [2/8] 0, 128
        %2296 = vxpose.xlu0.c.b16.cont [3/8] 0, 128
        %2297 = vxpose.xlu0.c.b16.cont [4/8] 0, 128
        %2298 = vxpose.xlu0.c.b16.cont [5/8] 0, 128
        %2299 = vxpose.xlu0.c.b16.cont [6/8] 0, 128
        %2300 = vxpose.xlu0.c.b16.cont [7/8] 0, 128
        %2301 = vxpose.xlu0.c.b16.end [8/8] 0, 128
        %v2302 = vpop.trf.xlu0
        %v2303 = vpop.trf.xlu0
        %v2304 = vpop.trf.xlu0
        %v2305 = vpop.trf.xlu0
        %v2306 = vpop.trf.xlu0
        %v2307 = vpop.trf.xlu0
        %v2308 = vpop.trf.xlu0
        %v2309 = vpop.trf.xlu0
        %2310 = vxpose.xlu0.c.b16.start [1/8] %v1881, 128
        %2311 = vxpose.xlu0.c.b16.cont [2/8] 0, 128
        %2312 = vxpose.xlu0.c.b16.cont [3/8] 0, 128
        %2313 = vxpose.xlu0.c.b16.cont [4/8] 0, 128
        %2314 = vxpose.xlu0.c.b16.cont [5/8] 0, 128
        %2315 = vxpose.xlu0.c.b16.cont [6/8] 0, 128
        %2316 = vxpose.xlu0.c.b16.cont [7/8] 0, 128
        %2317 = vxpose.xlu0.c.b16.end [8/8] 0, 128
        %v2318 = vpop.trf.xlu0
        %v2319 = vpop.trf.xlu0
        %v2320 = vpop.trf.xlu0
        %v2321 = vpop.trf.xlu0
        %v2322 = vpop.trf.xlu0
        %v2323 = vpop.trf.xlu0
        %v2324 = vpop.trf.xlu0
        %v2325 = vpop.trf.xlu0
        %2326 = vxpose.xlu0.c.b16.start [1/8] %v1949, 128
        %2327 = vxpose.xlu0.c.b16.cont [2/8] 0, 128
        %2328 = vxpose.xlu0.c.b16.cont [3/8] 0, 128
        %2329 = vxpose.xlu0.c.b16.cont [4/8] 0, 128
        %2330 = vxpose.xlu0.c.b16.cont [5/8] 0, 128
        %2331 = vxpose.xlu0.c.b16.cont [6/8] 0, 128
        %2332 = vxpose.xlu0.c.b16.cont [7/8] 0, 128
        %2333 = vxpose.xlu0.c.b16.end [8/8] 0, 128
        %v2334 = vpop.trf.xlu0
        %v2335 = vpop.trf.xlu0
        %v2336 = vpop.trf.xlu0
        %v2337 = vpop.trf.xlu0
        %v2338 = vpop.trf.xlu0
        %v2339 = vpop.trf.xlu0
        %v2340 = vpop.trf.xlu0
        %v2341 = vpop.trf.xlu0
        %2342 = vxpose.xlu0.c.b16.start [1/8] %v1990, 128
        %2343 = vxpose.xlu0.c.b16.cont [2/8] 0, 128
        %2344 = vxpose.xlu0.c.b16.cont [3/8] 0, 128
        %2345 = vxpose.xlu0.c.b16.cont [4/8] 0, 128
        %2346 = vxpose.xlu0.c.b16.cont [5/8] 0, 128
        %2347 = vxpose.xlu0.c.b16.cont [6/8] 0, 128
        %2348 = vxpose.xlu0.c.b16.cont [7/8] 0, 128
        %2349 = vxpose.xlu0.c.b16.end [8/8] 0, 128
        %v2350 = vpop.trf.xlu0
        %v2351 = vpop.trf.xlu0
        %v2352 = vpop.trf.xlu0
        %v2353 = vpop.trf.xlu0
        %v2354 = vpop.trf.xlu0
        %v2355 = vpop.trf.xlu0
        %v2356 = vpop.trf.xlu0
        %v2357 = vpop.trf.xlu0
        %2358 = vxpose.xlu0.c.b16.start [1/8] %v2058, 128
        %2359 = vxpose.xlu0.c.b16.cont [2/8] 0, 128
        %2360 = vxpose.xlu0.c.b16.cont [3/8] 0, 128
        %2361 = vxpose.xlu0.c.b16.cont [4/8] 0, 128
        %2362 = vxpose.xlu0.c.b16.cont [5/8] 0, 128
        %2363 = vxpose.xlu0.c.b16.cont [6/8] 0, 128
        %2364 = vxpose.xlu0.c.b16.cont [7/8] 0, 128
        %2365 = vxpose.xlu0.c.b16.end [8/8] 0, 128
        %v2366 = vpop.trf.xlu0
        %v2367 = vpop.trf.xlu0
        %v2368 = vpop.trf.xlu0
        %v2369 = vpop.trf.xlu0
        %v2370 = vpop.trf.xlu0
        %v2371 = vpop.trf.xlu0
        %v2372 = vpop.trf.xlu0
        %v2373 = vpop.trf.xlu0
        %2374 = vxpose.xlu0.c.b16.start [1/8] %v2014, 128
        %2375 = vxpose.xlu0.c.b16.cont [2/8] 0, 128
        %2376 = vxpose.xlu0.c.b16.cont [3/8] 0, 128
        %2377 = vxpose.xlu0.c.b16.cont [4/8] 0, 128
        %2378 = vxpose.xlu0.c.b16.cont [5/8] 0, 128
        %2379 = vxpose.xlu0.c.b16.cont [6/8] 0, 128
        %2380 = vxpose.xlu0.c.b16.cont [7/8] 0, 128
        %2381 = vxpose.xlu0.c.b16.end [8/8] 0, 128
        %v2382 = vpop.trf.xlu0
        %v2383 = vpop.trf.xlu0
        %v2384 = vpop.trf.xlu0
        %v2385 = vpop.trf.xlu0
        %v2386 = vpop.trf.xlu0
        %v2387 = vpop.trf.xlu0
        %v2388 = vpop.trf.xlu0
        %v2389 = vpop.trf.xlu0
        %2390 = vxpose.xlu0.c.b16.start [1/8] %v2082, 128
        %2391 = vxpose.xlu0.c.b16.cont [2/8] 0, 128
        %2392 = vxpose.xlu0.c.b16.cont [3/8] 0, 128
        %2393 = vxpose.xlu0.c.b16.cont [4/8] 0, 128
        %2394 = vxpose.xlu0.c.b16.cont [5/8] 0, 128
        %2395 = vxpose.xlu0.c.b16.cont [6/8] 0, 128
        %2396 = vxpose.xlu0.c.b16.cont [7/8] 0, 128
        %2397 = vxpose.xlu0.c.b16.end [8/8] 0, 128
        %v2398 = vpop.trf.xlu0
        %v2399 = vpop.trf.xlu0
        %v2400 = vpop.trf.xlu0
        %v2401 = vpop.trf.xlu0
        %v2402 = vpop.trf.xlu0
        %v2403 = vpop.trf.xlu0
        %v2404 = vpop.trf.xlu0
        %v2405 = vpop.trf.xlu0
        %2406 = vxpose.xlu0.c.b16.start [1/8] %v1997, 128
        %2407 = vxpose.xlu0.c.b16.cont [2/8] 0, 128
        %2408 = vxpose.xlu0.c.b16.cont [3/8] 0, 128
        %2409 = vxpose.xlu0.c.b16.cont [4/8] 0, 128
        %2410 = vxpose.xlu0.c.b16.cont [5/8] 0, 128
        %2411 = vxpose.xlu0.c.b16.cont [6/8] 0, 128
        %2412 = vxpose.xlu0.c.b16.cont [7/8] 0, 128
        %2413 = vxpose.xlu0.c.b16.end [8/8] 0, 128
        %v2414 = vpop.trf.xlu0
        %v2415 = vpop.trf.xlu0
        %v2416 = vpop.trf.xlu0
        %v2417 = vpop.trf.xlu0
        %v2418 = vpop.trf.xlu0
        %v2419 = vpop.trf.xlu0
        %v2420 = vpop.trf.xlu0
        %v2421 = vpop.trf.xlu0
        %2422 = vxpose.xlu0.c.b16.start [1/8] %v2065, 128
        %2423 = vxpose.xlu0.c.b16.cont [2/8] 0, 128
        %2424 = vxpose.xlu0.c.b16.cont [3/8] 0, 128
        %2425 = vxpose.xlu0.c.b16.cont [4/8] 0, 128
        %2426 = vxpose.xlu0.c.b16.cont [5/8] 0, 128
        %2427 = vxpose.xlu0.c.b16.cont [6/8] 0, 128
        %2428 = vxpose.xlu0.c.b16.cont [7/8] 0, 128
        %2429 = vxpose.xlu0.c.b16.end [8/8] 0, 128
        %v2430 = vpop.trf.xlu0
        %v2431 = vpop.trf.xlu0
        %v2432 = vpop.trf.xlu0
        %v2433 = vpop.trf.xlu0
        %v2434 = vpop.trf.xlu0
        %v2435 = vpop.trf.xlu0
        %v2436 = vpop.trf.xlu0
        %v2437 = vpop.trf.xlu0
        %2438 = vxpose.xlu0.c.b16.start [1/8] %v2015, 128
        %2439 = vxpose.xlu0.c.b16.cont [2/8] 0, 128
        %2440 = vxpose.xlu0.c.b16.cont [3/8] 0, 128
        %2441 = vxpose.xlu0.c.b16.cont [4/8] 0, 128
        %2442 = vxpose.xlu0.c.b16.cont [5/8] 0, 128
        %2443 = vxpose.xlu0.c.b16.cont [6/8] 0, 128
        %2444 = vxpose.xlu0.c.b16.cont [7/8] 0, 128
        %2445 = vxpose.xlu0.c.b16.end [8/8] 0, 128
        %v2446 = vpop.trf.xlu0
        %v2447 = vpop.trf.xlu0
        %v2448 = vpop.trf.xlu0
        %v2449 = vpop.trf.xlu0
        %v2450 = vpop.trf.xlu0
        %v2451 = vpop.trf.xlu0
        %v2452 = vpop.trf.xlu0
        %v2453 = vpop.trf.xlu0
        %2454 = vxpose.xlu0.c.b16.start [1/8] %v2083, 128
        %2455 = vxpose.xlu0.c.b16.cont [2/8] 0, 128
        %2456 = vxpose.xlu0.c.b16.cont [3/8] 0, 128
        %2457 = vxpose.xlu0.c.b16.cont [4/8] 0, 128
        %2458 = vxpose.xlu0.c.b16.cont [5/8] 0, 128
        %2459 = vxpose.xlu0.c.b16.cont [6/8] 0, 128
        %2460 = vxpose.xlu0.c.b16.cont [7/8] 0, 128
        %2461 = vxpose.xlu0.c.b16.end [8/8] 0, 128
        %v2462 = vpop.trf.xlu0
        %v2463 = vpop.trf.xlu0
        %v2464 = vpop.trf.xlu0
        %v2465 = vpop.trf.xlu0
        %v2466 = vpop.trf.xlu0
        %v2467 = vpop.trf.xlu0
        %v2468 = vpop.trf.xlu0
        %v2469 = vpop.trf.xlu0
        %2470 = vxpose.xlu0.c.b16.start [1/8] %v2006, 128
        %2471 = vxpose.xlu0.c.b16.cont [2/8] 0, 128
        %2472 = vxpose.xlu0.c.b16.cont [3/8] 0, 128
        %2473 = vxpose.xlu0.c.b16.cont [4/8] 0, 128
        %2474 = vxpose.xlu0.c.b16.cont [5/8] 0, 128
        %2475 = vxpose.xlu0.c.b16.cont [6/8] 0, 128
        %2476 = vxpose.xlu0.c.b16.cont [7/8] 0, 128
        %2477 = vxpose.xlu0.c.b16.end [8/8] 0, 128
        %v2478 = vpop.trf.xlu0
        %v2479 = vpop.trf.xlu0
        %v2480 = vpop.trf.xlu0
        %v2481 = vpop.trf.xlu0
        %v2482 = vpop.trf.xlu0
        %v2483 = vpop.trf.xlu0
        %v2484 = vpop.trf.xlu0
        %v2485 = vpop.trf.xlu0
        %2486 = vxpose.xlu0.c.b16.start [1/8] %v2074, 128
        %2487 = vxpose.xlu0.c.b16.cont [2/8] 0, 128
        %2488 = vxpose.xlu0.c.b16.cont [3/8] 0, 128
        %2489 = vxpose.xlu0.c.b16.cont [4/8] 0, 128
        %2490 = vxpose.xlu0.c.b16.cont [5/8] 0, 128
        %2491 = vxpose.xlu0.c.b16.cont [6/8] 0, 128
        %2492 = vxpose.xlu0.c.b16.cont [7/8] 0, 128
        %2493 = vxpose.xlu0.c.b16.end [8/8] 0, 128
        %v2494 = vpop.trf.xlu0
        %v2495 = vpop.trf.xlu0
        %v2496 = vpop.trf.xlu0
        %v2497 = vpop.trf.xlu0
        %v2498 = vpop.trf.xlu0
        %v2499 = vpop.trf.xlu0
        %v2500 = vpop.trf.xlu0
        %v2501 = vpop.trf.xlu0
        %2502 = vxpose.xlu0.c.b16.start [1/8] %v2016, 128
        %2503 = vxpose.xlu0.c.b16.cont [2/8] 0, 128
        %2504 = vxpose.xlu0.c.b16.cont [3/8] 0, 128
        %2505 = vxpose.xlu0.c.b16.cont [4/8] 0, 128
        %2506 = vxpose.xlu0.c.b16.cont [5/8] 0, 128
        %2507 = vxpose.xlu0.c.b16.cont [6/8] 0, 128
        %2508 = vxpose.xlu0.c.b16.cont [7/8] 0, 128
        %2509 = vxpose.xlu0.c.b16.end [8/8] 0, 128
        %v2510 = vpop.trf.xlu0
        %v2511 = vpop.trf.xlu0
        %v2512 = vpop.trf.xlu0
        %v2513 = vpop.trf.xlu0
        %v2514 = vpop.trf.xlu0
        %v2515 = vpop.trf.xlu0
        %v2516 = vpop.trf.xlu0
        %v2517 = vpop.trf.xlu0
        %2518 = vxpose.xlu0.c.b16.start [1/8] %v2084, 128
        %2519 = vxpose.xlu0.c.b16.cont [2/8] 0, 128
        %2520 = vxpose.xlu0.c.b16.cont [3/8] 0, 128
        %2521 = vxpose.xlu0.c.b16.cont [4/8] 0, 128
        %2522 = vxpose.xlu0.c.b16.cont [5/8] 0, 128
        %2523 = vxpose.xlu0.c.b16.cont [6/8] 0, 128
        %2524 = vxpose.xlu0.c.b16.cont [7/8] 0, 128
        %2525 = vxpose.xlu0.c.b16.end [8/8] 0, 128
        %v2526 = vpop.trf.xlu0
        %v2527 = vpop.trf.xlu0
        %v2528 = vpop.trf.xlu0
        %v2529 = vpop.trf.xlu0
        %v2530 = vpop.trf.xlu0
        %v2531 = vpop.trf.xlu0
        %v2532 = vpop.trf.xlu0
        %v2533 = vpop.trf.xlu0
        %2534 = vxpose.xlu0.c.b16.start [1/8] %v2013, 128
        %2535 = vxpose.xlu0.c.b16.cont [2/8] 0, 128
        %2536 = vxpose.xlu0.c.b16.cont [3/8] 0, 128
        %2537 = vxpose.xlu0.c.b16.cont [4/8] 0, 128
        %2538 = vxpose.xlu0.c.b16.cont [5/8] 0, 128
        %2539 = vxpose.xlu0.c.b16.cont [6/8] 0, 128
        %2540 = vxpose.xlu0.c.b16.cont [7/8] 0, 128
        %2541 = vxpose.xlu0.c.b16.end [8/8] 0, 128
        %v2542 = vpop.trf.xlu0
        %v2543 = vpop.trf.xlu0
        %v2544 = vpop.trf.xlu0
        %v2545 = vpop.trf.xlu0
        %v2546 = vpop.trf.xlu0
        %v2547 = vpop.trf.xlu0
        %v2548 = vpop.trf.xlu0
        %v2549 = vpop.trf.xlu0
        %2550 = vxpose.xlu0.c.b16.start [1/8] %v2081, 128
        %2551 = vxpose.xlu0.c.b16.cont [2/8] 0, 128
        %2552 = vxpose.xlu0.c.b16.cont [3/8] 0, 128
        %2553 = vxpose.xlu0.c.b16.cont [4/8] 0, 128
        %2554 = vxpose.xlu0.c.b16.cont [5/8] 0, 128
        %2555 = vxpose.xlu0.c.b16.cont [6/8] 0, 128
        %2556 = vxpose.xlu0.c.b16.cont [7/8] 0, 128
        %2557 = vxpose.xlu0.c.b16.end [8/8] 0, 128
        %v2558 = vpop.trf.xlu0
        %v2559 = vpop.trf.xlu0
        %v2560 = vpop.trf.xlu0
        %v2561 = vpop.trf.xlu0
        %v2562 = vpop.trf.xlu0
        %v2563 = vpop.trf.xlu0
        %v2564 = vpop.trf.xlu0
        %v2565 = vpop.trf.xlu0
        %2566 = vxpose.xlu0.c.b16.start [1/8] %v2017, 128
        %2567 = vxpose.xlu0.c.b16.cont [2/8] 0, 128
        %2568 = vxpose.xlu0.c.b16.cont [3/8] 0, 128
        %2569 = vxpose.xlu0.c.b16.cont [4/8] 0, 128
        %2570 = vxpose.xlu0.c.b16.cont [5/8] 0, 128
        %2571 = vxpose.xlu0.c.b16.cont [6/8] 0, 128
        %2572 = vxpose.xlu0.c.b16.cont [7/8] 0, 128
        %2573 = vxpose.xlu0.c.b16.end [8/8] 0, 128
        %v2574 = vpop.trf.xlu0
        %v2575 = vpop.trf.xlu0
        %v2576 = vpop.trf.xlu0
        %v2577 = vpop.trf.xlu0
        %v2578 = vpop.trf.xlu0
        %v2579 = vpop.trf.xlu0
        %v2580 = vpop.trf.xlu0
        %v2581 = vpop.trf.xlu0
        %2582 = vxpose.xlu0.c.b16.start [1/8] %v2085, 128
        %2583 = vxpose.xlu0.c.b16.cont [2/8] 0, 128
        %2584 = vxpose.xlu0.c.b16.cont [3/8] 0, 128
        %2585 = vxpose.xlu0.c.b16.cont [4/8] 0, 128
        %2586 = vxpose.xlu0.c.b16.cont [5/8] 0, 128
        %2587 = vxpose.xlu0.c.b16.cont [6/8] 0, 128
        %2588 = vxpose.xlu0.c.b16.cont [7/8] 0, 128
        %2589 = vxpose.xlu0.c.b16.end [8/8] 0, 128
        %v2590 = vpop.trf.xlu0
        %v2591 = vpop.trf.xlu0
        %v2592 = vpop.trf.xlu0
        %v2593 = vpop.trf.xlu0
        %v2594 = vpop.trf.xlu0
        %v2595 = vpop.trf.xlu0
        %v2596 = vpop.trf.xlu0
        %v2597 = vpop.trf.xlu0
        %v2598 = vcombine.low %v2094, %v2158
        %v2600 = vunpack.c.l.s4 1983009808
        %v2601 = vunpack.c.0.s8 %v2600
        %v2602 = vlaneseq
        %v2603 = vshrl.u32 %v2602, 7
        %v2604 = vsub.s32 %v2601, %v2603
        %v2605 = vrot.slane %v2598, %v2604
        %v2606 = vcombine.low %v2126, %v2190
        %v2608 = vunpack.c.l.s4 1983009808
        %v2609 = vunpack.c.0.s8 %v2608
        %v2610 = vlaneseq
        %v2611 = vshrl.u32 %v2610, 7
        %v2612 = vsub.s32 %v2609, %v2611
        %v2613 = vrot.slane %v2606, %v2612
        %v2614 = vcombine.low %v2222, %v2286
        %v2616 = vunpack.c.l.s4 1983009808
        %v2617 = vunpack.c.0.s8 %v2616
        %v2618 = vlaneseq
        %v2619 = vshrl.u32 %v2618, 7
        %v2620 = vsub.s32 %v2617, %v2619
        %v2621 = vrot.slane %v2614, %v2620
        %v2622 = vcombine.low %v2254, %v2318
        %v2624 = vunpack.c.l.s4 1983009808
        %v2625 = vunpack.c.0.s8 %v2624
        %v2626 = vlaneseq
        %v2627 = vshrl.u32 %v2626, 7
        %v2628 = vsub.s32 %v2625, %v2627
        %v2629 = vrot.slane %v2622, %v2628
        %v2630 = vcombine.low %v2605, %v2613
        %v2632 = vunpack.c.l.s4 1934713408
        %v2633 = vunpack.c.0.s8 %v2632
        %v2634 = vlaneseq
        %v2635 = vshrl.u32 %v2634, 7
        %v2636 = vsub.s32 %v2633, %v2635
        %v2637 = vrot.slane %v2630, %v2636
        %v2638 = vcombine.low %v2621, %v2629
        %v2640 = vunpack.c.l.s4 1934713408
        %v2641 = vunpack.c.0.s8 %v2640
        %v2642 = vlaneseq
        %v2643 = vshrl.u32 %v2642, 7
        %v2644 = vsub.s32 %v2641, %v2643
        %v2645 = vrot.slane %v2638, %v2644
        %v2646 = vcombine.low %v2637, %v2645
        %v2647 = vcombine.high %v2637, %v2645
        %v2648 = vcombine.low %v2110, %v2174
        %v2650 = vunpack.c.l.s4 1983009808
        %v2651 = vunpack.c.0.s8 %v2650
        %v2652 = vlaneseq
        %v2653 = vshrl.u32 %v2652, 7
        %v2654 = vsub.s32 %v2651, %v2653
        %v2655 = vrot.slane %v2648, %v2654
        %v2656 = vcombine.low %v2142, %v2206
        %v2658 = vunpack.c.l.s4 1983009808
        %v2659 = vunpack.c.0.s8 %v2658
        %v2660 = vlaneseq
        %v2661 = vshrl.u32 %v2660, 7
        %v2662 = vsub.s32 %v2659, %v2661
        %v2663 = vrot.slane %v2656, %v2662
        %v2664 = vcombine.low %v2238, %v2302
        %v2666 = vunpack.c.l.s4 1983009808
        %v2667 = vunpack.c.0.s8 %v2666
        %v2668 = vlaneseq
        %v2669 = vshrl.u32 %v2668, 7
        %v2670 = vsub.s32 %v2667, %v2669
        %v2671 = vrot.slane %v2664, %v2670
        %v2672 = vcombine.low %v2270, %v2334
        %v2674 = vunpack.c.l.s4 1983009808
        %v2675 = vunpack.c.0.s8 %v2674
        %v2676 = vlaneseq
        %v2677 = vshrl.u32 %v2676, 7
        %v2678 = vsub.s32 %v2675, %v2677
        %v2679 = vrot.slane %v2672, %v2678
        %v2680 = vcombine.low %v2655, %v2663
        %v2682 = vunpack.c.l.s4 1934713408
        %v2683 = vunpack.c.0.s8 %v2682
        %v2684 = vlaneseq
        %v2685 = vshrl.u32 %v2684, 7
        %v2686 = vsub.s32 %v2683, %v2685
        %v2687 = vrot.slane %v2680, %v2686
        %v2688 = vcombine.low %v2671, %v2679
        %v2690 = vunpack.c.l.s4 1934713408
        %v2691 = vunpack.c.0.s8 %v2690
        %v2692 = vlaneseq
        %v2693 = vshrl.u32 %v2692, 7
        %v2694 = vsub.s32 %v2691, %v2693
        %v2695 = vrot.slane %v2688, %v2694
        %v2696 = vcombine.low %v2687, %v2695
        %v2697 = vcombine.high %v2687, %v2695
        %v2698 = vcombine.low %v2350, %v2414
        %v2700 = vunpack.c.l.s4 1983009808
        %v2701 = vunpack.c.0.s8 %v2700
        %v2702 = vlaneseq
        %v2703 = vshrl.u32 %v2702, 7
        %v2704 = vsub.s32 %v2701, %v2703
        %v2705 = vrot.slane %v2698, %v2704
        %v2706 = vcombine.low %v2382, %v2446
        %v2708 = vunpack.c.l.s4 1983009808
        %v2709 = vunpack.c.0.s8 %v2708
        %v2710 = vlaneseq
        %v2711 = vshrl.u32 %v2710, 7
        %v2712 = vsub.s32 %v2709, %v2711
        %v2713 = vrot.slane %v2706, %v2712
        %v2714 = vcombine.low %v2478, %v2542
        %v2716 = vunpack.c.l.s4 1983009808
        %v2717 = vunpack.c.0.s8 %v2716
        %v2718 = vlaneseq
        %v2719 = vshrl.u32 %v2718, 7
        %v2720 = vsub.s32 %v2717, %v2719
        %v2721 = vrot.slane %v2714, %v2720
        %v2722 = vcombine.low %v2510, %v2574
        %v2724 = vunpack.c.l.s4 1983009808
        %v2725 = vunpack.c.0.s8 %v2724
        %v2726 = vlaneseq
        %v2727 = vshrl.u32 %v2726, 7
        %v2728 = vsub.s32 %v2725, %v2727
        %v2729 = vrot.slane %v2722, %v2728
        %v2730 = vcombine.low %v2705, %v2713
        %v2732 = vunpack.c.l.s4 1934713408
        %v2733 = vunpack.c.0.s8 %v2732
        %v2734 = vlaneseq
        %v2735 = vshrl.u32 %v2734, 7
        %v2736 = vsub.s32 %v2733, %v2735
        %v2737 = vrot.slane %v2730, %v2736
        %v2738 = vcombine.low %v2721, %v2729
        %v2740 = vunpack.c.l.s4 1934713408
        %v2741 = vunpack.c.0.s8 %v2740
        %v2742 = vlaneseq
        %v2743 = vshrl.u32 %v2742, 7
        %v2744 = vsub.s32 %v2741, %v2743
        %v2745 = vrot.slane %v2738, %v2744
        %v2746 = vcombine.low %v2737, %v2745
        %v2747 = vcombine.high %v2737, %v2745
        %v2748 = vcombine.low %v2366, %v2430
        %v2750 = vunpack.c.l.s4 1983009808
        %v2751 = vunpack.c.0.s8 %v2750
        %v2752 = vlaneseq
        %v2753 = vshrl.u32 %v2752, 7
        %v2754 = vsub.s32 %v2751, %v2753
        %v2755 = vrot.slane %v2748, %v2754
        %v2756 = vcombine.low %v2398, %v2462
        %v2758 = vunpack.c.l.s4 1983009808
        %v2759 = vunpack.c.0.s8 %v2758
        %v2760 = vlaneseq
        %v2761 = vshrl.u32 %v2760, 7
        %v2762 = vsub.s32 %v2759, %v2761
        %v2763 = vrot.slane %v2756, %v2762
        %v2764 = vcombine.low %v2494, %v2558
        %v2766 = vunpack.c.l.s4 1983009808
        %v2767 = vunpack.c.0.s8 %v2766
        %v2768 = vlaneseq
        %v2769 = vshrl.u32 %v2768, 7
        %v2770 = vsub.s32 %v2767, %v2769
        %v2771 = vrot.slane %v2764, %v2770
        %v2772 = vcombine.low %v2526, %v2590
        %v2774 = vunpack.c.l.s4 1983009808
        %v2775 = vunpack.c.0.s8 %v2774
        %v2776 = vlaneseq
        %v2777 = vshrl.u32 %v2776, 7
        %v2778 = vsub.s32 %v2775, %v2777
        %v2779 = vrot.slane %v2772, %v2778
        %v2780 = vcombine.low %v2755, %v2763
        %v2782 = vunpack.c.l.s4 1934713408
        %v2783 = vunpack.c.0.s8 %v2782
        %v2784 = vlaneseq
        %v2785 = vshrl.u32 %v2784, 7
        %v2786 = vsub.s32 %v2783, %v2785
        %v2787 = vrot.slane %v2780, %v2786
        %v2788 = vcombine.low %v2771, %v2779
        %v2790 = vunpack.c.l.s4 1934713408
        %v2791 = vunpack.c.0.s8 %v2790
        %v2792 = vlaneseq
        %v2793 = vshrl.u32 %v2792, 7
        %v2794 = vsub.s32 %v2791, %v2793
        %v2795 = vrot.slane %v2788, %v2794
        %v2796 = vcombine.low %v2787, %v2795
        %v2797 = vcombine.high %v2787, %v2795
        %v2800 = vpack.i.b16 %v2696, %v2646
        %v2802 = vshrl.u32 %v2646, 16
        %v2803 = vshrl.u32 %v2696, 16
        %v2804 = vpack.i.b16 %v2803, %v2802
        %v2808 = vpack.i.b16 %v2697, %v2647
        %v2810 = vshrl.u32 %v2647, 16
        %v2811 = vshrl.u32 %v2697, 16
        %v2812 = vpack.i.b16 %v2811, %v2810
        %v2816 = vpack.i.b16 %v2796, %v2746
        %v2818 = vshrl.u32 %v2746, 16
        %v2819 = vshrl.u32 %v2796, 16
        %v2820 = vpack.i.b16 %v2819, %v2818
        %v2824 = vpack.i.b16 %v2797, %v2747
        %v2826 = vshrl.u32 %v2747, 16
        %v2827 = vshrl.u32 %v2797, 16
        %v2828 = vpack.i.b16 %v2827, %v2826
        %vm2830 = vcmask 261120
        %v2832 = vsel %vm2830, %v1612, 0
        %2834 = vmatprep.subr.bf16.mxu0 0
        %2835 = vmatpush1.bf16.msra.mxu0 0
        %2836 = vmatprep.subr.bf16.mxu0 0
        %2837 = vmatpush1.bf16.msra.mxu0 0
        %2838 = vmatprep.subr.bf16.mxu0 0
        %2839 = vmatpush1.bf16.msra.mxu0 0
        %2840 = vmatprep.subr.bf16.mxu0 0
        %2841 = vmatpush1.bf16.msra.mxu0 0
        %2842 = vmatprep.subr.bf16.mxu0 0
        %2843 = vmatpush1.bf16.msra.mxu0 0
        %2844 = vmatprep.subr.bf16.mxu0 0
        %2845 = vmatpush1.bf16.msra.mxu0 0
        %2846 = vmatprep.subr.bf16.mxu0 0
        %2847 = vmatpush1.bf16.msra.mxu0 %v2816
        %2848 = vmatprep.subr.bf16.mxu0 0
        %2849 = vmatpush1.bf16.msra.mxu0 %v2800
        %2850 = vmatprep.subr.bf16.mxu0 0
        %2851 = vmatpush2.bf16.msra.mxu0 0
        %2852 = vmatprep.subr.bf16.mxu0 0
        %2853 = vmatpush2.bf16.msra.mxu0 0
        %2854 = vmatprep.subr.bf16.mxu0 0
        %2855 = vmatpush2.bf16.msra.mxu0 0
        %2856 = vmatprep.subr.bf16.mxu0 0
        %2857 = vmatpush2.bf16.msra.mxu0 0
        %2858 = vmatprep.subr.bf16.mxu0 0
        %2859 = vmatpush2.bf16.msra.mxu0 0
        %2860 = vmatprep.subr.bf16.mxu0 0
        %2861 = vmatpush2.bf16.msra.mxu0 0
        %2862 = vmatprep.subr.bf16.mxu0 0
        %2863 = vmatpush2.bf16.msra.mxu0 0
        %2864 = vmatprep.subr.bf16.mxu0 0
        %2865 = vmatpush2.bf16.msra.mxu0 0
        %2866 = vmatprep.mubr.bf16.mxu0 0
        %2867 = vmatmul.mubr.bf16.gmra.mxu0 %v2832
        %v2868 = vpop.f32.mrf.mxu0
        %v2869 = vadd.f32 0.0, %v2868
        %v2870 = vpop.f32.mrf.mxu0
        %v2871 = vpop.f32.mrf.mxu0
        %v2872 = vpop.f32.mrf.mxu0
        %2873 = vdwg.mxu0
        %v2875 = vsel %vm2830, %v1615, 0
        %2877 = vmatprep.subr.bf16.mxu0 0
        %2878 = vmatpush1.bf16.msra.mxu0 0
        %2879 = vmatprep.subr.bf16.mxu0 0
        %2880 = vmatpush1.bf16.msra.mxu0 0
        %2881 = vmatprep.subr.bf16.mxu0 0
        %2882 = vmatpush1.bf16.msra.mxu0 0
        %2883 = vmatprep.subr.bf16.mxu0 0
        %2884 = vmatpush1.bf16.msra.mxu0 0
        %2885 = vmatprep.subr.bf16.mxu0 0
        %2886 = vmatpush1.bf16.msra.mxu0 0
        %2887 = vmatprep.subr.bf16.mxu0 0
        %2888 = vmatpush1.bf16.msra.mxu0 0
        %2889 = vmatprep.subr.bf16.mxu0 0
        %2890 = vmatpush1.bf16.msra.mxu0 %v2820
        %2891 = vmatprep.subr.bf16.mxu0 0
        %2892 = vmatpush1.bf16.msra.mxu0 %v2804
        %2893 = vmatprep.subr.bf16.mxu0 0
        %2894 = vmatpush2.bf16.msra.mxu0 0
        %2895 = vmatprep.subr.bf16.mxu0 0
        %2896 = vmatpush2.bf16.msra.mxu0 0
        %2897 = vmatprep.subr.bf16.mxu0 0
        %2898 = vmatpush2.bf16.msra.mxu0 0
        %2899 = vmatprep.subr.bf16.mxu0 0
        %2900 = vmatpush2.bf16.msra.mxu0 0
        %2901 = vmatprep.subr.bf16.mxu0 0
        %2902 = vmatpush2.bf16.msra.mxu0 0
        %2903 = vmatprep.subr.bf16.mxu0 0
        %2904 = vmatpush2.bf16.msra.mxu0 0
        %2905 = vmatprep.subr.bf16.mxu0 0
        %2906 = vmatpush2.bf16.msra.mxu0 0
        %2907 = vmatprep.subr.bf16.mxu0 0
        %2908 = vmatpush2.bf16.msra.mxu0 0
        %2909 = vmatprep.mubr.bf16.mxu0 0
        %2910 = vmatmul.mubr.bf16.gmra.mxu0 %v2875
        %v2911 = vpop.f32.mrf.mxu0
        %v2912 = vadd.f32 0.0, %v2911
        %v2913 = vpop.f32.mrf.mxu0
        %v2914 = vpop.f32.mrf.mxu0
        %v2915 = vpop.f32.mrf.mxu0
        %2916 = vdwg.mxu0
        %v2918 = vsel %vm2830, %v1618, 0
        %2920 = vmatprep.subr.bf16.mxu0 0
        %2921 = vmatpush1.bf16.msra.mxu0 0
        %2922 = vmatprep.subr.bf16.mxu0 0
        %2923 = vmatpush1.bf16.msra.mxu0 0
        %2924 = vmatprep.subr.bf16.mxu0 0
        %2925 = vmatpush1.bf16.msra.mxu0 0
        %2926 = vmatprep.subr.bf16.mxu0 0
        %2927 = vmatpush1.bf16.msra.mxu0 0
        %2928 = vmatprep.subr.bf16.mxu0 0
        %2929 = vmatpush1.bf16.msra.mxu0 0
        %2930 = vmatprep.subr.bf16.mxu0 0
        %2931 = vmatpush1.bf16.msra.mxu0 0
        %2932 = vmatprep.subr.bf16.mxu0 0
        %2933 = vmatpush1.bf16.msra.mxu0 %v2824
        %2934 = vmatprep.subr.bf16.mxu0 0
        %2935 = vmatpush1.bf16.msra.mxu0 %v2808
        %2936 = vmatprep.subr.bf16.mxu0 0
        %2937 = vmatpush2.bf16.msra.mxu0 0
        %2938 = vmatprep.subr.bf16.mxu0 0
        %2939 = vmatpush2.bf16.msra.mxu0 0
        %2940 = vmatprep.subr.bf16.mxu0 0
        %2941 = vmatpush2.bf16.msra.mxu0 0
        %2942 = vmatprep.subr.bf16.mxu0 0
        %2943 = vmatpush2.bf16.msra.mxu0 0
        %2944 = vmatprep.subr.bf16.mxu0 0
        %2945 = vmatpush2.bf16.msra.mxu0 0
        %2946 = vmatprep.subr.bf16.mxu0 0
        %2947 = vmatpush2.bf16.msra.mxu0 0
        %2948 = vmatprep.subr.bf16.mxu0 0
        %2949 = vmatpush2.bf16.msra.mxu0 0
        %2950 = vmatprep.subr.bf16.mxu0 0
        %2951 = vmatpush2.bf16.msra.mxu0 0
        %2952 = vmatprep.mubr.bf16.mxu0 0
        %2953 = vmatmul.mubr.bf16.gmra.mxu0 %v2918
        %v2954 = vpop.f32.mrf.mxu0
        %v2955 = vadd.f32 0.0, %v2954
        %v2956 = vpop.f32.mrf.mxu0
        %v2957 = vpop.f32.mrf.mxu0
        %v2958 = vpop.f32.mrf.mxu0
        %2959 = vdwg.mxu0
        %v2961 = vsel %vm2830, %v1621, 0
        %2963 = vmatprep.subr.bf16.mxu0 0
        %2964 = vmatpush1.bf16.msra.mxu0 0
        %2965 = vmatprep.subr.bf16.mxu0 0
        %2966 = vmatpush1.bf16.msra.mxu0 0
        %2967 = vmatprep.subr.bf16.mxu0 0
        %2968 = vmatpush1.bf16.msra.mxu0 0
        %2969 = vmatprep.subr.bf16.mxu0 0
        %2970 = vmatpush1.bf16.msra.mxu0 0
        %2971 = vmatprep.subr.bf16.mxu0 0
        %2972 = vmatpush1.bf16.msra.mxu0 0
        %2973 = vmatprep.subr.bf16.mxu0 0
        %2974 = vmatpush1.bf16.msra.mxu0 0
        %2975 = vmatprep.subr.bf16.mxu0 0
        %2976 = vmatpush1.bf16.msra.mxu0 %v2828
        %2977 = vmatprep.subr.bf16.mxu0 0
        %2978 = vmatpush1.bf16.msra.mxu0 %v2812
        %2979 = vmatprep.subr.bf16.mxu0 0
        %2980 = vmatpush2.bf16.msra.mxu0 0
        %2981 = vmatprep.subr.bf16.mxu0 0
        %2982 = vmatpush2.bf16.msra.mxu0 0
        %2983 = vmatprep.subr.bf16.mxu0 0
        %2984 = vmatpush2.bf16.msra.mxu0 0
        %2985 = vmatprep.subr.bf16.mxu0 0
        %2986 = vmatpush2.bf16.msra.mxu0 0
        %2987 = vmatprep.subr.bf16.mxu0 0
        %2988 = vmatpush2.bf16.msra.mxu0 0
        %2989 = vmatprep.subr.bf16.mxu0 0
        %2990 = vmatpush2.bf16.msra.mxu0 0
        %2991 = vmatprep.subr.bf16.mxu0 0
        %2992 = vmatpush2.bf16.msra.mxu0 0
        %2993 = vmatprep.subr.bf16.mxu0 0
        %2994 = vmatpush2.bf16.msra.mxu0 0
        %2995 = vmatprep.mubr.bf16.mxu0 0
        %2996 = vmatmul.mubr.bf16.gmra.mxu0 %v2961
        %v2997 = vpop.f32.mrf.mxu0
        %v2998 = vadd.f32 0.0, %v2997
        %v2999 = vpop.f32.mrf.mxu0
        %v3000 = vpop.f32.mrf.mxu0
        %v3001 = vpop.f32.mrf.mxu0
        %3002 = vdwg.mxu0
        %v3003 = vmul.f32 %v2869, 0.17677669
        %v3004 = vmul.f32 %v2912, 0.17677669
        %v3005 = vmul.f32 %v2955, 0.17677669
        %v3006 = vmul.f32 %v2998, 0.17677669
        %v3007 = vadd.f32 %v3003, %v964
        %v3008 = vadd.f32 %v3004, %v964
        %v3009 = vadd.f32 %v3005, %v964
        %v3010 = vadd.f32 %v3006, %v964
        %vm3011 = vcmask 64512
        %v3012 = vsel %vm3011, %v3007, -inf
        %3013 = vmax.xlane.f32.xlu0 %v3012
        %v3014 = vpop.xlane.xlu0 %3013
        %v3015 = vsel %vm3011, %v3008, -inf
        %3016 = vmax.xlane.f32.xlu0 %v3015
        %v3017 = vpop.xlane.xlu0 %3016
        %v3018 = vsel %vm3011, %v3009, -inf
        %3019 = vmax.xlane.f32.xlu0 %v3018
        %v3020 = vpop.xlane.xlu0 %3019
        %v3021 = vsel %vm3011, %v3010, -inf
        %3022 = vmax.xlane.f32.xlu0 %v3021
        %v3023 = vpop.xlane.xlu0 %3022
        %v3024 = vsub.f32 %v3007, %v3014
        %v3025 = vsub.f32 %v3008, %v3017
        %v3026 = vsub.f32 %v3009, %v3020
        %v3027 = vsub.f32 %v3010, %v3023
        %v3028 = vmul.f32 %v3024, 1.442695
        %v3029 = vpow.pop %v3028
        %v3030 = vmul.f32 %v3025, 1.442695
        %v3031 = vpow.pop %v3030
        %v3032 = vmul.f32 %v3026, 1.442695
        %v3033 = vpow.pop %v3032
        %v3034 = vmul.f32 %v3027, 1.442695
        %v3035 = vpow.pop %v3034
        %v3036 = vsel %vm3011, %v3029, 0.0
        %3037 = vadd.xlane.f32.xlu0 %v3036
        %v3038 = vpop.xlane.xlu0 %3037
        %v3039 = vsel %vm3011, %v3031, 0.0
        %3040 = vadd.xlane.f32.xlu0 %v3039
        %v3041 = vpop.xlane.xlu0 %3040
        %v3042 = vsel %vm3011, %v3033, 0.0
        %3043 = vadd.xlane.f32.xlu0 %v3042
        %v3044 = vpop.xlane.xlu0 %3043
        %v3045 = vsel %vm3011, %v3035, 0.0
        %3046 = vadd.xlane.f32.xlu0 %v3045
        %v3047 = vpop.xlane.xlu0 %3046
        %v3048 = vrcp.pop %v3038
        %v3049 = vrcp.pop %v3041
        %v3050 = vrcp.pop %v3044
        %v3051 = vrcp.pop %v3047
        %v3052 = vmul.f32 %v3029, %v3048
        %v3053 = vmul.f32 %v3031, %v3049
        %v3054 = vmul.f32 %v3033, %v3050
        %v3055 = vmul.f32 %v3035, %v3051
        %v3056 = vpack.c.bf16 %v3052, %v3052
        %v3057 = vpack.c.bf16 %v3053, %v3053
        %v3058 = vpack.c.bf16 %v3054, %v3054
        %v3059 = vpack.c.bf16 %v3055, %v3055
        %3060 = vxpose.xlu0.c.b16.start [1/8] %v1552, 128
        %3061 = vxpose.xlu0.c.b16.cont [2/8] 0, 128
        %3062 = vxpose.xlu0.c.b16.cont [3/8] 0, 128
        %3063 = vxpose.xlu0.c.b16.cont [4/8] 0, 128
        %3064 = vxpose.xlu0.c.b16.cont [5/8] 0, 128
        %3065 = vxpose.xlu0.c.b16.cont [6/8] 0, 128
        %3066 = vxpose.xlu0.c.b16.cont [7/8] 0, 128
        %3067 = vxpose.xlu0.c.b16.end [8/8] 0, 128
        %v3068 = vpop.trf.xlu0
        %v3069 = vpop.trf.xlu0
        %v3070 = vpop.trf.xlu0
        %v3071 = vpop.trf.xlu0
        %v3072 = vpop.trf.xlu0
        %v3073 = vpop.trf.xlu0
        %v3074 = vpop.trf.xlu0
        %v3075 = vpop.trf.xlu0
        %3076 = vxpose.xlu0.c.b16.start [1/8] %v1553, 128
        %3077 = vxpose.xlu0.c.b16.cont [2/8] 0, 128
        %3078 = vxpose.xlu0.c.b16.cont [3/8] 0, 128
        %3079 = vxpose.xlu0.c.b16.cont [4/8] 0, 128
        %3080 = vxpose.xlu0.c.b16.cont [5/8] 0, 128
        %3081 = vxpose.xlu0.c.b16.cont [6/8] 0, 128
        %3082 = vxpose.xlu0.c.b16.cont [7/8] 0, 128
        %3083 = vxpose.xlu0.c.b16.end [8/8] 0, 128
        %v3084 = vpop.trf.xlu0
        %v3085 = vpop.trf.xlu0
        %v3086 = vpop.trf.xlu0
        %v3087 = vpop.trf.xlu0
        %v3088 = vpop.trf.xlu0
        %v3089 = vpop.trf.xlu0
        %v3090 = vpop.trf.xlu0
        %v3091 = vpop.trf.xlu0
        %3092 = vxpose.xlu0.c.b16.start [1/8] %v1554, 128
        %3093 = vxpose.xlu0.c.b16.cont [2/8] 0, 128
        %3094 = vxpose.xlu0.c.b16.cont [3/8] 0, 128
        %3095 = vxpose.xlu0.c.b16.cont [4/8] 0, 128
        %3096 = vxpose.xlu0.c.b16.cont [5/8] 0, 128
        %3097 = vxpose.xlu0.c.b16.cont [6/8] 0, 128
        %3098 = vxpose.xlu0.c.b16.cont [7/8] 0, 128
        %3099 = vxpose.xlu0.c.b16.end [8/8] 0, 128
        %v3100 = vpop.trf.xlu0
        %v3101 = vpop.trf.xlu0
        %v3102 = vpop.trf.xlu0
        %v3103 = vpop.trf.xlu0
        %v3104 = vpop.trf.xlu0
        %v3105 = vpop.trf.xlu0
        %v3106 = vpop.trf.xlu0
        %v3107 = vpop.trf.xlu0
        %3108 = vxpose.xlu0.c.b16.start [1/8] %v1555, 128
        %3109 = vxpose.xlu0.c.b16.cont [2/8] 0, 128
        %3110 = vxpose.xlu0.c.b16.cont [3/8] 0, 128
        %3111 = vxpose.xlu0.c.b16.cont [4/8] 0, 128
        %3112 = vxpose.xlu0.c.b16.cont [5/8] 0, 128
        %3113 = vxpose.xlu0.c.b16.cont [6/8] 0, 128
        %3114 = vxpose.xlu0.c.b16.cont [7/8] 0, 128
        %3115 = vxpose.xlu0.c.b16.end [8/8] 0, 128
        %v3116 = vpop.trf.xlu0
        %v3117 = vpop.trf.xlu0
        %v3118 = vpop.trf.xlu0
        %v3119 = vpop.trf.xlu0
        %v3120 = vpop.trf.xlu0
        %v3121 = vpop.trf.xlu0
        %v3122 = vpop.trf.xlu0
        %v3123 = vpop.trf.xlu0
        %3124 = vxpose.xlu0.c.b16.start [1/8] %v1556, 128
        %3125 = vxpose.xlu0.c.b16.cont [2/8] 0, 128
        %3126 = vxpose.xlu0.c.b16.cont [3/8] 0, 128
        %3127 = vxpose.xlu0.c.b16.cont [4/8] 0, 128
        %3128 = vxpose.xlu0.c.b16.cont [5/8] 0, 128
        %3129 = vxpose.xlu0.c.b16.cont [6/8] 0, 128
        %3130 = vxpose.xlu0.c.b16.cont [7/8] 0, 128
        %3131 = vxpose.xlu0.c.b16.end [8/8] 0, 128
        %v3132 = vpop.trf.xlu0
        %v3133 = vpop.trf.xlu0
        %v3134 = vpop.trf.xlu0
        %v3135 = vpop.trf.xlu0
        %v3136 = vpop.trf.xlu0
        %v3137 = vpop.trf.xlu0
        %v3138 = vpop.trf.xlu0
        %v3139 = vpop.trf.xlu0
        %3140 = vxpose.xlu0.c.b16.start [1/8] %v1557, 128
        %3141 = vxpose.xlu0.c.b16.cont [2/8] 0, 128
        %3142 = vxpose.xlu0.c.b16.cont [3/8] 0, 128
        %3143 = vxpose.xlu0.c.b16.cont [4/8] 0, 128
        %3144 = vxpose.xlu0.c.b16.cont [5/8] 0, 128
        %3145 = vxpose.xlu0.c.b16.cont [6/8] 0, 128
        %3146 = vxpose.xlu0.c.b16.cont [7/8] 0, 128
        %3147 = vxpose.xlu0.c.b16.end [8/8] 0, 128
        %v3148 = vpop.trf.xlu0
        %v3149 = vpop.trf.xlu0
        %v3150 = vpop.trf.xlu0
        %v3151 = vpop.trf.xlu0
        %v3152 = vpop.trf.xlu0
        %v3153 = vpop.trf.xlu0
        %v3154 = vpop.trf.xlu0
        %v3155 = vpop.trf.xlu0
        %3156 = vxpose.xlu0.c.b16.start [1/8] %v1558, 128
        %3157 = vxpose.xlu0.c.b16.cont [2/8] 0, 128
        %3158 = vxpose.xlu0.c.b16.cont [3/8] 0, 128
        %3159 = vxpose.xlu0.c.b16.cont [4/8] 0, 128
        %3160 = vxpose.xlu0.c.b16.cont [5/8] 0, 128
        %3161 = vxpose.xlu0.c.b16.cont [6/8] 0, 128
        %3162 = vxpose.xlu0.c.b16.cont [7/8] 0, 128
        %3163 = vxpose.xlu0.c.b16.end [8/8] 0, 128
        %v3164 = vpop.trf.xlu0
        %v3165 = vpop.trf.xlu0
        %v3166 = vpop.trf.xlu0
        %v3167 = vpop.trf.xlu0
        %v3168 = vpop.trf.xlu0
        %v3169 = vpop.trf.xlu0
        %v3170 = vpop.trf.xlu0
        %v3171 = vpop.trf.xlu0
        %3172 = vxpose.xlu0.c.b16.start [1/8] %v1559, 128
        %3173 = vxpose.xlu0.c.b16.cont [2/8] 0, 128
        %3174 = vxpose.xlu0.c.b16.cont [3/8] 0, 128
        %3175 = vxpose.xlu0.c.b16.cont [4/8] 0, 128
        %3176 = vxpose.xlu0.c.b16.cont [5/8] 0, 128
        %3177 = vxpose.xlu0.c.b16.cont [6/8] 0, 128
        %3178 = vxpose.xlu0.c.b16.cont [7/8] 0, 128
        %3179 = vxpose.xlu0.c.b16.end [8/8] 0, 128
        %v3180 = vpop.trf.xlu0
        %v3181 = vpop.trf.xlu0
        %v3182 = vpop.trf.xlu0
        %v3183 = vpop.trf.xlu0
        %v3184 = vpop.trf.xlu0
        %v3185 = vpop.trf.xlu0
        %v3186 = vpop.trf.xlu0
        %v3187 = vpop.trf.xlu0
        %v3190 = vpack.i.b16 %v3084, %v3068
        %v3192 = vshrl.u32 %v3068, 16
        %v3193 = vshrl.u32 %v3084, 16
        %v3194 = vpack.i.b16 %v3193, %v3192
        %v3198 = vpack.i.b16 %v3116, %v3100
        %v3200 = vshrl.u32 %v3100, 16
        %v3201 = vshrl.u32 %v3116, 16
        %v3202 = vpack.i.b16 %v3201, %v3200
        %v3206 = vpack.i.b16 %v3148, %v3132
        %v3208 = vshrl.u32 %v3132, 16
        %v3209 = vshrl.u32 %v3148, 16
        %v3210 = vpack.i.b16 %v3209, %v3208
        %v3214 = vpack.i.b16 %v3180, %v3164
        %v3216 = vshrl.u32 %v3164, 16
        %v3217 = vshrl.u32 %v3180, 16
        %v3218 = vpack.i.b16 %v3217, %v3216
        %v3222 = vpack.i.b16 %v3085, %v3069
        %v3224 = vshrl.u32 %v3069, 16
        %v3225 = vshrl.u32 %v3085, 16
        %v3226 = vpack.i.b16 %v3225, %v3224
        %v3230 = vpack.i.b16 %v3117, %v3101
        %v3232 = vshrl.u32 %v3101, 16
        %v3233 = vshrl.u32 %v3117, 16
        %v3234 = vpack.i.b16 %v3233, %v3232
        %v3238 = vpack.i.b16 %v3149, %v3133
        %v3240 = vshrl.u32 %v3133, 16
        %v3241 = vshrl.u32 %v3149, 16
        %v3242 = vpack.i.b16 %v3241, %v3240
        %v3246 = vpack.i.b16 %v3181, %v3165
        %v3248 = vshrl.u32 %v3165, 16
        %v3249 = vshrl.u32 %v3181, 16
        %v3250 = vpack.i.b16 %v3249, %v3248
        %v3252 = vcombine.low %v3190, %v3206
        %v3253 = vcombine.high %v3190, %v3206
        %v3255 = vunpack.c.l.s4 1983009808
        %v3256 = vunpack.c.0.s8 %v3255
        %v3257 = vlaneseq
        %v3258 = vshrl.u32 %v3257, 7
        %v3259 = vsub.s32 %v3256, %v3258
        %v3260 = vrot.slane %v3252, %v3259
        %v3262 = vunpack.c.l.s4 1983009808
        %v3263 = vunpack.c.0.s8 %v3262
        %v3264 = vlaneseq
        %v3265 = vshrl.u32 %v3264, 7
        %v3266 = vsub.s32 %v3263, %v3265
        %v3267 = vrot.slane %v3253, %v3266
        %v3268 = vcombine.low %v3198, %v3214
        %v3269 = vcombine.high %v3198, %v3214
        %v3271 = vunpack.c.l.s4 1983009808
        %v3272 = vunpack.c.0.s8 %v3271
        %v3273 = vlaneseq
        %v3274 = vshrl.u32 %v3273, 7
        %v3275 = vsub.s32 %v3272, %v3274
        %v3276 = vrot.slane %v3268, %v3275
        %v3278 = vunpack.c.l.s4 1983009808
        %v3279 = vunpack.c.0.s8 %v3278
        %v3280 = vlaneseq
        %v3281 = vshrl.u32 %v3280, 7
        %v3282 = vsub.s32 %v3279, %v3281
        %v3283 = vrot.slane %v3269, %v3282
        %v3284 = vcombine.low %v3260, %v3276
        %v3285 = vcombine.high %v3260, %v3276
        %v3287 = vunpack.c.l.s4 1934713408
        %v3288 = vunpack.c.0.s8 %v3287
        %v3289 = vlaneseq
        %v3290 = vshrl.u32 %v3289, 7
        %v3291 = vsub.s32 %v3288, %v3290
        %v3292 = vrot.slane %v3284, %v3291
        %v3294 = vunpack.c.l.s4 1934713408
        %v3295 = vunpack.c.0.s8 %v3294
        %v3296 = vlaneseq
        %v3297 = vshrl.u32 %v3296, 7
        %v3298 = vsub.s32 %v3295, %v3297
        %v3299 = vrot.slane %v3285, %v3298
        %v3300 = vcombine.low %v3267, %v3283
        %v3301 = vcombine.high %v3267, %v3283
        %v3303 = vunpack.c.l.s4 1934713408
        %v3304 = vunpack.c.0.s8 %v3303
        %v3305 = vlaneseq
        %v3306 = vshrl.u32 %v3305, 7
        %v3307 = vsub.s32 %v3304, %v3306
        %v3308 = vrot.slane %v3300, %v3307
        %v3310 = vunpack.c.l.s4 1934713408
        %v3311 = vunpack.c.0.s8 %v3310
        %v3312 = vlaneseq
        %v3313 = vshrl.u32 %v3312, 7
        %v3314 = vsub.s32 %v3311, %v3313
        %v3315 = vrot.slane %v3301, %v3314
        %v3316 = vcombine.high %v3292, 0
        %v3317 = vcombine.high %v3299, 0
        %v3318 = vcombine.high %v3308, 0
        %v3319 = vcombine.high %v3315, 0
        %v3320 = vcombine.low %v3194, %v3210
        %v3321 = vcombine.high %v3194, %v3210
        %v3323 = vunpack.c.l.s4 1983009808
        %v3324 = vunpack.c.0.s8 %v3323
        %v3325 = vlaneseq
        %v3326 = vshrl.u32 %v3325, 7
        %v3327 = vsub.s32 %v3324, %v3326
        %v3328 = vrot.slane %v3320, %v3327
        %v3330 = vunpack.c.l.s4 1983009808
        %v3331 = vunpack.c.0.s8 %v3330
        %v3332 = vlaneseq
        %v3333 = vshrl.u32 %v3332, 7
        %v3334 = vsub.s32 %v3331, %v3333
        %v3335 = vrot.slane %v3321, %v3334
        %v3336 = vcombine.low %v3202, %v3218
        %v3337 = vcombine.high %v3202, %v3218
        %v3339 = vunpack.c.l.s4 1983009808
        %v3340 = vunpack.c.0.s8 %v3339
        %v3341 = vlaneseq
        %v3342 = vshrl.u32 %v3341, 7
        %v3343 = vsub.s32 %v3340, %v3342
        %v3344 = vrot.slane %v3336, %v3343
        %v3346 = vunpack.c.l.s4 1983009808
        %v3347 = vunpack.c.0.s8 %v3346
        %v3348 = vlaneseq
        %v3349 = vshrl.u32 %v3348, 7
        %v3350 = vsub.s32 %v3347, %v3349
        %v3351 = vrot.slane %v3337, %v3350
        %v3352 = vcombine.low %v3328, %v3344
        %v3353 = vcombine.high %v3328, %v3344
        %v3355 = vunpack.c.l.s4 1934713408
        %v3356 = vunpack.c.0.s8 %v3355
        %v3357 = vlaneseq
        %v3358 = vshrl.u32 %v3357, 7
        %v3359 = vsub.s32 %v3356, %v3358
        %v3360 = vrot.slane %v3352, %v3359
        %v3362 = vunpack.c.l.s4 1934713408
        %v3363 = vunpack.c.0.s8 %v3362
        %v3364 = vlaneseq
        %v3365 = vshrl.u32 %v3364, 7
        %v3366 = vsub.s32 %v3363, %v3365
        %v3367 = vrot.slane %v3353, %v3366
        %v3368 = vcombine.low %v3335, %v3351
        %v3369 = vcombine.high %v3335, %v3351
        %v3371 = vunpack.c.l.s4 1934713408
        %v3372 = vunpack.c.0.s8 %v3371
        %v3373 = vlaneseq
        %v3374 = vshrl.u32 %v3373, 7
        %v3375 = vsub.s32 %v3372, %v3374
        %v3376 = vrot.slane %v3368, %v3375
        %v3378 = vunpack.c.l.s4 1934713408
        %v3379 = vunpack.c.0.s8 %v3378
        %v3380 = vlaneseq
        %v3381 = vshrl.u32 %v3380, 7
        %v3382 = vsub.s32 %v3379, %v3381
        %v3383 = vrot.slane %v3369, %v3382
        %v3384 = vcombine.high %v3360, 0
        %v3385 = vcombine.high %v3367, 0
        %v3386 = vcombine.high %v3376, 0
        %v3387 = vcombine.high %v3383, 0
        %v3388 = vcombine.low %v3222, %v3238
        %v3389 = vcombine.high %v3222, %v3238
        %v3391 = vunpack.c.l.s4 1983009808
        %v3392 = vunpack.c.0.s8 %v3391
        %v3393 = vlaneseq
        %v3394 = vshrl.u32 %v3393, 7
        %v3395 = vsub.s32 %v3392, %v3394
        %v3396 = vrot.slane %v3388, %v3395
        %v3398 = vunpack.c.l.s4 1983009808
        %v3399 = vunpack.c.0.s8 %v3398
        %v3400 = vlaneseq
        %v3401 = vshrl.u32 %v3400, 7
        %v3402 = vsub.s32 %v3399, %v3401
        %v3403 = vrot.slane %v3389, %v3402
        %v3404 = vcombine.low %v3230, %v3246
        %v3405 = vcombine.high %v3230, %v3246
        %v3407 = vunpack.c.l.s4 1983009808
        %v3408 = vunpack.c.0.s8 %v3407
        %v3409 = vlaneseq
        %v3410 = vshrl.u32 %v3409, 7
        %v3411 = vsub.s32 %v3408, %v3410
        %v3412 = vrot.slane %v3404, %v3411
        %v3414 = vunpack.c.l.s4 1983009808
        %v3415 = vunpack.c.0.s8 %v3414
        %v3416 = vlaneseq
        %v3417 = vshrl.u32 %v3416, 7
        %v3418 = vsub.s32 %v3415, %v3417
        %v3419 = vrot.slane %v3405, %v3418
        %v3420 = vcombine.low %v3396, %v3412
        %v3421 = vcombine.high %v3396, %v3412
        %v3423 = vunpack.c.l.s4 1934713408
        %v3424 = vunpack.c.0.s8 %v3423
        %v3425 = vlaneseq
        %v3426 = vshrl.u32 %v3425, 7
        %v3427 = vsub.s32 %v3424, %v3426
        %v3428 = vrot.slane %v3420, %v3427
        %v3430 = vunpack.c.l.s4 1934713408
        %v3431 = vunpack.c.0.s8 %v3430
        %v3432 = vlaneseq
        %v3433 = vshrl.u32 %v3432, 7
        %v3434 = vsub.s32 %v3431, %v3433
        %v3435 = vrot.slane %v3421, %v3434
        %v3436 = vcombine.low %v3403, %v3419
        %v3437 = vcombine.high %v3403, %v3419
        %v3439 = vunpack.c.l.s4 1934713408
        %v3440 = vunpack.c.0.s8 %v3439
        %v3441 = vlaneseq
        %v3442 = vshrl.u32 %v3441, 7
        %v3443 = vsub.s32 %v3440, %v3442
        %v3444 = vrot.slane %v3436, %v3443
        %v3446 = vunpack.c.l.s4 1934713408
        %v3447 = vunpack.c.0.s8 %v3446
        %v3448 = vlaneseq
        %v3449 = vshrl.u32 %v3448, 7
        %v3450 = vsub.s32 %v3447, %v3449
        %v3451 = vrot.slane %v3437, %v3450
        %v3452 = vcombine.high %v3428, 0
        %v3453 = vcombine.high %v3435, 0
        %v3454 = vcombine.high %v3444, 0
        %v3455 = vcombine.high %v3451, 0
        %v3456 = vcombine.low %v3226, %v3242
        %v3457 = vcombine.high %v3226, %v3242
        %v3459 = vunpack.c.l.s4 1983009808
        %v3460 = vunpack.c.0.s8 %v3459
        %v3461 = vlaneseq
        %v3462 = vshrl.u32 %v3461, 7
        %v3463 = vsub.s32 %v3460, %v3462
        %v3464 = vrot.slane %v3456, %v3463
        %v3466 = vunpack.c.l.s4 1983009808
        %v3467 = vunpack.c.0.s8 %v3466
        %v3468 = vlaneseq
        %v3469 = vshrl.u32 %v3468, 7
        %v3470 = vsub.s32 %v3467, %v3469
        %v3471 = vrot.slane %v3457, %v3470
        %v3472 = vcombine.low %v3234, %v3250
        %v3473 = vcombine.high %v3234, %v3250
        %v3475 = vunpack.c.l.s4 1983009808
        %v3476 = vunpack.c.0.s8 %v3475
        %v3477 = vlaneseq
        %v3478 = vshrl.u32 %v3477, 7
        %v3479 = vsub.s32 %v3476, %v3478
        %v3480 = vrot.slane %v3472, %v3479
        %v3482 = vunpack.c.l.s4 1983009808
        %v3483 = vunpack.c.0.s8 %v3482
        %v3484 = vlaneseq
        %v3485 = vshrl.u32 %v3484, 7
        %v3486 = vsub.s32 %v3483, %v3485
        %v3487 = vrot.slane %v3473, %v3486
        %v3488 = vcombine.low %v3464, %v3480
        %v3489 = vcombine.high %v3464, %v3480
        %v3491 = vunpack.c.l.s4 1934713408
        %v3492 = vunpack.c.0.s8 %v3491
        %v3493 = vlaneseq
        %v3494 = vshrl.u32 %v3493, 7
        %v3495 = vsub.s32 %v3492, %v3494
        %v3496 = vrot.slane %v3488, %v3495
        %v3498 = vunpack.c.l.s4 1934713408
        %v3499 = vunpack.c.0.s8 %v3498
        %v3500 = vlaneseq
        %v3501 = vshrl.u32 %v3500, 7
        %v3502 = vsub.s32 %v3499, %v3501
        %v3503 = vrot.slane %v3489, %v3502
        %v3504 = vcombine.low %v3471, %v3487
        %v3505 = vcombine.high %v3471, %v3487
        %v3507 = vunpack.c.l.s4 1934713408
        %v3508 = vunpack.c.0.s8 %v3507
        %v3509 = vlaneseq
        %v3510 = vshrl.u32 %v3509, 7
        %v3511 = vsub.s32 %v3508, %v3510
        %v3512 = vrot.slane %v3504, %v3511
        %v3514 = vunpack.c.l.s4 1934713408
        %v3515 = vunpack.c.0.s8 %v3514
        %v3516 = vlaneseq
        %v3517 = vshrl.u32 %v3516, 7
        %v3518 = vsub.s32 %v3515, %v3517
        %v3519 = vrot.slane %v3505, %v3518
        %v3520 = vcombine.high %v3496, 0
        %v3521 = vcombine.high %v3503, 0
        %v3522 = vcombine.high %v3512, 0
        %v3523 = vcombine.high %v3519, 0
        %3524 = vxpose.xlu0.c.b16.start [1/8] %v3292, 128
        %3525 = vxpose.xlu0.c.b16.cont [2/8] 0, 128
        %3526 = vxpose.xlu0.c.b16.cont [3/8] 0, 128
        %3527 = vxpose.xlu0.c.b16.cont [4/8] 0, 128
        %3528 = vxpose.xlu0.c.b16.cont [5/8] 0, 128
        %3529 = vxpose.xlu0.c.b16.cont [6/8] 0, 128
        %3530 = vxpose.xlu0.c.b16.cont [7/8] 0, 128
        %3531 = vxpose.xlu0.c.b16.end [8/8] 0, 128
        %v3532 = vpop.trf.xlu0
        %v3533 = vpop.trf.xlu0
        %v3534 = vpop.trf.xlu0
        %v3535 = vpop.trf.xlu0
        %v3536 = vpop.trf.xlu0
        %v3537 = vpop.trf.xlu0
        %v3538 = vpop.trf.xlu0
        %v3539 = vpop.trf.xlu0
        %3540 = vxpose.xlu0.c.b16.start [1/8] %v3360, 128
        %3541 = vxpose.xlu0.c.b16.cont [2/8] 0, 128
        %3542 = vxpose.xlu0.c.b16.cont [3/8] 0, 128
        %3543 = vxpose.xlu0.c.b16.cont [4/8] 0, 128
        %3544 = vxpose.xlu0.c.b16.cont [5/8] 0, 128
        %3545 = vxpose.xlu0.c.b16.cont [6/8] 0, 128
        %3546 = vxpose.xlu0.c.b16.cont [7/8] 0, 128
        %3547 = vxpose.xlu0.c.b16.end [8/8] 0, 128
        %v3548 = vpop.trf.xlu0
        %v3549 = vpop.trf.xlu0
        %v3550 = vpop.trf.xlu0
        %v3551 = vpop.trf.xlu0
        %v3552 = vpop.trf.xlu0
        %v3553 = vpop.trf.xlu0
        %v3554 = vpop.trf.xlu0
        %v3555 = vpop.trf.xlu0
        %3556 = vxpose.xlu0.c.b16.start [1/8] %v3316, 128
        %3557 = vxpose.xlu0.c.b16.cont [2/8] 0, 128
        %3558 = vxpose.xlu0.c.b16.cont [3/8] 0, 128
        %3559 = vxpose.xlu0.c.b16.cont [4/8] 0, 128
        %3560 = vxpose.xlu0.c.b16.cont [5/8] 0, 128
        %3561 = vxpose.xlu0.c.b16.cont [6/8] 0, 128
        %3562 = vxpose.xlu0.c.b16.cont [7/8] 0, 128
        %3563 = vxpose.xlu0.c.b16.end [8/8] 0, 128
        %v3564 = vpop.trf.xlu0
        %v3565 = vpop.trf.xlu0
        %v3566 = vpop.trf.xlu0
        %v3567 = vpop.trf.xlu0
        %v3568 = vpop.trf.xlu0
        %v3569 = vpop.trf.xlu0
        %v3570 = vpop.trf.xlu0
        %v3571 = vpop.trf.xlu0
        %3572 = vxpose.xlu0.c.b16.start [1/8] %v3384, 128
        %3573 = vxpose.xlu0.c.b16.cont [2/8] 0, 128
        %3574 = vxpose.xlu0.c.b16.cont [3/8] 0, 128
        %3575 = vxpose.xlu0.c.b16.cont [4/8] 0, 128
        %3576 = vxpose.xlu0.c.b16.cont [5/8] 0, 128
        %3577 = vxpose.xlu0.c.b16.cont [6/8] 0, 128
        %3578 = vxpose.xlu0.c.b16.cont [7/8] 0, 128
        %3579 = vxpose.xlu0.c.b16.end [8/8] 0, 128
        %v3580 = vpop.trf.xlu0
        %v3581 = vpop.trf.xlu0
        %v3582 = vpop.trf.xlu0
        %v3583 = vpop.trf.xlu0
        %v3584 = vpop.trf.xlu0
        %v3585 = vpop.trf.xlu0
        %v3586 = vpop.trf.xlu0
        %v3587 = vpop.trf.xlu0
        %3588 = vxpose.xlu0.c.b16.start [1/8] %v3299, 128
        %3589 = vxpose.xlu0.c.b16.cont [2/8] 0, 128
        %3590 = vxpose.xlu0.c.b16.cont [3/8] 0, 128
        %3591 = vxpose.xlu0.c.b16.cont [4/8] 0, 128
        %3592 = vxpose.xlu0.c.b16.cont [5/8] 0, 128
        %3593 = vxpose.xlu0.c.b16.cont [6/8] 0, 128
        %3594 = vxpose.xlu0.c.b16.cont [7/8] 0, 128
        %3595 = vxpose.xlu0.c.b16.end [8/8] 0, 128
        %v3596 = vpop.trf.xlu0
        %v3597 = vpop.trf.xlu0
        %v3598 = vpop.trf.xlu0
        %v3599 = vpop.trf.xlu0
        %v3600 = vpop.trf.xlu0
        %v3601 = vpop.trf.xlu0
        %v3602 = vpop.trf.xlu0
        %v3603 = vpop.trf.xlu0
        %3604 = vxpose.xlu0.c.b16.start [1/8] %v3367, 128
        %3605 = vxpose.xlu0.c.b16.cont [2/8] 0, 128
        %3606 = vxpose.xlu0.c.b16.cont [3/8] 0, 128
        %3607 = vxpose.xlu0.c.b16.cont [4/8] 0, 128
        %3608 = vxpose.xlu0.c.b16.cont [5/8] 0, 128
        %3609 = vxpose.xlu0.c.b16.cont [6/8] 0, 128
        %3610 = vxpose.xlu0.c.b16.cont [7/8] 0, 128
        %3611 = vxpose.xlu0.c.b16.end [8/8] 0, 128
        %v3612 = vpop.trf.xlu0
        %v3613 = vpop.trf.xlu0
        %v3614 = vpop.trf.xlu0
        %v3615 = vpop.trf.xlu0
        %v3616 = vpop.trf.xlu0
        %v3617 = vpop.trf.xlu0
        %v3618 = vpop.trf.xlu0
        %v3619 = vpop.trf.xlu0
        %3620 = vxpose.xlu0.c.b16.start [1/8] %v3317, 128
        %3621 = vxpose.xlu0.c.b16.cont [2/8] 0, 128
        %3622 = vxpose.xlu0.c.b16.cont [3/8] 0, 128
        %3623 = vxpose.xlu0.c.b16.cont [4/8] 0, 128
        %3624 = vxpose.xlu0.c.b16.cont [5/8] 0, 128
        %3625 = vxpose.xlu0.c.b16.cont [6/8] 0, 128
        %3626 = vxpose.xlu0.c.b16.cont [7/8] 0, 128
        %3627 = vxpose.xlu0.c.b16.end [8/8] 0, 128
        %v3628 = vpop.trf.xlu0
        %v3629 = vpop.trf.xlu0
        %v3630 = vpop.trf.xlu0
        %v3631 = vpop.trf.xlu0
        %v3632 = vpop.trf.xlu0
        %v3633 = vpop.trf.xlu0
        %v3634 = vpop.trf.xlu0
        %v3635 = vpop.trf.xlu0
        %3636 = vxpose.xlu0.c.b16.start [1/8] %v3385, 128
        %3637 = vxpose.xlu0.c.b16.cont [2/8] 0, 128
        %3638 = vxpose.xlu0.c.b16.cont [3/8] 0, 128
        %3639 = vxpose.xlu0.c.b16.cont [4/8] 0, 128
        %3640 = vxpose.xlu0.c.b16.cont [5/8] 0, 128
        %3641 = vxpose.xlu0.c.b16.cont [6/8] 0, 128
        %3642 = vxpose.xlu0.c.b16.cont [7/8] 0, 128
        %3643 = vxpose.xlu0.c.b16.end [8/8] 0, 128
        %v3644 = vpop.trf.xlu0
        %v3645 = vpop.trf.xlu0
        %v3646 = vpop.trf.xlu0
        %v3647 = vpop.trf.xlu0
        %v3648 = vpop.trf.xlu0
        %v3649 = vpop.trf.xlu0
        %v3650 = vpop.trf.xlu0
        %v3651 = vpop.trf.xlu0
        %3652 = vxpose.xlu0.c.b16.start [1/8] %v3308, 128
        %3653 = vxpose.xlu0.c.b16.cont [2/8] 0, 128
        %3654 = vxpose.xlu0.c.b16.cont [3/8] 0, 128
        %3655 = vxpose.xlu0.c.b16.cont [4/8] 0, 128
        %3656 = vxpose.xlu0.c.b16.cont [5/8] 0, 128
        %3657 = vxpose.xlu0.c.b16.cont [6/8] 0, 128
        %3658 = vxpose.xlu0.c.b16.cont [7/8] 0, 128
        %3659 = vxpose.xlu0.c.b16.end [8/8] 0, 128
        %v3660 = vpop.trf.xlu0
        %v3661 = vpop.trf.xlu0
        %v3662 = vpop.trf.xlu0
        %v3663 = vpop.trf.xlu0
        %v3664 = vpop.trf.xlu0
        %v3665 = vpop.trf.xlu0
        %v3666 = vpop.trf.xlu0
        %v3667 = vpop.trf.xlu0
        %3668 = vxpose.xlu0.c.b16.start [1/8] %v3376, 128
        %3669 = vxpose.xlu0.c.b16.cont [2/8] 0, 128
        %3670 = vxpose.xlu0.c.b16.cont [3/8] 0, 128
        %3671 = vxpose.xlu0.c.b16.cont [4/8] 0, 128
        %3672 = vxpose.xlu0.c.b16.cont [5/8] 0, 128
        %3673 = vxpose.xlu0.c.b16.cont [6/8] 0, 128
        %3674 = vxpose.xlu0.c.b16.cont [7/8] 0, 128
        %3675 = vxpose.xlu0.c.b16.end [8/8] 0, 128
        %v3676 = vpop.trf.xlu0
        %v3677 = vpop.trf.xlu0
        %v3678 = vpop.trf.xlu0
        %v3679 = vpop.trf.xlu0
        %v3680 = vpop.trf.xlu0
        %v3681 = vpop.trf.xlu0
        %v3682 = vpop.trf.xlu0
        %v3683 = vpop.trf.xlu0
        %3684 = vxpose.xlu0.c.b16.start [1/8] %v3318, 128
        %3685 = vxpose.xlu0.c.b16.cont [2/8] 0, 128
        %3686 = vxpose.xlu0.c.b16.cont [3/8] 0, 128
        %3687 = vxpose.xlu0.c.b16.cont [4/8] 0, 128
        %3688 = vxpose.xlu0.c.b16.cont [5/8] 0, 128
        %3689 = vxpose.xlu0.c.b16.cont [6/8] 0, 128
        %3690 = vxpose.xlu0.c.b16.cont [7/8] 0, 128
        %3691 = vxpose.xlu0.c.b16.end [8/8] 0, 128
        %v3692 = vpop.trf.xlu0
        %v3693 = vpop.trf.xlu0
        %v3694 = vpop.trf.xlu0
        %v3695 = vpop.trf.xlu0
        %v3696 = vpop.trf.xlu0
        %v3697 = vpop.trf.xlu0
        %v3698 = vpop.trf.xlu0
        %v3699 = vpop.trf.xlu0
        %3700 = vxpose.xlu0.c.b16.start [1/8] %v3386, 128
        %3701 = vxpose.xlu0.c.b16.cont [2/8] 0, 128
        %3702 = vxpose.xlu0.c.b16.cont [3/8] 0, 128
        %3703 = vxpose.xlu0.c.b16.cont [4/8] 0, 128
        %3704 = vxpose.xlu0.c.b16.cont [5/8] 0, 128
        %3705 = vxpose.xlu0.c.b16.cont [6/8] 0, 128
        %3706 = vxpose.xlu0.c.b16.cont [7/8] 0, 128
        %3707 = vxpose.xlu0.c.b16.end [8/8] 0, 128
        %v3708 = vpop.trf.xlu0
        %v3709 = vpop.trf.xlu0
        %v3710 = vpop.trf.xlu0
        %v3711 = vpop.trf.xlu0
        %v3712 = vpop.trf.xlu0
        %v3713 = vpop.trf.xlu0
        %v3714 = vpop.trf.xlu0
        %v3715 = vpop.trf.xlu0
        %3716 = vxpose.xlu0.c.b16.start [1/8] %v3315, 128
        %3717 = vxpose.xlu0.c.b16.cont [2/8] 0, 128
        %3718 = vxpose.xlu0.c.b16.cont [3/8] 0, 128
        %3719 = vxpose.xlu0.c.b16.cont [4/8] 0, 128
        %3720 = vxpose.xlu0.c.b16.cont [5/8] 0, 128
        %3721 = vxpose.xlu0.c.b16.cont [6/8] 0, 128
        %3722 = vxpose.xlu0.c.b16.cont [7/8] 0, 128
        %3723 = vxpose.xlu0.c.b16.end [8/8] 0, 128
        %v3724 = vpop.trf.xlu0
        %v3725 = vpop.trf.xlu0
        %v3726 = vpop.trf.xlu0
        %v3727 = vpop.trf.xlu0
        %v3728 = vpop.trf.xlu0
        %v3729 = vpop.trf.xlu0
        %v3730 = vpop.trf.xlu0
        %v3731 = vpop.trf.xlu0
        %3732 = vxpose.xlu0.c.b16.start [1/8] %v3383, 128
        %3733 = vxpose.xlu0.c.b16.cont [2/8] 0, 128
        %3734 = vxpose.xlu0.c.b16.cont [3/8] 0, 128
        %3735 = vxpose.xlu0.c.b16.cont [4/8] 0, 128
        %3736 = vxpose.xlu0.c.b16.cont [5/8] 0, 128
        %3737 = vxpose.xlu0.c.b16.cont [6/8] 0, 128
        %3738 = vxpose.xlu0.c.b16.cont [7/8] 0, 128
        %3739 = vxpose.xlu0.c.b16.end [8/8] 0, 128
        %v3740 = vpop.trf.xlu0
        %v3741 = vpop.trf.xlu0
        %v3742 = vpop.trf.xlu0
        %v3743 = vpop.trf.xlu0
        %v3744 = vpop.trf.xlu0
        %v3745 = vpop.trf.xlu0
        %v3746 = vpop.trf.xlu0
        %v3747 = vpop.trf.xlu0
        %3748 = vxpose.xlu0.c.b16.start [1/8] %v3319, 128
        %3749 = vxpose.xlu0.c.b16.cont [2/8] 0, 128
        %3750 = vxpose.xlu0.c.b16.cont [3/8] 0, 128
        %3751 = vxpose.xlu0.c.b16.cont [4/8] 0, 128
        %3752 = vxpose.xlu0.c.b16.cont [5/8] 0, 128
        %3753 = vxpose.xlu0.c.b16.cont [6/8] 0, 128
        %3754 = vxpose.xlu0.c.b16.cont [7/8] 0, 128
        %3755 = vxpose.xlu0.c.b16.end [8/8] 0, 128
        %v3756 = vpop.trf.xlu0
        %v3757 = vpop.trf.xlu0
        %v3758 = vpop.trf.xlu0
        %v3759 = vpop.trf.xlu0
        %v3760 = vpop.trf.xlu0
        %v3761 = vpop.trf.xlu0
        %v3762 = vpop.trf.xlu0
        %v3763 = vpop.trf.xlu0
        %3764 = vxpose.xlu0.c.b16.start [1/8] %v3387, 128
        %3765 = vxpose.xlu0.c.b16.cont [2/8] 0, 128
        %3766 = vxpose.xlu0.c.b16.cont [3/8] 0, 128
        %3767 = vxpose.xlu0.c.b16.cont [4/8] 0, 128
        %3768 = vxpose.xlu0.c.b16.cont [5/8] 0, 128
        %3769 = vxpose.xlu0.c.b16.cont [6/8] 0, 128
        %3770 = vxpose.xlu0.c.b16.cont [7/8] 0, 128
        %3771 = vxpose.xlu0.c.b16.end [8/8] 0, 128
        %v3772 = vpop.trf.xlu0
        %v3773 = vpop.trf.xlu0
        %v3774 = vpop.trf.xlu0
        %v3775 = vpop.trf.xlu0
        %v3776 = vpop.trf.xlu0
        %v3777 = vpop.trf.xlu0
        %v3778 = vpop.trf.xlu0
        %v3779 = vpop.trf.xlu0
        %3780 = vxpose.xlu0.c.b16.start [1/8] %v3428, 128
        %3781 = vxpose.xlu0.c.b16.cont [2/8] 0, 128
        %3782 = vxpose.xlu0.c.b16.cont [3/8] 0, 128
        %3783 = vxpose.xlu0.c.b16.cont [4/8] 0, 128
        %3784 = vxpose.xlu0.c.b16.cont [5/8] 0, 128
        %3785 = vxpose.xlu0.c.b16.cont [6/8] 0, 128
        %3786 = vxpose.xlu0.c.b16.cont [7/8] 0, 128
        %3787 = vxpose.xlu0.c.b16.end [8/8] 0, 128
        %v3788 = vpop.trf.xlu0
        %v3789 = vpop.trf.xlu0
        %v3790 = vpop.trf.xlu0
        %v3791 = vpop.trf.xlu0
        %v3792 = vpop.trf.xlu0
        %v3793 = vpop.trf.xlu0
        %v3794 = vpop.trf.xlu0
        %v3795 = vpop.trf.xlu0
        %3796 = vxpose.xlu0.c.b16.start [1/8] %v3496, 128
        %3797 = vxpose.xlu0.c.b16.cont [2/8] 0, 128
        %3798 = vxpose.xlu0.c.b16.cont [3/8] 0, 128
        %3799 = vxpose.xlu0.c.b16.cont [4/8] 0, 128
        %3800 = vxpose.xlu0.c.b16.cont [5/8] 0, 128
        %3801 = vxpose.xlu0.c.b16.cont [6/8] 0, 128
        %3802 = vxpose.xlu0.c.b16.cont [7/8] 0, 128
        %3803 = vxpose.xlu0.c.b16.end [8/8] 0, 128
        %v3804 = vpop.trf.xlu0
        %v3805 = vpop.trf.xlu0
        %v3806 = vpop.trf.xlu0
        %v3807 = vpop.trf.xlu0
        %v3808 = vpop.trf.xlu0
        %v3809 = vpop.trf.xlu0
        %v3810 = vpop.trf.xlu0
        %v3811 = vpop.trf.xlu0
        %3812 = vxpose.xlu0.c.b16.start [1/8] %v3452, 128
        %3813 = vxpose.xlu0.c.b16.cont [2/8] 0, 128
        %3814 = vxpose.xlu0.c.b16.cont [3/8] 0, 128
        %3815 = vxpose.xlu0.c.b16.cont [4/8] 0, 128
        %3816 = vxpose.xlu0.c.b16.cont [5/8] 0, 128
        %3817 = vxpose.xlu0.c.b16.cont [6/8] 0, 128
        %3818 = vxpose.xlu0.c.b16.cont [7/8] 0, 128
        %3819 = vxpose.xlu0.c.b16.end [8/8] 0, 128
        %v3820 = vpop.trf.xlu0
        %v3821 = vpop.trf.xlu0
        %v3822 = vpop.trf.xlu0
        %v3823 = vpop.trf.xlu0
        %v3824 = vpop.trf.xlu0
        %v3825 = vpop.trf.xlu0
        %v3826 = vpop.trf.xlu0
        %v3827 = vpop.trf.xlu0
        %3828 = vxpose.xlu0.c.b16.start [1/8] %v3520, 128
        %3829 = vxpose.xlu0.c.b16.cont [2/8] 0, 128
        %3830 = vxpose.xlu0.c.b16.cont [3/8] 0, 128
        %3831 = vxpose.xlu0.c.b16.cont [4/8] 0, 128
        %3832 = vxpose.xlu0.c.b16.cont [5/8] 0, 128
        %3833 = vxpose.xlu0.c.b16.cont [6/8] 0, 128
        %3834 = vxpose.xlu0.c.b16.cont [7/8] 0, 128
        %3835 = vxpose.xlu0.c.b16.end [8/8] 0, 128
        %v3836 = vpop.trf.xlu0
        %v3837 = vpop.trf.xlu0
        %v3838 = vpop.trf.xlu0
        %v3839 = vpop.trf.xlu0
        %v3840 = vpop.trf.xlu0
        %v3841 = vpop.trf.xlu0
        %v3842 = vpop.trf.xlu0
        %v3843 = vpop.trf.xlu0
        %3844 = vxpose.xlu0.c.b16.start [1/8] %v3435, 128
        %3845 = vxpose.xlu0.c.b16.cont [2/8] 0, 128
        %3846 = vxpose.xlu0.c.b16.cont [3/8] 0, 128
        %3847 = vxpose.xlu0.c.b16.cont [4/8] 0, 128
        %3848 = vxpose.xlu0.c.b16.cont [5/8] 0, 128
        %3849 = vxpose.xlu0.c.b16.cont [6/8] 0, 128
        %3850 = vxpose.xlu0.c.b16.cont [7/8] 0, 128
        %3851 = vxpose.xlu0.c.b16.end [8/8] 0, 128
        %v3852 = vpop.trf.xlu0
        %v3853 = vpop.trf.xlu0
        %v3854 = vpop.trf.xlu0
        %v3855 = vpop.trf.xlu0
        %v3856 = vpop.trf.xlu0
        %v3857 = vpop.trf.xlu0
        %v3858 = vpop.trf.xlu0
        %v3859 = vpop.trf.xlu0
        %3860 = vxpose.xlu0.c.b16.start [1/8] %v3503, 128
        %3861 = vxpose.xlu0.c.b16.cont [2/8] 0, 128
        %3862 = vxpose.xlu0.c.b16.cont [3/8] 0, 128
        %3863 = vxpose.xlu0.c.b16.cont [4/8] 0, 128
        %3864 = vxpose.xlu0.c.b16.cont [5/8] 0, 128
        %3865 = vxpose.xlu0.c.b16.cont [6/8] 0, 128
        %3866 = vxpose.xlu0.c.b16.cont [7/8] 0, 128
        %3867 = vxpose.xlu0.c.b16.end [8/8] 0, 128
        %v3868 = vpop.trf.xlu0
        %v3869 = vpop.trf.xlu0
        %v3870 = vpop.trf.xlu0
        %v3871 = vpop.trf.xlu0
        %v3872 = vpop.trf.xlu0
        %v3873 = vpop.trf.xlu0
        %v3874 = vpop.trf.xlu0
        %v3875 = vpop.trf.xlu0
        %3876 = vxpose.xlu0.c.b16.start [1/8] %v3453, 128
        %3877 = vxpose.xlu0.c.b16.cont [2/8] 0, 128
        %3878 = vxpose.xlu0.c.b16.cont [3/8] 0, 128
        %3879 = vxpose.xlu0.c.b16.cont [4/8] 0, 128
        %3880 = vxpose.xlu0.c.b16.cont [5/8] 0, 128
        %3881 = vxpose.xlu0.c.b16.cont [6/8] 0, 128
        %3882 = vxpose.xlu0.c.b16.cont [7/8] 0, 128
        %3883 = vxpose.xlu0.c.b16.end [8/8] 0, 128
        %v3884 = vpop.trf.xlu0
        %v3885 = vpop.trf.xlu0
        %v3886 = vpop.trf.xlu0
        %v3887 = vpop.trf.xlu0
        %v3888 = vpop.trf.xlu0
        %v3889 = vpop.trf.xlu0
        %v3890 = vpop.trf.xlu0
        %v3891 = vpop.trf.xlu0
        %3892 = vxpose.xlu0.c.b16.start [1/8] %v3521, 128
        %3893 = vxpose.xlu0.c.b16.cont [2/8] 0, 128
        %3894 = vxpose.xlu0.c.b16.cont [3/8] 0, 128
        %3895 = vxpose.xlu0.c.b16.cont [4/8] 0, 128
        %3896 = vxpose.xlu0.c.b16.cont [5/8] 0, 128
        %3897 = vxpose.xlu0.c.b16.cont [6/8] 0, 128
        %3898 = vxpose.xlu0.c.b16.cont [7/8] 0, 128
        %3899 = vxpose.xlu0.c.b16.end [8/8] 0, 128
        %v3900 = vpop.trf.xlu0
        %v3901 = vpop.trf.xlu0
        %v3902 = vpop.trf.xlu0
        %v3903 = vpop.trf.xlu0
        %v3904 = vpop.trf.xlu0
        %v3905 = vpop.trf.xlu0
        %v3906 = vpop.trf.xlu0
        %v3907 = vpop.trf.xlu0
        %3908 = vxpose.xlu0.c.b16.start [1/8] %v3444, 128
        %3909 = vxpose.xlu0.c.b16.cont [2/8] 0, 128
        %3910 = vxpose.xlu0.c.b16.cont [3/8] 0, 128
        %3911 = vxpose.xlu0.c.b16.cont [4/8] 0, 128
        %3912 = vxpose.xlu0.c.b16.cont [5/8] 0, 128
        %3913 = vxpose.xlu0.c.b16.cont [6/8] 0, 128
        %3914 = vxpose.xlu0.c.b16.cont [7/8] 0, 128
        %3915 = vxpose.xlu0.c.b16.end [8/8] 0, 128
        %v3916 = vpop.trf.xlu0
        %v3917 = vpop.trf.xlu0
        %v3918 = vpop.trf.xlu0
        %v3919 = vpop.trf.xlu0
        %v3920 = vpop.trf.xlu0
        %v3921 = vpop.trf.xlu0
        %v3922 = vpop.trf.xlu0
        %v3923 = vpop.trf.xlu0
        %3924 = vxpose.xlu0.c.b16.start [1/8] %v3512, 128
        %3925 = vxpose.xlu0.c.b16.cont [2/8] 0, 128
        %3926 = vxpose.xlu0.c.b16.cont [3/8] 0, 128
        %3927 = vxpose.xlu0.c.b16.cont [4/8] 0, 128
        %3928 = vxpose.xlu0.c.b16.cont [5/8] 0, 128
        %3929 = vxpose.xlu0.c.b16.cont [6/8] 0, 128
        %3930 = vxpose.xlu0.c.b16.cont [7/8] 0, 128
        %3931 = vxpose.xlu0.c.b16.end [8/8] 0, 128
        %v3932 = vpop.trf.xlu0
        %v3933 = vpop.trf.xlu0
        %v3934 = vpop.trf.xlu0
        %v3935 = vpop.trf.xlu0
        %v3936 = vpop.trf.xlu0
        %v3937 = vpop.trf.xlu0
        %v3938 = vpop.trf.xlu0
        %v3939 = vpop.trf.xlu0
        %3940 = vxpose.xlu0.c.b16.start [1/8] %v3454, 128
        %3941 = vxpose.xlu0.c.b16.cont [2/8] 0, 128
        %3942 = vxpose.xlu0.c.b16.cont [3/8] 0, 128
        %3943 = vxpose.xlu0.c.b16.cont [4/8] 0, 128
        %3944 = vxpose.xlu0.c.b16.cont [5/8] 0, 128
        %3945 = vxpose.xlu0.c.b16.cont [6/8] 0, 128
        %3946 = vxpose.xlu0.c.b16.cont [7/8] 0, 128
        %3947 = vxpose.xlu0.c.b16.end [8/8] 0, 128
        %v3948 = vpop.trf.xlu0
        %v3949 = vpop.trf.xlu0
        %v3950 = vpop.trf.xlu0
        %v3951 = vpop.trf.xlu0
        %v3952 = vpop.trf.xlu0
        %v3953 = vpop.trf.xlu0
        %v3954 = vpop.trf.xlu0
        %v3955 = vpop.trf.xlu0
        %3956 = vxpose.xlu0.c.b16.start [1/8] %v3522, 128
        %3957 = vxpose.xlu0.c.b16.cont [2/8] 0, 128
        %3958 = vxpose.xlu0.c.b16.cont [3/8] 0, 128
        %3959 = vxpose.xlu0.c.b16.cont [4/8] 0, 128
        %3960 = vxpose.xlu0.c.b16.cont [5/8] 0, 128
        %3961 = vxpose.xlu0.c.b16.cont [6/8] 0, 128
        %3962 = vxpose.xlu0.c.b16.cont [7/8] 0, 128
        %3963 = vxpose.xlu0.c.b16.end [8/8] 0, 128
        %v3964 = vpop.trf.xlu0
        %v3965 = vpop.trf.xlu0
        %v3966 = vpop.trf.xlu0
        %v3967 = vpop.trf.xlu0
        %v3968 = vpop.trf.xlu0
        %v3969 = vpop.trf.xlu0
        %v3970 = vpop.trf.xlu0
        %v3971 = vpop.trf.xlu0
        %3972 = vxpose.xlu0.c.b16.start [1/8] %v3451, 128
        %3973 = vxpose.xlu0.c.b16.cont [2/8] 0, 128
        %3974 = vxpose.xlu0.c.b16.cont [3/8] 0, 128
        %3975 = vxpose.xlu0.c.b16.cont [4/8] 0, 128
        %3976 = vxpose.xlu0.c.b16.cont [5/8] 0, 128
        %3977 = vxpose.xlu0.c.b16.cont [6/8] 0, 128
        %3978 = vxpose.xlu0.c.b16.cont [7/8] 0, 128
        %3979 = vxpose.xlu0.c.b16.end [8/8] 0, 128
        %v3980 = vpop.trf.xlu0
        %v3981 = vpop.trf.xlu0
        %v3982 = vpop.trf.xlu0
        %v3983 = vpop.trf.xlu0
        %v3984 = vpop.trf.xlu0
        %v3985 = vpop.trf.xlu0
        %v3986 = vpop.trf.xlu0
        %v3987 = vpop.trf.xlu0
        %3988 = vxpose.xlu0.c.b16.start [1/8] %v3519, 128
        %3989 = vxpose.xlu0.c.b16.cont [2/8] 0, 128
        %3990 = vxpose.xlu0.c.b16.cont [3/8] 0, 128
        %3991 = vxpose.xlu0.c.b16.cont [4/8] 0, 128
        %3992 = vxpose.xlu0.c.b16.cont [5/8] 0, 128
        %3993 = vxpose.xlu0.c.b16.cont [6/8] 0, 128
        %3994 = vxpose.xlu0.c.b16.cont [7/8] 0, 128
        %3995 = vxpose.xlu0.c.b16.end [8/8] 0, 128
        %v3996 = vpop.trf.xlu0
        %v3997 = vpop.trf.xlu0
        %v3998 = vpop.trf.xlu0
        %v3999 = vpop.trf.xlu0
        %v4000 = vpop.trf.xlu0
        %v4001 = vpop.trf.xlu0
        %v4002 = vpop.trf.xlu0
        %v4003 = vpop.trf.xlu0
        %4004 = vxpose.xlu0.c.b16.start [1/8] %v3455, 128
        %4005 = vxpose.xlu0.c.b16.cont [2/8] 0, 128
        %4006 = vxpose.xlu0.c.b16.cont [3/8] 0, 128
        %4007 = vxpose.xlu0.c.b16.cont [4/8] 0, 128
        %4008 = vxpose.xlu0.c.b16.cont [5/8] 0, 128
        %4009 = vxpose.xlu0.c.b16.cont [6/8] 0, 128
        %4010 = vxpose.xlu0.c.b16.cont [7/8] 0, 128
        %4011 = vxpose.xlu0.c.b16.end [8/8] 0, 128
        %v4012 = vpop.trf.xlu0
        %v4013 = vpop.trf.xlu0
        %v4014 = vpop.trf.xlu0
        %v4015 = vpop.trf.xlu0
        %v4016 = vpop.trf.xlu0
        %v4017 = vpop.trf.xlu0
        %v4018 = vpop.trf.xlu0
        %v4019 = vpop.trf.xlu0
        %4020 = vxpose.xlu0.c.b16.start [1/8] %v3523, 128
        %4021 = vxpose.xlu0.c.b16.cont [2/8] 0, 128
        %4022 = vxpose.xlu0.c.b16.cont [3/8] 0, 128
        %4023 = vxpose.xlu0.c.b16.cont [4/8] 0, 128
        %4024 = vxpose.xlu0.c.b16.cont [5/8] 0, 128
        %4025 = vxpose.xlu0.c.b16.cont [6/8] 0, 128
        %4026 = vxpose.xlu0.c.b16.cont [7/8] 0, 128
        %4027 = vxpose.xlu0.c.b16.end [8/8] 0, 128
        %v4028 = vpop.trf.xlu0
        %v4029 = vpop.trf.xlu0
        %v4030 = vpop.trf.xlu0
        %v4031 = vpop.trf.xlu0
        %v4032 = vpop.trf.xlu0
        %v4033 = vpop.trf.xlu0
        %v4034 = vpop.trf.xlu0
        %v4035 = vpop.trf.xlu0
        %v4036 = vcombine.low %v3532, %v3596
        %v4038 = vunpack.c.l.s4 1983009808
        %v4039 = vunpack.c.0.s8 %v4038
        %v4040 = vlaneseq
        %v4041 = vshrl.u32 %v4040, 7
        %v4042 = vsub.s32 %v4039, %v4041
        %v4043 = vrot.slane %v4036, %v4042
        %v4044 = vcombine.low %v3564, %v3628
        %v4046 = vunpack.c.l.s4 1983009808
        %v4047 = vunpack.c.0.s8 %v4046
        %v4048 = vlaneseq
        %v4049 = vshrl.u32 %v4048, 7
        %v4050 = vsub.s32 %v4047, %v4049
        %v4051 = vrot.slane %v4044, %v4050
        %v4052 = vcombine.low %v3660, %v3724
        %v4054 = vunpack.c.l.s4 1983009808
        %v4055 = vunpack.c.0.s8 %v4054
        %v4056 = vlaneseq
        %v4057 = vshrl.u32 %v4056, 7
        %v4058 = vsub.s32 %v4055, %v4057
        %v4059 = vrot.slane %v4052, %v4058
        %v4060 = vcombine.low %v3692, %v3756
        %v4062 = vunpack.c.l.s4 1983009808
        %v4063 = vunpack.c.0.s8 %v4062
        %v4064 = vlaneseq
        %v4065 = vshrl.u32 %v4064, 7
        %v4066 = vsub.s32 %v4063, %v4065
        %v4067 = vrot.slane %v4060, %v4066
        %v4068 = vcombine.low %v4043, %v4051
        %v4070 = vunpack.c.l.s4 1934713408
        %v4071 = vunpack.c.0.s8 %v4070
        %v4072 = vlaneseq
        %v4073 = vshrl.u32 %v4072, 7
        %v4074 = vsub.s32 %v4071, %v4073
        %v4075 = vrot.slane %v4068, %v4074
        %v4076 = vcombine.low %v4059, %v4067
        %v4078 = vunpack.c.l.s4 1934713408
        %v4079 = vunpack.c.0.s8 %v4078
        %v4080 = vlaneseq
        %v4081 = vshrl.u32 %v4080, 7
        %v4082 = vsub.s32 %v4079, %v4081
        %v4083 = vrot.slane %v4076, %v4082
        %v4084 = vcombine.low %v4075, %v4083
        %v4085 = vcombine.high %v4075, %v4083
        %v4086 = vcombine.low %v3548, %v3612
        %v4088 = vunpack.c.l.s4 1983009808
        %v4089 = vunpack.c.0.s8 %v4088
        %v4090 = vlaneseq
        %v4091 = vshrl.u32 %v4090, 7
        %v4092 = vsub.s32 %v4089, %v4091
        %v4093 = vrot.slane %v4086, %v4092
        %v4094 = vcombine.low %v3580, %v3644
        %v4096 = vunpack.c.l.s4 1983009808
        %v4097 = vunpack.c.0.s8 %v4096
        %v4098 = vlaneseq
        %v4099 = vshrl.u32 %v4098, 7
        %v4100 = vsub.s32 %v4097, %v4099
        %v4101 = vrot.slane %v4094, %v4100
        %v4102 = vcombine.low %v3676, %v3740
        %v4104 = vunpack.c.l.s4 1983009808
        %v4105 = vunpack.c.0.s8 %v4104
        %v4106 = vlaneseq
        %v4107 = vshrl.u32 %v4106, 7
        %v4108 = vsub.s32 %v4105, %v4107
        %v4109 = vrot.slane %v4102, %v4108
        %v4110 = vcombine.low %v3708, %v3772
        %v4112 = vunpack.c.l.s4 1983009808
        %v4113 = vunpack.c.0.s8 %v4112
        %v4114 = vlaneseq
        %v4115 = vshrl.u32 %v4114, 7
        %v4116 = vsub.s32 %v4113, %v4115
        %v4117 = vrot.slane %v4110, %v4116
        %v4118 = vcombine.low %v4093, %v4101
        %v4120 = vunpack.c.l.s4 1934713408
        %v4121 = vunpack.c.0.s8 %v4120
        %v4122 = vlaneseq
        %v4123 = vshrl.u32 %v4122, 7
        %v4124 = vsub.s32 %v4121, %v4123
        %v4125 = vrot.slane %v4118, %v4124
        %v4126 = vcombine.low %v4109, %v4117
        %v4128 = vunpack.c.l.s4 1934713408
        %v4129 = vunpack.c.0.s8 %v4128
        %v4130 = vlaneseq
        %v4131 = vshrl.u32 %v4130, 7
        %v4132 = vsub.s32 %v4129, %v4131
        %v4133 = vrot.slane %v4126, %v4132
        %v4134 = vcombine.low %v4125, %v4133
        %v4135 = vcombine.high %v4125, %v4133
        %v4136 = vcombine.low %v3788, %v3852
        %v4138 = vunpack.c.l.s4 1983009808
        %v4139 = vunpack.c.0.s8 %v4138
        %v4140 = vlaneseq
        %v4141 = vshrl.u32 %v4140, 7
        %v4142 = vsub.s32 %v4139, %v4141
        %v4143 = vrot.slane %v4136, %v4142
        %v4144 = vcombine.low %v3820, %v3884
        %v4146 = vunpack.c.l.s4 1983009808
        %v4147 = vunpack.c.0.s8 %v4146
        %v4148 = vlaneseq
        %v4149 = vshrl.u32 %v4148, 7
        %v4150 = vsub.s32 %v4147, %v4149
        %v4151 = vrot.slane %v4144, %v4150
        %v4152 = vcombine.low %v3916, %v3980
        %v4154 = vunpack.c.l.s4 1983009808
        %v4155 = vunpack.c.0.s8 %v4154
        %v4156 = vlaneseq
        %v4157 = vshrl.u32 %v4156, 7
        %v4158 = vsub.s32 %v4155, %v4157
        %v4159 = vrot.slane %v4152, %v4158
        %v4160 = vcombine.low %v3948, %v4012
        %v4162 = vunpack.c.l.s4 1983009808
        %v4163 = vunpack.c.0.s8 %v4162
        %v4164 = vlaneseq
        %v4165 = vshrl.u32 %v4164, 7
        %v4166 = vsub.s32 %v4163, %v4165
        %v4167 = vrot.slane %v4160, %v4166
        %v4168 = vcombine.low %v4143, %v4151
        %v4170 = vunpack.c.l.s4 1934713408
        %v4171 = vunpack.c.0.s8 %v4170
        %v4172 = vlaneseq
        %v4173 = vshrl.u32 %v4172, 7
        %v4174 = vsub.s32 %v4171, %v4173
        %v4175 = vrot.slane %v4168, %v4174
        %v4176 = vcombine.low %v4159, %v4167
        %v4178 = vunpack.c.l.s4 1934713408
        %v4179 = vunpack.c.0.s8 %v4178
        %v4180 = vlaneseq
        %v4181 = vshrl.u32 %v4180, 7
        %v4182 = vsub.s32 %v4179, %v4181
        %v4183 = vrot.slane %v4176, %v4182
        %v4184 = vcombine.low %v4175, %v4183
        %v4185 = vcombine.high %v4175, %v4183
        %v4186 = vcombine.low %v3804, %v3868
        %v4188 = vunpack.c.l.s4 1983009808
        %v4189 = vunpack.c.0.s8 %v4188
        %v4190 = vlaneseq
        %v4191 = vshrl.u32 %v4190, 7
        %v4192 = vsub.s32 %v4189, %v4191
        %v4193 = vrot.slane %v4186, %v4192
        %v4194 = vcombine.low %v3836, %v3900
        %v4196 = vunpack.c.l.s4 1983009808
        %v4197 = vunpack.c.0.s8 %v4196
        %v4198 = vlaneseq
        %v4199 = vshrl.u32 %v4198, 7
        %v4200 = vsub.s32 %v4197, %v4199
        %v4201 = vrot.slane %v4194, %v4200
        %v4202 = vcombine.low %v3932, %v3996
        %v4204 = vunpack.c.l.s4 1983009808
        %v4205 = vunpack.c.0.s8 %v4204
        %v4206 = vlaneseq
        %v4207 = vshrl.u32 %v4206, 7
        %v4208 = vsub.s32 %v4205, %v4207
        %v4209 = vrot.slane %v4202, %v4208
        %v4210 = vcombine.low %v3964, %v4028
        %v4212 = vunpack.c.l.s4 1983009808
        %v4213 = vunpack.c.0.s8 %v4212
        %v4214 = vlaneseq
        %v4215 = vshrl.u32 %v4214, 7
        %v4216 = vsub.s32 %v4213, %v4215
        %v4217 = vrot.slane %v4210, %v4216
        %v4218 = vcombine.low %v4193, %v4201
        %v4220 = vunpack.c.l.s4 1934713408
        %v4221 = vunpack.c.0.s8 %v4220
        %v4222 = vlaneseq
        %v4223 = vshrl.u32 %v4222, 7
        %v4224 = vsub.s32 %v4221, %v4223
        %v4225 = vrot.slane %v4218, %v4224
        %v4226 = vcombine.low %v4209, %v4217
        %v4228 = vunpack.c.l.s4 1934713408
        %v4229 = vunpack.c.0.s8 %v4228
        %v4230 = vlaneseq
        %v4231 = vshrl.u32 %v4230, 7
        %v4232 = vsub.s32 %v4229, %v4231
        %v4233 = vrot.slane %v4226, %v4232
        %v4234 = vcombine.low %v4225, %v4233
        %v4235 = vcombine.high %v4225, %v4233
        %v4238 = vpack.i.b16 %v4134, %v4084
        %v4239 = vshrl.u32 %v4084, 16
        %v4240 = vshrl.u32 %v4134, 16
        %v4241 = vpack.i.b16 %v4240, %v4239
        %v4244 = vpack.i.b16 %v4135, %v4085
        %v4245 = vshrl.u32 %v4085, 16
        %v4246 = vshrl.u32 %v4135, 16
        %v4247 = vpack.i.b16 %v4246, %v4245
        %v4250 = vpack.i.b16 %v4234, %v4184
        %v4251 = vshrl.u32 %v4184, 16
        %v4252 = vshrl.u32 %v4234, 16
        %v4253 = vpack.i.b16 %v4252, %v4251
        %v4256 = vpack.i.b16 %v4235, %v4185
        %v4257 = vshrl.u32 %v4185, 16
        %v4258 = vshrl.u32 %v4235, 16
        %v4259 = vpack.i.b16 %v4258, %v4257
        %v4261 = vsel %vm3011, %v4238, 0
        %v4264 = vsel %vm3011, %v4250, 0
        %v4267 = vsel %vm3011, %v3056, 0
        %4269 = vmatprep.subr.bf16.mxu0 0
        %4270 = vmatpush1.bf16.xpose.msra.mxu0 0
        %4271 = vmatprep.subr.bf16.mxu0 0
        %4272 = vmatpush1.bf16.xpose.msra.mxu0 0
        %4273 = vmatprep.subr.bf16.mxu0 0
        %4274 = vmatpush1.bf16.xpose.msra.mxu0 0
        %4275 = vmatprep.subr.bf16.mxu0 0
        %4276 = vmatpush1.bf16.xpose.msra.mxu0 0
        %4277 = vmatprep.subr.bf16.mxu0 0
        %4278 = vmatpush1.bf16.xpose.msra.mxu0 0
        %4279 = vmatprep.subr.bf16.mxu0 0
        %4280 = vmatpush1.bf16.xpose.msra.mxu0 0
        %4281 = vmatprep.subr.bf16.mxu0 0
        %4282 = vmatpush1.bf16.xpose.msra.mxu0 0
        %4283 = vmatprep.subr.bf16.mxu0 0
        %4284 = vmatpush1.bf16.xpose.msra.mxu0 %v4267
        %4285 = vmatprep.subr.bf16.mxu0 0
        %4286 = vmatpush2.bf16.xpose.msra.mxu0 0
        %4287 = vmatprep.subr.bf16.mxu0 0
        %4288 = vmatpush2.bf16.xpose.msra.mxu0 0
        %4289 = vmatprep.subr.bf16.mxu0 0
        %4290 = vmatpush2.bf16.xpose.msra.mxu0 0
        %4291 = vmatprep.subr.bf16.mxu0 0
        %4292 = vmatpush2.bf16.xpose.msra.mxu0 0
        %4293 = vmatprep.subr.bf16.mxu0 0
        %4294 = vmatpush2.bf16.xpose.msra.mxu0 0
        %4295 = vmatprep.subr.bf16.mxu0 0
        %4296 = vmatpush2.bf16.xpose.msra.mxu0 0
        %4297 = vmatprep.subr.bf16.mxu0 0
        %4298 = vmatpush2.bf16.xpose.msra.mxu0 0
        %4299 = vmatprep.subr.bf16.mxu0 0
        %4300 = vmatpush2.bf16.xpose.msra.mxu0 0
        %4301 = vmatprep.mubr.bf16.mxu0 0
        %4302 = vmatmul.mubr.bf16.gmra.mxu0 %v4261
        %v4303 = vpop.f32.mrf.mxu0
        %v4304 = vadd.f32 0.0, %v4303
        %v4305 = vpop.f32.mrf.mxu0
        %v4306 = vpop.f32.mrf.mxu0
        %v4307 = vadd.f32 0.0, %v4306
        %v4308 = vpop.f32.mrf.mxu0
        %4309 = vmatprep.mubr.bf16.mxu0 0
        %4310 = vmatmul.mubr.bf16.gmra.mxu0 %v4264
        %v4311 = vpop.f32.mrf.mxu0
        %v4312 = vadd.f32 0.0, %v4311
        %v4313 = vpop.f32.mrf.mxu0
        %v4314 = vpop.f32.mrf.mxu0
        %v4315 = vadd.f32 0.0, %v4314
        %v4316 = vpop.f32.mrf.mxu0
        %4317 = vdwg.mxu0
        %v4319 = vsel %vm3011, %v4241, 0
        %v4322 = vsel %vm3011, %v4253, 0
        %v4325 = vsel %vm3011, %v3057, 0
        %4327 = vmatprep.subr.bf16.mxu0 0
        %4328 = vmatpush1.bf16.xpose.msra.mxu0 0
        %4329 = vmatprep.subr.bf16.mxu0 0
        %4330 = vmatpush1.bf16.xpose.msra.mxu0 0
        %4331 = vmatprep.subr.bf16.mxu0 0
        %4332 = vmatpush1.bf16.xpose.msra.mxu0 0
        %4333 = vmatprep.subr.bf16.mxu0 0
        %4334 = vmatpush1.bf16.xpose.msra.mxu0 0
        %4335 = vmatprep.subr.bf16.mxu0 0
        %4336 = vmatpush1.bf16.xpose.msra.mxu0 0
        %4337 = vmatprep.subr.bf16.mxu0 0
        %4338 = vmatpush1.bf16.xpose.msra.mxu0 0
        %4339 = vmatprep.subr.bf16.mxu0 0
        %4340 = vmatpush1.bf16.xpose.msra.mxu0 0
        %4341 = vmatprep.subr.bf16.mxu0 0
        %4342 = vmatpush1.bf16.xpose.msra.mxu0 %v4325
        %4343 = vmatprep.subr.bf16.mxu0 0
        %4344 = vmatpush2.bf16.xpose.msra.mxu0 0
        %4345 = vmatprep.subr.bf16.mxu0 0
        %4346 = vmatpush2.bf16.xpose.msra.mxu0 0
        %4347 = vmatprep.subr.bf16.mxu0 0
        %4348 = vmatpush2.bf16.xpose.msra.mxu0 0
        %4349 = vmatprep.subr.bf16.mxu0 0
        %4350 = vmatpush2.bf16.xpose.msra.mxu0 0
        %4351 = vmatprep.subr.bf16.mxu0 0
        %4352 = vmatpush2.bf16.xpose.msra.mxu0 0
        %4353 = vmatprep.subr.bf16.mxu0 0
        %4354 = vmatpush2.bf16.xpose.msra.mxu0 0
        %4355 = vmatprep.subr.bf16.mxu0 0
        %4356 = vmatpush2.bf16.xpose.msra.mxu0 0
        %4357 = vmatprep.subr.bf16.mxu0 0
        %4358 = vmatpush2.bf16.xpose.msra.mxu0 0
        %4359 = vmatprep.mubr.bf16.mxu0 0
        %4360 = vmatmul.mubr.bf16.gmra.mxu0 %v4319
        %v4361 = vpop.f32.mrf.mxu0
        %v4362 = vadd.f32 0.0, %v4361
        %v4363 = vpop.f32.mrf.mxu0
        %v4364 = vpop.f32.mrf.mxu0
        %v4365 = vadd.f32 0.0, %v4364
        %v4366 = vpop.f32.mrf.mxu0
        %4367 = vmatprep.mubr.bf16.mxu0 0
        %4368 = vmatmul.mubr.bf16.gmra.mxu0 %v4322
        %v4369 = vpop.f32.mrf.mxu0
        %v4370 = vadd.f32 0.0, %v4369
        %v4371 = vpop.f32.mrf.mxu0
        %v4372 = vpop.f32.mrf.mxu0
        %v4373 = vadd.f32 0.0, %v4372
        %v4374 = vpop.f32.mrf.mxu0
        %4375 = vdwg.mxu0
        %v4377 = vsel %vm3011, %v4244, 0
        %v4380 = vsel %vm3011, %v4256, 0
        %v4383 = vsel %vm3011, %v3058, 0
        %4385 = vmatprep.subr.bf16.mxu0 0
        %4386 = vmatpush1.bf16.xpose.msra.mxu0 0
        %4387 = vmatprep.subr.bf16.mxu0 0
        %4388 = vmatpush1.bf16.xpose.msra.mxu0 0
        %4389 = vmatprep.subr.bf16.mxu0 0
        %4390 = vmatpush1.bf16.xpose.msra.mxu0 0
        %4391 = vmatprep.subr.bf16.mxu0 0
        %4392 = vmatpush1.bf16.xpose.msra.mxu0 0
        %4393 = vmatprep.subr.bf16.mxu0 0
        %4394 = vmatpush1.bf16.xpose.msra.mxu0 0
        %4395 = vmatprep.subr.bf16.mxu0 0
        %4396 = vmatpush1.bf16.xpose.msra.mxu0 0
        %4397 = vmatprep.subr.bf16.mxu0 0
        %4398 = vmatpush1.bf16.xpose.msra.mxu0 0
        %4399 = vmatprep.subr.bf16.mxu0 0
        %4400 = vmatpush1.bf16.xpose.msra.mxu0 %v4383
        %4401 = vmatprep.subr.bf16.mxu0 0
        %4402 = vmatpush2.bf16.xpose.msra.mxu0 0
        %4403 = vmatprep.subr.bf16.mxu0 0
        %4404 = vmatpush2.bf16.xpose.msra.mxu0 0
        %4405 = vmatprep.subr.bf16.mxu0 0
        %4406 = vmatpush2.bf16.xpose.msra.mxu0 0
        %4407 = vmatprep.subr.bf16.mxu0 0
        %4408 = vmatpush2.bf16.xpose.msra.mxu0 0
        %4409 = vmatprep.subr.bf16.mxu0 0
        %4410 = vmatpush2.bf16.xpose.msra.mxu0 0
        %4411 = vmatprep.subr.bf16.mxu0 0
        %4412 = vmatpush2.bf16.xpose.msra.mxu0 0
        %4413 = vmatprep.subr.bf16.mxu0 0
        %4414 = vmatpush2.bf16.xpose.msra.mxu0 0
        %4415 = vmatprep.subr.bf16.mxu0 0
        %4416 = vmatpush2.bf16.xpose.msra.mxu0 0
        %4417 = vmatprep.mubr.bf16.mxu0 0
        %4418 = vmatmul.mubr.bf16.gmra.mxu0 %v4377
        %v4419 = vpop.f32.mrf.mxu0
        %v4420 = vadd.f32 0.0, %v4419
        %v4421 = vpop.f32.mrf.mxu0
        %v4422 = vpop.f32.mrf.mxu0
        %v4423 = vadd.f32 0.0, %v4422
        %v4424 = vpop.f32.mrf.mxu0
        %4425 = vmatprep.mubr.bf16.mxu0 0
        %4426 = vmatmul.mubr.bf16.gmra.mxu0 %v4380
        %v4427 = vpop.f32.mrf.mxu0
        %v4428 = vadd.f32 0.0, %v4427
        %v4429 = vpop.f32.mrf.mxu0
        %v4430 = vpop.f32.mrf.mxu0
        %v4431 = vadd.f32 0.0, %v4430
        %v4432 = vpop.f32.mrf.mxu0
        %4433 = vdwg.mxu0
        %v4435 = vsel %vm3011, %v4247, 0
        %v4438 = vsel %vm3011, %v4259, 0
        %v4441 = vsel %vm3011, %v3059, 0
        %4443 = vmatprep.subr.bf16.mxu0 0
        %4444 = vmatpush1.bf16.xpose.msra.mxu0 0
        %4445 = vmatprep.subr.bf16.mxu0 0
        %4446 = vmatpush1.bf16.xpose.msra.mxu0 0
        %4447 = vmatprep.subr.bf16.mxu0 0
        %4448 = vmatpush1.bf16.xpose.msra.mxu0 0
        %4449 = vmatprep.subr.bf16.mxu0 0
        %4450 = vmatpush1.bf16.xpose.msra.mxu0 0
        %4451 = vmatprep.subr.bf16.mxu0 0
        %4452 = vmatpush1.bf16.xpose.msra.mxu0 0
        %4453 = vmatprep.subr.bf16.mxu0 0
        %4454 = vmatpush1.bf16.xpose.msra.mxu0 0
        %4455 = vmatprep.subr.bf16.mxu0 0
        %4456 = vmatpush1.bf16.xpose.msra.mxu0 0
        %4457 = vmatprep.subr.bf16.mxu0 0
        %4458 = vmatpush1.bf16.xpose.msra.mxu0 %v4441
        %4459 = vmatprep.subr.bf16.mxu0 0
        %4460 = vmatpush2.bf16.xpose.msra.mxu0 0
        %4461 = vmatprep.subr.bf16.mxu0 0
        %4462 = vmatpush2.bf16.xpose.msra.mxu0 0
        %4463 = vmatprep.subr.bf16.mxu0 0
        %4464 = vmatpush2.bf16.xpose.msra.mxu0 0
        %4465 = vmatprep.subr.bf16.mxu0 0
        %4466 = vmatpush2.bf16.xpose.msra.mxu0 0
        %4467 = vmatprep.subr.bf16.mxu0 0
        %4468 = vmatpush2.bf16.xpose.msra.mxu0 0
        %4469 = vmatprep.subr.bf16.mxu0 0
        %4470 = vmatpush2.bf16.xpose.msra.mxu0 0
        %4471 = vmatprep.subr.bf16.mxu0 0
        %4472 = vmatpush2.bf16.xpose.msra.mxu0 0
        %4473 = vmatprep.subr.bf16.mxu0 0
        %4474 = vmatpush2.bf16.xpose.msra.mxu0 0
        %4475 = vmatprep.mubr.bf16.mxu0 0
        %4476 = vmatmul.mubr.bf16.gmra.mxu0 %v4435
        %v4477 = vpop.f32.mrf.mxu0
        %v4478 = vadd.f32 0.0, %v4477
        %v4479 = vpop.f32.mrf.mxu0
        %v4480 = vpop.f32.mrf.mxu0
        %v4481 = vadd.f32 0.0, %v4480
        %v4482 = vpop.f32.mrf.mxu0
        %4483 = vmatprep.mubr.bf16.mxu0 0
        %4484 = vmatmul.mubr.bf16.gmra.mxu0 %v4438
        %v4485 = vpop.f32.mrf.mxu0
        %v4486 = vadd.f32 0.0, %v4485
        %v4487 = vpop.f32.mrf.mxu0
        %v4488 = vpop.f32.mrf.mxu0
        %v4489 = vadd.f32 0.0, %v4488
        %v4490 = vpop.f32.mrf.mxu0
        %4491 = vdwg.mxu0
        %4492 = vxpose.xlu0.b32.start [1/16] %v4304, 128
        %4493 = vxpose.xlu0.b32.cont [2/16] %v4307, 128
        %4494 = vxpose.xlu0.b32.cont [3/16] %v4312, 128
        %4495 = vxpose.xlu0.b32.cont [4/16] %v4315, 128
        %4496 = vxpose.xlu0.b32.cont [5/16] 0.0, 128
        %4497 = vxpose.xlu0.b32.cont [6/16] 0.0, 128
        %4498 = vxpose.xlu0.b32.cont [7/16] 0.0, 128
        %4499 = vxpose.xlu0.b32.cont [8/16] 0.0, 128
        %4500 = vxpose.xlu0.b32.cont [9/16] 0.0, 128
        %4501 = vxpose.xlu0.b32.cont [10/16] 0.0, 128
        %4502 = vxpose.xlu0.b32.cont [11/16] 0.0, 128
        %4503 = vxpose.xlu0.b32.cont [12/16] 0.0, 128
        %4504 = vxpose.xlu0.b32.cont [13/16] 0.0, 128
        %4505 = vxpose.xlu0.b32.cont [14/16] 0.0, 128
        %4506 = vxpose.xlu0.b32.cont [15/16] 0.0, 128
        %4507 = vxpose.xlu0.b32.end [16/16] 0.0, 128
        %v4508 = vpop.trf.xlu0
        %v4509 = vpop.trf.xlu0
        %v4510 = vpop.trf.xlu0
        %v4511 = vpop.trf.xlu0
        %v4512 = vpop.trf.xlu0
        %v4513 = vpop.trf.xlu0
        %v4514 = vpop.trf.xlu0
        %v4515 = vpop.trf.xlu0
        %v4516 = vpop.trf.xlu0
        %v4517 = vpop.trf.xlu0
        %v4518 = vpop.trf.xlu0
        %v4519 = vpop.trf.xlu0
        %v4520 = vpop.trf.xlu0
        %v4521 = vpop.trf.xlu0
        %v4522 = vpop.trf.xlu0
        %v4523 = vpop.trf.xlu0
        %4524 = vxpose.xlu0.b32.start [1/16] %v4362, 128
        %4525 = vxpose.xlu0.b32.cont [2/16] %v4365, 128
        %4526 = vxpose.xlu0.b32.cont [3/16] %v4370, 128
        %4527 = vxpose.xlu0.b32.cont [4/16] %v4373, 128
        %4528 = vxpose.xlu0.b32.cont [5/16] 0.0, 128
        %4529 = vxpose.xlu0.b32.cont [6/16] 0.0, 128
        %4530 = vxpose.xlu0.b32.cont [7/16] 0.0, 128
        %4531 = vxpose.xlu0.b32.cont [8/16] 0.0, 128
        %4532 = vxpose.xlu0.b32.cont [9/16] 0.0, 128
        %4533 = vxpose.xlu0.b32.cont [10/16] 0.0, 128
        %4534 = vxpose.xlu0.b32.cont [11/16] 0.0, 128
        %4535 = vxpose.xlu0.b32.cont [12/16] 0.0, 128
        %4536 = vxpose.xlu0.b32.cont [13/16] 0.0, 128
        %4537 = vxpose.xlu0.b32.cont [14/16] 0.0, 128
        %4538 = vxpose.xlu0.b32.cont [15/16] 0.0, 128
        %4539 = vxpose.xlu0.b32.end [16/16] 0.0, 128
        %v4540 = vpop.trf.xlu0
        %v4541 = vpop.trf.xlu0
        %v4542 = vpop.trf.xlu0
        %v4543 = vpop.trf.xlu0
        %v4544 = vpop.trf.xlu0
        %v4545 = vpop.trf.xlu0
        %v4546 = vpop.trf.xlu0
        %v4547 = vpop.trf.xlu0
        %v4548 = vpop.trf.xlu0
        %v4549 = vpop.trf.xlu0
        %v4550 = vpop.trf.xlu0
        %v4551 = vpop.trf.xlu0
        %v4552 = vpop.trf.xlu0
        %v4553 = vpop.trf.xlu0
        %v4554 = vpop.trf.xlu0
        %v4555 = vpop.trf.xlu0
        %4556 = vxpose.xlu0.b32.start [1/16] %v4420, 128
        %4557 = vxpose.xlu0.b32.cont [2/16] %v4423, 128
        %4558 = vxpose.xlu0.b32.cont [3/16] %v4428, 128
        %4559 = vxpose.xlu0.b32.cont [4/16] %v4431, 128
        %4560 = vxpose.xlu0.b32.cont [5/16] 0.0, 128
        %4561 = vxpose.xlu0.b32.cont [6/16] 0.0, 128
        %4562 = vxpose.xlu0.b32.cont [7/16] 0.0, 128
        %4563 = vxpose.xlu0.b32.cont [8/16] 0.0, 128
        %4564 = vxpose.xlu0.b32.cont [9/16] 0.0, 128
        %4565 = vxpose.xlu0.b32.cont [10/16] 0.0, 128
        %4566 = vxpose.xlu0.b32.cont [11/16] 0.0, 128
        %4567 = vxpose.xlu0.b32.cont [12/16] 0.0, 128
        %4568 = vxpose.xlu0.b32.cont [13/16] 0.0, 128
        %4569 = vxpose.xlu0.b32.cont [14/16] 0.0, 128
        %4570 = vxpose.xlu0.b32.cont [15/16] 0.0, 128
        %4571 = vxpose.xlu0.b32.end [16/16] 0.0, 128
        %v4572 = vpop.trf.xlu0
        %v4573 = vpop.trf.xlu0
        %v4574 = vpop.trf.xlu0
        %v4575 = vpop.trf.xlu0
        %v4576 = vpop.trf.xlu0
        %v4577 = vpop.trf.xlu0
        %v4578 = vpop.trf.xlu0
        %v4579 = vpop.trf.xlu0
        %v4580 = vpop.trf.xlu0
        %v4581 = vpop.trf.xlu0
        %v4582 = vpop.trf.xlu0
        %v4583 = vpop.trf.xlu0
        %v4584 = vpop.trf.xlu0
        %v4585 = vpop.trf.xlu0
        %v4586 = vpop.trf.xlu0
        %v4587 = vpop.trf.xlu0
        %4588 = vxpose.xlu0.b32.start [1/16] %v4478, 128
        %4589 = vxpose.xlu0.b32.cont [2/16] %v4481, 128
        %4590 = vxpose.xlu0.b32.cont [3/16] %v4486, 128
        %4591 = vxpose.xlu0.b32.cont [4/16] %v4489, 128
        %4592 = vxpose.xlu0.b32.cont [5/16] 0.0, 128
        %4593 = vxpose.xlu0.b32.cont [6/16] 0.0, 128
        %4594 = vxpose.xlu0.b32.cont [7/16] 0.0, 128
        %4595 = vxpose.xlu0.b32.cont [8/16] 0.0, 128
        %4596 = vxpose.xlu0.b32.cont [9/16] 0.0, 128
        %4597 = vxpose.xlu0.b32.cont [10/16] 0.0, 128
        %4598 = vxpose.xlu0.b32.cont [11/16] 0.0, 128
        %4599 = vxpose.xlu0.b32.cont [12/16] 0.0, 128
        %4600 = vxpose.xlu0.b32.cont [13/16] 0.0, 128
        %4601 = vxpose.xlu0.b32.cont [14/16] 0.0, 128
        %4602 = vxpose.xlu0.b32.cont [15/16] 0.0, 128
        %4603 = vxpose.xlu0.b32.end [16/16] 0.0, 128
        %v4604 = vpop.trf.xlu0
        %v4605 = vpop.trf.xlu0
        %v4606 = vpop.trf.xlu0
        %v4607 = vpop.trf.xlu0
        %v4608 = vpop.trf.xlu0
        %v4609 = vpop.trf.xlu0
        %v4610 = vpop.trf.xlu0
        %v4611 = vpop.trf.xlu0
        %v4612 = vpop.trf.xlu0
        %v4613 = vpop.trf.xlu0
        %v4614 = vpop.trf.xlu0
        %v4615 = vpop.trf.xlu0
        %v4616 = vpop.trf.xlu0
        %v4617 = vpop.trf.xlu0
        %v4618 = vpop.trf.xlu0
        %v4619 = vpop.trf.xlu0
        %v4620 = vcombine.low %v4508, %v4572
        %v4621 = vcombine.high %v4508, %v4572
        %v4623 = vunpack.c.l.s4 1983009808
        %v4624 = vunpack.c.0.s8 %v4623
        %v4625 = vlaneseq
        %v4626 = vshrl.u32 %v4625, 7
        %v4627 = vsub.s32 %v4624, %v4626
        %v4628 = vrot.slane %v4620, %v4627
        %v4630 = vunpack.c.l.s4 1983009808
        %v4631 = vunpack.c.0.s8 %v4630
        %v4632 = vlaneseq
        %v4633 = vshrl.u32 %v4632, 7
        %v4634 = vsub.s32 %v4631, %v4633
        %v4635 = vrot.slane %v4621, %v4634
        %v4636 = vcombine.low %v4540, %v4604
        %v4637 = vcombine.high %v4540, %v4604
        %v4639 = vunpack.c.l.s4 1983009808
        %v4640 = vunpack.c.0.s8 %v4639
        %v4641 = vlaneseq
        %v4642 = vshrl.u32 %v4641, 7
        %v4643 = vsub.s32 %v4640, %v4642
        %v4644 = vrot.slane %v4636, %v4643
        %v4646 = vunpack.c.l.s4 1983009808
        %v4647 = vunpack.c.0.s8 %v4646
        %v4648 = vlaneseq
        %v4649 = vshrl.u32 %v4648, 7
        %v4650 = vsub.s32 %v4647, %v4649
        %v4651 = vrot.slane %v4637, %v4650
        %v4652 = vcombine.low %v4628, %v4644
        %v4653 = vcombine.high %v4628, %v4644
        %v4655 = vunpack.c.l.s4 1934713408
        %v4656 = vunpack.c.0.s8 %v4655
        %v4657 = vlaneseq
        %v4658 = vshrl.u32 %v4657, 7
        %v4659 = vsub.s32 %v4656, %v4658
        %v4660 = vrot.slane %v4652, %v4659
        %v4662 = vunpack.c.l.s4 1934713408
        %v4663 = vunpack.c.0.s8 %v4662
        %v4664 = vlaneseq
        %v4665 = vshrl.u32 %v4664, 7
        %v4666 = vsub.s32 %v4663, %v4665
        %v4667 = vrot.slane %v4653, %v4666
        %v4668 = vcombine.low %v4635, %v4651
        %v4669 = vcombine.high %v4635, %v4651
        %v4671 = vunpack.c.l.s4 1934713408
        %v4672 = vunpack.c.0.s8 %v4671
        %v4673 = vlaneseq
        %v4674 = vshrl.u32 %v4673, 7
        %v4675 = vsub.s32 %v4672, %v4674
        %v4676 = vrot.slane %v4668, %v4675
        %v4678 = vunpack.c.l.s4 1934713408
        %v4679 = vunpack.c.0.s8 %v4678
        %v4680 = vlaneseq
        %v4681 = vshrl.u32 %v4680, 7
        %v4682 = vsub.s32 %v4679, %v4681
        %v4683 = vrot.slane %v4669, %v4682
        %v4684 = vcombine.high %v4660, 0.0
        %v4685 = vcombine.high %v4667, 0.0
        %v4686 = vcombine.high %v4676, 0.0
        %v4687 = vcombine.high %v4683, 0.0
        %v4688 = vcombine.low %v4660, %v4667
        %v4690 = vunpack.c.l.s4 1983009808
        %v4691 = vunpack.c.0.s8 %v4690
        %v4692 = vlaneseq
        %v4693 = vshrl.u32 %v4692, 7
        %v4694 = vsub.s32 %v4691, %v4693
        %v4695 = vrot.slane %v4688, %v4694
        %v4696 = vcombine.low %v4684, %v4685
        %v4698 = vunpack.c.l.s4 1983009808
        %v4699 = vunpack.c.0.s8 %v4698
        %v4700 = vlaneseq
        %v4701 = vshrl.u32 %v4700, 7
        %v4702 = vsub.s32 %v4699, %v4701
        %v4703 = vrot.slane %v4696, %v4702
        %v4704 = vcombine.low %v4676, %v4683
        %v4706 = vunpack.c.l.s4 1983009808
        %v4707 = vunpack.c.0.s8 %v4706
        %v4708 = vlaneseq
        %v4709 = vshrl.u32 %v4708, 7
        %v4710 = vsub.s32 %v4707, %v4709
        %v4711 = vrot.slane %v4704, %v4710
        %v4712 = vcombine.low %v4686, %v4687
        %v4714 = vunpack.c.l.s4 1983009808
        %v4715 = vunpack.c.0.s8 %v4714
        %v4716 = vlaneseq
        %v4717 = vshrl.u32 %v4716, 7
        %v4718 = vsub.s32 %v4715, %v4717
        %v4719 = vrot.slane %v4712, %v4718
        %v4720 = vcombine.low %v4695, %v4703
        %v4721 = vcombine.high %v4695, %v4703
        %v4723 = vunpack.c.l.s4 1934713408
        %v4724 = vunpack.c.0.s8 %v4723
        %v4725 = vlaneseq
        %v4726 = vshrl.u32 %v4725, 7
        %v4727 = vsub.s32 %v4724, %v4726
        %v4728 = vrot.slane %v4720, %v4727
        %v4730 = vunpack.c.l.s4 1934713408
        %v4731 = vunpack.c.0.s8 %v4730
        %v4732 = vlaneseq
        %v4733 = vshrl.u32 %v4732, 7
        %v4734 = vsub.s32 %v4731, %v4733
        %v4735 = vrot.slane %v4721, %v4734
        %v4736 = vcombine.low %v4711, %v4719
        %v4737 = vcombine.high %v4711, %v4719
        %v4739 = vunpack.c.l.s4 1934713408
        %v4740 = vunpack.c.0.s8 %v4739
        %v4741 = vlaneseq
        %v4742 = vshrl.u32 %v4741, 7
        %v4743 = vsub.s32 %v4740, %v4742
        %v4744 = vrot.slane %v4736, %v4743
        %v4746 = vunpack.c.l.s4 1934713408
        %v4747 = vunpack.c.0.s8 %v4746
        %v4748 = vlaneseq
        %v4749 = vshrl.u32 %v4748, 7
        %v4750 = vsub.s32 %v4747, %v4749
        %v4751 = vrot.slane %v4737, %v4750
        %v4752 = vcombine.low %v4728, %v4744
        %v4753 = vcombine.high %v4728, %v4744
        %v4754 = vcombine.low %v4735, %v4751
        %v4755 = vcombine.high %v4735, %v4751
        %4757 = vrot.lane.b32.xlu0 %v4753, 32
        %v4758 = vpop.permute.xlu0 %4757
        %4761 = vrot.lane.b32.xlu0 %v4754, 64
        %v4762 = vpop.permute.xlu0 %4761
        %4765 = vrot.lane.b32.xlu0 %v4755, 96
        %v4766 = vpop.permute.xlu0 %4765
        %v4768 = vsel %vm2830, %v4752, %v4758
        %vm4769 = vcmask 523264
        %v4770 = vsel %vm4769, %v4768, %v4762
        %vm4771 = vcmask 785408
        %v4772 = vsel %vm4771, %v4770, %v4766
        %v4773 = vpack.c.bf16 %v4772, %v4772
        %v4790 = vunpack.c.l.b16 %v1021
        %v4791 = vunpack.c.l.b16 %v1022
        %v4792 = vunpack.c.l.b16 %v1023
        %v4793 = vunpack.c.l.b16 %v1024
        %v4794 = vunpack.c.l.b16 %v1025
        %v4795 = vunpack.c.l.b16 %v1026
        %v4796 = vunpack.c.l.b16 %v1027
        %v4797 = vunpack.c.l.b16 %v1028
        %v4798 = vunpack.c.l.b16 %v1029
        %v4799 = vunpack.c.l.b16 %v1030
        %v4800 = vunpack.c.l.b16 %v1031
        %v4801 = vunpack.c.l.b16 %v1032
        %v4802 = vunpack.c.l.b16 %v1033
        %v4803 = vunpack.c.l.b16 %v1034
        %v4804 = vunpack.c.l.b16 %v1035
        %v4805 = vunpack.c.l.b16 %v1036
        %v4806 = vpack.c.b16 %v4791, %v4790
        %v4807 = vpack.c.b16 %v4793, %v4792
        %v4808 = vpack.c.b16 %v4795, %v4794
        %v4809 = vpack.c.b16 %v4797, %v4796
        %v4810 = vpack.c.b16 %v4799, %v4798
        %v4811 = vpack.c.b16 %v4801, %v4800
        %v4812 = vpack.c.b16 %v4803, %v4802
        %v4813 = vpack.c.b16 %v4805, %v4804
        %4822 = vmatprep.subr.bf16.mxu0 0
        %4823 = vmatpush1.bf16.msra.mxu0 %v4813
        %4824 = vmatprep.subr.bf16.mxu0 0
        %4825 = vmatpush1.bf16.msra.mxu0 %v4812
        %4826 = vmatprep.subr.bf16.mxu0 0
        %4827 = vmatpush1.bf16.msra.mxu0 %v4811
        %4828 = vmatprep.subr.bf16.mxu0 0
        %4829 = vmatpush1.bf16.msra.mxu0 %v4810
        %4830 = vmatprep.subr.bf16.mxu0 0
        %4831 = vmatpush1.bf16.msra.mxu0 %v4809
        %4832 = vmatprep.subr.bf16.mxu0 0
        %4833 = vmatpush1.bf16.msra.mxu0 %v4808
        %4834 = vmatprep.subr.bf16.mxu0 0
        %4835 = vmatpush1.bf16.msra.mxu0 %v4807
        %4836 = vmatprep.subr.bf16.mxu0 0
        %4837 = vmatpush1.bf16.msra.mxu0 %v4806
        %4838 = vmatprep.subr.bf16.mxu0 0
        %4839 = vmatpush2.bf16.msra.mxu0 0
        %4840 = vmatprep.subr.bf16.mxu0 0
        %4841 = vmatpush2.bf16.msra.mxu0 0
        %4842 = vmatprep.subr.bf16.mxu0 0
        %4843 = vmatpush2.bf16.msra.mxu0 0
        %4844 = vmatprep.subr.bf16.mxu0 0
        %4845 = vmatpush2.bf16.msra.mxu0 0
        %4846 = vmatprep.subr.bf16.mxu0 0
        %4847 = vmatpush2.bf16.msra.mxu0 0
        %4848 = vmatprep.subr.bf16.mxu0 0
        %4849 = vmatpush2.bf16.msra.mxu0 0
        %4850 = vmatprep.subr.bf16.mxu0 0
        %4851 = vmatpush2.bf16.msra.mxu0 0
        %4852 = vmatprep.subr.bf16.mxu0 0
        %4853 = vmatpush2.bf16.msra.mxu0 0
        %4854 = vmatprep.mubr.bf16.mxu0 0
        %4855 = vmatmul.mubr.bf16.gmra.mxu0 %v4773
        %v4856 = vpop.f32.mrf.mxu0
        %v4857 = vadd.f32 0.0, %v4856
        %v4858 = vpop.f32.mrf.mxu0
        %v4859 = vpop.f32.mrf.mxu0
        %v4860 = vpop.f32.mrf.mxu0
        %4861 = vdwg.mxu0
        %v4862 = vadd.f32 %v937, %v4857
        %v4863 = vld [vmem:[%s13] sm:$0x1]
        %v4864 = vld [vmem:[%s14] sm:$0x1]
        %4865 = vadd.xlane.f32.xlu0 %v4862
        %v4866 = vpop.xlane.xlu0 %4865
        %v4867 = vrcp.pop 128.0
        %v4868 = vmul.f32 %v4866, %v4867
        %v4869 = vsub.f32 %v4862, %v4868
        %v4870 = vmul.f32 %v4869, %v4869
        %4871 = vadd.xlane.f32.xlu0 %v4870
        %v4872 = vpop.xlane.xlu0 %4871
        %v4873 = vmul.f32 %v4872, %v4867
        %v4874 = vadd.f32 %v4873, 1e-05
        %v4875 = vrsqrt.pop %v4874
        %v4876 = vmul.f32 %v4869, %v4875
        %v4878 = vlaneseq
        %v4879 = vshrl.u32 %v4878, 7
        %v4880 = vsub.s32 0, %v4879
        %v4881 = vrot.slane %v4863, %v4880
        %v4883 = vmul.f32 %v4876, %v4881
        %v4885 = vlaneseq
        %v4886 = vshrl.u32 %v4885, 7
        %v4887 = vsub.s32 0, %v4886
        %v4888 = vrot.slane %v4864, %v4887
        %v4890 = vadd.f32 %v4883, %v4888
        %v4891 = vld [vmem:[#allocation11] sm:$0xf]
        %v4892 = vld [vmem:[#allocation11 + $0x4] sm:$0xf]
        %v4893 = vld [vmem:[#allocation11 + $0x8] sm:$0xf]
        %v4894 = vld [vmem:[#allocation11 + $0xc] sm:$0xf]
        %v4895 = vld [vmem:[#allocation11 + $0x10] sm:$0xf]
        %v4896 = vld [vmem:[#allocation11 + $0x14] sm:$0xf]
        %v4897 = vld [vmem:[#allocation11 + $0x18] sm:$0xf]
        %v4898 = vld [vmem:[#allocation11 + $0x1c] sm:$0xf]
        %v4899 = vld [vmem:[#allocation11 + $0x20] sm:$0xf]
        %v4900 = vld [vmem:[#allocation11 + $0x24] sm:$0xf]
        %v4901 = vld [vmem:[#allocation11 + $0x28] sm:$0xf]
        %v4902 = vld [vmem:[#allocation11 + $0x2c] sm:$0xf]
        %v4903 = vld [vmem:[#allocation11 + $0x30] sm:$0xf]
        %v4904 = vld [vmem:[#allocation11 + $0x34] sm:$0xf]
        %v4905 = vld [vmem:[#allocation11 + $0x38] sm:$0xf]
        %v4906 = vld [vmem:[#allocation11 + $0x3c] sm:$0xf]
        %v4907 = vld [vmem:[#allocation13] sm:$0xf]
        %v4908 = vld [vmem:[#allocation13 + $0x4] sm:$0xf]
        %v4909 = vld [vmem:[#allocation13 + $0x8] sm:$0xf]
        %v4910 = vld [vmem:[#allocation13 + $0xc] sm:$0xf]
        %v4911 = vld [vmem:[#allocation13 + $0x10] sm:$0xf]
        %v4912 = vld [vmem:[#allocation13 + $0x14] sm:$0xf]
        %v4913 = vld [vmem:[#allocation13 + $0x18] sm:$0xf]
        %v4914 = vld [vmem:[#allocation13 + $0x1c] sm:$0xf]
        %v4915 = vld [vmem:[#allocation13 + $0x20] sm:$0xf]
        %v4916 = vld [vmem:[#allocation13 + $0x24] sm:$0xf]
        %v4917 = vld [vmem:[#allocation13 + $0x28] sm:$0xf]
        %v4918 = vld [vmem:[#allocation13 + $0x2c] sm:$0xf]
        %v4919 = vld [vmem:[#allocation13 + $0x30] sm:$0xf]
        %v4920 = vld [vmem:[#allocation13 + $0x34] sm:$0xf]
        %v4921 = vld [vmem:[#allocation13 + $0x38] sm:$0xf]
        %v4922 = vld [vmem:[#allocation13 + $0x3c] sm:$0xf]
        %v4923 = vld [vmem:[#allocation14] sm:$0xf]
        %v4924 = vld [vmem:[#allocation14 + $0x4] sm:$0xf]
        %v4925 = vld [vmem:[#allocation14 + $0x8] sm:$0xf]
        %v4926 = vld [vmem:[#allocation14 + $0xc] sm:$0xf]
        %v4927 = vld [vmem:[#allocation14 + $0x10] sm:$0xf]
        %v4928 = vld [vmem:[#allocation14 + $0x14] sm:$0xf]
        %v4929 = vld [vmem:[#allocation14 + $0x18] sm:$0xf]
        %v4930 = vld [vmem:[#allocation14 + $0x1c] sm:$0xf]
        %v4931 = vld [vmem:[#allocation14 + $0x20] sm:$0xf]
        %v4932 = vld [vmem:[#allocation14 + $0x24] sm:$0xf]
        %v4933 = vld [vmem:[#allocation14 + $0x28] sm:$0xf]
        %v4934 = vld [vmem:[#allocation14 + $0x2c] sm:$0xf]
        %v4935 = vld [vmem:[#allocation14 + $0x30] sm:$0xf]
        %v4936 = vld [vmem:[#allocation14 + $0x34] sm:$0xf]
        %v4937 = vld [vmem:[#allocation14 + $0x38] sm:$0xf]
        %v4938 = vld [vmem:[#allocation14 + $0x3c] sm:$0xf]
        %v4939 = vld [vmem:[#allocation16] sm:$0xf]
        %v4940 = vld [vmem:[#allocation16 + $0x4] sm:$0xf]
        %v4941 = vld [vmem:[#allocation16 + $0x8] sm:$0xf]
        %v4942 = vld [vmem:[#allocation16 + $0xc] sm:$0xf]
        %v4943 = vld [vmem:[#allocation16 + $0x10] sm:$0xf]
        %v4944 = vld [vmem:[#allocation16 + $0x14] sm:$0xf]
        %v4945 = vld [vmem:[#allocation16 + $0x18] sm:$0xf]
        %v4946 = vld [vmem:[#allocation16 + $0x1c] sm:$0xf]
        %v4947 = vld [vmem:[#allocation16 + $0x20] sm:$0xf]
        %v4948 = vld [vmem:[#allocation16 + $0x24] sm:$0xf]
        %v4949 = vld [vmem:[#allocation16 + $0x28] sm:$0xf]
        %v4950 = vld [vmem:[#allocation16 + $0x2c] sm:$0xf]
        %v4951 = vld [vmem:[#allocation16 + $0x30] sm:$0xf]
        %v4952 = vld [vmem:[#allocation16 + $0x34] sm:$0xf]
        %v4953 = vld [vmem:[#allocation16 + $0x38] sm:$0xf]
        %v4954 = vld [vmem:[#allocation16 + $0x3c] sm:$0xf]
        %v4955 = vpack.c.bf16 %v4890, %v4890
        %v4956 = vpack.c.bf16 %v939, %v938
        %v4973 = vunpack.c.l.b16 %v4891
        %v4974 = vunpack.c.l.b16 %v4892
        %v4975 = vunpack.c.l.b16 %v4893
        %v4976 = vunpack.c.l.b16 %v4894
        %v4977 = vunpack.c.l.b16 %v4895
        %v4978 = vunpack.c.l.b16 %v4896
        %v4979 = vunpack.c.l.b16 %v4897
        %v4980 = vunpack.c.l.b16 %v4898
        %v4981 = vunpack.c.l.b16 %v4899
        %v4982 = vunpack.c.l.b16 %v4900
        %v4983 = vunpack.c.l.b16 %v4901
        %v4984 = vunpack.c.l.b16 %v4902
        %v4985 = vunpack.c.l.b16 %v4903
        %v4986 = vunpack.c.l.b16 %v4904
        %v4987 = vunpack.c.l.b16 %v4905
        %v4988 = vunpack.c.l.b16 %v4906
        %v4989 = vpack.c.b16 %v4974, %v4973
        %v4990 = vpack.c.b16 %v4976, %v4975
        %v4991 = vpack.c.b16 %v4978, %v4977
        %v4992 = vpack.c.b16 %v4980, %v4979
        %v4993 = vpack.c.b16 %v4982, %v4981
        %v4994 = vpack.c.b16 %v4984, %v4983
        %v4995 = vpack.c.b16 %v4986, %v4985
        %v4996 = vpack.c.b16 %v4988, %v4987
        %5005 = vmatprep.subr.bf16.mxu0 0
        %5006 = vmatpush1.bf16.msra.mxu0 %v4996
        %5007 = vmatprep.subr.bf16.mxu0 0
        %5008 = vmatpush1.bf16.msra.mxu0 %v4995
        %5009 = vmatprep.subr.bf16.mxu0 0
        %5010 = vmatpush1.bf16.msra.mxu0 %v4994
        %5011 = vmatprep.subr.bf16.mxu0 0
        %5012 = vmatpush1.bf16.msra.mxu0 %v4993
        %5013 = vmatprep.subr.bf16.mxu0 0
        %5014 = vmatpush1.bf16.msra.mxu0 %v4992
        %5015 = vmatprep.subr.bf16.mxu0 0
        %5016 = vmatpush1.bf16.msra.mxu0 %v4991
        %5017 = vmatprep.subr.bf16.mxu0 0
        %5018 = vmatpush1.bf16.msra.mxu0 %v4990
        %5019 = vmatprep.subr.bf16.mxu0 0
        %5020 = vmatpush1.bf16.msra.mxu0 %v4989
        %5021 = vmatprep.subr.bf16.mxu0 0
        %5022 = vmatpush2.bf16.msra.mxu0 0
        %5023 = vmatprep.subr.bf16.mxu0 0
        %5024 = vmatpush2.bf16.msra.mxu0 0
        %5025 = vmatprep.subr.bf16.mxu0 0
        %5026 = vmatpush2.bf16.msra.mxu0 0
        %5027 = vmatprep.subr.bf16.mxu0 0
        %5028 = vmatpush2.bf16.msra.mxu0 0
        %5029 = vmatprep.subr.bf16.mxu0 0
        %5030 = vmatpush2.bf16.msra.mxu0 0
        %5031 = vmatprep.subr.bf16.mxu0 0
        %5032 = vmatpush2.bf16.msra.mxu0 0
        %5033 = vmatprep.subr.bf16.mxu0 0
        %5034 = vmatpush2.bf16.msra.mxu0 0
        %5035 = vmatprep.subr.bf16.mxu0 0
        %5036 = vmatpush2.bf16.msra.mxu0 0
        %5037 = vmatprep.mubr.bf16.mxu0 0
        %5038 = vmatmul.mubr.bf16.gmra.mxu0 %v4955
        %v5039 = vpop.f32.mrf.mxu0
        %v5040 = vadd.f32 0.0, %v5039
        %v5041 = vpop.f32.mrf.mxu0
        %v5042 = vpop.f32.mrf.mxu0
        %v5043 = vpop.f32.mrf.mxu0
        %5044 = vdwg.mxu0
        %v5061 = vunpack.c.l.b16 %v4907
        %v5062 = vunpack.c.l.b16 %v4908
        %v5063 = vunpack.c.l.b16 %v4909
        %v5064 = vunpack.c.l.b16 %v4910
        %v5065 = vunpack.c.l.b16 %v4911
        %v5066 = vunpack.c.l.b16 %v4912
        %v5067 = vunpack.c.l.b16 %v4913
        %v5068 = vunpack.c.l.b16 %v4914
        %v5069 = vunpack.c.l.b16 %v4915
        %v5070 = vunpack.c.l.b16 %v4916
        %v5071 = vunpack.c.l.b16 %v4917
        %v5072 = vunpack.c.l.b16 %v4918
        %v5073 = vunpack.c.l.b16 %v4919
        %v5074 = vunpack.c.l.b16 %v4920
        %v5075 = vunpack.c.l.b16 %v4921
        %v5076 = vunpack.c.l.b16 %v4922
        %v5077 = vpack.c.b16 %v5062, %v5061
        %v5078 = vpack.c.b16 %v5064, %v5063
        %v5079 = vpack.c.b16 %v5066, %v5065
        %v5080 = vpack.c.b16 %v5068, %v5067
        %v5081 = vpack.c.b16 %v5070, %v5069
        %v5082 = vpack.c.b16 %v5072, %v5071
        %v5083 = vpack.c.b16 %v5074, %v5073
        %v5084 = vpack.c.b16 %v5076, %v5075
        %5093 = vmatprep.subr.bf16.mxu0 0
        %5094 = vmatpush1.bf16.msra.mxu0 %v5084
        %5095 = vmatprep.subr.bf16.mxu0 0
        %5096 = vmatpush1.bf16.msra.mxu0 %v5083
        %5097 = vmatprep.subr.bf16.mxu0 0
        %5098 = vmatpush1.bf16.msra.mxu0 %v5082
        %5099 = vmatprep.subr.bf16.mxu0 0
        %5100 = vmatpush1.bf16.msra.mxu0 %v5081
        %5101 = vmatprep.subr.bf16.mxu0 0
        %5102 = vmatpush1.bf16.msra.mxu0 %v5080
        %5103 = vmatprep.subr.bf16.mxu0 0
        %5104 = vmatpush1.bf16.msra.mxu0 %v5079
        %5105 = vmatprep.subr.bf16.mxu0 0
        %5106 = vmatpush1.bf16.msra.mxu0 %v5078
        %5107 = vmatprep.subr.bf16.mxu0 0
        %5108 = vmatpush1.bf16.msra.mxu0 %v5077
        %5109 = vmatprep.subr.bf16.mxu0 0
        %5110 = vmatpush2.bf16.msra.mxu0 0
        %5111 = vmatprep.subr.bf16.mxu0 0
        %5112 = vmatpush2.bf16.msra.mxu0 0
        %5113 = vmatprep.subr.bf16.mxu0 0
        %5114 = vmatpush2.bf16.msra.mxu0 0
        %5115 = vmatprep.subr.bf16.mxu0 0
        %5116 = vmatpush2.bf16.msra.mxu0 0
        %5117 = vmatprep.subr.bf16.mxu0 0
        %5118 = vmatpush2.bf16.msra.mxu0 0
        %5119 = vmatprep.subr.bf16.mxu0 0
        %5120 = vmatpush2.bf16.msra.mxu0 0
        %5121 = vmatprep.subr.bf16.mxu0 0
        %5122 = vmatpush2.bf16.msra.mxu0 0
        %5123 = vmatprep.subr.bf16.mxu0 0
        %5124 = vmatpush2.bf16.msra.mxu0 0
        %5125 = vmatprep.mubr.bf16.mxu0 0
        %5126 = vmatmul.mubr.bf16.gmra.mxu0 %v4956
        %v5127 = vpop.f32.mrf.mxu0
        %v5128 = vadd.f32 0.0, %v5127
        %v5129 = vpop.f32.mrf.mxu0
        %v5130 = vpop.f32.mrf.mxu0
        %v5131 = vadd.f32 0.0, %v5130
        %v5132 = vpop.f32.mrf.mxu0
        %5133 = vdwg.mxu0
        %v5150 = vunpack.c.l.b16 %v4923
        %v5151 = vunpack.c.l.b16 %v4924
        %v5152 = vunpack.c.l.b16 %v4925
        %v5153 = vunpack.c.l.b16 %v4926
        %v5154 = vunpack.c.l.b16 %v4927
        %v5155 = vunpack.c.l.b16 %v4928
        %v5156 = vunpack.c.l.b16 %v4929
        %v5157 = vunpack.c.l.b16 %v4930
        %v5158 = vunpack.c.l.b16 %v4931
        %v5159 = vunpack.c.l.b16 %v4932
        %v5160 = vunpack.c.l.b16 %v4933
        %v5161 = vunpack.c.l.b16 %v4934
        %v5162 = vunpack.c.l.b16 %v4935
        %v5163 = vunpack.c.l.b16 %v4936
        %v5164 = vunpack.c.l.b16 %v4937
        %v5165 = vunpack.c.l.b16 %v4938
        %v5166 = vpack.c.b16 %v5151, %v5150
        %v5167 = vpack.c.b16 %v5153, %v5152
        %v5168 = vpack.c.b16 %v5155, %v5154
        %v5169 = vpack.c.b16 %v5157, %v5156
        %v5170 = vpack.c.b16 %v5159, %v5158
        %v5171 = vpack.c.b16 %v5161, %v5160
        %v5172 = vpack.c.b16 %v5163, %v5162
        %v5173 = vpack.c.b16 %v5165, %v5164
        %5182 = vmatprep.subr.bf16.mxu0 0
        %5183 = vmatpush1.bf16.msra.mxu0 %v5173
        %5184 = vmatprep.subr.bf16.mxu0 0
        %5185 = vmatpush1.bf16.msra.mxu0 %v5172
        %5186 = vmatprep.subr.bf16.mxu0 0
        %5187 = vmatpush1.bf16.msra.mxu0 %v5171
        %5188 = vmatprep.subr.bf16.mxu0 0
        %5189 = vmatpush1.bf16.msra.mxu0 %v5170
        %5190 = vmatprep.subr.bf16.mxu0 0
        %5191 = vmatpush1.bf16.msra.mxu0 %v5169
        %5192 = vmatprep.subr.bf16.mxu0 0
        %5193 = vmatpush1.bf16.msra.mxu0 %v5168
        %5194 = vmatprep.subr.bf16.mxu0 0
        %5195 = vmatpush1.bf16.msra.mxu0 %v5167
        %5196 = vmatprep.subr.bf16.mxu0 0
        %5197 = vmatpush1.bf16.msra.mxu0 %v5166
        %5198 = vmatprep.subr.bf16.mxu0 0
        %5199 = vmatpush2.bf16.msra.mxu0 0
        %5200 = vmatprep.subr.bf16.mxu0 0
        %5201 = vmatpush2.bf16.msra.mxu0 0
        %5202 = vmatprep.subr.bf16.mxu0 0
        %5203 = vmatpush2.bf16.msra.mxu0 0
        %5204 = vmatprep.subr.bf16.mxu0 0
        %5205 = vmatpush2.bf16.msra.mxu0 0
        %5206 = vmatprep.subr.bf16.mxu0 0
        %5207 = vmatpush2.bf16.msra.mxu0 0
        %5208 = vmatprep.subr.bf16.mxu0 0
        %5209 = vmatpush2.bf16.msra.mxu0 0
        %5210 = vmatprep.subr.bf16.mxu0 0
        %5211 = vmatpush2.bf16.msra.mxu0 0
        %5212 = vmatprep.subr.bf16.mxu0 0
        %5213 = vmatpush2.bf16.msra.mxu0 0
        %5214 = vmatprep.mubr.bf16.mxu0 0
        %5215 = vmatmul.mubr.bf16.gmra.mxu0 %v4956
        %v5216 = vpop.f32.mrf.mxu0
        %v5217 = vadd.f32 0.0, %v5216
        %v5218 = vpop.f32.mrf.mxu0
        %v5219 = vpop.f32.mrf.mxu0
        %v5220 = vadd.f32 0.0, %v5219
        %v5221 = vpop.f32.mrf.mxu0
        %5222 = vdwg.mxu0
        %5224 = vrot.lane.b32.xlu0 %v5040, 96
        %v5225 = vpop.permute.xlu0 %5224
        %5227 = vrot.lane.b32.xlu0 %v5040, 64
        %v5228 = vpop.permute.xlu0 %5227
        %5230 = vrot.lane.b32.xlu0 %v5040, 32
        %v5231 = vpop.permute.xlu0 %5230
        %v5233 = vcombine.low %v5040, %v5228
        %v5234 = vcombine.high %v5040, %v5228
        %v5236 = vunpack.c.l.s4 1983009808
        %v5237 = vunpack.c.0.s8 %v5236
        %v5238 = vlaneseq
        %v5239 = vshrl.u32 %v5238, 7
        %v5240 = vsub.s32 %v5237, %v5239
        %v5241 = vrot.slane %v5233, %v5240
        %v5243 = vunpack.c.l.s4 1983009808
        %v5244 = vunpack.c.0.s8 %v5243
        %v5245 = vlaneseq
        %v5246 = vshrl.u32 %v5245, 7
        %v5247 = vsub.s32 %v5244, %v5246
        %v5248 = vrot.slane %v5234, %v5247
        %v5249 = vcombine.low %v5225, %v5231
        %v5250 = vcombine.high %v5225, %v5231
        %v5252 = vunpack.c.l.s4 1983009808
        %v5253 = vunpack.c.0.s8 %v5252
        %v5254 = vlaneseq
        %v5255 = vshrl.u32 %v5254, 7
        %v5256 = vsub.s32 %v5253, %v5255
        %v5257 = vrot.slane %v5249, %v5256
        %v5259 = vunpack.c.l.s4 1983009808
        %v5260 = vunpack.c.0.s8 %v5259
        %v5261 = vlaneseq
        %v5262 = vshrl.u32 %v5261, 7
        %v5263 = vsub.s32 %v5260, %v5262
        %v5264 = vrot.slane %v5250, %v5263
        %v5265 = vcombine.low %v5241, %v5257
        %v5266 = vcombine.high %v5241, %v5257
        %v5268 = vunpack.c.l.s4 1934713408
        %v5269 = vunpack.c.0.s8 %v5268
        %v5270 = vlaneseq
        %v5271 = vshrl.u32 %v5270, 7
        %v5272 = vsub.s32 %v5269, %v5271
        %v5273 = vrot.slane %v5265, %v5272
        %v5275 = vunpack.c.l.s4 1934713408
        %v5276 = vunpack.c.0.s8 %v5275
        %v5277 = vlaneseq
        %v5278 = vshrl.u32 %v5277, 7
        %v5279 = vsub.s32 %v5276, %v5278
        %v5280 = vrot.slane %v5266, %v5279
        %v5281 = vcombine.low %v5248, %v5264
        %v5282 = vcombine.high %v5248, %v5264
        %v5284 = vunpack.c.l.s4 1934713408
        %v5285 = vunpack.c.0.s8 %v5284
        %v5286 = vlaneseq
        %v5287 = vshrl.u32 %v5286, 7
        %v5288 = vsub.s32 %v5285, %v5287
        %v5289 = vrot.slane %v5281, %v5288
        %v5291 = vunpack.c.l.s4 1934713408
        %v5292 = vunpack.c.0.s8 %v5291
        %v5293 = vlaneseq
        %v5294 = vshrl.u32 %v5293, 7
        %v5295 = vsub.s32 %v5292, %v5294
        %v5296 = vrot.slane %v5282, %v5295
        %v5297 = vcombine.high %v5273, 0.0
        %v5298 = vcombine.high %v5280, 0.0
        %v5299 = vcombine.high %v5289, 0.0
        %v5300 = vcombine.high %v5296, 0.0
        %v5301 = vpack.c.bf16 %v5273, %v5273
        %v5302 = vpack.c.bf16 %v5297, %v5297
        %v5303 = vpack.c.bf16 %v5280, %v5280
        %v5304 = vpack.c.bf16 %v5298, %v5298
        %v5305 = vpack.c.bf16 %v5289, %v5289
        %v5306 = vpack.c.bf16 %v5299, %v5299
        %v5307 = vpack.c.bf16 %v5296, %v5296
        %v5308 = vpack.c.bf16 %v5300, %v5300
        %5311 = vrot.lane.b32.xlu0 %v5128, 96
        %v5312 = vpop.permute.xlu0 %5311
        %5313 = vrot.lane.b32.xlu0 %v5131, 96
        %v5314 = vpop.permute.xlu0 %5313
        %5317 = vrot.lane.b32.xlu0 %v5128, 64
        %v5318 = vpop.permute.xlu0 %5317
        %5319 = vrot.lane.b32.xlu0 %v5131, 64
        %v5320 = vpop.permute.xlu0 %5319
        %5323 = vrot.lane.b32.xlu0 %v5128, 32
        %v5324 = vpop.permute.xlu0 %5323
        %5325 = vrot.lane.b32.xlu0 %v5131, 32
        %v5326 = vpop.permute.xlu0 %5325
        %v5329 = vcombine.low %v5128, %v5318
        %v5330 = vcombine.high %v5128, %v5318
        %v5332 = vunpack.c.l.s4 1983009808
        %v5333 = vunpack.c.0.s8 %v5332
        %v5334 = vlaneseq
        %v5335 = vshrl.u32 %v5334, 7
        %v5336 = vsub.s32 %v5333, %v5335
        %v5337 = vrot.slane %v5329, %v5336
        %v5339 = vunpack.c.l.s4 1983009808
        %v5340 = vunpack.c.0.s8 %v5339
        %v5341 = vlaneseq
        %v5342 = vshrl.u32 %v5341, 7
        %v5343 = vsub.s32 %v5340, %v5342
        %v5344 = vrot.slane %v5330, %v5343
        %v5345 = vcombine.low %v5312, %v5324
        %v5346 = vcombine.high %v5312, %v5324
        %v5348 = vunpack.c.l.s4 1983009808
        %v5349 = vunpack.c.0.s8 %v5348
        %v5350 = vlaneseq
        %v5351 = vshrl.u32 %v5350, 7
        %v5352 = vsub.s32 %v5349, %v5351
        %v5353 = vrot.slane %v5345, %v5352
        %v5355 = vunpack.c.l.s4 1983009808
        %v5356 = vunpack.c.0.s8 %v5355
        %v5357 = vlaneseq
        %v5358 = vshrl.u32 %v5357, 7
        %v5359 = vsub.s32 %v5356, %v5358
        %v5360 = vrot.slane %v5346, %v5359
        %v5361 = vcombine.low %v5337, %v5353
        %v5362 = vcombine.high %v5337, %v5353
        %v5364 = vunpack.c.l.s4 1934713408
        %v5365 = vunpack.c.0.s8 %v5364
        %v5366 = vlaneseq
        %v5367 = vshrl.u32 %v5366, 7
        %v5368 = vsub.s32 %v5365, %v5367
        %v5369 = vrot.slane %v5361, %v5368
        %v5371 = vunpack.c.l.s4 1934713408
        %v5372 = vunpack.c.0.s8 %v5371
        %v5373 = vlaneseq
        %v5374 = vshrl.u32 %v5373, 7
        %v5375 = vsub.s32 %v5372, %v5374
        %v5376 = vrot.slane %v5362, %v5375
        %v5377 = vcombine.low %v5344, %v5360
        %v5378 = vcombine.high %v5344, %v5360
        %v5380 = vunpack.c.l.s4 1934713408
        %v5381 = vunpack.c.0.s8 %v5380
        %v5382 = vlaneseq
        %v5383 = vshrl.u32 %v5382, 7
        %v5384 = vsub.s32 %v5381, %v5383
        %v5385 = vrot.slane %v5377, %v5384
        %v5387 = vunpack.c.l.s4 1934713408
        %v5388 = vunpack.c.0.s8 %v5387
        %v5389 = vlaneseq
        %v5390 = vshrl.u32 %v5389, 7
        %v5391 = vsub.s32 %v5388, %v5390
        %v5392 = vrot.slane %v5378, %v5391
        %v5393 = vcombine.high %v5369, 0.0
        %v5394 = vcombine.high %v5376, 0.0
        %v5395 = vcombine.high %v5385, 0.0
        %v5396 = vcombine.high %v5392, 0.0
        %v5397 = vcombine.low %v5131, %v5320
        %v5398 = vcombine.high %v5131, %v5320
        %v5400 = vunpack.c.l.s4 1983009808
        %v5401 = vunpack.c.0.s8 %v5400
        %v5402 = vlaneseq
        %v5403 = vshrl.u32 %v5402, 7
        %v5404 = vsub.s32 %v5401, %v5403
        %v5405 = vrot.slane %v5397, %v5404
        %v5407 = vunpack.c.l.s4 1983009808
        %v5408 = vunpack.c.0.s8 %v5407
        %v5409 = vlaneseq
        %v5410 = vshrl.u32 %v5409, 7
        %v5411 = vsub.s32 %v5408, %v5410
        %v5412 = vrot.slane %v5398, %v5411
        %v5413 = vcombine.low %v5314, %v5326
        %v5414 = vcombine.high %v5314, %v5326
        %v5416 = vunpack.c.l.s4 1983009808
        %v5417 = vunpack.c.0.s8 %v5416
        %v5418 = vlaneseq
        %v5419 = vshrl.u32 %v5418, 7
        %v5420 = vsub.s32 %v5417, %v5419
        %v5421 = vrot.slane %v5413, %v5420
        %v5423 = vunpack.c.l.s4 1983009808
        %v5424 = vunpack.c.0.s8 %v5423
        %v5425 = vlaneseq
        %v5426 = vshrl.u32 %v5425, 7
        %v5427 = vsub.s32 %v5424, %v5426
        %v5428 = vrot.slane %v5414, %v5427
        %v5429 = vcombine.low %v5405, %v5421
        %v5430 = vcombine.high %v5405, %v5421
        %v5432 = vunpack.c.l.s4 1934713408
        %v5433 = vunpack.c.0.s8 %v5432
        %v5434 = vlaneseq
        %v5435 = vshrl.u32 %v5434, 7
        %v5436 = vsub.s32 %v5433, %v5435
        %v5437 = vrot.slane %v5429, %v5436
        %v5439 = vunpack.c.l.s4 1934713408
        %v5440 = vunpack.c.0.s8 %v5439
        %v5441 = vlaneseq
        %v5442 = vshrl.u32 %v5441, 7
        %v5443 = vsub.s32 %v5440, %v5442
        %v5444 = vrot.slane %v5430, %v5443
        %v5445 = vcombine.low %v5412, %v5428
        %v5446 = vcombine.high %v5412, %v5428
        %v5448 = vunpack.c.l.s4 1934713408
        %v5449 = vunpack.c.0.s8 %v5448
        %v5450 = vlaneseq
        %v5451 = vshrl.u32 %v5450, 7
        %v5452 = vsub.s32 %v5449, %v5451
        %v5453 = vrot.slane %v5445, %v5452
        %v5455 = vunpack.c.l.s4 1934713408
        %v5456 = vunpack.c.0.s8 %v5455
        %v5457 = vlaneseq
        %v5458 = vshrl.u32 %v5457, 7
        %v5459 = vsub.s32 %v5456, %v5458
        %v5460 = vrot.slane %v5446, %v5459
        %v5461 = vcombine.high %v5437, 0.0
        %v5462 = vcombine.high %v5444, 0.0
        %v5463 = vcombine.high %v5453, 0.0
        %v5464 = vcombine.high %v5460, 0.0
        %v5465 = vpack.c.bf16 %v5369, %v5369
        %v5466 = vpack.c.bf16 %v5393, %v5393
        %v5467 = vpack.c.bf16 %v5376, %v5376
        %v5468 = vpack.c.bf16 %v5394, %v5394
        %v5469 = vpack.c.bf16 %v5385, %v5385
        %v5470 = vpack.c.bf16 %v5395, %v5395
        %v5471 = vpack.c.bf16 %v5392, %v5392
        %v5472 = vpack.c.bf16 %v5396, %v5396
        %v5473 = vpack.c.bf16 %v5437, %v5437
        %v5474 = vpack.c.bf16 %v5461, %v5461
        %v5475 = vpack.c.bf16 %v5444, %v5444
        %v5476 = vpack.c.bf16 %v5462, %v5462
        %v5477 = vpack.c.bf16 %v5453, %v5453
        %v5478 = vpack.c.bf16 %v5463, %v5463
        %v5479 = vpack.c.bf16 %v5460, %v5460
        %v5480 = vpack.c.bf16 %v5464, %v5464
        %5483 = vrot.lane.b32.xlu0 %v5217, 96
        %v5484 = vpop.permute.xlu0 %5483
        %5485 = vrot.lane.b32.xlu0 %v5220, 96
        %v5486 = vpop.permute.xlu0 %5485
        %5489 = vrot.lane.b32.xlu0 %v5217, 64
        %v5490 = vpop.permute.xlu0 %5489
        %5491 = vrot.lane.b32.xlu0 %v5220, 64
        %v5492 = vpop.permute.xlu0 %5491
        %5495 = vrot.lane.b32.xlu0 %v5217, 32
        %v5496 = vpop.permute.xlu0 %5495
        %5497 = vrot.lane.b32.xlu0 %v5220, 32
        %v5498 = vpop.permute.xlu0 %5497
        %v5501 = vcombine.low %v5217, %v5490
        %v5502 = vcombine.high %v5217, %v5490
        %v5504 = vunpack.c.l.s4 1983009808
        %v5505 = vunpack.c.0.s8 %v5504
        %v5506 = vlaneseq
        %v5507 = vshrl.u32 %v5506, 7
        %v5508 = vsub.s32 %v5505, %v5507
        %v5509 = vrot.slane %v5501, %v5508
        %v5511 = vunpack.c.l.s4 1983009808
        %v5512 = vunpack.c.0.s8 %v5511
        %v5513 = vlaneseq
        %v5514 = vshrl.u32 %v5513, 7
        %v5515 = vsub.s32 %v5512, %v5514
        %v5516 = vrot.slane %v5502, %v5515
        %v5517 = vcombine.low %v5484, %v5496
        %v5518 = vcombine.high %v5484, %v5496
        %v5520 = vunpack.c.l.s4 1983009808
        %v5521 = vunpack.c.0.s8 %v5520
        %v5522 = vlaneseq
        %v5523 = vshrl.u32 %v5522, 7
        %v5524 = vsub.s32 %v5521, %v5523
        %v5525 = vrot.slane %v5517, %v5524
        %v5527 = vunpack.c.l.s4 1983009808
        %v5528 = vunpack.c.0.s8 %v5527
        %v5529 = vlaneseq
        %v5530 = vshrl.u32 %v5529, 7
        %v5531 = vsub.s32 %v5528, %v5530
        %v5532 = vrot.slane %v5518, %v5531
        %v5533 = vcombine.low %v5509, %v5525
        %v5534 = vcombine.high %v5509, %v5525
        %v5536 = vunpack.c.l.s4 1934713408
        %v5537 = vunpack.c.0.s8 %v5536
        %v5538 = vlaneseq
        %v5539 = vshrl.u32 %v5538, 7
        %v5540 = vsub.s32 %v5537, %v5539
        %v5541 = vrot.slane %v5533, %v5540
        %v5543 = vunpack.c.l.s4 1934713408
        %v5544 = vunpack.c.0.s8 %v5543
        %v5545 = vlaneseq
        %v5546 = vshrl.u32 %v5545, 7
        %v5547 = vsub.s32 %v5544, %v5546
        %v5548 = vrot.slane %v5534, %v5547
        %v5549 = vcombine.low %v5516, %v5532
        %v5550 = vcombine.high %v5516, %v5532
        %v5552 = vunpack.c.l.s4 1934713408
        %v5553 = vunpack.c.0.s8 %v5552
        %v5554 = vlaneseq
        %v5555 = vshrl.u32 %v5554, 7
        %v5556 = vsub.s32 %v5553, %v5555
        %v5557 = vrot.slane %v5549, %v5556
        %v5559 = vunpack.c.l.s4 1934713408
        %v5560 = vunpack.c.0.s8 %v5559
        %v5561 = vlaneseq
        %v5562 = vshrl.u32 %v5561, 7
        %v5563 = vsub.s32 %v5560, %v5562
        %v5564 = vrot.slane %v5550, %v5563
        %v5565 = vcombine.high %v5541, 0.0
        %v5566 = vcombine.high %v5548, 0.0
        %v5567 = vcombine.high %v5557, 0.0
        %v5568 = vcombine.high %v5564, 0.0
        %v5569 = vcombine.low %v5220, %v5492
        %v5570 = vcombine.high %v5220, %v5492
        %v5572 = vunpack.c.l.s4 1983009808
        %v5573 = vunpack.c.0.s8 %v5572
        %v5574 = vlaneseq
        %v5575 = vshrl.u32 %v5574, 7
        %v5576 = vsub.s32 %v5573, %v5575
        %v5577 = vrot.slane %v5569, %v5576
        %v5579 = vunpack.c.l.s4 1983009808
        %v5580 = vunpack.c.0.s8 %v5579
        %v5581 = vlaneseq
        %v5582 = vshrl.u32 %v5581, 7
        %v5583 = vsub.s32 %v5580, %v5582
        %v5584 = vrot.slane %v5570, %v5583
        %v5585 = vcombine.low %v5486, %v5498
        %v5586 = vcombine.high %v5486, %v5498
        %v5588 = vunpack.c.l.s4 1983009808
        %v5589 = vunpack.c.0.s8 %v5588
        %v5590 = vlaneseq
        %v5591 = vshrl.u32 %v5590, 7
        %v5592 = vsub.s32 %v5589, %v5591
        %v5593 = vrot.slane %v5585, %v5592
        %v5595 = vunpack.c.l.s4 1983009808
        %v5596 = vunpack.c.0.s8 %v5595
        %v5597 = vlaneseq
        %v5598 = vshrl.u32 %v5597, 7
        %v5599 = vsub.s32 %v5596, %v5598
        %v5600 = vrot.slane %v5586, %v5599
        %v5601 = vcombine.low %v5577, %v5593
        %v5602 = vcombine.high %v5577, %v5593
        %v5604 = vunpack.c.l.s4 1934713408
        %v5605 = vunpack.c.0.s8 %v5604
        %v5606 = vlaneseq
        %v5607 = vshrl.u32 %v5606, 7
        %v5608 = vsub.s32 %v5605, %v5607
        %v5609 = vrot.slane %v5601, %v5608
        %v5611 = vunpack.c.l.s4 1934713408
        %v5612 = vunpack.c.0.s8 %v5611
        %v5613 = vlaneseq
        %v5614 = vshrl.u32 %v5613, 7
        %v5615 = vsub.s32 %v5612, %v5614
        %v5616 = vrot.slane %v5602, %v5615
        %v5617 = vcombine.low %v5584, %v5600
        %v5618 = vcombine.high %v5584, %v5600
        %v5620 = vunpack.c.l.s4 1934713408
        %v5621 = vunpack.c.0.s8 %v5620
        %v5622 = vlaneseq
        %v5623 = vshrl.u32 %v5622, 7
        %v5624 = vsub.s32 %v5621, %v5623
        %v5625 = vrot.slane %v5617, %v5624
        %v5627 = vunpack.c.l.s4 1934713408
        %v5628 = vunpack.c.0.s8 %v5627
        %v5629 = vlaneseq
        %v5630 = vshrl.u32 %v5629, 7
        %v5631 = vsub.s32 %v5628, %v5630
        %v5632 = vrot.slane %v5618, %v5631
        %v5633 = vcombine.high %v5609, 0.0
        %v5634 = vcombine.high %v5616, 0.0
        %v5635 = vcombine.high %v5625, 0.0
        %v5636 = vcombine.high %v5632, 0.0
        %v5637 = vpack.c.bf16 %v5541, %v5541
        %v5638 = vpack.c.bf16 %v5565, %v5565
        %v5639 = vpack.c.bf16 %v5548, %v5548
        %v5640 = vpack.c.bf16 %v5566, %v5566
        %v5641 = vpack.c.bf16 %v5557, %v5557
        %v5642 = vpack.c.bf16 %v5567, %v5567
        %v5643 = vpack.c.bf16 %v5564, %v5564
        %v5644 = vpack.c.bf16 %v5568, %v5568
        %v5645 = vpack.c.bf16 %v5609, %v5609
        %v5646 = vpack.c.bf16 %v5633, %v5633
        %v5647 = vpack.c.bf16 %v5616, %v5616
        %v5648 = vpack.c.bf16 %v5634, %v5634
        %v5649 = vpack.c.bf16 %v5625, %v5625
        %v5650 = vpack.c.bf16 %v5635, %v5635
        %v5651 = vpack.c.bf16 %v5632, %v5632
        %v5652 = vpack.c.bf16 %v5636, %v5636
        %v5653 = vcombine.low %v5301, %v5305
        %v5655 = vunpack.c.l.s4 1983009808
        %v5656 = vunpack.c.0.s8 %v5655
        %v5657 = vlaneseq
        %v5658 = vshrl.u32 %v5657, 7
        %v5659 = vsub.s32 %v5656, %v5658
        %v5660 = vrot.slane %v5653, %v5659
        %v5661 = vcombine.low %v5303, %v5307
        %v5663 = vunpack.c.l.s4 1983009808
        %v5664 = vunpack.c.0.s8 %v5663
        %v5665 = vlaneseq
        %v5666 = vshrl.u32 %v5665, 7
        %v5667 = vsub.s32 %v5664, %v5666
        %v5668 = vrot.slane %v5661, %v5667
        %v5669 = vcombine.low %v5660, %v5668
        %v5671 = vunpack.c.l.s4 1934713408
        %v5672 = vunpack.c.0.s8 %v5671
        %v5673 = vlaneseq
        %v5674 = vshrl.u32 %v5673, 7
        %v5675 = vsub.s32 %v5672, %v5674
        %v5676 = vrot.slane %v5669, %v5675
        %v5677 = vcombine.high %v5676, 0
        %v5678 = vcombine.low %v5302, %v5306
        %v5680 = vunpack.c.l.s4 1983009808
        %v5681 = vunpack.c.0.s8 %v5680
        %v5682 = vlaneseq
        %v5683 = vshrl.u32 %v5682, 7
        %v5684 = vsub.s32 %v5681, %v5683
        %v5685 = vrot.slane %v5678, %v5684
        %v5686 = vcombine.low %v5304, %v5308
        %v5688 = vunpack.c.l.s4 1983009808
        %v5689 = vunpack.c.0.s8 %v5688
        %v5690 = vlaneseq
        %v5691 = vshrl.u32 %v5690, 7
        %v5692 = vsub.s32 %v5689, %v5691
        %v5693 = vrot.slane %v5686, %v5692
        %v5694 = vcombine.low %v5685, %v5693
        %v5696 = vunpack.c.l.s4 1934713408
        %v5697 = vunpack.c.0.s8 %v5696
        %v5698 = vlaneseq
        %v5699 = vshrl.u32 %v5698, 7
        %v5700 = vsub.s32 %v5697, %v5699
        %v5701 = vrot.slane %v5694, %v5700
        %v5702 = vcombine.high %v5701, 0
        %v5705 = vpack.i.b16 %v5701, %v5676
        %v5706 = vshrl.u32 %v5676, 16
        %v5707 = vshrl.u32 %v5701, 16
        %v5708 = vpack.i.b16 %v5707, %v5706
        %v5711 = vpack.i.b16 %v5702, %v5677
        %v5712 = vshrl.u32 %v5677, 16
        %v5713 = vshrl.u32 %v5702, 16
        %v5714 = vpack.i.b16 %v5713, %v5712
        %5715 = vxpose.xlu0.c.b16.start [1/8] %v5465, 128
        %5716 = vxpose.xlu0.c.b16.cont [2/8] 0, 128
        %5717 = vxpose.xlu0.c.b16.cont [3/8] 0, 128
        %5718 = vxpose.xlu0.c.b16.cont [4/8] 0, 128
        %5719 = vxpose.xlu0.c.b16.cont [5/8] 0, 128
        %5720 = vxpose.xlu0.c.b16.cont [6/8] 0, 128
        %5721 = vxpose.xlu0.c.b16.cont [7/8] 0, 128
        %5722 = vxpose.xlu0.c.b16.end [8/8] 0, 128
        %v5723 = vpop.trf.xlu0
        %v5724 = vpop.trf.xlu0
        %v5725 = vpop.trf.xlu0
        %v5726 = vpop.trf.xlu0
        %v5727 = vpop.trf.xlu0
        %v5728 = vpop.trf.xlu0
        %v5729 = vpop.trf.xlu0
        %v5730 = vpop.trf.xlu0
        %5731 = vxpose.xlu0.c.b16.start [1/8] %v5466, 128
        %5732 = vxpose.xlu0.c.b16.cont [2/8] 0, 128
        %5733 = vxpose.xlu0.c.b16.cont [3/8] 0, 128
        %5734 = vxpose.xlu0.c.b16.cont [4/8] 0, 128
        %5735 = vxpose.xlu0.c.b16.cont [5/8] 0, 128
        %5736 = vxpose.xlu0.c.b16.cont [6/8] 0, 128
        %5737 = vxpose.xlu0.c.b16.cont [7/8] 0, 128
        %5738 = vxpose.xlu0.c.b16.end [8/8] 0, 128
        %v5739 = vpop.trf.xlu0
        %v5740 = vpop.trf.xlu0
        %v5741 = vpop.trf.xlu0
        %v5742 = vpop.trf.xlu0
        %v5743 = vpop.trf.xlu0
        %v5744 = vpop.trf.xlu0
        %v5745 = vpop.trf.xlu0
        %v5746 = vpop.trf.xlu0
        %5747 = vxpose.xlu0.c.b16.start [1/8] %v5467, 128
        %5748 = vxpose.xlu0.c.b16.cont [2/8] 0, 128
        %5749 = vxpose.xlu0.c.b16.cont [3/8] 0, 128
        %5750 = vxpose.xlu0.c.b16.cont [4/8] 0, 128
        %5751 = vxpose.xlu0.c.b16.cont [5/8] 0, 128
        %5752 = vxpose.xlu0.c.b16.cont [6/8] 0, 128
        %5753 = vxpose.xlu0.c.b16.cont [7/8] 0, 128
        %5754 = vxpose.xlu0.c.b16.end [8/8] 0, 128
        %v5755 = vpop.trf.xlu0
        %v5756 = vpop.trf.xlu0
        %v5757 = vpop.trf.xlu0
        %v5758 = vpop.trf.xlu0
        %v5759 = vpop.trf.xlu0
        %v5760 = vpop.trf.xlu0
        %v5761 = vpop.trf.xlu0
        %v5762 = vpop.trf.xlu0
        %5763 = vxpose.xlu0.c.b16.start [1/8] %v5468, 128
        %5764 = vxpose.xlu0.c.b16.cont [2/8] 0, 128
        %5765 = vxpose.xlu0.c.b16.cont [3/8] 0, 128
        %5766 = vxpose.xlu0.c.b16.cont [4/8] 0, 128
        %5767 = vxpose.xlu0.c.b16.cont [5/8] 0, 128
        %5768 = vxpose.xlu0.c.b16.cont [6/8] 0, 128
        %5769 = vxpose.xlu0.c.b16.cont [7/8] 0, 128
        %5770 = vxpose.xlu0.c.b16.end [8/8] 0, 128
        %v5771 = vpop.trf.xlu0
        %v5772 = vpop.trf.xlu0
        %v5773 = vpop.trf.xlu0
        %v5774 = vpop.trf.xlu0
        %v5775 = vpop.trf.xlu0
        %v5776 = vpop.trf.xlu0
        %v5777 = vpop.trf.xlu0
        %v5778 = vpop.trf.xlu0
        %5779 = vxpose.xlu0.c.b16.start [1/8] %v5469, 128
        %5780 = vxpose.xlu0.c.b16.cont [2/8] 0, 128
        %5781 = vxpose.xlu0.c.b16.cont [3/8] 0, 128
        %5782 = vxpose.xlu0.c.b16.cont [4/8] 0, 128
        %5783 = vxpose.xlu0.c.b16.cont [5/8] 0, 128
        %5784 = vxpose.xlu0.c.b16.cont [6/8] 0, 128
        %5785 = vxpose.xlu0.c.b16.cont [7/8] 0, 128
        %5786 = vxpose.xlu0.c.b16.end [8/8] 0, 128
        %v5787 = vpop.trf.xlu0
        %v5788 = vpop.trf.xlu0
        %v5789 = vpop.trf.xlu0
        %v5790 = vpop.trf.xlu0
        %v5791 = vpop.trf.xlu0
        %v5792 = vpop.trf.xlu0
        %v5793 = vpop.trf.xlu0
        %v5794 = vpop.trf.xlu0
        %5795 = vxpose.xlu0.c.b16.start [1/8] %v5470, 128
        %5796 = vxpose.xlu0.c.b16.cont [2/8] 0, 128
        %5797 = vxpose.xlu0.c.b16.cont [3/8] 0, 128
        %5798 = vxpose.xlu0.c.b16.cont [4/8] 0, 128
        %5799 = vxpose.xlu0.c.b16.cont [5/8] 0, 128
        %5800 = vxpose.xlu0.c.b16.cont [6/8] 0, 128
        %5801 = vxpose.xlu0.c.b16.cont [7/8] 0, 128
        %5802 = vxpose.xlu0.c.b16.end [8/8] 0, 128
        %v5803 = vpop.trf.xlu0
        %v5804 = vpop.trf.xlu0
        %v5805 = vpop.trf.xlu0
        %v5806 = vpop.trf.xlu0
        %v5807 = vpop.trf.xlu0
        %v5808 = vpop.trf.xlu0
        %v5809 = vpop.trf.xlu0
        %v5810 = vpop.trf.xlu0
        %5811 = vxpose.xlu0.c.b16.start [1/8] %v5471, 128
        %5812 = vxpose.xlu0.c.b16.cont [2/8] 0, 128
        %5813 = vxpose.xlu0.c.b16.cont [3/8] 0, 128
        %5814 = vxpose.xlu0.c.b16.cont [4/8] 0, 128
        %5815 = vxpose.xlu0.c.b16.cont [5/8] 0, 128
        %5816 = vxpose.xlu0.c.b16.cont [6/8] 0, 128
        %5817 = vxpose.xlu0.c.b16.cont [7/8] 0, 128
        %5818 = vxpose.xlu0.c.b16.end [8/8] 0, 128
        %v5819 = vpop.trf.xlu0
        %v5820 = vpop.trf.xlu0
        %v5821 = vpop.trf.xlu0
        %v5822 = vpop.trf.xlu0
        %v5823 = vpop.trf.xlu0
        %v5824 = vpop.trf.xlu0
        %v5825 = vpop.trf.xlu0
        %v5826 = vpop.trf.xlu0
        %5827 = vxpose.xlu0.c.b16.start [1/8] %v5472, 128
        %5828 = vxpose.xlu0.c.b16.cont [2/8] 0, 128
        %5829 = vxpose.xlu0.c.b16.cont [3/8] 0, 128
        %5830 = vxpose.xlu0.c.b16.cont [4/8] 0, 128
        %5831 = vxpose.xlu0.c.b16.cont [5/8] 0, 128
        %5832 = vxpose.xlu0.c.b16.cont [6/8] 0, 128
        %5833 = vxpose.xlu0.c.b16.cont [7/8] 0, 128
        %5834 = vxpose.xlu0.c.b16.end [8/8] 0, 128
        %v5835 = vpop.trf.xlu0
        %v5836 = vpop.trf.xlu0
        %v5837 = vpop.trf.xlu0
        %v5838 = vpop.trf.xlu0
        %v5839 = vpop.trf.xlu0
        %v5840 = vpop.trf.xlu0
        %v5841 = vpop.trf.xlu0
        %v5842 = vpop.trf.xlu0
        %5843 = vxpose.xlu0.c.b16.start [1/8] %v5473, 128
        %5844 = vxpose.xlu0.c.b16.cont [2/8] 0, 128
        %5845 = vxpose.xlu0.c.b16.cont [3/8] 0, 128
        %5846 = vxpose.xlu0.c.b16.cont [4/8] 0, 128
        %5847 = vxpose.xlu0.c.b16.cont [5/8] 0, 128
        %5848 = vxpose.xlu0.c.b16.cont [6/8] 0, 128
        %5849 = vxpose.xlu0.c.b16.cont [7/8] 0, 128
        %5850 = vxpose.xlu0.c.b16.end [8/8] 0, 128
        %v5851 = vpop.trf.xlu0
        %v5852 = vpop.trf.xlu0
        %v5853 = vpop.trf.xlu0
        %v5854 = vpop.trf.xlu0
        %v5855 = vpop.trf.xlu0
        %v5856 = vpop.trf.xlu0
        %v5857 = vpop.trf.xlu0
        %v5858 = vpop.trf.xlu0
        %5859 = vxpose.xlu0.c.b16.start [1/8] %v5474, 128
        %5860 = vxpose.xlu0.c.b16.cont [2/8] 0, 128
        %5861 = vxpose.xlu0.c.b16.cont [3/8] 0, 128
        %5862 = vxpose.xlu0.c.b16.cont [4/8] 0, 128
        %5863 = vxpose.xlu0.c.b16.cont [5/8] 0, 128
        %5864 = vxpose.xlu0.c.b16.cont [6/8] 0, 128
        %5865 = vxpose.xlu0.c.b16.cont [7/8] 0, 128
        %5866 = vxpose.xlu0.c.b16.end [8/8] 0, 128
        %v5867 = vpop.trf.xlu0
        %v5868 = vpop.trf.xlu0
        %v5869 = vpop.trf.xlu0
        %v5870 = vpop.trf.xlu0
        %v5871 = vpop.trf.xlu0
        %v5872 = vpop.trf.xlu0
        %v5873 = vpop.trf.xlu0
        %v5874 = vpop.trf.xlu0
        %5875 = vxpose.xlu0.c.b16.start [1/8] %v5475, 128
        %5876 = vxpose.xlu0.c.b16.cont [2/8] 0, 128
        %5877 = vxpose.xlu0.c.b16.cont [3/8] 0, 128
        %5878 = vxpose.xlu0.c.b16.cont [4/8] 0, 128
        %5879 = vxpose.xlu0.c.b16.cont [5/8] 0, 128
        %5880 = vxpose.xlu0.c.b16.cont [6/8] 0, 128
        %5881 = vxpose.xlu0.c.b16.cont [7/8] 0, 128
        %5882 = vxpose.xlu0.c.b16.end [8/8] 0, 128
        %v5883 = vpop.trf.xlu0
        %v5884 = vpop.trf.xlu0
        %v5885 = vpop.trf.xlu0
        %v5886 = vpop.trf.xlu0
        %v5887 = vpop.trf.xlu0
        %v5888 = vpop.trf.xlu0
        %v5889 = vpop.trf.xlu0
        %v5890 = vpop.trf.xlu0
        %5891 = vxpose.xlu0.c.b16.start [1/8] %v5476, 128
        %5892 = vxpose.xlu0.c.b16.cont [2/8] 0, 128
        %5893 = vxpose.xlu0.c.b16.cont [3/8] 0, 128
        %5894 = vxpose.xlu0.c.b16.cont [4/8] 0, 128
        %5895 = vxpose.xlu0.c.b16.cont [5/8] 0, 128
        %5896 = vxpose.xlu0.c.b16.cont [6/8] 0, 128
        %5897 = vxpose.xlu0.c.b16.cont [7/8] 0, 128
        %5898 = vxpose.xlu0.c.b16.end [8/8] 0, 128
        %v5899 = vpop.trf.xlu0
        %v5900 = vpop.trf.xlu0
        %v5901 = vpop.trf.xlu0
        %v5902 = vpop.trf.xlu0
        %v5903 = vpop.trf.xlu0
        %v5904 = vpop.trf.xlu0
        %v5905 = vpop.trf.xlu0
        %v5906 = vpop.trf.xlu0
        %5907 = vxpose.xlu0.c.b16.start [1/8] %v5477, 128
        %5908 = vxpose.xlu0.c.b16.cont [2/8] 0, 128
        %5909 = vxpose.xlu0.c.b16.cont [3/8] 0, 128
        %5910 = vxpose.xlu0.c.b16.cont [4/8] 0, 128
        %5911 = vxpose.xlu0.c.b16.cont [5/8] 0, 128
        %5912 = vxpose.xlu0.c.b16.cont [6/8] 0, 128
        %5913 = vxpose.xlu0.c.b16.cont [7/8] 0, 128
        %5914 = vxpose.xlu0.c.b16.end [8/8] 0, 128
        %v5915 = vpop.trf.xlu0
        %v5916 = vpop.trf.xlu0
        %v5917 = vpop.trf.xlu0
        %v5918 = vpop.trf.xlu0
        %v5919 = vpop.trf.xlu0
        %v5920 = vpop.trf.xlu0
        %v5921 = vpop.trf.xlu0
        %v5922 = vpop.trf.xlu0
        %5923 = vxpose.xlu0.c.b16.start [1/8] %v5478, 128
        %5924 = vxpose.xlu0.c.b16.cont [2/8] 0, 128
        %5925 = vxpose.xlu0.c.b16.cont [3/8] 0, 128
        %5926 = vxpose.xlu0.c.b16.cont [4/8] 0, 128
        %5927 = vxpose.xlu0.c.b16.cont [5/8] 0, 128
        %5928 = vxpose.xlu0.c.b16.cont [6/8] 0, 128
        %5929 = vxpose.xlu0.c.b16.cont [7/8] 0, 128
        %5930 = vxpose.xlu0.c.b16.end [8/8] 0, 128
        %v5931 = vpop.trf.xlu0
        %v5932 = vpop.trf.xlu0
        %v5933 = vpop.trf.xlu0
        %v5934 = vpop.trf.xlu0
        %v5935 = vpop.trf.xlu0
        %v5936 = vpop.trf.xlu0
        %v5937 = vpop.trf.xlu0
        %v5938 = vpop.trf.xlu0
        %5939 = vxpose.xlu0.c.b16.start [1/8] %v5479, 128
        %5940 = vxpose.xlu0.c.b16.cont [2/8] 0, 128
        %5941 = vxpose.xlu0.c.b16.cont [3/8] 0, 128
        %5942 = vxpose.xlu0.c.b16.cont [4/8] 0, 128
        %5943 = vxpose.xlu0.c.b16.cont [5/8] 0, 128
        %5944 = vxpose.xlu0.c.b16.cont [6/8] 0, 128
        %5945 = vxpose.xlu0.c.b16.cont [7/8] 0, 128
        %5946 = vxpose.xlu0.c.b16.end [8/8] 0, 128
        %v5947 = vpop.trf.xlu0
        %v5948 = vpop.trf.xlu0
        %v5949 = vpop.trf.xlu0
        %v5950 = vpop.trf.xlu0
        %v5951 = vpop.trf.xlu0
        %v5952 = vpop.trf.xlu0
        %v5953 = vpop.trf.xlu0
        %v5954 = vpop.trf.xlu0
        %5955 = vxpose.xlu0.c.b16.start [1/8] %v5480, 128
        %5956 = vxpose.xlu0.c.b16.cont [2/8] 0, 128
        %5957 = vxpose.xlu0.c.b16.cont [3/8] 0, 128
        %5958 = vxpose.xlu0.c.b16.cont [4/8] 0, 128
        %5959 = vxpose.xlu0.c.b16.cont [5/8] 0, 128
        %5960 = vxpose.xlu0.c.b16.cont [6/8] 0, 128
        %5961 = vxpose.xlu0.c.b16.cont [7/8] 0, 128
        %5962 = vxpose.xlu0.c.b16.end [8/8] 0, 128
        %v5963 = vpop.trf.xlu0
        %v5964 = vpop.trf.xlu0
        %v5965 = vpop.trf.xlu0
        %v5966 = vpop.trf.xlu0
        %v5967 = vpop.trf.xlu0
        %v5968 = vpop.trf.xlu0
        %v5969 = vpop.trf.xlu0
        %v5970 = vpop.trf.xlu0
        %v5971 = vcombine.low %v5723, %v5787
        %v5972 = vcombine.high %v5723, %v5787
        %v5974 = vunpack.c.l.s4 1983009808
        %v5975 = vunpack.c.0.s8 %v5974
        %v5976 = vlaneseq
        %v5977 = vshrl.u32 %v5976, 7
        %v5978 = vsub.s32 %v5975, %v5977
        %v5979 = vrot.slane %v5971, %v5978
        %v5981 = vunpack.c.l.s4 1983009808
        %v5982 = vunpack.c.0.s8 %v5981
        %v5983 = vlaneseq
        %v5984 = vshrl.u32 %v5983, 7
        %v5985 = vsub.s32 %v5982, %v5984
        %v5986 = vrot.slane %v5972, %v5985
        %v5987 = vcombine.low %v5755, %v5819
        %v5988 = vcombine.high %v5755, %v5819
        %v5990 = vunpack.c.l.s4 1983009808
        %v5991 = vunpack.c.0.s8 %v5990
        %v5992 = vlaneseq
        %v5993 = vshrl.u32 %v5992, 7
        %v5994 = vsub.s32 %v5991, %v5993
        %v5995 = vrot.slane %v5987, %v5994
        %v5997 = vunpack.c.l.s4 1983009808
        %v5998 = vunpack.c.0.s8 %v5997
        %v5999 = vlaneseq
        %v6000 = vshrl.u32 %v5999, 7
        %v6001 = vsub.s32 %v5998, %v6000
        %v6002 = vrot.slane %v5988, %v6001
        %v6003 = vcombine.low %v5851, %v5915
        %v6004 = vcombine.high %v5851, %v5915
        %v6006 = vunpack.c.l.s4 1983009808
        %v6007 = vunpack.c.0.s8 %v6006
        %v6008 = vlaneseq
        %v6009 = vshrl.u32 %v6008, 7
        %v6010 = vsub.s32 %v6007, %v6009
        %v6011 = vrot.slane %v6003, %v6010
        %v6013 = vunpack.c.l.s4 1983009808
        %v6014 = vunpack.c.0.s8 %v6013
        %v6015 = vlaneseq
        %v6016 = vshrl.u32 %v6015, 7
        %v6017 = vsub.s32 %v6014, %v6016
        %v6018 = vrot.slane %v6004, %v6017
        %v6019 = vcombine.low %v5883, %v5947
        %v6020 = vcombine.high %v5883, %v5947
        %v6022 = vunpack.c.l.s4 1983009808
        %v6023 = vunpack.c.0.s8 %v6022
        %v6024 = vlaneseq
        %v6025 = vshrl.u32 %v6024, 7
        %v6026 = vsub.s32 %v6023, %v6025
        %v6027 = vrot.slane %v6019, %v6026
        %v6029 = vunpack.c.l.s4 1983009808
        %v6030 = vunpack.c.0.s8 %v6029
        %v6031 = vlaneseq
        %v6032 = vshrl.u32 %v6031, 7
        %v6033 = vsub.s32 %v6030, %v6032
        %v6034 = vrot.slane %v6020, %v6033
        %v6035 = vcombine.low %v5979, %v5995
        %v6036 = vcombine.high %v5979, %v5995
        %v6038 = vunpack.c.l.s4 1934713408
        %v6039 = vunpack.c.0.s8 %v6038
        %v6040 = vlaneseq
        %v6041 = vshrl.u32 %v6040, 7
        %v6042 = vsub.s32 %v6039, %v6041
        %v6043 = vrot.slane %v6035, %v6042
        %v6045 = vunpack.c.l.s4 1934713408
        %v6046 = vunpack.c.0.s8 %v6045
        %v6047 = vlaneseq
        %v6048 = vshrl.u32 %v6047, 7
        %v6049 = vsub.s32 %v6046, %v6048
        %v6050 = vrot.slane %v6036, %v6049
        %v6051 = vcombine.low %v5986, %v6002
        %v6052 = vcombine.high %v5986, %v6002
        %v6054 = vunpack.c.l.s4 1934713408
        %v6055 = vunpack.c.0.s8 %v6054
        %v6056 = vlaneseq
        %v6057 = vshrl.u32 %v6056, 7
        %v6058 = vsub.s32 %v6055, %v6057
        %v6059 = vrot.slane %v6051, %v6058
        %v6061 = vunpack.c.l.s4 1934713408
        %v6062 = vunpack.c.0.s8 %v6061
        %v6063 = vlaneseq
        %v6064 = vshrl.u32 %v6063, 7
        %v6065 = vsub.s32 %v6062, %v6064
        %v6066 = vrot.slane %v6052, %v6065
        %v6067 = vcombine.low %v6011, %v6027
        %v6068 = vcombine.high %v6011, %v6027
        %v6070 = vunpack.c.l.s4 1934713408
        %v6071 = vunpack.c.0.s8 %v6070
        %v6072 = vlaneseq
        %v6073 = vshrl.u32 %v6072, 7
        %v6074 = vsub.s32 %v6071, %v6073
        %v6075 = vrot.slane %v6067, %v6074
        %v6077 = vunpack.c.l.s4 1934713408
        %v6078 = vunpack.c.0.s8 %v6077
        %v6079 = vlaneseq
        %v6080 = vshrl.u32 %v6079, 7
        %v6081 = vsub.s32 %v6078, %v6080
        %v6082 = vrot.slane %v6068, %v6081
        %v6083 = vcombine.low %v6018, %v6034
        %v6084 = vcombine.high %v6018, %v6034
        %v6086 = vunpack.c.l.s4 1934713408
        %v6087 = vunpack.c.0.s8 %v6086
        %v6088 = vlaneseq
        %v6089 = vshrl.u32 %v6088, 7
        %v6090 = vsub.s32 %v6087, %v6089
        %v6091 = vrot.slane %v6083, %v6090
        %v6093 = vunpack.c.l.s4 1934713408
        %v6094 = vunpack.c.0.s8 %v6093
        %v6095 = vlaneseq
        %v6096 = vshrl.u32 %v6095, 7
        %v6097 = vsub.s32 %v6094, %v6096
        %v6098 = vrot.slane %v6084, %v6097
        %v6099 = vcombine.low %v6043, %v6075
        %v6100 = vcombine.high %v6043, %v6075
        %v6101 = vcombine.low %v6050, %v6082
        %v6102 = vcombine.high %v6050, %v6082
        %v6103 = vcombine.low %v6059, %v6091
        %v6104 = vcombine.high %v6059, %v6091
        %v6105 = vcombine.low %v6066, %v6098
        %v6106 = vcombine.high %v6066, %v6098
        %v6107 = vcombine.low %v5739, %v5803
        %v6108 = vcombine.high %v5739, %v5803
        %v6110 = vunpack.c.l.s4 1983009808
        %v6111 = vunpack.c.0.s8 %v6110
        %v6112 = vlaneseq
        %v6113 = vshrl.u32 %v6112, 7
        %v6114 = vsub.s32 %v6111, %v6113
        %v6115 = vrot.slane %v6107, %v6114
        %v6117 = vunpack.c.l.s4 1983009808
        %v6118 = vunpack.c.0.s8 %v6117
        %v6119 = vlaneseq
        %v6120 = vshrl.u32 %v6119, 7
        %v6121 = vsub.s32 %v6118, %v6120
        %v6122 = vrot.slane %v6108, %v6121
        %v6123 = vcombine.low %v5771, %v5835
        %v6124 = vcombine.high %v5771, %v5835
        %v6126 = vunpack.c.l.s4 1983009808
        %v6127 = vunpack.c.0.s8 %v6126
        %v6128 = vlaneseq
        %v6129 = vshrl.u32 %v6128, 7
        %v6130 = vsub.s32 %v6127, %v6129
        %v6131 = vrot.slane %v6123, %v6130
        %v6133 = vunpack.c.l.s4 1983009808
        %v6134 = vunpack.c.0.s8 %v6133
        %v6135 = vlaneseq
        %v6136 = vshrl.u32 %v6135, 7
        %v6137 = vsub.s32 %v6134, %v6136
        %v6138 = vrot.slane %v6124, %v6137
        %v6139 = vcombine.low %v5867, %v5931
        %v6140 = vcombine.high %v5867, %v5931
        %v6142 = vunpack.c.l.s4 1983009808
        %v6143 = vunpack.c.0.s8 %v6142
        %v6144 = vlaneseq
        %v6145 = vshrl.u32 %v6144, 7
        %v6146 = vsub.s32 %v6143, %v6145
        %v6147 = vrot.slane %v6139, %v6146
        %v6149 = vunpack.c.l.s4 1983009808
        %v6150 = vunpack.c.0.s8 %v6149
        %v6151 = vlaneseq
        %v6152 = vshrl.u32 %v6151, 7
        %v6153 = vsub.s32 %v6150, %v6152
        %v6154 = vrot.slane %v6140, %v6153
        %v6155 = vcombine.low %v5899, %v5963
        %v6156 = vcombine.high %v5899, %v5963
        %v6158 = vunpack.c.l.s4 1983009808
        %v6159 = vunpack.c.0.s8 %v6158
        %v6160 = vlaneseq
        %v6161 = vshrl.u32 %v6160, 7
        %v6162 = vsub.s32 %v6159, %v6161
        %v6163 = vrot.slane %v6155, %v6162
        %v6165 = vunpack.c.l.s4 1983009808
        %v6166 = vunpack.c.0.s8 %v6165
        %v6167 = vlaneseq
        %v6168 = vshrl.u32 %v6167, 7
        %v6169 = vsub.s32 %v6166, %v6168
        %v6170 = vrot.slane %v6156, %v6169
        %v6171 = vcombine.low %v6115, %v6131
        %v6172 = vcombine.high %v6115, %v6131
        %v6174 = vunpack.c.l.s4 1934713408
        %v6175 = vunpack.c.0.s8 %v6174
        %v6176 = vlaneseq
        %v6177 = vshrl.u32 %v6176, 7
        %v6178 = vsub.s32 %v6175, %v6177
        %v6179 = vrot.slane %v6171, %v6178
        %v6181 = vunpack.c.l.s4 1934713408
        %v6182 = vunpack.c.0.s8 %v6181
        %v6183 = vlaneseq
        %v6184 = vshrl.u32 %v6183, 7
        %v6185 = vsub.s32 %v6182, %v6184
        %v6186 = vrot.slane %v6172, %v6185
        %v6187 = vcombine.low %v6122, %v6138
        %v6188 = vcombine.high %v6122, %v6138
        %v6190 = vunpack.c.l.s4 1934713408
        %v6191 = vunpack.c.0.s8 %v6190
        %v6192 = vlaneseq
        %v6193 = vshrl.u32 %v6192, 7
        %v6194 = vsub.s32 %v6191, %v6193
        %v6195 = vrot.slane %v6187, %v6194
        %v6197 = vunpack.c.l.s4 1934713408
        %v6198 = vunpack.c.0.s8 %v6197
        %v6199 = vlaneseq
        %v6200 = vshrl.u32 %v6199, 7
        %v6201 = vsub.s32 %v6198, %v6200
        %v6202 = vrot.slane %v6188, %v6201
        %v6203 = vcombine.low %v6147, %v6163
        %v6204 = vcombine.high %v6147, %v6163
        %v6206 = vunpack.c.l.s4 1934713408
        %v6207 = vunpack.c.0.s8 %v6206
        %v6208 = vlaneseq
        %v6209 = vshrl.u32 %v6208, 7
        %v6210 = vsub.s32 %v6207, %v6209
        %v6211 = vrot.slane %v6203, %v6210
        %v6213 = vunpack.c.l.s4 1934713408
        %v6214 = vunpack.c.0.s8 %v6213
        %v6215 = vlaneseq
        %v6216 = vshrl.u32 %v6215, 7
        %v6217 = vsub.s32 %v6214, %v6216
        %v6218 = vrot.slane %v6204, %v6217
        %v6219 = vcombine.low %v6154, %v6170
        %v6220 = vcombine.high %v6154, %v6170
        %v6222 = vunpack.c.l.s4 1934713408
        %v6223 = vunpack.c.0.s8 %v6222
        %v6224 = vlaneseq
        %v6225 = vshrl.u32 %v6224, 7
        %v6226 = vsub.s32 %v6223, %v6225
        %v6227 = vrot.slane %v6219, %v6226
        %v6229 = vunpack.c.l.s4 1934713408
        %v6230 = vunpack.c.0.s8 %v6229
        %v6231 = vlaneseq
        %v6232 = vshrl.u32 %v6231, 7
        %v6233 = vsub.s32 %v6230, %v6232
        %v6234 = vrot.slane %v6220, %v6233
        %v6235 = vcombine.low %v6179, %v6211
        %v6236 = vcombine.high %v6179, %v6211
        %v6237 = vcombine.low %v6186, %v6218
        %v6238 = vcombine.high %v6186, %v6218
        %v6239 = vcombine.low %v6195, %v6227
        %v6240 = vcombine.high %v6195, %v6227
        %v6241 = vcombine.low %v6202, %v6234
        %v6242 = vcombine.high %v6202, %v6234
        %v6243 = vcombine.low %v5724, %v5788
        %v6244 = vcombine.high %v5724, %v5788
        %v6246 = vunpack.c.l.s4 1983009808
        %v6247 = vunpack.c.0.s8 %v6246
        %v6248 = vlaneseq
        %v6249 = vshrl.u32 %v6248, 7
        %v6250 = vsub.s32 %v6247, %v6249
        %v6251 = vrot.slane %v6243, %v6250
        %v6253 = vunpack.c.l.s4 1983009808
        %v6254 = vunpack.c.0.s8 %v6253
        %v6255 = vlaneseq
        %v6256 = vshrl.u32 %v6255, 7
        %v6257 = vsub.s32 %v6254, %v6256
        %v6258 = vrot.slane %v6244, %v6257
        %v6259 = vcombine.low %v5756, %v5820
        %v6260 = vcombine.high %v5756, %v5820
        %v6262 = vunpack.c.l.s4 1983009808
        %v6263 = vunpack.c.0.s8 %v6262
        %v6264 = vlaneseq
        %v6265 = vshrl.u32 %v6264, 7
        %v6266 = vsub.s32 %v6263, %v6265
        %v6267 = vrot.slane %v6259, %v6266
        %v6269 = vunpack.c.l.s4 1983009808
        %v6270 = vunpack.c.0.s8 %v6269
        %v6271 = vlaneseq
        %v6272 = vshrl.u32 %v6271, 7
        %v6273 = vsub.s32 %v6270, %v6272
        %v6274 = vrot.slane %v6260, %v6273
        %v6275 = vcombine.low %v5852, %v5916
        %v6276 = vcombine.high %v5852, %v5916
        %v6278 = vunpack.c.l.s4 1983009808
        %v6279 = vunpack.c.0.s8 %v6278
        %v6280 = vlaneseq
        %v6281 = vshrl.u32 %v6280, 7
        %v6282 = vsub.s32 %v6279, %v6281
        %v6283 = vrot.slane %v6275, %v6282
        %v6285 = vunpack.c.l.s4 1983009808
        %v6286 = vunpack.c.0.s8 %v6285
        %v6287 = vlaneseq
        %v6288 = vshrl.u32 %v6287, 7
        %v6289 = vsub.s32 %v6286, %v6288
        %v6290 = vrot.slane %v6276, %v6289
        %v6291 = vcombine.low %v5884, %v5948
        %v6292 = vcombine.high %v5884, %v5948
        %v6294 = vunpack.c.l.s4 1983009808
        %v6295 = vunpack.c.0.s8 %v6294
        %v6296 = vlaneseq
        %v6297 = vshrl.u32 %v6296, 7
        %v6298 = vsub.s32 %v6295, %v6297
        %v6299 = vrot.slane %v6291, %v6298
        %v6301 = vunpack.c.l.s4 1983009808
        %v6302 = vunpack.c.0.s8 %v6301
        %v6303 = vlaneseq
        %v6304 = vshrl.u32 %v6303, 7
        %v6305 = vsub.s32 %v6302, %v6304
        %v6306 = vrot.slane %v6292, %v6305
        %v6307 = vcombine.low %v6251, %v6267
        %v6308 = vcombine.high %v6251, %v6267
        %v6310 = vunpack.c.l.s4 1934713408
        %v6311 = vunpack.c.0.s8 %v6310
        %v6312 = vlaneseq
        %v6313 = vshrl.u32 %v6312, 7
        %v6314 = vsub.s32 %v6311, %v6313
        %v6315 = vrot.slane %v6307, %v6314
        %v6317 = vunpack.c.l.s4 1934713408
        %v6318 = vunpack.c.0.s8 %v6317
        %v6319 = vlaneseq
        %v6320 = vshrl.u32 %v6319, 7
        %v6321 = vsub.s32 %v6318, %v6320
        %v6322 = vrot.slane %v6308, %v6321
        %v6323 = vcombine.low %v6258, %v6274
        %v6324 = vcombine.high %v6258, %v6274
        %v6326 = vunpack.c.l.s4 1934713408
        %v6327 = vunpack.c.0.s8 %v6326
        %v6328 = vlaneseq
        %v6329 = vshrl.u32 %v6328, 7
        %v6330 = vsub.s32 %v6327, %v6329
        %v6331 = vrot.slane %v6323, %v6330
        %v6333 = vunpack.c.l.s4 1934713408
        %v6334 = vunpack.c.0.s8 %v6333
        %v6335 = vlaneseq
        %v6336 = vshrl.u32 %v6335, 7
        %v6337 = vsub.s32 %v6334, %v6336
        %v6338 = vrot.slane %v6324, %v6337
        %v6339 = vcombine.low %v6283, %v6299
        %v6340 = vcombine.high %v6283, %v6299
        %v6342 = vunpack.c.l.s4 1934713408
        %v6343 = vunpack.c.0.s8 %v6342
        %v6344 = vlaneseq
        %v6345 = vshrl.u32 %v6344, 7
        %v6346 = vsub.s32 %v6343, %v6345
        %v6347 = vrot.slane %v6339, %v6346
        %v6349 = vunpack.c.l.s4 1934713408
        %v6350 = vunpack.c.0.s8 %v6349
        %v6351 = vlaneseq
        %v6352 = vshrl.u32 %v6351, 7
        %v6353 = vsub.s32 %v6350, %v6352
        %v6354 = vrot.slane %v6340, %v6353
        %v6355 = vcombine.low %v6290, %v6306
        %v6356 = vcombine.high %v6290, %v6306
        %v6358 = vunpack.c.l.s4 1934713408
        %v6359 = vunpack.c.0.s8 %v6358
        %v6360 = vlaneseq
        %v6361 = vshrl.u32 %v6360, 7
        %v6362 = vsub.s32 %v6359, %v6361
        %v6363 = vrot.slane %v6355, %v6362
        %v6365 = vunpack.c.l.s4 1934713408
        %v6366 = vunpack.c.0.s8 %v6365
        %v6367 = vlaneseq
        %v6368 = vshrl.u32 %v6367, 7
        %v6369 = vsub.s32 %v6366, %v6368
        %v6370 = vrot.slane %v6356, %v6369
        %v6371 = vcombine.low %v6315, %v6347
        %v6372 = vcombine.high %v6315, %v6347
        %v6373 = vcombine.low %v6322, %v6354
        %v6374 = vcombine.high %v6322, %v6354
        %v6375 = vcombine.low %v6331, %v6363
        %v6376 = vcombine.high %v6331, %v6363
        %v6377 = vcombine.low %v6338, %v6370
        %v6378 = vcombine.high %v6338, %v6370
        %v6379 = vcombine.low %v5740, %v5804
        %v6380 = vcombine.high %v5740, %v5804
        %v6382 = vunpack.c.l.s4 1983009808
        %v6383 = vunpack.c.0.s8 %v6382
        %v6384 = vlaneseq
        %v6385 = vshrl.u32 %v6384, 7
        %v6386 = vsub.s32 %v6383, %v6385
        %v6387 = vrot.slane %v6379, %v6386
        %v6389 = vunpack.c.l.s4 1983009808
        %v6390 = vunpack.c.0.s8 %v6389
        %v6391 = vlaneseq
        %v6392 = vshrl.u32 %v6391, 7
        %v6393 = vsub.s32 %v6390, %v6392
        %v6394 = vrot.slane %v6380, %v6393
        %v6395 = vcombine.low %v5772, %v5836
        %v6396 = vcombine.high %v5772, %v5836
        %v6398 = vunpack.c.l.s4 1983009808
        %v6399 = vunpack.c.0.s8 %v6398
        %v6400 = vlaneseq
        %v6401 = vshrl.u32 %v6400, 7
        %v6402 = vsub.s32 %v6399, %v6401
        %v6403 = vrot.slane %v6395, %v6402
        %v6405 = vunpack.c.l.s4 1983009808
        %v6406 = vunpack.c.0.s8 %v6405
        %v6407 = vlaneseq
        %v6408 = vshrl.u32 %v6407, 7
        %v6409 = vsub.s32 %v6406, %v6408
        %v6410 = vrot.slane %v6396, %v6409
        %v6411 = vcombine.low %v5868, %v5932
        %v6412 = vcombine.high %v5868, %v5932
        %v6414 = vunpack.c.l.s4 1983009808
        %v6415 = vunpack.c.0.s8 %v6414
        %v6416 = vlaneseq
        %v6417 = vshrl.u32 %v6416, 7
        %v6418 = vsub.s32 %v6415, %v6417
        %v6419 = vrot.slane %v6411, %v6418
        %v6421 = vunpack.c.l.s4 1983009808
        %v6422 = vunpack.c.0.s8 %v6421
        %v6423 = vlaneseq
        %v6424 = vshrl.u32 %v6423, 7
        %v6425 = vsub.s32 %v6422, %v6424
        %v6426 = vrot.slane %v6412, %v6425
        %v6427 = vcombine.low %v5900, %v5964
        %v6428 = vcombine.high %v5900, %v5964
        %v6430 = vunpack.c.l.s4 1983009808
        %v6431 = vunpack.c.0.s8 %v6430
        %v6432 = vlaneseq
        %v6433 = vshrl.u32 %v6432, 7
        %v6434 = vsub.s32 %v6431, %v6433
        %v6435 = vrot.slane %v6427, %v6434
        %v6437 = vunpack.c.l.s4 1983009808
        %v6438 = vunpack.c.0.s8 %v6437
        %v6439 = vlaneseq
        %v6440 = vshrl.u32 %v6439, 7
        %v6441 = vsub.s32 %v6438, %v6440
        %v6442 = vrot.slane %v6428, %v6441
        %v6443 = vcombine.low %v6387, %v6403
        %v6444 = vcombine.high %v6387, %v6403
        %v6446 = vunpack.c.l.s4 1934713408
        %v6447 = vunpack.c.0.s8 %v6446
        %v6448 = vlaneseq
        %v6449 = vshrl.u32 %v6448, 7
        %v6450 = vsub.s32 %v6447, %v6449
        %v6451 = vrot.slane %v6443, %v6450
        %v6453 = vunpack.c.l.s4 1934713408
        %v6454 = vunpack.c.0.s8 %v6453
        %v6455 = vlaneseq
        %v6456 = vshrl.u32 %v6455, 7
        %v6457 = vsub.s32 %v6454, %v6456
        %v6458 = vrot.slane %v6444, %v6457
        %v6459 = vcombine.low %v6394, %v6410
        %v6460 = vcombine.high %v6394, %v6410
        %v6462 = vunpack.c.l.s4 1934713408
        %v6463 = vunpack.c.0.s8 %v6462
        %v6464 = vlaneseq
        %v6465 = vshrl.u32 %v6464, 7
        %v6466 = vsub.s32 %v6463, %v6465
        %v6467 = vrot.slane %v6459, %v6466
        %v6469 = vunpack.c.l.s4 1934713408
        %v6470 = vunpack.c.0.s8 %v6469
        %v6471 = vlaneseq
        %v6472 = vshrl.u32 %v6471, 7
        %v6473 = vsub.s32 %v6470, %v6472
        %v6474 = vrot.slane %v6460, %v6473
        %v6475 = vcombine.low %v6419, %v6435
        %v6476 = vcombine.high %v6419, %v6435
        %v6478 = vunpack.c.l.s4 1934713408
        %v6479 = vunpack.c.0.s8 %v6478
        %v6480 = vlaneseq
        %v6481 = vshrl.u32 %v6480, 7
        %v6482 = vsub.s32 %v6479, %v6481
        %v6483 = vrot.slane %v6475, %v6482
        %v6485 = vunpack.c.l.s4 1934713408
        %v6486 = vunpack.c.0.s8 %v6485
        %v6487 = vlaneseq
        %v6488 = vshrl.u32 %v6487, 7
        %v6489 = vsub.s32 %v6486, %v6488
        %v6490 = vrot.slane %v6476, %v6489
        %v6491 = vcombine.low %v6426, %v6442
        %v6492 = vcombine.high %v6426, %v6442
        %v6494 = vunpack.c.l.s4 1934713408
        %v6495 = vunpack.c.0.s8 %v6494
        %v6496 = vlaneseq
        %v6497 = vshrl.u32 %v6496, 7
        %v6498 = vsub.s32 %v6495, %v6497
        %v6499 = vrot.slane %v6491, %v6498
        %v6501 = vunpack.c.l.s4 1934713408
        %v6502 = vunpack.c.0.s8 %v6501
        %v6503 = vlaneseq
        %v6504 = vshrl.u32 %v6503, 7
        %v6505 = vsub.s32 %v6502, %v6504
        %v6506 = vrot.slane %v6492, %v6505
        %v6507 = vcombine.low %v6451, %v6483
        %v6508 = vcombine.high %v6451, %v6483
        %v6509 = vcombine.low %v6458, %v6490
        %v6510 = vcombine.high %v6458, %v6490
        %v6511 = vcombine.low %v6467, %v6499
        %v6512 = vcombine.high %v6467, %v6499
        %v6513 = vcombine.low %v6474, %v6506
        %v6514 = vcombine.high %v6474, %v6506
        %v6517 = vpack.i.b16 %v6235, %v6099
        %v6519 = vshrl.u32 %v6099, 16
        %v6520 = vshrl.u32 %v6235, 16
        %v6521 = vpack.i.b16 %v6520, %v6519
        %v6525 = vpack.i.b16 %v6236, %v6100
        %v6527 = vshrl.u32 %v6100, 16
        %v6528 = vshrl.u32 %v6236, 16
        %v6529 = vpack.i.b16 %v6528, %v6527
        %v6533 = vpack.i.b16 %v6237, %v6101
        %v6535 = vshrl.u32 %v6101, 16
        %v6536 = vshrl.u32 %v6237, 16
        %v6537 = vpack.i.b16 %v6536, %v6535
        %v6541 = vpack.i.b16 %v6238, %v6102
        %v6543 = vshrl.u32 %v6102, 16
        %v6544 = vshrl.u32 %v6238, 16
        %v6545 = vpack.i.b16 %v6544, %v6543
        %v6549 = vpack.i.b16 %v6239, %v6103
        %v6551 = vshrl.u32 %v6103, 16
        %v6552 = vshrl.u32 %v6239, 16
        %v6553 = vpack.i.b16 %v6552, %v6551
        %v6557 = vpack.i.b16 %v6240, %v6104
        %v6559 = vshrl.u32 %v6104, 16
        %v6560 = vshrl.u32 %v6240, 16
        %v6561 = vpack.i.b16 %v6560, %v6559
        %v6565 = vpack.i.b16 %v6241, %v6105
        %v6567 = vshrl.u32 %v6105, 16
        %v6568 = vshrl.u32 %v6241, 16
        %v6569 = vpack.i.b16 %v6568, %v6567
        %v6573 = vpack.i.b16 %v6242, %v6106
        %v6575 = vshrl.u32 %v6106, 16
        %v6576 = vshrl.u32 %v6242, 16
        %v6577 = vpack.i.b16 %v6576, %v6575
        %v6581 = vpack.i.b16 %v6507, %v6371
        %v6583 = vshrl.u32 %v6371, 16
        %v6584 = vshrl.u32 %v6507, 16
        %v6585 = vpack.i.b16 %v6584, %v6583
        %v6589 = vpack.i.b16 %v6508, %v6372
        %v6591 = vshrl.u32 %v6372, 16
        %v6592 = vshrl.u32 %v6508, 16
        %v6593 = vpack.i.b16 %v6592, %v6591
        %v6597 = vpack.i.b16 %v6509, %v6373
        %v6599 = vshrl.u32 %v6373, 16
        %v6600 = vshrl.u32 %v6509, 16
        %v6601 = vpack.i.b16 %v6600, %v6599
        %v6605 = vpack.i.b16 %v6510, %v6374
        %v6607 = vshrl.u32 %v6374, 16
        %v6608 = vshrl.u32 %v6510, 16
        %v6609 = vpack.i.b16 %v6608, %v6607
        %v6613 = vpack.i.b16 %v6511, %v6375
        %v6615 = vshrl.u32 %v6375, 16
        %v6616 = vshrl.u32 %v6511, 16
        %v6617 = vpack.i.b16 %v6616, %v6615
        %v6621 = vpack.i.b16 %v6512, %v6376
        %v6623 = vshrl.u32 %v6376, 16
        %v6624 = vshrl.u32 %v6512, 16
        %v6625 = vpack.i.b16 %v6624, %v6623
        %v6629 = vpack.i.b16 %v6513, %v6377
        %v6631 = vshrl.u32 %v6377, 16
        %v6632 = vshrl.u32 %v6513, 16
        %v6633 = vpack.i.b16 %v6632, %v6631
        %v6637 = vpack.i.b16 %v6514, %v6378
        %v6639 = vshrl.u32 %v6378, 16
        %v6640 = vshrl.u32 %v6514, 16
        %v6641 = vpack.i.b16 %v6640, %v6639
        %6643 = vxpose.xlu0.c.b16.start [1/8] %v6517, 128
        %6644 = vxpose.xlu0.c.b16.cont [2/8] 0, 128
        %6645 = vxpose.xlu0.c.b16.cont [3/8] 0, 128
        %6646 = vxpose.xlu0.c.b16.cont [4/8] 0, 128
        %6647 = vxpose.xlu0.c.b16.cont [5/8] 0, 128
        %6648 = vxpose.xlu0.c.b16.cont [6/8] 0, 128
        %6649 = vxpose.xlu0.c.b16.cont [7/8] 0, 128
        %6650 = vxpose.xlu0.c.b16.end [8/8] 0, 128
        %v6651 = vpop.trf.xlu0
        %v6652 = vpop.trf.xlu0
        %v6653 = vpop.trf.xlu0
        %v6654 = vpop.trf.xlu0
        %v6655 = vpop.trf.xlu0
        %v6656 = vpop.trf.xlu0
        %v6657 = vpop.trf.xlu0
        %v6658 = vpop.trf.xlu0
        %6659 = vxpose.xlu0.c.b16.start [1/8] %v6521, 128
        %6660 = vxpose.xlu0.c.b16.cont [2/8] 0, 128
        %6661 = vxpose.xlu0.c.b16.cont [3/8] 0, 128
        %6662 = vxpose.xlu0.c.b16.cont [4/8] 0, 128
        %6663 = vxpose.xlu0.c.b16.cont [5/8] 0, 128
        %6664 = vxpose.xlu0.c.b16.cont [6/8] 0, 128
        %6665 = vxpose.xlu0.c.b16.cont [7/8] 0, 128
        %6666 = vxpose.xlu0.c.b16.end [8/8] 0, 128
        %v6667 = vpop.trf.xlu0
        %v6668 = vpop.trf.xlu0
        %v6669 = vpop.trf.xlu0
        %v6670 = vpop.trf.xlu0
        %v6671 = vpop.trf.xlu0
        %v6672 = vpop.trf.xlu0
        %v6673 = vpop.trf.xlu0
        %v6674 = vpop.trf.xlu0
        %6675 = vxpose.xlu0.c.b16.start [1/8] %v6525, 128
        %6676 = vxpose.xlu0.c.b16.cont [2/8] 0, 128
        %6677 = vxpose.xlu0.c.b16.cont [3/8] 0, 128
        %6678 = vxpose.xlu0.c.b16.cont [4/8] 0, 128
        %6679 = vxpose.xlu0.c.b16.cont [5/8] 0, 128
        %6680 = vxpose.xlu0.c.b16.cont [6/8] 0, 128
        %6681 = vxpose.xlu0.c.b16.cont [7/8] 0, 128
        %6682 = vxpose.xlu0.c.b16.end [8/8] 0, 128
        %v6683 = vpop.trf.xlu0
        %v6684 = vpop.trf.xlu0
        %v6685 = vpop.trf.xlu0
        %v6686 = vpop.trf.xlu0
        %v6687 = vpop.trf.xlu0
        %v6688 = vpop.trf.xlu0
        %v6689 = vpop.trf.xlu0
        %v6690 = vpop.trf.xlu0
        %6691 = vxpose.xlu0.c.b16.start [1/8] %v6529, 128
        %6692 = vxpose.xlu0.c.b16.cont [2/8] 0, 128
        %6693 = vxpose.xlu0.c.b16.cont [3/8] 0, 128
        %6694 = vxpose.xlu0.c.b16.cont [4/8] 0, 128
        %6695 = vxpose.xlu0.c.b16.cont [5/8] 0, 128
        %6696 = vxpose.xlu0.c.b16.cont [6/8] 0, 128
        %6697 = vxpose.xlu0.c.b16.cont [7/8] 0, 128
        %6698 = vxpose.xlu0.c.b16.end [8/8] 0, 128
        %v6699 = vpop.trf.xlu0
        %v6700 = vpop.trf.xlu0
        %v6701 = vpop.trf.xlu0
        %v6702 = vpop.trf.xlu0
        %v6703 = vpop.trf.xlu0
        %v6704 = vpop.trf.xlu0
        %v6705 = vpop.trf.xlu0
        %v6706 = vpop.trf.xlu0
        %6707 = vxpose.xlu0.c.b16.start [1/8] %v6533, 128
        %6708 = vxpose.xlu0.c.b16.cont [2/8] 0, 128
        %6709 = vxpose.xlu0.c.b16.cont [3/8] 0, 128
        %6710 = vxpose.xlu0.c.b16.cont [4/8] 0, 128
        %6711 = vxpose.xlu0.c.b16.cont [5/8] 0, 128
        %6712 = vxpose.xlu0.c.b16.cont [6/8] 0, 128
        %6713 = vxpose.xlu0.c.b16.cont [7/8] 0, 128
        %6714 = vxpose.xlu0.c.b16.end [8/8] 0, 128
        %v6715 = vpop.trf.xlu0
        %v6716 = vpop.trf.xlu0
        %v6717 = vpop.trf.xlu0
        %v6718 = vpop.trf.xlu0
        %v6719 = vpop.trf.xlu0
        %v6720 = vpop.trf.xlu0
        %v6721 = vpop.trf.xlu0
        %v6722 = vpop.trf.xlu0
        %6723 = vxpose.xlu0.c.b16.start [1/8] %v6537, 128
        %6724 = vxpose.xlu0.c.b16.cont [2/8] 0, 128
        %6725 = vxpose.xlu0.c.b16.cont [3/8] 0, 128
        %6726 = vxpose.xlu0.c.b16.cont [4/8] 0, 128
        %6727 = vxpose.xlu0.c.b16.cont [5/8] 0, 128
        %6728 = vxpose.xlu0.c.b16.cont [6/8] 0, 128
        %6729 = vxpose.xlu0.c.b16.cont [7/8] 0, 128
        %6730 = vxpose.xlu0.c.b16.end [8/8] 0, 128
        %v6731 = vpop.trf.xlu0
        %v6732 = vpop.trf.xlu0
        %v6733 = vpop.trf.xlu0
        %v6734 = vpop.trf.xlu0
        %v6735 = vpop.trf.xlu0
        %v6736 = vpop.trf.xlu0
        %v6737 = vpop.trf.xlu0
        %v6738 = vpop.trf.xlu0
        %6739 = vxpose.xlu0.c.b16.start [1/8] %v6541, 128
        %6740 = vxpose.xlu0.c.b16.cont [2/8] 0, 128
        %6741 = vxpose.xlu0.c.b16.cont [3/8] 0, 128
        %6742 = vxpose.xlu0.c.b16.cont [4/8] 0, 128
        %6743 = vxpose.xlu0.c.b16.cont [5/8] 0, 128
        %6744 = vxpose.xlu0.c.b16.cont [6/8] 0, 128
        %6745 = vxpose.xlu0.c.b16.cont [7/8] 0, 128
        %6746 = vxpose.xlu0.c.b16.end [8/8] 0, 128
        %v6747 = vpop.trf.xlu0
        %v6748 = vpop.trf.xlu0
        %v6749 = vpop.trf.xlu0
        %v6750 = vpop.trf.xlu0
        %v6751 = vpop.trf.xlu0
        %v6752 = vpop.trf.xlu0
        %v6753 = vpop.trf.xlu0
        %v6754 = vpop.trf.xlu0
        %6755 = vxpose.xlu0.c.b16.start [1/8] %v6545, 128
        %6756 = vxpose.xlu0.c.b16.cont [2/8] 0, 128
        %6757 = vxpose.xlu0.c.b16.cont [3/8] 0, 128
        %6758 = vxpose.xlu0.c.b16.cont [4/8] 0, 128
        %6759 = vxpose.xlu0.c.b16.cont [5/8] 0, 128
        %6760 = vxpose.xlu0.c.b16.cont [6/8] 0, 128
        %6761 = vxpose.xlu0.c.b16.cont [7/8] 0, 128
        %6762 = vxpose.xlu0.c.b16.end [8/8] 0, 128
        %v6763 = vpop.trf.xlu0
        %v6764 = vpop.trf.xlu0
        %v6765 = vpop.trf.xlu0
        %v6766 = vpop.trf.xlu0
        %v6767 = vpop.trf.xlu0
        %v6768 = vpop.trf.xlu0
        %v6769 = vpop.trf.xlu0
        %v6770 = vpop.trf.xlu0
        %6771 = vxpose.xlu0.c.b16.start [1/8] %v6549, 128
        %6772 = vxpose.xlu0.c.b16.cont [2/8] 0, 128
        %6773 = vxpose.xlu0.c.b16.cont [3/8] 0, 128
        %6774 = vxpose.xlu0.c.b16.cont [4/8] 0, 128
        %6775 = vxpose.xlu0.c.b16.cont [5/8] 0, 128
        %6776 = vxpose.xlu0.c.b16.cont [6/8] 0, 128
        %6777 = vxpose.xlu0.c.b16.cont [7/8] 0, 128
        %6778 = vxpose.xlu0.c.b16.end [8/8] 0, 128
        %v6779 = vpop.trf.xlu0
        %v6780 = vpop.trf.xlu0
        %v6781 = vpop.trf.xlu0
        %v6782 = vpop.trf.xlu0
        %v6783 = vpop.trf.xlu0
        %v6784 = vpop.trf.xlu0
        %v6785 = vpop.trf.xlu0
        %v6786 = vpop.trf.xlu0
        %6787 = vxpose.xlu0.c.b16.start [1/8] %v6553, 128
        %6788 = vxpose.xlu0.c.b16.cont [2/8] 0, 128
        %6789 = vxpose.xlu0.c.b16.cont [3/8] 0, 128
        %6790 = vxpose.xlu0.c.b16.cont [4/8] 0, 128
        %6791 = vxpose.xlu0.c.b16.cont [5/8] 0, 128
        %6792 = vxpose.xlu0.c.b16.cont [6/8] 0, 128
        %6793 = vxpose.xlu0.c.b16.cont [7/8] 0, 128
        %6794 = vxpose.xlu0.c.b16.end [8/8] 0, 128
        %v6795 = vpop.trf.xlu0
        %v6796 = vpop.trf.xlu0
        %v6797 = vpop.trf.xlu0
        %v6798 = vpop.trf.xlu0
        %v6799 = vpop.trf.xlu0
        %v6800 = vpop.trf.xlu0
        %v6801 = vpop.trf.xlu0
        %v6802 = vpop.trf.xlu0
        %6803 = vxpose.xlu0.c.b16.start [1/8] %v6557, 128
        %6804 = vxpose.xlu0.c.b16.cont [2/8] 0, 128
        %6805 = vxpose.xlu0.c.b16.cont [3/8] 0, 128
        %6806 = vxpose.xlu0.c.b16.cont [4/8] 0, 128
        %6807 = vxpose.xlu0.c.b16.cont [5/8] 0, 128
        %6808 = vxpose.xlu0.c.b16.cont [6/8] 0, 128
        %6809 = vxpose.xlu0.c.b16.cont [7/8] 0, 128
        %6810 = vxpose.xlu0.c.b16.end [8/8] 0, 128
        %v6811 = vpop.trf.xlu0
        %v6812 = vpop.trf.xlu0
        %v6813 = vpop.trf.xlu0
        %v6814 = vpop.trf.xlu0
        %v6815 = vpop.trf.xlu0
        %v6816 = vpop.trf.xlu0
        %v6817 = vpop.trf.xlu0
        %v6818 = vpop.trf.xlu0
        %6819 = vxpose.xlu0.c.b16.start [1/8] %v6561, 128
        %6820 = vxpose.xlu0.c.b16.cont [2/8] 0, 128
        %6821 = vxpose.xlu0.c.b16.cont [3/8] 0, 128
        %6822 = vxpose.xlu0.c.b16.cont [4/8] 0, 128
        %6823 = vxpose.xlu0.c.b16.cont [5/8] 0, 128
        %6824 = vxpose.xlu0.c.b16.cont [6/8] 0, 128
        %6825 = vxpose.xlu0.c.b16.cont [7/8] 0, 128
        %6826 = vxpose.xlu0.c.b16.end [8/8] 0, 128
        %v6827 = vpop.trf.xlu0
        %v6828 = vpop.trf.xlu0
        %v6829 = vpop.trf.xlu0
        %v6830 = vpop.trf.xlu0
        %v6831 = vpop.trf.xlu0
        %v6832 = vpop.trf.xlu0
        %v6833 = vpop.trf.xlu0
        %v6834 = vpop.trf.xlu0
        %6835 = vxpose.xlu0.c.b16.start [1/8] %v6565, 128
        %6836 = vxpose.xlu0.c.b16.cont [2/8] 0, 128
        %6837 = vxpose.xlu0.c.b16.cont [3/8] 0, 128
        %6838 = vxpose.xlu0.c.b16.cont [4/8] 0, 128
        %6839 = vxpose.xlu0.c.b16.cont [5/8] 0, 128
        %6840 = vxpose.xlu0.c.b16.cont [6/8] 0, 128
        %6841 = vxpose.xlu0.c.b16.cont [7/8] 0, 128
        %6842 = vxpose.xlu0.c.b16.end [8/8] 0, 128
        %v6843 = vpop.trf.xlu0
        %v6844 = vpop.trf.xlu0
        %v6845 = vpop.trf.xlu0
        %v6846 = vpop.trf.xlu0
        %v6847 = vpop.trf.xlu0
        %v6848 = vpop.trf.xlu0
        %v6849 = vpop.trf.xlu0
        %v6850 = vpop.trf.xlu0
        %6851 = vxpose.xlu0.c.b16.start [1/8] %v6569, 128
        %6852 = vxpose.xlu0.c.b16.cont [2/8] 0, 128
        %6853 = vxpose.xlu0.c.b16.cont [3/8] 0, 128
        %6854 = vxpose.xlu0.c.b16.cont [4/8] 0, 128
        %6855 = vxpose.xlu0.c.b16.cont [5/8] 0, 128
        %6856 = vxpose.xlu0.c.b16.cont [6/8] 0, 128
        %6857 = vxpose.xlu0.c.b16.cont [7/8] 0, 128
        %6858 = vxpose.xlu0.c.b16.end [8/8] 0, 128
        %v6859 = vpop.trf.xlu0
        %v6860 = vpop.trf.xlu0
        %v6861 = vpop.trf.xlu0
        %v6862 = vpop.trf.xlu0
        %v6863 = vpop.trf.xlu0
        %v6864 = vpop.trf.xlu0
        %v6865 = vpop.trf.xlu0
        %v6866 = vpop.trf.xlu0
        %6867 = vxpose.xlu0.c.b16.start [1/8] %v6573, 128
        %6868 = vxpose.xlu0.c.b16.cont [2/8] 0, 128
        %6869 = vxpose.xlu0.c.b16.cont [3/8] 0, 128
        %6870 = vxpose.xlu0.c.b16.cont [4/8] 0, 128
        %6871 = vxpose.xlu0.c.b16.cont [5/8] 0, 128
        %6872 = vxpose.xlu0.c.b16.cont [6/8] 0, 128
        %6873 = vxpose.xlu0.c.b16.cont [7/8] 0, 128
        %6874 = vxpose.xlu0.c.b16.end [8/8] 0, 128
        %v6875 = vpop.trf.xlu0
        %v6876 = vpop.trf.xlu0
        %v6877 = vpop.trf.xlu0
        %v6878 = vpop.trf.xlu0
        %v6879 = vpop.trf.xlu0
        %v6880 = vpop.trf.xlu0
        %v6881 = vpop.trf.xlu0
        %v6882 = vpop.trf.xlu0
        %6883 = vxpose.xlu0.c.b16.start [1/8] %v6577, 128
        %6884 = vxpose.xlu0.c.b16.cont [2/8] 0, 128
        %6885 = vxpose.xlu0.c.b16.cont [3/8] 0, 128
        %6886 = vxpose.xlu0.c.b16.cont [4/8] 0, 128
        %6887 = vxpose.xlu0.c.b16.cont [5/8] 0, 128
        %6888 = vxpose.xlu0.c.b16.cont [6/8] 0, 128
        %6889 = vxpose.xlu0.c.b16.cont [7/8] 0, 128
        %6890 = vxpose.xlu0.c.b16.end [8/8] 0, 128
        %v6891 = vpop.trf.xlu0
        %v6892 = vpop.trf.xlu0
        %v6893 = vpop.trf.xlu0
        %v6894 = vpop.trf.xlu0
        %v6895 = vpop.trf.xlu0
        %v6896 = vpop.trf.xlu0
        %v6897 = vpop.trf.xlu0
        %v6898 = vpop.trf.xlu0
        %6899 = vxpose.xlu0.c.b16.start [1/8] %v6581, 128
        %6900 = vxpose.xlu0.c.b16.cont [2/8] 0, 128
        %6901 = vxpose.xlu0.c.b16.cont [3/8] 0, 128
        %6902 = vxpose.xlu0.c.b16.cont [4/8] 0, 128
        %6903 = vxpose.xlu0.c.b16.cont [5/8] 0, 128
        %6904 = vxpose.xlu0.c.b16.cont [6/8] 0, 128
        %6905 = vxpose.xlu0.c.b16.cont [7/8] 0, 128
        %6906 = vxpose.xlu0.c.b16.end [8/8] 0, 128
        %v6907 = vpop.trf.xlu0
        %v6908 = vpop.trf.xlu0
        %v6909 = vpop.trf.xlu0
        %v6910 = vpop.trf.xlu0
        %v6911 = vpop.trf.xlu0
        %v6912 = vpop.trf.xlu0
        %v6913 = vpop.trf.xlu0
        %v6914 = vpop.trf.xlu0
        %6915 = vxpose.xlu0.c.b16.start [1/8] %v6585, 128
        %6916 = vxpose.xlu0.c.b16.cont [2/8] 0, 128
        %6917 = vxpose.xlu0.c.b16.cont [3/8] 0, 128
        %6918 = vxpose.xlu0.c.b16.cont [4/8] 0, 128
        %6919 = vxpose.xlu0.c.b16.cont [5/8] 0, 128
        %6920 = vxpose.xlu0.c.b16.cont [6/8] 0, 128
        %6921 = vxpose.xlu0.c.b16.cont [7/8] 0, 128
        %6922 = vxpose.xlu0.c.b16.end [8/8] 0, 128
        %v6923 = vpop.trf.xlu0
        %v6924 = vpop.trf.xlu0
        %v6925 = vpop.trf.xlu0
        %v6926 = vpop.trf.xlu0
        %v6927 = vpop.trf.xlu0
        %v6928 = vpop.trf.xlu0
        %v6929 = vpop.trf.xlu0
        %v6930 = vpop.trf.xlu0
        %6931 = vxpose.xlu0.c.b16.start [1/8] %v6589, 128
        %6932 = vxpose.xlu0.c.b16.cont [2/8] 0, 128
        %6933 = vxpose.xlu0.c.b16.cont [3/8] 0, 128
        %6934 = vxpose.xlu0.c.b16.cont [4/8] 0, 128
        %6935 = vxpose.xlu0.c.b16.cont [5/8] 0, 128
        %6936 = vxpose.xlu0.c.b16.cont [6/8] 0, 128
        %6937 = vxpose.xlu0.c.b16.cont [7/8] 0, 128
        %6938 = vxpose.xlu0.c.b16.end [8/8] 0, 128
        %v6939 = vpop.trf.xlu0
        %v6940 = vpop.trf.xlu0
        %v6941 = vpop.trf.xlu0
        %v6942 = vpop.trf.xlu0
        %v6943 = vpop.trf.xlu0
        %v6944 = vpop.trf.xlu0
        %v6945 = vpop.trf.xlu0
        %v6946 = vpop.trf.xlu0
        %6947 = vxpose.xlu0.c.b16.start [1/8] %v6593, 128
        %6948 = vxpose.xlu0.c.b16.cont [2/8] 0, 128
        %6949 = vxpose.xlu0.c.b16.cont [3/8] 0, 128
        %6950 = vxpose.xlu0.c.b16.cont [4/8] 0, 128
        %6951 = vxpose.xlu0.c.b16.cont [5/8] 0, 128
        %6952 = vxpose.xlu0.c.b16.cont [6/8] 0, 128
        %6953 = vxpose.xlu0.c.b16.cont [7/8] 0, 128
        %6954 = vxpose.xlu0.c.b16.end [8/8] 0, 128
        %v6955 = vpop.trf.xlu0
        %v6956 = vpop.trf.xlu0
        %v6957 = vpop.trf.xlu0
        %v6958 = vpop.trf.xlu0
        %v6959 = vpop.trf.xlu0
        %v6960 = vpop.trf.xlu0
        %v6961 = vpop.trf.xlu0
        %v6962 = vpop.trf.xlu0
        %6963 = vxpose.xlu0.c.b16.start [1/8] %v6597, 128
        %6964 = vxpose.xlu0.c.b16.cont [2/8] 0, 128
        %6965 = vxpose.xlu0.c.b16.cont [3/8] 0, 128
        %6966 = vxpose.xlu0.c.b16.cont [4/8] 0, 128
        %6967 = vxpose.xlu0.c.b16.cont [5/8] 0, 128
        %6968 = vxpose.xlu0.c.b16.cont [6/8] 0, 128
        %6969 = vxpose.xlu0.c.b16.cont [7/8] 0, 128
        %6970 = vxpose.xlu0.c.b16.end [8/8] 0, 128
        %v6971 = vpop.trf.xlu0
        %v6972 = vpop.trf.xlu0
        %v6973 = vpop.trf.xlu0
        %v6974 = vpop.trf.xlu0
        %v6975 = vpop.trf.xlu0
        %v6976 = vpop.trf.xlu0
        %v6977 = vpop.trf.xlu0
        %v6978 = vpop.trf.xlu0
        %6979 = vxpose.xlu0.c.b16.start [1/8] %v6601, 128
        %6980 = vxpose.xlu0.c.b16.cont [2/8] 0, 128
        %6981 = vxpose.xlu0.c.b16.cont [3/8] 0, 128
        %6982 = vxpose.xlu0.c.b16.cont [4/8] 0, 128
        %6983 = vxpose.xlu0.c.b16.cont [5/8] 0, 128
        %6984 = vxpose.xlu0.c.b16.cont [6/8] 0, 128
        %6985 = vxpose.xlu0.c.b16.cont [7/8] 0, 128
        %6986 = vxpose.xlu0.c.b16.end [8/8] 0, 128
        %v6987 = vpop.trf.xlu0
        %v6988 = vpop.trf.xlu0
        %v6989 = vpop.trf.xlu0
        %v6990 = vpop.trf.xlu0
        %v6991 = vpop.trf.xlu0
        %v6992 = vpop.trf.xlu0
        %v6993 = vpop.trf.xlu0
        %v6994 = vpop.trf.xlu0
        %6995 = vxpose.xlu0.c.b16.start [1/8] %v6605, 128
        %6996 = vxpose.xlu0.c.b16.cont [2/8] 0, 128
        %6997 = vxpose.xlu0.c.b16.cont [3/8] 0, 128
        %6998 = vxpose.xlu0.c.b16.cont [4/8] 0, 128
        %6999 = vxpose.xlu0.c.b16.cont [5/8] 0, 128
        %7000 = vxpose.xlu0.c.b16.cont [6/8] 0, 128
        %7001 = vxpose.xlu0.c.b16.cont [7/8] 0, 128
        %7002 = vxpose.xlu0.c.b16.end [8/8] 0, 128
        %v7003 = vpop.trf.xlu0
        %v7004 = vpop.trf.xlu0
        %v7005 = vpop.trf.xlu0
        %v7006 = vpop.trf.xlu0
        %v7007 = vpop.trf.xlu0
        %v7008 = vpop.trf.xlu0
        %v7009 = vpop.trf.xlu0
        %v7010 = vpop.trf.xlu0
        %7011 = vxpose.xlu0.c.b16.start [1/8] %v6609, 128
        %7012 = vxpose.xlu0.c.b16.cont [2/8] 0, 128
        %7013 = vxpose.xlu0.c.b16.cont [3/8] 0, 128
        %7014 = vxpose.xlu0.c.b16.cont [4/8] 0, 128
        %7015 = vxpose.xlu0.c.b16.cont [5/8] 0, 128
        %7016 = vxpose.xlu0.c.b16.cont [6/8] 0, 128
        %7017 = vxpose.xlu0.c.b16.cont [7/8] 0, 128
        %7018 = vxpose.xlu0.c.b16.end [8/8] 0, 128
        %v7019 = vpop.trf.xlu0
        %v7020 = vpop.trf.xlu0
        %v7021 = vpop.trf.xlu0
        %v7022 = vpop.trf.xlu0
        %v7023 = vpop.trf.xlu0
        %v7024 = vpop.trf.xlu0
        %v7025 = vpop.trf.xlu0
        %v7026 = vpop.trf.xlu0
        %7027 = vxpose.xlu0.c.b16.start [1/8] %v6613, 128
        %7028 = vxpose.xlu0.c.b16.cont [2/8] 0, 128
        %7029 = vxpose.xlu0.c.b16.cont [3/8] 0, 128
        %7030 = vxpose.xlu0.c.b16.cont [4/8] 0, 128
        %7031 = vxpose.xlu0.c.b16.cont [5/8] 0, 128
        %7032 = vxpose.xlu0.c.b16.cont [6/8] 0, 128
        %7033 = vxpose.xlu0.c.b16.cont [7/8] 0, 128
        %7034 = vxpose.xlu0.c.b16.end [8/8] 0, 128
        %v7035 = vpop.trf.xlu0
        %v7036 = vpop.trf.xlu0
        %v7037 = vpop.trf.xlu0
        %v7038 = vpop.trf.xlu0
        %v7039 = vpop.trf.xlu0
        %v7040 = vpop.trf.xlu0
        %v7041 = vpop.trf.xlu0
        %v7042 = vpop.trf.xlu0
        %7043 = vxpose.xlu0.c.b16.start [1/8] %v6617, 128
        %7044 = vxpose.xlu0.c.b16.cont [2/8] 0, 128
        %7045 = vxpose.xlu0.c.b16.cont [3/8] 0, 128
        %7046 = vxpose.xlu0.c.b16.cont [4/8] 0, 128
        %7047 = vxpose.xlu0.c.b16.cont [5/8] 0, 128
        %7048 = vxpose.xlu0.c.b16.cont [6/8] 0, 128
        %7049 = vxpose.xlu0.c.b16.cont [7/8] 0, 128
        %7050 = vxpose.xlu0.c.b16.end [8/8] 0, 128
        %v7051 = vpop.trf.xlu0
        %v7052 = vpop.trf.xlu0
        %v7053 = vpop.trf.xlu0
        %v7054 = vpop.trf.xlu0
        %v7055 = vpop.trf.xlu0
        %v7056 = vpop.trf.xlu0
        %v7057 = vpop.trf.xlu0
        %v7058 = vpop.trf.xlu0
        %7059 = vxpose.xlu0.c.b16.start [1/8] %v6621, 128
        %7060 = vxpose.xlu0.c.b16.cont [2/8] 0, 128
        %7061 = vxpose.xlu0.c.b16.cont [3/8] 0, 128
        %7062 = vxpose.xlu0.c.b16.cont [4/8] 0, 128
        %7063 = vxpose.xlu0.c.b16.cont [5/8] 0, 128
        %7064 = vxpose.xlu0.c.b16.cont [6/8] 0, 128
        %7065 = vxpose.xlu0.c.b16.cont [7/8] 0, 128
        %7066 = vxpose.xlu0.c.b16.end [8/8] 0, 128
        %v7067 = vpop.trf.xlu0
        %v7068 = vpop.trf.xlu0
        %v7069 = vpop.trf.xlu0
        %v7070 = vpop.trf.xlu0
        %v7071 = vpop.trf.xlu0
        %v7072 = vpop.trf.xlu0
        %v7073 = vpop.trf.xlu0
        %v7074 = vpop.trf.xlu0
        %7075 = vxpose.xlu0.c.b16.start [1/8] %v6625, 128
        %7076 = vxpose.xlu0.c.b16.cont [2/8] 0, 128
        %7077 = vxpose.xlu0.c.b16.cont [3/8] 0, 128
        %7078 = vxpose.xlu0.c.b16.cont [4/8] 0, 128
        %7079 = vxpose.xlu0.c.b16.cont [5/8] 0, 128
        %7080 = vxpose.xlu0.c.b16.cont [6/8] 0, 128
        %7081 = vxpose.xlu0.c.b16.cont [7/8] 0, 128
        %7082 = vxpose.xlu0.c.b16.end [8/8] 0, 128
        %v7083 = vpop.trf.xlu0
        %v7084 = vpop.trf.xlu0
        %v7085 = vpop.trf.xlu0
        %v7086 = vpop.trf.xlu0
        %v7087 = vpop.trf.xlu0
        %v7088 = vpop.trf.xlu0
        %v7089 = vpop.trf.xlu0
        %v7090 = vpop.trf.xlu0
        %7091 = vxpose.xlu0.c.b16.start [1/8] %v6629, 128
        %7092 = vxpose.xlu0.c.b16.cont [2/8] 0, 128
        %7093 = vxpose.xlu0.c.b16.cont [3/8] 0, 128
        %7094 = vxpose.xlu0.c.b16.cont [4/8] 0, 128
        %7095 = vxpose.xlu0.c.b16.cont [5/8] 0, 128
        %7096 = vxpose.xlu0.c.b16.cont [6/8] 0, 128
        %7097 = vxpose.xlu0.c.b16.cont [7/8] 0, 128
        %7098 = vxpose.xlu0.c.b16.end [8/8] 0, 128
        %v7099 = vpop.trf.xlu0
        %v7100 = vpop.trf.xlu0
        %v7101 = vpop.trf.xlu0
        %v7102 = vpop.trf.xlu0
        %v7103 = vpop.trf.xlu0
        %v7104 = vpop.trf.xlu0
        %v7105 = vpop.trf.xlu0
        %v7106 = vpop.trf.xlu0
        %7107 = vxpose.xlu0.c.b16.start [1/8] %v6633, 128
        %7108 = vxpose.xlu0.c.b16.cont [2/8] 0, 128
        %7109 = vxpose.xlu0.c.b16.cont [3/8] 0, 128
        %7110 = vxpose.xlu0.c.b16.cont [4/8] 0, 128
        %7111 = vxpose.xlu0.c.b16.cont [5/8] 0, 128
        %7112 = vxpose.xlu0.c.b16.cont [6/8] 0, 128
        %7113 = vxpose.xlu0.c.b16.cont [7/8] 0, 128
        %7114 = vxpose.xlu0.c.b16.end [8/8] 0, 128
        %v7115 = vpop.trf.xlu0
        %v7116 = vpop.trf.xlu0
        %v7117 = vpop.trf.xlu0
        %v7118 = vpop.trf.xlu0
        %v7119 = vpop.trf.xlu0
        %v7120 = vpop.trf.xlu0
        %v7121 = vpop.trf.xlu0
        %v7122 = vpop.trf.xlu0
        %7123 = vxpose.xlu0.c.b16.start [1/8] %v6637, 128
        %7124 = vxpose.xlu0.c.b16.cont [2/8] 0, 128
        %7125 = vxpose.xlu0.c.b16.cont [3/8] 0, 128
        %7126 = vxpose.xlu0.c.b16.cont [4/8] 0, 128
        %7127 = vxpose.xlu0.c.b16.cont [5/8] 0, 128
        %7128 = vxpose.xlu0.c.b16.cont [6/8] 0, 128
        %7129 = vxpose.xlu0.c.b16.cont [7/8] 0, 128
        %7130 = vxpose.xlu0.c.b16.end [8/8] 0, 128
        %v7131 = vpop.trf.xlu0
        %v7132 = vpop.trf.xlu0
        %v7133 = vpop.trf.xlu0
        %v7134 = vpop.trf.xlu0
        %v7135 = vpop.trf.xlu0
        %v7136 = vpop.trf.xlu0
        %v7137 = vpop.trf.xlu0
        %v7138 = vpop.trf.xlu0
        %7139 = vxpose.xlu0.c.b16.start [1/8] %v6641, 128
        %7140 = vxpose.xlu0.c.b16.cont [2/8] 0, 128
        %7141 = vxpose.xlu0.c.b16.cont [3/8] 0, 128
        %7142 = vxpose.xlu0.c.b16.cont [4/8] 0, 128
        %7143 = vxpose.xlu0.c.b16.cont [5/8] 0, 128
        %7144 = vxpose.xlu0.c.b16.cont [6/8] 0, 128
        %7145 = vxpose.xlu0.c.b16.cont [7/8] 0, 128
        %7146 = vxpose.xlu0.c.b16.end [8/8] 0, 128
        %v7147 = vpop.trf.xlu0
        %v7148 = vpop.trf.xlu0
        %v7149 = vpop.trf.xlu0
        %v7150 = vpop.trf.xlu0
        %v7151 = vpop.trf.xlu0
        %v7152 = vpop.trf.xlu0
        %v7153 = vpop.trf.xlu0
        %v7154 = vpop.trf.xlu0
        %v7155 = vcombine.low %v6651, %v6715
        %v7157 = vunpack.c.l.s4 1983009808
        %v7158 = vunpack.c.0.s8 %v7157
        %v7159 = vlaneseq
        %v7160 = vshrl.u32 %v7159, 7
        %v7161 = vsub.s32 %v7158, %v7160
        %v7162 = vrot.slane %v7155, %v7161
        %v7163 = vcombine.low %v6683, %v6747
        %v7165 = vunpack.c.l.s4 1983009808
        %v7166 = vunpack.c.0.s8 %v7165
        %v7167 = vlaneseq
        %v7168 = vshrl.u32 %v7167, 7
        %v7169 = vsub.s32 %v7166, %v7168
        %v7170 = vrot.slane %v7163, %v7169
        %v7171 = vcombine.low %v6779, %v6843
        %v7173 = vunpack.c.l.s4 1983009808
        %v7174 = vunpack.c.0.s8 %v7173
        %v7175 = vlaneseq
        %v7176 = vshrl.u32 %v7175, 7
        %v7177 = vsub.s32 %v7174, %v7176
        %v7178 = vrot.slane %v7171, %v7177
        %v7179 = vcombine.low %v6811, %v6875
        %v7181 = vunpack.c.l.s4 1983009808
        %v7182 = vunpack.c.0.s8 %v7181
        %v7183 = vlaneseq
        %v7184 = vshrl.u32 %v7183, 7
        %v7185 = vsub.s32 %v7182, %v7184
        %v7186 = vrot.slane %v7179, %v7185
        %v7187 = vcombine.low %v7162, %v7170
        %v7189 = vunpack.c.l.s4 1934713408
        %v7190 = vunpack.c.0.s8 %v7189
        %v7191 = vlaneseq
        %v7192 = vshrl.u32 %v7191, 7
        %v7193 = vsub.s32 %v7190, %v7192
        %v7194 = vrot.slane %v7187, %v7193
        %v7195 = vcombine.low %v7178, %v7186
        %v7197 = vunpack.c.l.s4 1934713408
        %v7198 = vunpack.c.0.s8 %v7197
        %v7199 = vlaneseq
        %v7200 = vshrl.u32 %v7199, 7
        %v7201 = vsub.s32 %v7198, %v7200
        %v7202 = vrot.slane %v7195, %v7201
        %v7203 = vcombine.low %v7194, %v7202
        %v7204 = vcombine.high %v7194, %v7202
        %v7205 = vcombine.low %v6667, %v6731
        %v7207 = vunpack.c.l.s4 1983009808
        %v7208 = vunpack.c.0.s8 %v7207
        %v7209 = vlaneseq
        %v7210 = vshrl.u32 %v7209, 7
        %v7211 = vsub.s32 %v7208, %v7210
        %v7212 = vrot.slane %v7205, %v7211
        %v7213 = vcombine.low %v6699, %v6763
        %v7215 = vunpack.c.l.s4 1983009808
        %v7216 = vunpack.c.0.s8 %v7215
        %v7217 = vlaneseq
        %v7218 = vshrl.u32 %v7217, 7
        %v7219 = vsub.s32 %v7216, %v7218
        %v7220 = vrot.slane %v7213, %v7219
        %v7221 = vcombine.low %v6795, %v6859
        %v7223 = vunpack.c.l.s4 1983009808
        %v7224 = vunpack.c.0.s8 %v7223
        %v7225 = vlaneseq
        %v7226 = vshrl.u32 %v7225, 7
        %v7227 = vsub.s32 %v7224, %v7226
        %v7228 = vrot.slane %v7221, %v7227
        %v7229 = vcombine.low %v6827, %v6891
        %v7231 = vunpack.c.l.s4 1983009808
        %v7232 = vunpack.c.0.s8 %v7231
        %v7233 = vlaneseq
        %v7234 = vshrl.u32 %v7233, 7
        %v7235 = vsub.s32 %v7232, %v7234
        %v7236 = vrot.slane %v7229, %v7235
        %v7237 = vcombine.low %v7212, %v7220
        %v7239 = vunpack.c.l.s4 1934713408
        %v7240 = vunpack.c.0.s8 %v7239
        %v7241 = vlaneseq
        %v7242 = vshrl.u32 %v7241, 7
        %v7243 = vsub.s32 %v7240, %v7242
        %v7244 = vrot.slane %v7237, %v7243
        %v7245 = vcombine.low %v7228, %v7236
        %v7247 = vunpack.c.l.s4 1934713408
        %v7248 = vunpack.c.0.s8 %v7247
        %v7249 = vlaneseq
        %v7250 = vshrl.u32 %v7249, 7
        %v7251 = vsub.s32 %v7248, %v7250
        %v7252 = vrot.slane %v7245, %v7251
        %v7253 = vcombine.low %v7244, %v7252
        %v7254 = vcombine.high %v7244, %v7252
        %v7255 = vcombine.low %v6907, %v6971
        %v7257 = vunpack.c.l.s4 1983009808
        %v7258 = vunpack.c.0.s8 %v7257
        %v7259 = vlaneseq
        %v7260 = vshrl.u32 %v7259, 7
        %v7261 = vsub.s32 %v7258, %v7260
        %v7262 = vrot.slane %v7255, %v7261
        %v7263 = vcombine.low %v6939, %v7003
        %v7265 = vunpack.c.l.s4 1983009808
        %v7266 = vunpack.c.0.s8 %v7265
        %v7267 = vlaneseq
        %v7268 = vshrl.u32 %v7267, 7
        %v7269 = vsub.s32 %v7266, %v7268
        %v7270 = vrot.slane %v7263, %v7269
        %v7271 = vcombine.low %v7035, %v7099
        %v7273 = vunpack.c.l.s4 1983009808
        %v7274 = vunpack.c.0.s8 %v7273
        %v7275 = vlaneseq
        %v7276 = vshrl.u32 %v7275, 7
        %v7277 = vsub.s32 %v7274, %v7276
        %v7278 = vrot.slane %v7271, %v7277
        %v7279 = vcombine.low %v7067, %v7131
        %v7281 = vunpack.c.l.s4 1983009808
        %v7282 = vunpack.c.0.s8 %v7281
        %v7283 = vlaneseq
        %v7284 = vshrl.u32 %v7283, 7
        %v7285 = vsub.s32 %v7282, %v7284
        %v7286 = vrot.slane %v7279, %v7285
        %v7287 = vcombine.low %v7262, %v7270
        %v7289 = vunpack.c.l.s4 1934713408
        %v7290 = vunpack.c.0.s8 %v7289
        %v7291 = vlaneseq
        %v7292 = vshrl.u32 %v7291, 7
        %v7293 = vsub.s32 %v7290, %v7292
        %v7294 = vrot.slane %v7287, %v7293
        %v7295 = vcombine.low %v7278, %v7286
        %v7297 = vunpack.c.l.s4 1934713408
        %v7298 = vunpack.c.0.s8 %v7297
        %v7299 = vlaneseq
        %v7300 = vshrl.u32 %v7299, 7
        %v7301 = vsub.s32 %v7298, %v7300
        %v7302 = vrot.slane %v7295, %v7301
        %v7303 = vcombine.low %v7294, %v7302
        %v7304 = vcombine.high %v7294, %v7302
        %v7305 = vcombine.low %v6923, %v6987
        %v7307 = vunpack.c.l.s4 1983009808
        %v7308 = vunpack.c.0.s8 %v7307
        %v7309 = vlaneseq
        %v7310 = vshrl.u32 %v7309, 7
        %v7311 = vsub.s32 %v7308, %v7310
        %v7312 = vrot.slane %v7305, %v7311
        %v7313 = vcombine.low %v6955, %v7019
        %v7315 = vunpack.c.l.s4 1983009808
        %v7316 = vunpack.c.0.s8 %v7315
        %v7317 = vlaneseq
        %v7318 = vshrl.u32 %v7317, 7
        %v7319 = vsub.s32 %v7316, %v7318
        %v7320 = vrot.slane %v7313, %v7319
        %v7321 = vcombine.low %v7051, %v7115
        %v7323 = vunpack.c.l.s4 1983009808
        %v7324 = vunpack.c.0.s8 %v7323
        %v7325 = vlaneseq
        %v7326 = vshrl.u32 %v7325, 7
        %v7327 = vsub.s32 %v7324, %v7326
        %v7328 = vrot.slane %v7321, %v7327
        %v7329 = vcombine.low %v7083, %v7147
        %v7331 = vunpack.c.l.s4 1983009808
        %v7332 = vunpack.c.0.s8 %v7331
        %v7333 = vlaneseq
        %v7334 = vshrl.u32 %v7333, 7
        %v7335 = vsub.s32 %v7332, %v7334
        %v7336 = vrot.slane %v7329, %v7335
        %v7337 = vcombine.low %v7312, %v7320
        %v7339 = vunpack.c.l.s4 1934713408
        %v7340 = vunpack.c.0.s8 %v7339
        %v7341 = vlaneseq
        %v7342 = vshrl.u32 %v7341, 7
        %v7343 = vsub.s32 %v7340, %v7342
        %v7344 = vrot.slane %v7337, %v7343
        %v7345 = vcombine.low %v7328, %v7336
        %v7347 = vunpack.c.l.s4 1934713408
        %v7348 = vunpack.c.0.s8 %v7347
        %v7349 = vlaneseq
        %v7350 = vshrl.u32 %v7349, 7
        %v7351 = vsub.s32 %v7348, %v7350
        %v7352 = vrot.slane %v7345, %v7351
        %v7353 = vcombine.low %v7344, %v7352
        %v7354 = vcombine.high %v7344, %v7352
        %v7357 = vpack.i.b16 %v7253, %v7203
        %v7359 = vshrl.u32 %v7203, 16
        %v7360 = vshrl.u32 %v7253, 16
        %v7361 = vpack.i.b16 %v7360, %v7359
        %v7365 = vpack.i.b16 %v7254, %v7204
        %v7367 = vshrl.u32 %v7204, 16
        %v7368 = vshrl.u32 %v7254, 16
        %v7369 = vpack.i.b16 %v7368, %v7367
        %v7373 = vpack.i.b16 %v7353, %v7303
        %v7375 = vshrl.u32 %v7303, 16
        %v7376 = vshrl.u32 %v7353, 16
        %v7377 = vpack.i.b16 %v7376, %v7375
        %v7381 = vpack.i.b16 %v7354, %v7304
        %v7383 = vshrl.u32 %v7304, 16
        %v7384 = vshrl.u32 %v7354, 16
        %v7385 = vpack.i.b16 %v7384, %v7383
        %v7388 = vsel %vm2830, %v5705, 0
        %7390 = vmatprep.subr.bf16.mxu0 0
        %7391 = vmatpush1.bf16.msra.mxu0 0
        %7392 = vmatprep.subr.bf16.mxu0 0
        %7393 = vmatpush1.bf16.msra.mxu0 0
        %7394 = vmatprep.subr.bf16.mxu0 0
        %7395 = vmatpush1.bf16.msra.mxu0 0
        %7396 = vmatprep.subr.bf16.mxu0 0
        %7397 = vmatpush1.bf16.msra.mxu0 0
        %7398 = vmatprep.subr.bf16.mxu0 0
        %7399 = vmatpush1.bf16.msra.mxu0 0
        %7400 = vmatprep.subr.bf16.mxu0 0
        %7401 = vmatpush1.bf16.msra.mxu0 0
        %7402 = vmatprep.subr.bf16.mxu0 0
        %7403 = vmatpush1.bf16.msra.mxu0 %v7373
        %7404 = vmatprep.subr.bf16.mxu0 0
        %7405 = vmatpush1.bf16.msra.mxu0 %v7357
        %7406 = vmatprep.subr.bf16.mxu0 0
        %7407 = vmatpush2.bf16.msra.mxu0 0
        %7408 = vmatprep.subr.bf16.mxu0 0
        %7409 = vmatpush2.bf16.msra.mxu0 0
        %7410 = vmatprep.subr.bf16.mxu0 0
        %7411 = vmatpush2.bf16.msra.mxu0 0
        %7412 = vmatprep.subr.bf16.mxu0 0
        %7413 = vmatpush2.bf16.msra.mxu0 0
        %7414 = vmatprep.subr.bf16.mxu0 0
        %7415 = vmatpush2.bf16.msra.mxu0 0
        %7416 = vmatprep.subr.bf16.mxu0 0
        %7417 = vmatpush2.bf16.msra.mxu0 0
        %7418 = vmatprep.subr.bf16.mxu0 0
        %7419 = vmatpush2.bf16.msra.mxu0 0
        %7420 = vmatprep.subr.bf16.mxu0 0
        %7421 = vmatpush2.bf16.msra.mxu0 0
        %7422 = vmatprep.mubr.bf16.mxu0 0
        %7423 = vmatmul.mubr.bf16.gmra.mxu0 %v7388
        %v7424 = vpop.f32.mrf.mxu0
        %v7425 = vadd.f32 0.0, %v7424
        %v7426 = vpop.f32.mrf.mxu0
        %v7427 = vpop.f32.mrf.mxu0
        %v7428 = vpop.f32.mrf.mxu0
        %7429 = vdwg.mxu0
        %v7431 = vsel %vm2830, %v5708, 0
        %7433 = vmatprep.subr.bf16.mxu0 0
        %7434 = vmatpush1.bf16.msra.mxu0 0
        %7435 = vmatprep.subr.bf16.mxu0 0
        %7436 = vmatpush1.bf16.msra.mxu0 0
        %7437 = vmatprep.subr.bf16.mxu0 0
        %7438 = vmatpush1.bf16.msra.mxu0 0
        %7439 = vmatprep.subr.bf16.mxu0 0
        %7440 = vmatpush1.bf16.msra.mxu0 0
        %7441 = vmatprep.subr.bf16.mxu0 0
        %7442 = vmatpush1.bf16.msra.mxu0 0
        %7443 = vmatprep.subr.bf16.mxu0 0
        %7444 = vmatpush1.bf16.msra.mxu0 0
        %7445 = vmatprep.subr.bf16.mxu0 0
        %7446 = vmatpush1.bf16.msra.mxu0 %v7377
        %7447 = vmatprep.subr.bf16.mxu0 0
        %7448 = vmatpush1.bf16.msra.mxu0 %v7361
        %7449 = vmatprep.subr.bf16.mxu0 0
        %7450 = vmatpush2.bf16.msra.mxu0 0
        %7451 = vmatprep.subr.bf16.mxu0 0
        %7452 = vmatpush2.bf16.msra.mxu0 0
        %7453 = vmatprep.subr.bf16.mxu0 0
        %7454 = vmatpush2.bf16.msra.mxu0 0
        %7455 = vmatprep.subr.bf16.mxu0 0
        %7456 = vmatpush2.bf16.msra.mxu0 0
        %7457 = vmatprep.subr.bf16.mxu0 0
        %7458 = vmatpush2.bf16.msra.mxu0 0
        %7459 = vmatprep.subr.bf16.mxu0 0
        %7460 = vmatpush2.bf16.msra.mxu0 0
        %7461 = vmatprep.subr.bf16.mxu0 0
        %7462 = vmatpush2.bf16.msra.mxu0 0
        %7463 = vmatprep.subr.bf16.mxu0 0
        %7464 = vmatpush2.bf16.msra.mxu0 0
        %7465 = vmatprep.mubr.bf16.mxu0 0
        %7466 = vmatmul.mubr.bf16.gmra.mxu0 %v7431
        %v7467 = vpop.f32.mrf.mxu0
        %v7468 = vadd.f32 0.0, %v7467
        %v7469 = vpop.f32.mrf.mxu0
        %v7470 = vpop.f32.mrf.mxu0
        %v7471 = vpop.f32.mrf.mxu0
        %7472 = vdwg.mxu0
        %v7474 = vsel %vm2830, %v5711, 0
        %7476 = vmatprep.subr.bf16.mxu0 0
        %7477 = vmatpush1.bf16.msra.mxu0 0
        %7478 = vmatprep.subr.bf16.mxu0 0
        %7479 = vmatpush1.bf16.msra.mxu0 0
        %7480 = vmatprep.subr.bf16.mxu0 0
        %7481 = vmatpush1.bf16.msra.mxu0 0
        %7482 = vmatprep.subr.bf16.mxu0 0
        %7483 = vmatpush1.bf16.msra.mxu0 0
        %7484 = vmatprep.subr.bf16.mxu0 0
        %7485 = vmatpush1.bf16.msra.mxu0 0
        %7486 = vmatprep.subr.bf16.mxu0 0
        %7487 = vmatpush1.bf16.msra.mxu0 0
        %7488 = vmatprep.subr.bf16.mxu0 0
        %7489 = vmatpush1.bf16.msra.mxu0 %v7381
        %7490 = vmatprep.subr.bf16.mxu0 0
        %7491 = vmatpush1.bf16.msra.mxu0 %v7365
        %7492 = vmatprep.subr.bf16.mxu0 0
        %7493 = vmatpush2.bf16.msra.mxu0 0
        %7494 = vmatprep.subr.bf16.mxu0 0
        %7495 = vmatpush2.bf16.msra.mxu0 0
        %7496 = vmatprep.subr.bf16.mxu0 0
        %7497 = vmatpush2.bf16.msra.mxu0 0
        %7498 = vmatprep.subr.bf16.mxu0 0
        %7499 = vmatpush2.bf16.msra.mxu0 0
        %7500 = vmatprep.subr.bf16.mxu0 0
        %7501 = vmatpush2.bf16.msra.mxu0 0
        %7502 = vmatprep.subr.bf16.mxu0 0
        %7503 = vmatpush2.bf16.msra.mxu0 0
        %7504 = vmatprep.subr.bf16.mxu0 0
        %7505 = vmatpush2.bf16.msra.mxu0 0
        %7506 = vmatprep.subr.bf16.mxu0 0
        %7507 = vmatpush2.bf16.msra.mxu0 0
        %7508 = vmatprep.mubr.bf16.mxu0 0
        %7509 = vmatmul.mubr.bf16.gmra.mxu0 %v7474
        %v7510 = vpop.f32.mrf.mxu0
        %v7511 = vadd.f32 0.0, %v7510
        %v7512 = vpop.f32.mrf.mxu0
        %v7513 = vpop.f32.mrf.mxu0
        %v7514 = vpop.f32.mrf.mxu0
        %7515 = vdwg.mxu0
        %v7517 = vsel %vm2830, %v5714, 0
        %7519 = vmatprep.subr.bf16.mxu0 0
        %7520 = vmatpush1.bf16.msra.mxu0 0
        %7521 = vmatprep.subr.bf16.mxu0 0
        %7522 = vmatpush1.bf16.msra.mxu0 0
        %7523 = vmatprep.subr.bf16.mxu0 0
        %7524 = vmatpush1.bf16.msra.mxu0 0
        %7525 = vmatprep.subr.bf16.mxu0 0
        %7526 = vmatpush1.bf16.msra.mxu0 0
        %7527 = vmatprep.subr.bf16.mxu0 0
        %7528 = vmatpush1.bf16.msra.mxu0 0
        %7529 = vmatprep.subr.bf16.mxu0 0
        %7530 = vmatpush1.bf16.msra.mxu0 0
        %7531 = vmatprep.subr.bf16.mxu0 0
        %7532 = vmatpush1.bf16.msra.mxu0 %v7385
        %7533 = vmatprep.subr.bf16.mxu0 0
        %7534 = vmatpush1.bf16.msra.mxu0 %v7369
        %7535 = vmatprep.subr.bf16.mxu0 0
        %7536 = vmatpush2.bf16.msra.mxu0 0
        %7537 = vmatprep.subr.bf16.mxu0 0
        %7538 = vmatpush2.bf16.msra.mxu0 0
        %7539 = vmatprep.subr.bf16.mxu0 0
        %7540 = vmatpush2.bf16.msra.mxu0 0
        %7541 = vmatprep.subr.bf16.mxu0 0
        %7542 = vmatpush2.bf16.msra.mxu0 0
        %7543 = vmatprep.subr.bf16.mxu0 0
        %7544 = vmatpush2.bf16.msra.mxu0 0
        %7545 = vmatprep.subr.bf16.mxu0 0
        %7546 = vmatpush2.bf16.msra.mxu0 0
        %7547 = vmatprep.subr.bf16.mxu0 0
        %7548 = vmatpush2.bf16.msra.mxu0 0
        %7549 = vmatprep.subr.bf16.mxu0 0
        %7550 = vmatpush2.bf16.msra.mxu0 0
        %7551 = vmatprep.mubr.bf16.mxu0 0
        %7552 = vmatmul.mubr.bf16.gmra.mxu0 %v7517
        %v7553 = vpop.f32.mrf.mxu0
        %v7554 = vadd.f32 0.0, %v7553
        %v7555 = vpop.f32.mrf.mxu0
        %v7556 = vpop.f32.mrf.mxu0
        %v7557 = vpop.f32.mrf.mxu0
        %7558 = vdwg.mxu0
        %v7559 = vmul.f32 %v7425, 0.17677669
        %v7560 = vmul.f32 %v7468, 0.17677669
        %v7561 = vmul.f32 %v7511, 0.17677669
        %v7562 = vmul.f32 %v7554, 0.17677669
        %v7563 = vadd.f32 %v7559, %v972
        %v7564 = vadd.f32 %v7560, %v972
        %v7565 = vadd.f32 %v7561, %v972
        %v7566 = vadd.f32 %v7562, %v972
        %vm7567 = vcmask 130048
        %v7568 = vsel %vm7567, %v7563, -inf
        %7569 = vmax.xlane.f32.xlu0 %v7568
        %v7570 = vpop.xlane.xlu0 %7569
        %v7571 = vsel %vm7567, %v7564, -inf
        %7572 = vmax.xlane.f32.xlu0 %v7571
        %v7573 = vpop.xlane.xlu0 %7572
        %v7574 = vsel %vm7567, %v7565, -inf
        %7575 = vmax.xlane.f32.xlu0 %v7574
        %v7576 = vpop.xlane.xlu0 %7575
        %v7577 = vsel %vm7567, %v7566, -inf
        %7578 = vmax.xlane.f32.xlu0 %v7577
        %v7579 = vpop.xlane.xlu0 %7578
        %v7580 = vsub.f32 %v7563, %v7570
        %v7581 = vsub.f32 %v7564, %v7573
        %v7582 = vsub.f32 %v7565, %v7576
        %v7583 = vsub.f32 %v7566, %v7579
        %v7584 = vmul.f32 %v7580, 1.442695
        %v7585 = vpow.pop %v7584
        %v7586 = vmul.f32 %v7581, 1.442695
        %v7587 = vpow.pop %v7586
        %v7588 = vmul.f32 %v7582, 1.442695
        %v7589 = vpow.pop %v7588
        %v7590 = vmul.f32 %v7583, 1.442695
        %v7591 = vpow.pop %v7590
        %v7592 = vsel %vm7567, %v7585, 0.0
        %7593 = vadd.xlane.f32.xlu0 %v7592
        %v7594 = vpop.xlane.xlu0 %7593
        %v7595 = vsel %vm7567, %v7587, 0.0
        %7596 = vadd.xlane.f32.xlu0 %v7595
        %v7597 = vpop.xlane.xlu0 %7596
        %v7598 = vsel %vm7567, %v7589, 0.0
        %7599 = vadd.xlane.f32.xlu0 %v7598
        %v7600 = vpop.xlane.xlu0 %7599
        %v7601 = vsel %vm7567, %v7591, 0.0
        %7602 = vadd.xlane.f32.xlu0 %v7601
        %v7603 = vpop.xlane.xlu0 %7602
        %v7604 = vrcp.pop %v7594
        %v7605 = vrcp.pop %v7597
        %v7606 = vrcp.pop %v7600
        %v7607 = vrcp.pop %v7603
        %v7608 = vmul.f32 %v7585, %v7604
        %v7609 = vmul.f32 %v7587, %v7605
        %v7610 = vmul.f32 %v7589, %v7606
        %v7611 = vmul.f32 %v7591, %v7607
        %v7612 = vpack.c.bf16 %v7608, %v7608
        %v7613 = vpack.c.bf16 %v7609, %v7609
        %v7614 = vpack.c.bf16 %v7610, %v7610
        %v7615 = vpack.c.bf16 %v7611, %v7611
        %7616 = vxpose.xlu0.c.b16.start [1/8] %v5637, 128
        %7617 = vxpose.xlu0.c.b16.cont [2/8] 0, 128
        %7618 = vxpose.xlu0.c.b16.cont [3/8] 0, 128
        %7619 = vxpose.xlu0.c.b16.cont [4/8] 0, 128
        %7620 = vxpose.xlu0.c.b16.cont [5/8] 0, 128
        %7621 = vxpose.xlu0.c.b16.cont [6/8] 0, 128
        %7622 = vxpose.xlu0.c.b16.cont [7/8] 0, 128
        %7623 = vxpose.xlu0.c.b16.end [8/8] 0, 128
        %v7624 = vpop.trf.xlu0
        %v7625 = vpop.trf.xlu0
        %v7626 = vpop.trf.xlu0
        %v7627 = vpop.trf.xlu0
        %v7628 = vpop.trf.xlu0
        %v7629 = vpop.trf.xlu0
        %v7630 = vpop.trf.xlu0
        %v7631 = vpop.trf.xlu0
        %7632 = vxpose.xlu0.c.b16.start [1/8] %v5638, 128
        %7633 = vxpose.xlu0.c.b16.cont [2/8] 0, 128
        %7634 = vxpose.xlu0.c.b16.cont [3/8] 0, 128
        %7635 = vxpose.xlu0.c.b16.cont [4/8] 0, 128
        %7636 = vxpose.xlu0.c.b16.cont [5/8] 0, 128
        %7637 = vxpose.xlu0.c.b16.cont [6/8] 0, 128
        %7638 = vxpose.xlu0.c.b16.cont [7/8] 0, 128
        %7639 = vxpose.xlu0.c.b16.end [8/8] 0, 128
        %v7640 = vpop.trf.xlu0
        %v7641 = vpop.trf.xlu0
        %v7642 = vpop.trf.xlu0
        %v7643 = vpop.trf.xlu0
        %v7644 = vpop.trf.xlu0
        %v7645 = vpop.trf.xlu0
        %v7646 = vpop.trf.xlu0
        %v7647 = vpop.trf.xlu0
        %7648 = vxpose.xlu0.c.b16.start [1/8] %v5639, 128
        %7649 = vxpose.xlu0.c.b16.cont [2/8] 0, 128
        %7650 = vxpose.xlu0.c.b16.cont [3/8] 0, 128
        %7651 = vxpose.xlu0.c.b16.cont [4/8] 0, 128
        %7652 = vxpose.xlu0.c.b16.cont [5/8] 0, 128
        %7653 = vxpose.xlu0.c.b16.cont [6/8] 0, 128
        %7654 = vxpose.xlu0.c.b16.cont [7/8] 0, 128
        %7655 = vxpose.xlu0.c.b16.end [8/8] 0, 128
        %v7656 = vpop.trf.xlu0
        %v7657 = vpop.trf.xlu0
        %v7658 = vpop.trf.xlu0
        %v7659 = vpop.trf.xlu0
        %v7660 = vpop.trf.xlu0
        %v7661 = vpop.trf.xlu0
        %v7662 = vpop.trf.xlu0
        %v7663 = vpop.trf.xlu0
        %7664 = vxpose.xlu0.c.b16.start [1/8] %v5640, 128
        %7665 = vxpose.xlu0.c.b16.cont [2/8] 0, 128
        %7666 = vxpose.xlu0.c.b16.cont [3/8] 0, 128
        %7667 = vxpose.xlu0.c.b16.cont [4/8] 0, 128
        %7668 = vxpose.xlu0.c.b16.cont [5/8] 0, 128
        %7669 = vxpose.xlu0.c.b16.cont [6/8] 0, 128
        %7670 = vxpose.xlu0.c.b16.cont [7/8] 0, 128
        %7671 = vxpose.xlu0.c.b16.end [8/8] 0, 128
        %v7672 = vpop.trf.xlu0
        %v7673 = vpop.trf.xlu0
        %v7674 = vpop.trf.xlu0
        %v7675 = vpop.trf.xlu0
        %v7676 = vpop.trf.xlu0
        %v7677 = vpop.trf.xlu0
        %v7678 = vpop.trf.xlu0
        %v7679 = vpop.trf.xlu0
        %7680 = vxpose.xlu0.c.b16.start [1/8] %v5641, 128
        %7681 = vxpose.xlu0.c.b16.cont [2/8] 0, 128
        %7682 = vxpose.xlu0.c.b16.cont [3/8] 0, 128
        %7683 = vxpose.xlu0.c.b16.cont [4/8] 0, 128
        %7684 = vxpose.xlu0.c.b16.cont [5/8] 0, 128
        %7685 = vxpose.xlu0.c.b16.cont [6/8] 0, 128
        %7686 = vxpose.xlu0.c.b16.cont [7/8] 0, 128
        %7687 = vxpose.xlu0.c.b16.end [8/8] 0, 128
        %v7688 = vpop.trf.xlu0
        %v7689 = vpop.trf.xlu0
        %v7690 = vpop.trf.xlu0
        %v7691 = vpop.trf.xlu0
        %v7692 = vpop.trf.xlu0
        %v7693 = vpop.trf.xlu0
        %v7694 = vpop.trf.xlu0
        %v7695 = vpop.trf.xlu0
        %7696 = vxpose.xlu0.c.b16.start [1/8] %v5642, 128
        %7697 = vxpose.xlu0.c.b16.cont [2/8] 0, 128
        %7698 = vxpose.xlu0.c.b16.cont [3/8] 0, 128
        %7699 = vxpose.xlu0.c.b16.cont [4/8] 0, 128
        %7700 = vxpose.xlu0.c.b16.cont [5/8] 0, 128
        %7701 = vxpose.xlu0.c.b16.cont [6/8] 0, 128
        %7702 = vxpose.xlu0.c.b16.cont [7/8] 0, 128
        %7703 = vxpose.xlu0.c.b16.end [8/8] 0, 128
        %v7704 = vpop.trf.xlu0
        %v7705 = vpop.trf.xlu0
        %v7706 = vpop.trf.xlu0
        %v7707 = vpop.trf.xlu0
        %v7708 = vpop.trf.xlu0
        %v7709 = vpop.trf.xlu0
        %v7710 = vpop.trf.xlu0
        %v7711 = vpop.trf.xlu0
        %7712 = vxpose.xlu0.c.b16.start [1/8] %v5643, 128
        %7713 = vxpose.xlu0.c.b16.cont [2/8] 0, 128
        %7714 = vxpose.xlu0.c.b16.cont [3/8] 0, 128
        %7715 = vxpose.xlu0.c.b16.cont [4/8] 0, 128
        %7716 = vxpose.xlu0.c.b16.cont [5/8] 0, 128
        %7717 = vxpose.xlu0.c.b16.cont [6/8] 0, 128
        %7718 = vxpose.xlu0.c.b16.cont [7/8] 0, 128
        %7719 = vxpose.xlu0.c.b16.end [8/8] 0, 128
        %v7720 = vpop.trf.xlu0
        %v7721 = vpop.trf.xlu0
        %v7722 = vpop.trf.xlu0
        %v7723 = vpop.trf.xlu0
        %v7724 = vpop.trf.xlu0
        %v7725 = vpop.trf.xlu0
        %v7726 = vpop.trf.xlu0
        %v7727 = vpop.trf.xlu0
        %7728 = vxpose.xlu0.c.b16.start [1/8] %v5644, 128
        %7729 = vxpose.xlu0.c.b16.cont [2/8] 0, 128
        %7730 = vxpose.xlu0.c.b16.cont [3/8] 0, 128
        %7731 = vxpose.xlu0.c.b16.cont [4/8] 0, 128
        %7732 = vxpose.xlu0.c.b16.cont [5/8] 0, 128
        %7733 = vxpose.xlu0.c.b16.cont [6/8] 0, 128
        %7734 = vxpose.xlu0.c.b16.cont [7/8] 0, 128
        %7735 = vxpose.xlu0.c.b16.end [8/8] 0, 128
        %v7736 = vpop.trf.xlu0
        %v7737 = vpop.trf.xlu0
        %v7738 = vpop.trf.xlu0
        %v7739 = vpop.trf.xlu0
        %v7740 = vpop.trf.xlu0
        %v7741 = vpop.trf.xlu0
        %v7742 = vpop.trf.xlu0
        %v7743 = vpop.trf.xlu0
        %7744 = vxpose.xlu0.c.b16.start [1/8] %v5645, 128
        %7745 = vxpose.xlu0.c.b16.cont [2/8] 0, 128
        %7746 = vxpose.xlu0.c.b16.cont [3/8] 0, 128
        %7747 = vxpose.xlu0.c.b16.cont [4/8] 0, 128
        %7748 = vxpose.xlu0.c.b16.cont [5/8] 0, 128
        %7749 = vxpose.xlu0.c.b16.cont [6/8] 0, 128
        %7750 = vxpose.xlu0.c.b16.cont [7/8] 0, 128
        %7751 = vxpose.xlu0.c.b16.end [8/8] 0, 128
        %v7752 = vpop.trf.xlu0
        %v7753 = vpop.trf.xlu0
        %v7754 = vpop.trf.xlu0
        %v7755 = vpop.trf.xlu0
        %v7756 = vpop.trf.xlu0
        %v7757 = vpop.trf.xlu0
        %v7758 = vpop.trf.xlu0
        %v7759 = vpop.trf.xlu0
        %7760 = vxpose.xlu0.c.b16.start [1/8] %v5646, 128
        %7761 = vxpose.xlu0.c.b16.cont [2/8] 0, 128
        %7762 = vxpose.xlu0.c.b16.cont [3/8] 0, 128
        %7763 = vxpose.xlu0.c.b16.cont [4/8] 0, 128
        %7764 = vxpose.xlu0.c.b16.cont [5/8] 0, 128
        %7765 = vxpose.xlu0.c.b16.cont [6/8] 0, 128
        %7766 = vxpose.xlu0.c.b16.cont [7/8] 0, 128
        %7767 = vxpose.xlu0.c.b16.end [8/8] 0, 128
        %v7768 = vpop.trf.xlu0
        %v7769 = vpop.trf.xlu0
        %v7770 = vpop.trf.xlu0
        %v7771 = vpop.trf.xlu0
        %v7772 = vpop.trf.xlu0
        %v7773 = vpop.trf.xlu0
        %v7774 = vpop.trf.xlu0
        %v7775 = vpop.trf.xlu0
        %7776 = vxpose.xlu0.c.b16.start [1/8] %v5647, 128
        %7777 = vxpose.xlu0.c.b16.cont [2/8] 0, 128
        %7778 = vxpose.xlu0.c.b16.cont [3/8] 0, 128
        %7779 = vxpose.xlu0.c.b16.cont [4/8] 0, 128
        %7780 = vxpose.xlu0.c.b16.cont [5/8] 0, 128
        %7781 = vxpose.xlu0.c.b16.cont [6/8] 0, 128
        %7782 = vxpose.xlu0.c.b16.cont [7/8] 0, 128
        %7783 = vxpose.xlu0.c.b16.end [8/8] 0, 128
        %v7784 = vpop.trf.xlu0
        %v7785 = vpop.trf.xlu0
        %v7786 = vpop.trf.xlu0
        %v7787 = vpop.trf.xlu0
        %v7788 = vpop.trf.xlu0
        %v7789 = vpop.trf.xlu0
        %v7790 = vpop.trf.xlu0
        %v7791 = vpop.trf.xlu0
        %7792 = vxpose.xlu0.c.b16.start [1/8] %v5648, 128
        %7793 = vxpose.xlu0.c.b16.cont [2/8] 0, 128
        %7794 = vxpose.xlu0.c.b16.cont [3/8] 0, 128
        %7795 = vxpose.xlu0.c.b16.cont [4/8] 0, 128
        %7796 = vxpose.xlu0.c.b16.cont [5/8] 0, 128
        %7797 = vxpose.xlu0.c.b16.cont [6/8] 0, 128
        %7798 = vxpose.xlu0.c.b16.cont [7/8] 0, 128
        %7799 = vxpose.xlu0.c.b16.end [8/8] 0, 128
        %v7800 = vpop.trf.xlu0
        %v7801 = vpop.trf.xlu0
        %v7802 = vpop.trf.xlu0
        %v7803 = vpop.trf.xlu0
        %v7804 = vpop.trf.xlu0
        %v7805 = vpop.trf.xlu0
        %v7806 = vpop.trf.xlu0
        %v7807 = vpop.trf.xlu0
        %7808 = vxpose.xlu0.c.b16.start [1/8] %v5649, 128
        %7809 = vxpose.xlu0.c.b16.cont [2/8] 0, 128
        %7810 = vxpose.xlu0.c.b16.cont [3/8] 0, 128
        %7811 = vxpose.xlu0.c.b16.cont [4/8] 0, 128
        %7812 = vxpose.xlu0.c.b16.cont [5/8] 0, 128
        %7813 = vxpose.xlu0.c.b16.cont [6/8] 0, 128
        %7814 = vxpose.xlu0.c.b16.cont [7/8] 0, 128
        %7815 = vxpose.xlu0.c.b16.end [8/8] 0, 128
        %v7816 = vpop.trf.xlu0
        %v7817 = vpop.trf.xlu0
        %v7818 = vpop.trf.xlu0
        %v7819 = vpop.trf.xlu0
        %v7820 = vpop.trf.xlu0
        %v7821 = vpop.trf.xlu0
        %v7822 = vpop.trf.xlu0
        %v7823 = vpop.trf.xlu0
        %7824 = vxpose.xlu0.c.b16.start [1/8] %v5650, 128
        %7825 = vxpose.xlu0.c.b16.cont [2/8] 0, 128
        %7826 = vxpose.xlu0.c.b16.cont [3/8] 0, 128
        %7827 = vxpose.xlu0.c.b16.cont [4/8] 0, 128
        %7828 = vxpose.xlu0.c.b16.cont [5/8] 0, 128
        %7829 = vxpose.xlu0.c.b16.cont [6/8] 0, 128
        %7830 = vxpose.xlu0.c.b16.cont [7/8] 0, 128
        %7831 = vxpose.xlu0.c.b16.end [8/8] 0, 128
        %v7832 = vpop.trf.xlu0
        %v7833 = vpop.trf.xlu0
        %v7834 = vpop.trf.xlu0
        %v7835 = vpop.trf.xlu0
        %v7836 = vpop.trf.xlu0
        %v7837 = vpop.trf.xlu0
        %v7838 = vpop.trf.xlu0
        %v7839 = vpop.trf.xlu0
        %7840 = vxpose.xlu0.c.b16.start [1/8] %v5651, 128
        %7841 = vxpose.xlu0.c.b16.cont [2/8] 0, 128
        %7842 = vxpose.xlu0.c.b16.cont [3/8] 0, 128
        %7843 = vxpose.xlu0.c.b16.cont [4/8] 0, 128
        %7844 = vxpose.xlu0.c.b16.cont [5/8] 0, 128
        %7845 = vxpose.xlu0.c.b16.cont [6/8] 0, 128
        %7846 = vxpose.xlu0.c.b16.cont [7/8] 0, 128
        %7847 = vxpose.xlu0.c.b16.end [8/8] 0, 128
        %v7848 = vpop.trf.xlu0
        %v7849 = vpop.trf.xlu0
        %v7850 = vpop.trf.xlu0
        %v7851 = vpop.trf.xlu0
        %v7852 = vpop.trf.xlu0
        %v7853 = vpop.trf.xlu0
        %v7854 = vpop.trf.xlu0
        %v7855 = vpop.trf.xlu0
        %7856 = vxpose.xlu0.c.b16.start [1/8] %v5652, 128
        %7857 = vxpose.xlu0.c.b16.cont [2/8] 0, 128
        %7858 = vxpose.xlu0.c.b16.cont [3/8] 0, 128
        %7859 = vxpose.xlu0.c.b16.cont [4/8] 0, 128
        %7860 = vxpose.xlu0.c.b16.cont [5/8] 0, 128
        %7861 = vxpose.xlu0.c.b16.cont [6/8] 0, 128
        %7862 = vxpose.xlu0.c.b16.cont [7/8] 0, 128
        %7863 = vxpose.xlu0.c.b16.end [8/8] 0, 128
        %v7864 = vpop.trf.xlu0
        %v7865 = vpop.trf.xlu0
        %v7866 = vpop.trf.xlu0
        %v7867 = vpop.trf.xlu0
        %v7868 = vpop.trf.xlu0
        %v7869 = vpop.trf.xlu0
        %v7870 = vpop.trf.xlu0
        %v7871 = vpop.trf.xlu0
        %v7872 = vcombine.low %v7624, %v7688
        %v7873 = vcombine.high %v7624, %v7688
        %v7875 = vunpack.c.l.s4 1983009808
        %v7876 = vunpack.c.0.s8 %v7875
        %v7877 = vlaneseq
        %v7878 = vshrl.u32 %v7877, 7
        %v7879 = vsub.s32 %v7876, %v7878
        %v7880 = vrot.slane %v7872, %v7879
        %v7882 = vunpack.c.l.s4 1983009808
        %v7883 = vunpack.c.0.s8 %v7882
        %v7884 = vlaneseq
        %v7885 = vshrl.u32 %v7884, 7
        %v7886 = vsub.s32 %v7883, %v7885
        %v7887 = vrot.slane %v7873, %v7886
        %v7888 = vcombine.low %v7656, %v7720
        %v7889 = vcombine.high %v7656, %v7720
        %v7891 = vunpack.c.l.s4 1983009808
        %v7892 = vunpack.c.0.s8 %v7891
        %v7893 = vlaneseq
        %v7894 = vshrl.u32 %v7893, 7
        %v7895 = vsub.s32 %v7892, %v7894
        %v7896 = vrot.slane %v7888, %v7895
        %v7898 = vunpack.c.l.s4 1983009808
        %v7899 = vunpack.c.0.s8 %v7898
        %v7900 = vlaneseq
        %v7901 = vshrl.u32 %v7900, 7
        %v7902 = vsub.s32 %v7899, %v7901
        %v7903 = vrot.slane %v7889, %v7902
        %v7904 = vcombine.low %v7752, %v7816
        %v7905 = vcombine.high %v7752, %v7816
        %v7907 = vunpack.c.l.s4 1983009808
        %v7908 = vunpack.c.0.s8 %v7907
        %v7909 = vlaneseq
        %v7910 = vshrl.u32 %v7909, 7
        %v7911 = vsub.s32 %v7908, %v7910
        %v7912 = vrot.slane %v7904, %v7911
        %v7914 = vunpack.c.l.s4 1983009808
        %v7915 = vunpack.c.0.s8 %v7914
        %v7916 = vlaneseq
        %v7917 = vshrl.u32 %v7916, 7
        %v7918 = vsub.s32 %v7915, %v7917
        %v7919 = vrot.slane %v7905, %v7918
        %v7920 = vcombine.low %v7784, %v7848
        %v7921 = vcombine.high %v7784, %v7848
        %v7923 = vunpack.c.l.s4 1983009808
        %v7924 = vunpack.c.0.s8 %v7923
        %v7925 = vlaneseq
        %v7926 = vshrl.u32 %v7925, 7
        %v7927 = vsub.s32 %v7924, %v7926
        %v7928 = vrot.slane %v7920, %v7927
        %v7930 = vunpack.c.l.s4 1983009808
        %v7931 = vunpack.c.0.s8 %v7930
        %v7932 = vlaneseq
        %v7933 = vshrl.u32 %v7932, 7
        %v7934 = vsub.s32 %v7931, %v7933
        %v7935 = vrot.slane %v7921, %v7934
        %v7936 = vcombine.low %v7880, %v7896
        %v7937 = vcombine.high %v7880, %v7896
        %v7939 = vunpack.c.l.s4 1934713408
        %v7940 = vunpack.c.0.s8 %v7939
        %v7941 = vlaneseq
        %v7942 = vshrl.u32 %v7941, 7
        %v7943 = vsub.s32 %v7940, %v7942
        %v7944 = vrot.slane %v7936, %v7943
        %v7946 = vunpack.c.l.s4 1934713408
        %v7947 = vunpack.c.0.s8 %v7946
        %v7948 = vlaneseq
        %v7949 = vshrl.u32 %v7948, 7
        %v7950 = vsub.s32 %v7947, %v7949
        %v7951 = vrot.slane %v7937, %v7950
        %v7952 = vcombine.low %v7887, %v7903
        %v7953 = vcombine.high %v7887, %v7903
        %v7955 = vunpack.c.l.s4 1934713408
        %v7956 = vunpack.c.0.s8 %v7955
        %v7957 = vlaneseq
        %v7958 = vshrl.u32 %v7957, 7
        %v7959 = vsub.s32 %v7956, %v7958
        %v7960 = vrot.slane %v7952, %v7959
        %v7962 = vunpack.c.l.s4 1934713408
        %v7963 = vunpack.c.0.s8 %v7962
        %v7964 = vlaneseq
        %v7965 = vshrl.u32 %v7964, 7
        %v7966 = vsub.s32 %v7963, %v7965
        %v7967 = vrot.slane %v7953, %v7966
        %v7968 = vcombine.low %v7912, %v7928
        %v7969 = vcombine.high %v7912, %v7928
        %v7971 = vunpack.c.l.s4 1934713408
        %v7972 = vunpack.c.0.s8 %v7971
        %v7973 = vlaneseq
        %v7974 = vshrl.u32 %v7973, 7
        %v7975 = vsub.s32 %v7972, %v7974
        %v7976 = vrot.slane %v7968, %v7975
        %v7978 = vunpack.c.l.s4 1934713408
        %v7979 = vunpack.c.0.s8 %v7978
        %v7980 = vlaneseq
        %v7981 = vshrl.u32 %v7980, 7
        %v7982 = vsub.s32 %v7979, %v7981
        %v7983 = vrot.slane %v7969, %v7982
        %v7984 = vcombine.low %v7919, %v7935
        %v7985 = vcombine.high %v7919, %v7935
        %v7987 = vunpack.c.l.s4 1934713408
        %v7988 = vunpack.c.0.s8 %v7987
        %v7989 = vlaneseq
        %v7990 = vshrl.u32 %v7989, 7
        %v7991 = vsub.s32 %v7988, %v7990
        %v7992 = vrot.slane %v7984, %v7991
        %v7994 = vunpack.c.l.s4 1934713408
        %v7995 = vunpack.c.0.s8 %v7994
        %v7996 = vlaneseq
        %v7997 = vshrl.u32 %v7996, 7
        %v7998 = vsub.s32 %v7995, %v7997
        %v7999 = vrot.slane %v7985, %v7998
        %v8000 = vcombine.low %v7944, %v7976
        %v8001 = vcombine.high %v7944, %v7976
        %v8002 = vcombine.low %v7951, %v7983
        %v8003 = vcombine.high %v7951, %v7983
        %v8004 = vcombine.low %v7960, %v7992
        %v8005 = vcombine.high %v7960, %v7992
        %v8006 = vcombine.low %v7967, %v7999
        %v8007 = vcombine.high %v7967, %v7999
        %v8008 = vcombine.low %v7640, %v7704
        %v8009 = vcombine.high %v7640, %v7704
        %v8011 = vunpack.c.l.s4 1983009808
        %v8012 = vunpack.c.0.s8 %v8011
        %v8013 = vlaneseq
        %v8014 = vshrl.u32 %v8013, 7
        %v8015 = vsub.s32 %v8012, %v8014
        %v8016 = vrot.slane %v8008, %v8015
        %v8018 = vunpack.c.l.s4 1983009808
        %v8019 = vunpack.c.0.s8 %v8018
        %v8020 = vlaneseq
        %v8021 = vshrl.u32 %v8020, 7
        %v8022 = vsub.s32 %v8019, %v8021
        %v8023 = vrot.slane %v8009, %v8022
        %v8024 = vcombine.low %v7672, %v7736
        %v8025 = vcombine.high %v7672, %v7736
        %v8027 = vunpack.c.l.s4 1983009808
        %v8028 = vunpack.c.0.s8 %v8027
        %v8029 = vlaneseq
        %v8030 = vshrl.u32 %v8029, 7
        %v8031 = vsub.s32 %v8028, %v8030
        %v8032 = vrot.slane %v8024, %v8031
        %v8034 = vunpack.c.l.s4 1983009808
        %v8035 = vunpack.c.0.s8 %v8034
        %v8036 = vlaneseq
        %v8037 = vshrl.u32 %v8036, 7
        %v8038 = vsub.s32 %v8035, %v8037
        %v8039 = vrot.slane %v8025, %v8038
        %v8040 = vcombine.low %v7768, %v7832
        %v8041 = vcombine.high %v7768, %v7832
        %v8043 = vunpack.c.l.s4 1983009808
        %v8044 = vunpack.c.0.s8 %v8043
        %v8045 = vlaneseq
        %v8046 = vshrl.u32 %v8045, 7
        %v8047 = vsub.s32 %v8044, %v8046
        %v8048 = vrot.slane %v8040, %v8047
        %v8050 = vunpack.c.l.s4 1983009808
        %v8051 = vunpack.c.0.s8 %v8050
        %v8052 = vlaneseq
        %v8053 = vshrl.u32 %v8052, 7
        %v8054 = vsub.s32 %v8051, %v8053
        %v8055 = vrot.slane %v8041, %v8054
        %v8056 = vcombine.low %v7800, %v7864
        %v8057 = vcombine.high %v7800, %v7864
        %v8059 = vunpack.c.l.s4 1983009808
        %v8060 = vunpack.c.0.s8 %v8059
        %v8061 = vlaneseq
        %v8062 = vshrl.u32 %v8061, 7
        %v8063 = vsub.s32 %v8060, %v8062
        %v8064 = vrot.slane %v8056, %v8063
        %v8066 = vunpack.c.l.s4 1983009808
        %v8067 = vunpack.c.0.s8 %v8066
        %v8068 = vlaneseq
        %v8069 = vshrl.u32 %v8068, 7
        %v8070 = vsub.s32 %v8067, %v8069
        %v8071 = vrot.slane %v8057, %v8070
        %v8072 = vcombine.low %v8016, %v8032
        %v8073 = vcombine.high %v8016, %v8032
        %v8075 = vunpack.c.l.s4 1934713408
        %v8076 = vunpack.c.0.s8 %v8075
        %v8077 = vlaneseq
        %v8078 = vshrl.u32 %v8077, 7
        %v8079 = vsub.s32 %v8076, %v8078
        %v8080 = vrot.slane %v8072, %v8079
        %v8082 = vunpack.c.l.s4 1934713408
        %v8083 = vunpack.c.0.s8 %v8082
        %v8084 = vlaneseq
        %v8085 = vshrl.u32 %v8084, 7
        %v8086 = vsub.s32 %v8083, %v8085
        %v8087 = vrot.slane %v8073, %v8086
        %v8088 = vcombine.low %v8023, %v8039
        %v8089 = vcombine.high %v8023, %v8039
        %v8091 = vunpack.c.l.s4 1934713408
        %v8092 = vunpack.c.0.s8 %v8091
        %v8093 = vlaneseq
        %v8094 = vshrl.u32 %v8093, 7
        %v8095 = vsub.s32 %v8092, %v8094
        %v8096 = vrot.slane %v8088, %v8095
        %v8098 = vunpack.c.l.s4 1934713408
        %v8099 = vunpack.c.0.s8 %v8098
        %v8100 = vlaneseq
        %v8101 = vshrl.u32 %v8100, 7
        %v8102 = vsub.s32 %v8099, %v8101
        %v8103 = vrot.slane %v8089, %v8102
        %v8104 = vcombine.low %v8048, %v8064
        %v8105 = vcombine.high %v8048, %v8064
        %v8107 = vunpack.c.l.s4 1934713408
        %v8108 = vunpack.c.0.s8 %v8107
        %v8109 = vlaneseq
        %v8110 = vshrl.u32 %v8109, 7
        %v8111 = vsub.s32 %v8108, %v8110
        %v8112 = vrot.slane %v8104, %v8111
        %v8114 = vunpack.c.l.s4 1934713408
        %v8115 = vunpack.c.0.s8 %v8114
        %v8116 = vlaneseq
        %v8117 = vshrl.u32 %v8116, 7
        %v8118 = vsub.s32 %v8115, %v8117
        %v8119 = vrot.slane %v8105, %v8118
        %v8120 = vcombine.low %v8055, %v8071
        %v8121 = vcombine.high %v8055, %v8071
        %v8123 = vunpack.c.l.s4 1934713408
        %v8124 = vunpack.c.0.s8 %v8123
        %v8125 = vlaneseq
        %v8126 = vshrl.u32 %v8125, 7
        %v8127 = vsub.s32 %v8124, %v8126
        %v8128 = vrot.slane %v8120, %v8127
        %v8130 = vunpack.c.l.s4 1934713408
        %v8131 = vunpack.c.0.s8 %v8130
        %v8132 = vlaneseq
        %v8133 = vshrl.u32 %v8132, 7
        %v8134 = vsub.s32 %v8131, %v8133
        %v8135 = vrot.slane %v8121, %v8134
        %v8136 = vcombine.low %v8080, %v8112
        %v8137 = vcombine.high %v8080, %v8112
        %v8138 = vcombine.low %v8087, %v8119
        %v8139 = vcombine.high %v8087, %v8119
        %v8140 = vcombine.low %v8096, %v8128
        %v8141 = vcombine.high %v8096, %v8128
        %v8142 = vcombine.low %v8103, %v8135
        %v8143 = vcombine.high %v8103, %v8135
        %v8144 = vcombine.low %v7625, %v7689
        %v8145 = vcombine.high %v7625, %v7689
        %v8147 = vunpack.c.l.s4 1983009808
        %v8148 = vunpack.c.0.s8 %v8147
        %v8149 = vlaneseq
        %v8150 = vshrl.u32 %v8149, 7
        %v8151 = vsub.s32 %v8148, %v8150
        %v8152 = vrot.slane %v8144, %v8151
        %v8154 = vunpack.c.l.s4 1983009808
        %v8155 = vunpack.c.0.s8 %v8154
        %v8156 = vlaneseq
        %v8157 = vshrl.u32 %v8156, 7
        %v8158 = vsub.s32 %v8155, %v8157
        %v8159 = vrot.slane %v8145, %v8158
        %v8160 = vcombine.low %v7657, %v7721
        %v8161 = vcombine.high %v7657, %v7721
        %v8163 = vunpack.c.l.s4 1983009808
        %v8164 = vunpack.c.0.s8 %v8163
        %v8165 = vlaneseq
        %v8166 = vshrl.u32 %v8165, 7
        %v8167 = vsub.s32 %v8164, %v8166
        %v8168 = vrot.slane %v8160, %v8167
        %v8170 = vunpack.c.l.s4 1983009808
        %v8171 = vunpack.c.0.s8 %v8170
        %v8172 = vlaneseq
        %v8173 = vshrl.u32 %v8172, 7
        %v8174 = vsub.s32 %v8171, %v8173
        %v8175 = vrot.slane %v8161, %v8174
        %v8176 = vcombine.low %v7753, %v7817
        %v8177 = vcombine.high %v7753, %v7817
        %v8179 = vunpack.c.l.s4 1983009808
        %v8180 = vunpack.c.0.s8 %v8179
        %v8181 = vlaneseq
        %v8182 = vshrl.u32 %v8181, 7
        %v8183 = vsub.s32 %v8180, %v8182
        %v8184 = vrot.slane %v8176, %v8183
        %v8186 = vunpack.c.l.s4 1983009808
        %v8187 = vunpack.c.0.s8 %v8186
        %v8188 = vlaneseq
        %v8189 = vshrl.u32 %v8188, 7
        %v8190 = vsub.s32 %v8187, %v8189
        %v8191 = vrot.slane %v8177, %v8190
        %v8192 = vcombine.low %v7785, %v7849
        %v8193 = vcombine.high %v7785, %v7849
        %v8195 = vunpack.c.l.s4 1983009808
        %v8196 = vunpack.c.0.s8 %v8195
        %v8197 = vlaneseq
        %v8198 = vshrl.u32 %v8197, 7
        %v8199 = vsub.s32 %v8196, %v8198
        %v8200 = vrot.slane %v8192, %v8199
        %v8202 = vunpack.c.l.s4 1983009808
        %v8203 = vunpack.c.0.s8 %v8202
        %v8204 = vlaneseq
        %v8205 = vshrl.u32 %v8204, 7
        %v8206 = vsub.s32 %v8203, %v8205
        %v8207 = vrot.slane %v8193, %v8206
        %v8208 = vcombine.low %v8152, %v8168
        %v8209 = vcombine.high %v8152, %v8168
        %v8211 = vunpack.c.l.s4 1934713408
        %v8212 = vunpack.c.0.s8 %v8211
        %v8213 = vlaneseq
        %v8214 = vshrl.u32 %v8213, 7
        %v8215 = vsub.s32 %v8212, %v8214
        %v8216 = vrot.slane %v8208, %v8215
        %v8218 = vunpack.c.l.s4 1934713408
        %v8219 = vunpack.c.0.s8 %v8218
        %v8220 = vlaneseq
        %v8221 = vshrl.u32 %v8220, 7
        %v8222 = vsub.s32 %v8219, %v8221
        %v8223 = vrot.slane %v8209, %v8222
        %v8224 = vcombine.low %v8159, %v8175
        %v8225 = vcombine.high %v8159, %v8175
        %v8227 = vunpack.c.l.s4 1934713408
        %v8228 = vunpack.c.0.s8 %v8227
        %v8229 = vlaneseq
        %v8230 = vshrl.u32 %v8229, 7
        %v8231 = vsub.s32 %v8228, %v8230
        %v8232 = vrot.slane %v8224, %v8231
        %v8234 = vunpack.c.l.s4 1934713408
        %v8235 = vunpack.c.0.s8 %v8234
        %v8236 = vlaneseq
        %v8237 = vshrl.u32 %v8236, 7
        %v8238 = vsub.s32 %v8235, %v8237
        %v8239 = vrot.slane %v8225, %v8238
        %v8240 = vcombine.low %v8184, %v8200
        %v8241 = vcombine.high %v8184, %v8200
        %v8243 = vunpack.c.l.s4 1934713408
        %v8244 = vunpack.c.0.s8 %v8243
        %v8245 = vlaneseq
        %v8246 = vshrl.u32 %v8245, 7
        %v8247 = vsub.s32 %v8244, %v8246
        %v8248 = vrot.slane %v8240, %v8247
        %v8250 = vunpack.c.l.s4 1934713408
        %v8251 = vunpack.c.0.s8 %v8250
        %v8252 = vlaneseq
        %v8253 = vshrl.u32 %v8252, 7
        %v8254 = vsub.s32 %v8251, %v8253
        %v8255 = vrot.slane %v8241, %v8254
        %v8256 = vcombine.low %v8191, %v8207
        %v8257 = vcombine.high %v8191, %v8207
        %v8259 = vunpack.c.l.s4 1934713408
        %v8260 = vunpack.c.0.s8 %v8259
        %v8261 = vlaneseq
        %v8262 = vshrl.u32 %v8261, 7
        %v8263 = vsub.s32 %v8260, %v8262
        %v8264 = vrot.slane %v8256, %v8263
        %v8266 = vunpack.c.l.s4 1934713408
        %v8267 = vunpack.c.0.s8 %v8266
        %v8268 = vlaneseq
        %v8269 = vshrl.u32 %v8268, 7
        %v8270 = vsub.s32 %v8267, %v8269
        %v8271 = vrot.slane %v8257, %v8270
        %v8272 = vcombine.low %v8216, %v8248
        %v8273 = vcombine.high %v8216, %v8248
        %v8274 = vcombine.low %v8223, %v8255
        %v8275 = vcombine.high %v8223, %v8255
        %v8276 = vcombine.low %v8232, %v8264
        %v8277 = vcombine.high %v8232, %v8264
        %v8278 = vcombine.low %v8239, %v8271
        %v8279 = vcombine.high %v8239, %v8271
        %v8280 = vcombine.low %v7641, %v7705
        %v8281 = vcombine.high %v7641, %v7705
        %v8283 = vunpack.c.l.s4 1983009808
        %v8284 = vunpack.c.0.s8 %v8283
        %v8285 = vlaneseq
        %v8286 = vshrl.u32 %v8285, 7
        %v8287 = vsub.s32 %v8284, %v8286
        %v8288 = vrot.slane %v8280, %v8287
        %v8290 = vunpack.c.l.s4 1983009808
        %v8291 = vunpack.c.0.s8 %v8290
        %v8292 = vlaneseq
        %v8293 = vshrl.u32 %v8292, 7
        %v8294 = vsub.s32 %v8291, %v8293
        %v8295 = vrot.slane %v8281, %v8294
        %v8296 = vcombine.low %v7673, %v7737
        %v8297 = vcombine.high %v7673, %v7737
        %v8299 = vunpack.c.l.s4 1983009808
        %v8300 = vunpack.c.0.s8 %v8299
        %v8301 = vlaneseq
        %v8302 = vshrl.u32 %v8301, 7
        %v8303 = vsub.s32 %v8300, %v8302
        %v8304 = vrot.slane %v8296, %v8303
        %v8306 = vunpack.c.l.s4 1983009808
        %v8307 = vunpack.c.0.s8 %v8306
        %v8308 = vlaneseq
        %v8309 = vshrl.u32 %v8308, 7
        %v8310 = vsub.s32 %v8307, %v8309
        %v8311 = vrot.slane %v8297, %v8310
        %v8312 = vcombine.low %v7769, %v7833
        %v8313 = vcombine.high %v7769, %v7833
        %v8315 = vunpack.c.l.s4 1983009808
        %v8316 = vunpack.c.0.s8 %v8315
        %v8317 = vlaneseq
        %v8318 = vshrl.u32 %v8317, 7
        %v8319 = vsub.s32 %v8316, %v8318
        %v8320 = vrot.slane %v8312, %v8319
        %v8322 = vunpack.c.l.s4 1983009808
        %v8323 = vunpack.c.0.s8 %v8322
        %v8324 = vlaneseq
        %v8325 = vshrl.u32 %v8324, 7
        %v8326 = vsub.s32 %v8323, %v8325
        %v8327 = vrot.slane %v8313, %v8326
        %v8328 = vcombine.low %v7801, %v7865
        %v8329 = vcombine.high %v7801, %v7865
        %v8331 = vunpack.c.l.s4 1983009808
        %v8332 = vunpack.c.0.s8 %v8331
        %v8333 = vlaneseq
        %v8334 = vshrl.u32 %v8333, 7
        %v8335 = vsub.s32 %v8332, %v8334
        %v8336 = vrot.slane %v8328, %v8335
        %v8338 = vunpack.c.l.s4 1983009808
        %v8339 = vunpack.c.0.s8 %v8338
        %v8340 = vlaneseq
        %v8341 = vshrl.u32 %v8340, 7
        %v8342 = vsub.s32 %v8339, %v8341
        %v8343 = vrot.slane %v8329, %v8342
        %v8344 = vcombine.low %v8288, %v8304
        %v8345 = vcombine.high %v8288, %v8304
        %v8347 = vunpack.c.l.s4 1934713408
        %v8348 = vunpack.c.0.s8 %v8347
        %v8349 = vlaneseq
        %v8350 = vshrl.u32 %v8349, 7
        %v8351 = vsub.s32 %v8348, %v8350
        %v8352 = vrot.slane %v8344, %v8351
        %v8354 = vunpack.c.l.s4 1934713408
        %v8355 = vunpack.c.0.s8 %v8354
        %v8356 = vlaneseq
        %v8357 = vshrl.u32 %v8356, 7
        %v8358 = vsub.s32 %v8355, %v8357
        %v8359 = vrot.slane %v8345, %v8358
        %v8360 = vcombine.low %v8295, %v8311
        %v8361 = vcombine.high %v8295, %v8311
        %v8363 = vunpack.c.l.s4 1934713408
        %v8364 = vunpack.c.0.s8 %v8363
        %v8365 = vlaneseq
        %v8366 = vshrl.u32 %v8365, 7
        %v8367 = vsub.s32 %v8364, %v8366
        %v8368 = vrot.slane %v8360, %v8367
        %v8370 = vunpack.c.l.s4 1934713408
        %v8371 = vunpack.c.0.s8 %v8370
        %v8372 = vlaneseq
        %v8373 = vshrl.u32 %v8372, 7
        %v8374 = vsub.s32 %v8371, %v8373
        %v8375 = vrot.slane %v8361, %v8374
        %v8376 = vcombine.low %v8320, %v8336
        %v8377 = vcombine.high %v8320, %v8336
        %v8379 = vunpack.c.l.s4 1934713408
        %v8380 = vunpack.c.0.s8 %v8379
        %v8381 = vlaneseq
        %v8382 = vshrl.u32 %v8381, 7
        %v8383 = vsub.s32 %v8380, %v8382
        %v8384 = vrot.slane %v8376, %v8383
        %v8386 = vunpack.c.l.s4 1934713408
        %v8387 = vunpack.c.0.s8 %v8386
        %v8388 = vlaneseq
        %v8389 = vshrl.u32 %v8388, 7
        %v8390 = vsub.s32 %v8387, %v8389
        %v8391 = vrot.slane %v8377, %v8390
        %v8392 = vcombine.low %v8327, %v8343
        %v8393 = vcombine.high %v8327, %v8343
        %v8395 = vunpack.c.l.s4 1934713408
        %v8396 = vunpack.c.0.s8 %v8395
        %v8397 = vlaneseq
        %v8398 = vshrl.u32 %v8397, 7
        %v8399 = vsub.s32 %v8396, %v8398
        %v8400 = vrot.slane %v8392, %v8399
        %v8402 = vunpack.c.l.s4 1934713408
        %v8403 = vunpack.c.0.s8 %v8402
        %v8404 = vlaneseq
        %v8405 = vshrl.u32 %v8404, 7
        %v8406 = vsub.s32 %v8403, %v8405
        %v8407 = vrot.slane %v8393, %v8406
        %v8408 = vcombine.low %v8352, %v8384
        %v8409 = vcombine.high %v8352, %v8384
        %v8410 = vcombine.low %v8359, %v8391
        %v8411 = vcombine.high %v8359, %v8391
        %v8412 = vcombine.low %v8368, %v8400
        %v8413 = vcombine.high %v8368, %v8400
        %v8414 = vcombine.low %v8375, %v8407
        %v8415 = vcombine.high %v8375, %v8407
        %v8418 = vpack.i.b16 %v8136, %v8000
        %v8420 = vshrl.u32 %v8000, 16
        %v8421 = vshrl.u32 %v8136, 16
        %v8422 = vpack.i.b16 %v8421, %v8420
        %v8426 = vpack.i.b16 %v8137, %v8001
        %v8428 = vshrl.u32 %v8001, 16
        %v8429 = vshrl.u32 %v8137, 16
        %v8430 = vpack.i.b16 %v8429, %v8428
        %v8434 = vpack.i.b16 %v8138, %v8002
        %v8436 = vshrl.u32 %v8002, 16
        %v8437 = vshrl.u32 %v8138, 16
        %v8438 = vpack.i.b16 %v8437, %v8436
        %v8442 = vpack.i.b16 %v8139, %v8003
        %v8444 = vshrl.u32 %v8003, 16
        %v8445 = vshrl.u32 %v8139, 16
        %v8446 = vpack.i.b16 %v8445, %v8444
        %v8450 = vpack.i.b16 %v8140, %v8004
        %v8452 = vshrl.u32 %v8004, 16
        %v8453 = vshrl.u32 %v8140, 16
        %v8454 = vpack.i.b16 %v8453, %v8452
        %v8458 = vpack.i.b16 %v8141, %v8005
        %v8460 = vshrl.u32 %v8005, 16
        %v8461 = vshrl.u32 %v8141, 16
        %v8462 = vpack.i.b16 %v8461, %v8460
        %v8466 = vpack.i.b16 %v8142, %v8006
        %v8468 = vshrl.u32 %v8006, 16
        %v8469 = vshrl.u32 %v8142, 16
        %v8470 = vpack.i.b16 %v8469, %v8468
        %v8474 = vpack.i.b16 %v8143, %v8007
        %v8476 = vshrl.u32 %v8007, 16
        %v8477 = vshrl.u32 %v8143, 16
        %v8478 = vpack.i.b16 %v8477, %v8476
        %v8482 = vpack.i.b16 %v8408, %v8272
        %v8484 = vshrl.u32 %v8272, 16
        %v8485 = vshrl.u32 %v8408, 16
        %v8486 = vpack.i.b16 %v8485, %v8484
        %v8490 = vpack.i.b16 %v8409, %v8273
        %v8492 = vshrl.u32 %v8273, 16
        %v8493 = vshrl.u32 %v8409, 16
        %v8494 = vpack.i.b16 %v8493, %v8492
        %v8498 = vpack.i.b16 %v8410, %v8274
        %v8500 = vshrl.u32 %v8274, 16
        %v8501 = vshrl.u32 %v8410, 16
        %v8502 = vpack.i.b16 %v8501, %v8500
        %v8506 = vpack.i.b16 %v8411, %v8275
        %v8508 = vshrl.u32 %v8275, 16
        %v8509 = vshrl.u32 %v8411, 16
        %v8510 = vpack.i.b16 %v8509, %v8508
        %v8514 = vpack.i.b16 %v8412, %v8276
        %v8516 = vshrl.u32 %v8276, 16
        %v8517 = vshrl.u32 %v8412, 16
        %v8518 = vpack.i.b16 %v8517, %v8516
        %v8522 = vpack.i.b16 %v8413, %v8277
        %v8524 = vshrl.u32 %v8277, 16
        %v8525 = vshrl.u32 %v8413, 16
        %v8526 = vpack.i.b16 %v8525, %v8524
        %v8530 = vpack.i.b16 %v8414, %v8278
        %v8532 = vshrl.u32 %v8278, 16
        %v8533 = vshrl.u32 %v8414, 16
        %v8534 = vpack.i.b16 %v8533, %v8532
        %v8538 = vpack.i.b16 %v8415, %v8279
        %v8540 = vshrl.u32 %v8279, 16
        %v8541 = vshrl.u32 %v8415, 16
        %v8542 = vpack.i.b16 %v8541, %v8540
        %8544 = vxpose.xlu0.c.b16.start [1/8] %v8418, 128
        %8545 = vxpose.xlu0.c.b16.cont [2/8] 0, 128
        %8546 = vxpose.xlu0.c.b16.cont [3/8] 0, 128
        %8547 = vxpose.xlu0.c.b16.cont [4/8] 0, 128
        %8548 = vxpose.xlu0.c.b16.cont [5/8] 0, 128
        %8549 = vxpose.xlu0.c.b16.cont [6/8] 0, 128
        %8550 = vxpose.xlu0.c.b16.cont [7/8] 0, 128
        %8551 = vxpose.xlu0.c.b16.end [8/8] 0, 128
        %v8552 = vpop.trf.xlu0
        %v8553 = vpop.trf.xlu0
        %v8554 = vpop.trf.xlu0
        %v8555 = vpop.trf.xlu0
        %v8556 = vpop.trf.xlu0
        %v8557 = vpop.trf.xlu0
        %v8558 = vpop.trf.xlu0
        %v8559 = vpop.trf.xlu0
        %8560 = vxpose.xlu0.c.b16.start [1/8] %v8422, 128
        %8561 = vxpose.xlu0.c.b16.cont [2/8] 0, 128
        %8562 = vxpose.xlu0.c.b16.cont [3/8] 0, 128
        %8563 = vxpose.xlu0.c.b16.cont [4/8] 0, 128
        %8564 = vxpose.xlu0.c.b16.cont [5/8] 0, 128
        %8565 = vxpose.xlu0.c.b16.cont [6/8] 0, 128
        %8566 = vxpose.xlu0.c.b16.cont [7/8] 0, 128
        %8567 = vxpose.xlu0.c.b16.end [8/8] 0, 128
        %v8568 = vpop.trf.xlu0
        %v8569 = vpop.trf.xlu0
        %v8570 = vpop.trf.xlu0
        %v8571 = vpop.trf.xlu0
        %v8572 = vpop.trf.xlu0
        %v8573 = vpop.trf.xlu0
        %v8574 = vpop.trf.xlu0
        %v8575 = vpop.trf.xlu0
        %8576 = vxpose.xlu0.c.b16.start [1/8] %v8426, 128
        %8577 = vxpose.xlu0.c.b16.cont [2/8] 0, 128
        %8578 = vxpose.xlu0.c.b16.cont [3/8] 0, 128
        %8579 = vxpose.xlu0.c.b16.cont [4/8] 0, 128
        %8580 = vxpose.xlu0.c.b16.cont [5/8] 0, 128
        %8581 = vxpose.xlu0.c.b16.cont [6/8] 0, 128
        %8582 = vxpose.xlu0.c.b16.cont [7/8] 0, 128
        %8583 = vxpose.xlu0.c.b16.end [8/8] 0, 128
        %v8584 = vpop.trf.xlu0
        %v8585 = vpop.trf.xlu0
        %v8586 = vpop.trf.xlu0
        %v8587 = vpop.trf.xlu0
        %v8588 = vpop.trf.xlu0
        %v8589 = vpop.trf.xlu0
        %v8590 = vpop.trf.xlu0
        %v8591 = vpop.trf.xlu0
        %8592 = vxpose.xlu0.c.b16.start [1/8] %v8430, 128
        %8593 = vxpose.xlu0.c.b16.cont [2/8] 0, 128
        %8594 = vxpose.xlu0.c.b16.cont [3/8] 0, 128
        %8595 = vxpose.xlu0.c.b16.cont [4/8] 0, 128
        %8596 = vxpose.xlu0.c.b16.cont [5/8] 0, 128
        %8597 = vxpose.xlu0.c.b16.cont [6/8] 0, 128
        %8598 = vxpose.xlu0.c.b16.cont [7/8] 0, 128
        %8599 = vxpose.xlu0.c.b16.end [8/8] 0, 128
        %v8600 = vpop.trf.xlu0
        %v8601 = vpop.trf.xlu0
        %v8602 = vpop.trf.xlu0
        %v8603 = vpop.trf.xlu0
        %v8604 = vpop.trf.xlu0
        %v8605 = vpop.trf.xlu0
        %v8606 = vpop.trf.xlu0
        %v8607 = vpop.trf.xlu0
        %8608 = vxpose.xlu0.c.b16.start [1/8] %v8434, 128
        %8609 = vxpose.xlu0.c.b16.cont [2/8] 0, 128
        %8610 = vxpose.xlu0.c.b16.cont [3/8] 0, 128
        %8611 = vxpose.xlu0.c.b16.cont [4/8] 0, 128
        %8612 = vxpose.xlu0.c.b16.cont [5/8] 0, 128
        %8613 = vxpose.xlu0.c.b16.cont [6/8] 0, 128
        %8614 = vxpose.xlu0.c.b16.cont [7/8] 0, 128
        %8615 = vxpose.xlu0.c.b16.end [8/8] 0, 128
        %v8616 = vpop.trf.xlu0
        %v8617 = vpop.trf.xlu0
        %v8618 = vpop.trf.xlu0
        %v8619 = vpop.trf.xlu0
        %v8620 = vpop.trf.xlu0
        %v8621 = vpop.trf.xlu0
        %v8622 = vpop.trf.xlu0
        %v8623 = vpop.trf.xlu0
        %8624 = vxpose.xlu0.c.b16.start [1/8] %v8438, 128
        %8625 = vxpose.xlu0.c.b16.cont [2/8] 0, 128
        %8626 = vxpose.xlu0.c.b16.cont [3/8] 0, 128
        %8627 = vxpose.xlu0.c.b16.cont [4/8] 0, 128
        %8628 = vxpose.xlu0.c.b16.cont [5/8] 0, 128
        %8629 = vxpose.xlu0.c.b16.cont [6/8] 0, 128
        %8630 = vxpose.xlu0.c.b16.cont [7/8] 0, 128
        %8631 = vxpose.xlu0.c.b16.end [8/8] 0, 128
        %v8632 = vpop.trf.xlu0
        %v8633 = vpop.trf.xlu0
        %v8634 = vpop.trf.xlu0
        %v8635 = vpop.trf.xlu0
        %v8636 = vpop.trf.xlu0
        %v8637 = vpop.trf.xlu0
        %v8638 = vpop.trf.xlu0
        %v8639 = vpop.trf.xlu0
        %8640 = vxpose.xlu0.c.b16.start [1/8] %v8442, 128
        %8641 = vxpose.xlu0.c.b16.cont [2/8] 0, 128
        %8642 = vxpose.xlu0.c.b16.cont [3/8] 0, 128
        %8643 = vxpose.xlu0.c.b16.cont [4/8] 0, 128
        %8644 = vxpose.xlu0.c.b16.cont [5/8] 0, 128
        %8645 = vxpose.xlu0.c.b16.cont [6/8] 0, 128
        %8646 = vxpose.xlu0.c.b16.cont [7/8] 0, 128
        %8647 = vxpose.xlu0.c.b16.end [8/8] 0, 128
        %v8648 = vpop.trf.xlu0
        %v8649 = vpop.trf.xlu0
        %v8650 = vpop.trf.xlu0
        %v8651 = vpop.trf.xlu0
        %v8652 = vpop.trf.xlu0
        %v8653 = vpop.trf.xlu0
        %v8654 = vpop.trf.xlu0
        %v8655 = vpop.trf.xlu0
        %8656 = vxpose.xlu0.c.b16.start [1/8] %v8446, 128
        %8657 = vxpose.xlu0.c.b16.cont [2/8] 0, 128
        %8658 = vxpose.xlu0.c.b16.cont [3/8] 0, 128
        %8659 = vxpose.xlu0.c.b16.cont [4/8] 0, 128
        %8660 = vxpose.xlu0.c.b16.cont [5/8] 0, 128
        %8661 = vxpose.xlu0.c.b16.cont [6/8] 0, 128
        %8662 = vxpose.xlu0.c.b16.cont [7/8] 0, 128
        %8663 = vxpose.xlu0.c.b16.end [8/8] 0, 128
        %v8664 = vpop.trf.xlu0
        %v8665 = vpop.trf.xlu0
        %v8666 = vpop.trf.xlu0
        %v8667 = vpop.trf.xlu0
        %v8668 = vpop.trf.xlu0
        %v8669 = vpop.trf.xlu0
        %v8670 = vpop.trf.xlu0
        %v8671 = vpop.trf.xlu0
        %8672 = vxpose.xlu0.c.b16.start [1/8] %v8450, 128
        %8673 = vxpose.xlu0.c.b16.cont [2/8] 0, 128
        %8674 = vxpose.xlu0.c.b16.cont [3/8] 0, 128
        %8675 = vxpose.xlu0.c.b16.cont [4/8] 0, 128
        %8676 = vxpose.xlu0.c.b16.cont [5/8] 0, 128
        %8677 = vxpose.xlu0.c.b16.cont [6/8] 0, 128
        %8678 = vxpose.xlu0.c.b16.cont [7/8] 0, 128
        %8679 = vxpose.xlu0.c.b16.end [8/8] 0, 128
        %v8680 = vpop.trf.xlu0
        %v8681 = vpop.trf.xlu0
        %v8682 = vpop.trf.xlu0
        %v8683 = vpop.trf.xlu0
        %v8684 = vpop.trf.xlu0
        %v8685 = vpop.trf.xlu0
        %v8686 = vpop.trf.xlu0
        %v8687 = vpop.trf.xlu0
        %8688 = vxpose.xlu0.c.b16.start [1/8] %v8454, 128
        %8689 = vxpose.xlu0.c.b16.cont [2/8] 0, 128
        %8690 = vxpose.xlu0.c.b16.cont [3/8] 0, 128
        %8691 = vxpose.xlu0.c.b16.cont [4/8] 0, 128
        %8692 = vxpose.xlu0.c.b16.cont [5/8] 0, 128
        %8693 = vxpose.xlu0.c.b16.cont [6/8] 0, 128
        %8694 = vxpose.xlu0.c.b16.cont [7/8] 0, 128
        %8695 = vxpose.xlu0.c.b16.end [8/8] 0, 128
        %v8696 = vpop.trf.xlu0
        %v8697 = vpop.trf.xlu0
        %v8698 = vpop.trf.xlu0
        %v8699 = vpop.trf.xlu0
        %v8700 = vpop.trf.xlu0
        %v8701 = vpop.trf.xlu0
        %v8702 = vpop.trf.xlu0
        %v8703 = vpop.trf.xlu0
        %8704 = vxpose.xlu0.c.b16.start [1/8] %v8458, 128
        %8705 = vxpose.xlu0.c.b16.cont [2/8] 0, 128
        %8706 = vxpose.xlu0.c.b16.cont [3/8] 0, 128
        %8707 = vxpose.xlu0.c.b16.cont [4/8] 0, 128
        %8708 = vxpose.xlu0.c.b16.cont [5/8] 0, 128
        %8709 = vxpose.xlu0.c.b16.cont [6/8] 0, 128
        %8710 = vxpose.xlu0.c.b16.cont [7/8] 0, 128
        %8711 = vxpose.xlu0.c.b16.end [8/8] 0, 128
        %v8712 = vpop.trf.xlu0
        %v8713 = vpop.trf.xlu0
        %v8714 = vpop.trf.xlu0
        %v8715 = vpop.trf.xlu0
        %v8716 = vpop.trf.xlu0
        %v8717 = vpop.trf.xlu0
        %v8718 = vpop.trf.xlu0
        %v8719 = vpop.trf.xlu0
        %8720 = vxpose.xlu0.c.b16.start [1/8] %v8462, 128
        %8721 = vxpose.xlu0.c.b16.cont [2/8] 0, 128
        %8722 = vxpose.xlu0.c.b16.cont [3/8] 0, 128
        %8723 = vxpose.xlu0.c.b16.cont [4/8] 0, 128
        %8724 = vxpose.xlu0.c.b16.cont [5/8] 0, 128
        %8725 = vxpose.xlu0.c.b16.cont [6/8] 0, 128
        %8726 = vxpose.xlu0.c.b16.cont [7/8] 0, 128
        %8727 = vxpose.xlu0.c.b16.end [8/8] 0, 128
        %v8728 = vpop.trf.xlu0
        %v8729 = vpop.trf.xlu0
        %v8730 = vpop.trf.xlu0
        %v8731 = vpop.trf.xlu0
        %v8732 = vpop.trf.xlu0
        %v8733 = vpop.trf.xlu0
        %v8734 = vpop.trf.xlu0
        %v8735 = vpop.trf.xlu0
        %8736 = vxpose.xlu0.c.b16.start [1/8] %v8466, 128
        %8737 = vxpose.xlu0.c.b16.cont [2/8] 0, 128
        %8738 = vxpose.xlu0.c.b16.cont [3/8] 0, 128
        %8739 = vxpose.xlu0.c.b16.cont [4/8] 0, 128
        %8740 = vxpose.xlu0.c.b16.cont [5/8] 0, 128
        %8741 = vxpose.xlu0.c.b16.cont [6/8] 0, 128
        %8742 = vxpose.xlu0.c.b16.cont [7/8] 0, 128
        %8743 = vxpose.xlu0.c.b16.end [8/8] 0, 128
        %v8744 = vpop.trf.xlu0
        %v8745 = vpop.trf.xlu0
        %v8746 = vpop.trf.xlu0
        %v8747 = vpop.trf.xlu0
        %v8748 = vpop.trf.xlu0
        %v8749 = vpop.trf.xlu0
        %v8750 = vpop.trf.xlu0
        %v8751 = vpop.trf.xlu0
        %8752 = vxpose.xlu0.c.b16.start [1/8] %v8470, 128
        %8753 = vxpose.xlu0.c.b16.cont [2/8] 0, 128
        %8754 = vxpose.xlu0.c.b16.cont [3/8] 0, 128
        %8755 = vxpose.xlu0.c.b16.cont [4/8] 0, 128
        %8756 = vxpose.xlu0.c.b16.cont [5/8] 0, 128
        %8757 = vxpose.xlu0.c.b16.cont [6/8] 0, 128
        %8758 = vxpose.xlu0.c.b16.cont [7/8] 0, 128
        %8759 = vxpose.xlu0.c.b16.end [8/8] 0, 128
        %v8760 = vpop.trf.xlu0
        %v8761 = vpop.trf.xlu0
        %v8762 = vpop.trf.xlu0
        %v8763 = vpop.trf.xlu0
        %v8764 = vpop.trf.xlu0
        %v8765 = vpop.trf.xlu0
        %v8766 = vpop.trf.xlu0
        %v8767 = vpop.trf.xlu0
        %8768 = vxpose.xlu0.c.b16.start [1/8] %v8474, 128
        %8769 = vxpose.xlu0.c.b16.cont [2/8] 0, 128
        %8770 = vxpose.xlu0.c.b16.cont [3/8] 0, 128
        %8771 = vxpose.xlu0.c.b16.cont [4/8] 0, 128
        %8772 = vxpose.xlu0.c.b16.cont [5/8] 0, 128
        %8773 = vxpose.xlu0.c.b16.cont [6/8] 0, 128
        %8774 = vxpose.xlu0.c.b16.cont [7/8] 0, 128
        %8775 = vxpose.xlu0.c.b16.end [8/8] 0, 128
        %v8776 = vpop.trf.xlu0
        %v8777 = vpop.trf.xlu0
        %v8778 = vpop.trf.xlu0
        %v8779 = vpop.trf.xlu0
        %v8780 = vpop.trf.xlu0
        %v8781 = vpop.trf.xlu0
        %v8782 = vpop.trf.xlu0
        %v8783 = vpop.trf.xlu0
        %8784 = vxpose.xlu0.c.b16.start [1/8] %v8478, 128
        %8785 = vxpose.xlu0.c.b16.cont [2/8] 0, 128
        %8786 = vxpose.xlu0.c.b16.cont [3/8] 0, 128
        %8787 = vxpose.xlu0.c.b16.cont [4/8] 0, 128
        %8788 = vxpose.xlu0.c.b16.cont [5/8] 0, 128
        %8789 = vxpose.xlu0.c.b16.cont [6/8] 0, 128
        %8790 = vxpose.xlu0.c.b16.cont [7/8] 0, 128
        %8791 = vxpose.xlu0.c.b16.end [8/8] 0, 128
        %v8792 = vpop.trf.xlu0
        %v8793 = vpop.trf.xlu0
        %v8794 = vpop.trf.xlu0
        %v8795 = vpop.trf.xlu0
        %v8796 = vpop.trf.xlu0
        %v8797 = vpop.trf.xlu0
        %v8798 = vpop.trf.xlu0
        %v8799 = vpop.trf.xlu0
        %8800 = vxpose.xlu0.c.b16.start [1/8] %v8482, 128
        %8801 = vxpose.xlu0.c.b16.cont [2/8] 0, 128
        %8802 = vxpose.xlu0.c.b16.cont [3/8] 0, 128
        %8803 = vxpose.xlu0.c.b16.cont [4/8] 0, 128
        %8804 = vxpose.xlu0.c.b16.cont [5/8] 0, 128
        %8805 = vxpose.xlu0.c.b16.cont [6/8] 0, 128
        %8806 = vxpose.xlu0.c.b16.cont [7/8] 0, 128
        %8807 = vxpose.xlu0.c.b16.end [8/8] 0, 128
        %v8808 = vpop.trf.xlu0
        %v8809 = vpop.trf.xlu0
        %v8810 = vpop.trf.xlu0
        %v8811 = vpop.trf.xlu0
        %v8812 = vpop.trf.xlu0
        %v8813 = vpop.trf.xlu0
        %v8814 = vpop.trf.xlu0
        %v8815 = vpop.trf.xlu0
        %8816 = vxpose.xlu0.c.b16.start [1/8] %v8486, 128
        %8817 = vxpose.xlu0.c.b16.cont [2/8] 0, 128
        %8818 = vxpose.xlu0.c.b16.cont [3/8] 0, 128
        %8819 = vxpose.xlu0.c.b16.cont [4/8] 0, 128
        %8820 = vxpose.xlu0.c.b16.cont [5/8] 0, 128
        %8821 = vxpose.xlu0.c.b16.cont [6/8] 0, 128
        %8822 = vxpose.xlu0.c.b16.cont [7/8] 0, 128
        %8823 = vxpose.xlu0.c.b16.end [8/8] 0, 128
        %v8824 = vpop.trf.xlu0
        %v8825 = vpop.trf.xlu0
        %v8826 = vpop.trf.xlu0
        %v8827 = vpop.trf.xlu0
        %v8828 = vpop.trf.xlu0
        %v8829 = vpop.trf.xlu0
        %v8830 = vpop.trf.xlu0
        %v8831 = vpop.trf.xlu0
        %8832 = vxpose.xlu0.c.b16.start [1/8] %v8490, 128
        %8833 = vxpose.xlu0.c.b16.cont [2/8] 0, 128
        %8834 = vxpose.xlu0.c.b16.cont [3/8] 0, 128
        %8835 = vxpose.xlu0.c.b16.cont [4/8] 0, 128
        %8836 = vxpose.xlu0.c.b16.cont [5/8] 0, 128
        %8837 = vxpose.xlu0.c.b16.cont [6/8] 0, 128
        %8838 = vxpose.xlu0.c.b16.cont [7/8] 0, 128
        %8839 = vxpose.xlu0.c.b16.end [8/8] 0, 128
        %v8840 = vpop.trf.xlu0
        %v8841 = vpop.trf.xlu0
        %v8842 = vpop.trf.xlu0
        %v8843 = vpop.trf.xlu0
        %v8844 = vpop.trf.xlu0
        %v8845 = vpop.trf.xlu0
        %v8846 = vpop.trf.xlu0
        %v8847 = vpop.trf.xlu0
        %8848 = vxpose.xlu0.c.b16.start [1/8] %v8494, 128
        %8849 = vxpose.xlu0.c.b16.cont [2/8] 0, 128
        %8850 = vxpose.xlu0.c.b16.cont [3/8] 0, 128
        %8851 = vxpose.xlu0.c.b16.cont [4/8] 0, 128
        %8852 = vxpose.xlu0.c.b16.cont [5/8] 0, 128
        %8853 = vxpose.xlu0.c.b16.cont [6/8] 0, 128
        %8854 = vxpose.xlu0.c.b16.cont [7/8] 0, 128
        %8855 = vxpose.xlu0.c.b16.end [8/8] 0, 128
        %v8856 = vpop.trf.xlu0
        %v8857 = vpop.trf.xlu0
        %v8858 = vpop.trf.xlu0
        %v8859 = vpop.trf.xlu0
        %v8860 = vpop.trf.xlu0
        %v8861 = vpop.trf.xlu0
        %v8862 = vpop.trf.xlu0
        %v8863 = vpop.trf.xlu0
        %8864 = vxpose.xlu0.c.b16.start [1/8] %v8498, 128
        %8865 = vxpose.xlu0.c.b16.cont [2/8] 0, 128
        %8866 = vxpose.xlu0.c.b16.cont [3/8] 0, 128
        %8867 = vxpose.xlu0.c.b16.cont [4/8] 0, 128
        %8868 = vxpose.xlu0.c.b16.cont [5/8] 0, 128
        %8869 = vxpose.xlu0.c.b16.cont [6/8] 0, 128
        %8870 = vxpose.xlu0.c.b16.cont [7/8] 0, 128
        %8871 = vxpose.xlu0.c.b16.end [8/8] 0, 128
        %v8872 = vpop.trf.xlu0
        %v8873 = vpop.trf.xlu0
        %v8874 = vpop.trf.xlu0
        %v8875 = vpop.trf.xlu0
        %v8876 = vpop.trf.xlu0
        %v8877 = vpop.trf.xlu0
        %v8878 = vpop.trf.xlu0
        %v8879 = vpop.trf.xlu0
        %8880 = vxpose.xlu0.c.b16.start [1/8] %v8502, 128
        %8881 = vxpose.xlu0.c.b16.cont [2/8] 0, 128
        %8882 = vxpose.xlu0.c.b16.cont [3/8] 0, 128
        %8883 = vxpose.xlu0.c.b16.cont [4/8] 0, 128
        %8884 = vxpose.xlu0.c.b16.cont [5/8] 0, 128
        %8885 = vxpose.xlu0.c.b16.cont [6/8] 0, 128
        %8886 = vxpose.xlu0.c.b16.cont [7/8] 0, 128
        %8887 = vxpose.xlu0.c.b16.end [8/8] 0, 128
        %v8888 = vpop.trf.xlu0
        %v8889 = vpop.trf.xlu0
        %v8890 = vpop.trf.xlu0
        %v8891 = vpop.trf.xlu0
        %v8892 = vpop.trf.xlu0
        %v8893 = vpop.trf.xlu0
        %v8894 = vpop.trf.xlu0
        %v8895 = vpop.trf.xlu0
        %8896 = vxpose.xlu0.c.b16.start [1/8] %v8506, 128
        %8897 = vxpose.xlu0.c.b16.cont [2/8] 0, 128
        %8898 = vxpose.xlu0.c.b16.cont [3/8] 0, 128
        %8899 = vxpose.xlu0.c.b16.cont [4/8] 0, 128
        %8900 = vxpose.xlu0.c.b16.cont [5/8] 0, 128
        %8901 = vxpose.xlu0.c.b16.cont [6/8] 0, 128
        %8902 = vxpose.xlu0.c.b16.cont [7/8] 0, 128
        %8903 = vxpose.xlu0.c.b16.end [8/8] 0, 128
        %v8904 = vpop.trf.xlu0
        %v8905 = vpop.trf.xlu0
        %v8906 = vpop.trf.xlu0
        %v8907 = vpop.trf.xlu0
        %v8908 = vpop.trf.xlu0
        %v8909 = vpop.trf.xlu0
        %v8910 = vpop.trf.xlu0
        %v8911 = vpop.trf.xlu0
        %8912 = vxpose.xlu0.c.b16.start [1/8] %v8510, 128
        %8913 = vxpose.xlu0.c.b16.cont [2/8] 0, 128
        %8914 = vxpose.xlu0.c.b16.cont [3/8] 0, 128
        %8915 = vxpose.xlu0.c.b16.cont [4/8] 0, 128
        %8916 = vxpose.xlu0.c.b16.cont [5/8] 0, 128
        %8917 = vxpose.xlu0.c.b16.cont [6/8] 0, 128
        %8918 = vxpose.xlu0.c.b16.cont [7/8] 0, 128
        %8919 = vxpose.xlu0.c.b16.end [8/8] 0, 128
        %v8920 = vpop.trf.xlu0
        %v8921 = vpop.trf.xlu0
        %v8922 = vpop.trf.xlu0
        %v8923 = vpop.trf.xlu0
        %v8924 = vpop.trf.xlu0
        %v8925 = vpop.trf.xlu0
        %v8926 = vpop.trf.xlu0
        %v8927 = vpop.trf.xlu0
        %8928 = vxpose.xlu0.c.b16.start [1/8] %v8514, 128
        %8929 = vxpose.xlu0.c.b16.cont [2/8] 0, 128
        %8930 = vxpose.xlu0.c.b16.cont [3/8] 0, 128
        %8931 = vxpose.xlu0.c.b16.cont [4/8] 0, 128
        %8932 = vxpose.xlu0.c.b16.cont [5/8] 0, 128
        %8933 = vxpose.xlu0.c.b16.cont [6/8] 0, 128
        %8934 = vxpose.xlu0.c.b16.cont [7/8] 0, 128
        %8935 = vxpose.xlu0.c.b16.end [8/8] 0, 128
        %v8936 = vpop.trf.xlu0
        %v8937 = vpop.trf.xlu0
        %v8938 = vpop.trf.xlu0
        %v8939 = vpop.trf.xlu0
        %v8940 = vpop.trf.xlu0
        %v8941 = vpop.trf.xlu0
        %v8942 = vpop.trf.xlu0
        %v8943 = vpop.trf.xlu0
        %8944 = vxpose.xlu0.c.b16.start [1/8] %v8518, 128
        %8945 = vxpose.xlu0.c.b16.cont [2/8] 0, 128
        %8946 = vxpose.xlu0.c.b16.cont [3/8] 0, 128
        %8947 = vxpose.xlu0.c.b16.cont [4/8] 0, 128
        %8948 = vxpose.xlu0.c.b16.cont [5/8] 0, 128
        %8949 = vxpose.xlu0.c.b16.cont [6/8] 0, 128
        %8950 = vxpose.xlu0.c.b16.cont [7/8] 0, 128
        %8951 = vxpose.xlu0.c.b16.end [8/8] 0, 128
        %v8952 = vpop.trf.xlu0
        %v8953 = vpop.trf.xlu0
        %v8954 = vpop.trf.xlu0
        %v8955 = vpop.trf.xlu0
        %v8956 = vpop.trf.xlu0
        %v8957 = vpop.trf.xlu0
        %v8958 = vpop.trf.xlu0
        %v8959 = vpop.trf.xlu0
        %8960 = vxpose.xlu0.c.b16.start [1/8] %v8522, 128
        %8961 = vxpose.xlu0.c.b16.cont [2/8] 0, 128
        %8962 = vxpose.xlu0.c.b16.cont [3/8] 0, 128
        %8963 = vxpose.xlu0.c.b16.cont [4/8] 0, 128
        %8964 = vxpose.xlu0.c.b16.cont [5/8] 0, 128
        %8965 = vxpose.xlu0.c.b16.cont [6/8] 0, 128
        %8966 = vxpose.xlu0.c.b16.cont [7/8] 0, 128
        %8967 = vxpose.xlu0.c.b16.end [8/8] 0, 128
        %v8968 = vpop.trf.xlu0
        %v8969 = vpop.trf.xlu0
        %v8970 = vpop.trf.xlu0
        %v8971 = vpop.trf.xlu0
        %v8972 = vpop.trf.xlu0
        %v8973 = vpop.trf.xlu0
        %v8974 = vpop.trf.xlu0
        %v8975 = vpop.trf.xlu0
        %8976 = vxpose.xlu0.c.b16.start [1/8] %v8526, 128
        %8977 = vxpose.xlu0.c.b16.cont [2/8] 0, 128
        %8978 = vxpose.xlu0.c.b16.cont [3/8] 0, 128
        %8979 = vxpose.xlu0.c.b16.cont [4/8] 0, 128
        %8980 = vxpose.xlu0.c.b16.cont [5/8] 0, 128
        %8981 = vxpose.xlu0.c.b16.cont [6/8] 0, 128
        %8982 = vxpose.xlu0.c.b16.cont [7/8] 0, 128
        %8983 = vxpose.xlu0.c.b16.end [8/8] 0, 128
        %v8984 = vpop.trf.xlu0
        %v8985 = vpop.trf.xlu0
        %v8986 = vpop.trf.xlu0
        %v8987 = vpop.trf.xlu0
        %v8988 = vpop.trf.xlu0
        %v8989 = vpop.trf.xlu0
        %v8990 = vpop.trf.xlu0
        %v8991 = vpop.trf.xlu0
        %8992 = vxpose.xlu0.c.b16.start [1/8] %v8530, 128
        %8993 = vxpose.xlu0.c.b16.cont [2/8] 0, 128
        %8994 = vxpose.xlu0.c.b16.cont [3/8] 0, 128
        %8995 = vxpose.xlu0.c.b16.cont [4/8] 0, 128
        %8996 = vxpose.xlu0.c.b16.cont [5/8] 0, 128
        %8997 = vxpose.xlu0.c.b16.cont [6/8] 0, 128
        %8998 = vxpose.xlu0.c.b16.cont [7/8] 0, 128
        %8999 = vxpose.xlu0.c.b16.end [8/8] 0, 128
        %v9000 = vpop.trf.xlu0
        %v9001 = vpop.trf.xlu0
        %v9002 = vpop.trf.xlu0
        %v9003 = vpop.trf.xlu0
        %v9004 = vpop.trf.xlu0
        %v9005 = vpop.trf.xlu0
        %v9006 = vpop.trf.xlu0
        %v9007 = vpop.trf.xlu0
        %9008 = vxpose.xlu0.c.b16.start [1/8] %v8534, 128
        %9009 = vxpose.xlu0.c.b16.cont [2/8] 0, 128
        %9010 = vxpose.xlu0.c.b16.cont [3/8] 0, 128
        %9011 = vxpose.xlu0.c.b16.cont [4/8] 0, 128
        %9012 = vxpose.xlu0.c.b16.cont [5/8] 0, 128
        %9013 = vxpose.xlu0.c.b16.cont [6/8] 0, 128
        %9014 = vxpose.xlu0.c.b16.cont [7/8] 0, 128
        %9015 = vxpose.xlu0.c.b16.end [8/8] 0, 128
        %v9016 = vpop.trf.xlu0
        %v9017 = vpop.trf.xlu0
        %v9018 = vpop.trf.xlu0
        %v9019 = vpop.trf.xlu0
        %v9020 = vpop.trf.xlu0
        %v9021 = vpop.trf.xlu0
        %v9022 = vpop.trf.xlu0
        %v9023 = vpop.trf.xlu0
        %9024 = vxpose.xlu0.c.b16.start [1/8] %v8538, 128
        %9025 = vxpose.xlu0.c.b16.cont [2/8] 0, 128
        %9026 = vxpose.xlu0.c.b16.cont [3/8] 0, 128
        %9027 = vxpose.xlu0.c.b16.cont [4/8] 0, 128
        %9028 = vxpose.xlu0.c.b16.cont [5/8] 0, 128
        %9029 = vxpose.xlu0.c.b16.cont [6/8] 0, 128
        %9030 = vxpose.xlu0.c.b16.cont [7/8] 0, 128
        %9031 = vxpose.xlu0.c.b16.end [8/8] 0, 128
        %v9032 = vpop.trf.xlu0
        %v9033 = vpop.trf.xlu0
        %v9034 = vpop.trf.xlu0
        %v9035 = vpop.trf.xlu0
        %v9036 = vpop.trf.xlu0
        %v9037 = vpop.trf.xlu0
        %v9038 = vpop.trf.xlu0
        %v9039 = vpop.trf.xlu0
        %9040 = vxpose.xlu0.c.b16.start [1/8] %v8542, 128
        %9041 = vxpose.xlu0.c.b16.cont [2/8] 0, 128
        %9042 = vxpose.xlu0.c.b16.cont [3/8] 0, 128
        %9043 = vxpose.xlu0.c.b16.cont [4/8] 0, 128
        %9044 = vxpose.xlu0.c.b16.cont [5/8] 0, 128
        %9045 = vxpose.xlu0.c.b16.cont [6/8] 0, 128
        %9046 = vxpose.xlu0.c.b16.cont [7/8] 0, 128
        %9047 = vxpose.xlu0.c.b16.end [8/8] 0, 128
        %v9048 = vpop.trf.xlu0
        %v9049 = vpop.trf.xlu0
        %v9050 = vpop.trf.xlu0
        %v9051 = vpop.trf.xlu0
        %v9052 = vpop.trf.xlu0
        %v9053 = vpop.trf.xlu0
        %v9054 = vpop.trf.xlu0
        %v9055 = vpop.trf.xlu0
        %v9056 = vcombine.low %v8552, %v8616
        %v9058 = vunpack.c.l.s4 1983009808
        %v9059 = vunpack.c.0.s8 %v9058
        %v9060 = vlaneseq
        %v9061 = vshrl.u32 %v9060, 7
        %v9062 = vsub.s32 %v9059, %v9061
        %v9063 = vrot.slane %v9056, %v9062
        %v9064 = vcombine.low %v8584, %v8648
        %v9066 = vunpack.c.l.s4 1983009808
        %v9067 = vunpack.c.0.s8 %v9066
        %v9068 = vlaneseq
        %v9069 = vshrl.u32 %v9068, 7
        %v9070 = vsub.s32 %v9067, %v9069
        %v9071 = vrot.slane %v9064, %v9070
        %v9072 = vcombine.low %v8680, %v8744
        %v9074 = vunpack.c.l.s4 1983009808
        %v9075 = vunpack.c.0.s8 %v9074
        %v9076 = vlaneseq
        %v9077 = vshrl.u32 %v9076, 7
        %v9078 = vsub.s32 %v9075, %v9077
        %v9079 = vrot.slane %v9072, %v9078
        %v9080 = vcombine.low %v8712, %v8776
        %v9082 = vunpack.c.l.s4 1983009808
        %v9083 = vunpack.c.0.s8 %v9082
        %v9084 = vlaneseq
        %v9085 = vshrl.u32 %v9084, 7
        %v9086 = vsub.s32 %v9083, %v9085
        %v9087 = vrot.slane %v9080, %v9086
        %v9088 = vcombine.low %v9063, %v9071
        %v9090 = vunpack.c.l.s4 1934713408
        %v9091 = vunpack.c.0.s8 %v9090
        %v9092 = vlaneseq
        %v9093 = vshrl.u32 %v9092, 7
        %v9094 = vsub.s32 %v9091, %v9093
        %v9095 = vrot.slane %v9088, %v9094
        %v9096 = vcombine.low %v9079, %v9087
        %v9098 = vunpack.c.l.s4 1934713408
        %v9099 = vunpack.c.0.s8 %v9098
        %v9100 = vlaneseq
        %v9101 = vshrl.u32 %v9100, 7
        %v9102 = vsub.s32 %v9099, %v9101
        %v9103 = vrot.slane %v9096, %v9102
        %v9104 = vcombine.low %v9095, %v9103
        %v9105 = vcombine.high %v9095, %v9103
        %v9106 = vcombine.low %v8568, %v8632
        %v9108 = vunpack.c.l.s4 1983009808
        %v9109 = vunpack.c.0.s8 %v9108
        %v9110 = vlaneseq
        %v9111 = vshrl.u32 %v9110, 7
        %v9112 = vsub.s32 %v9109, %v9111
        %v9113 = vrot.slane %v9106, %v9112
        %v9114 = vcombine.low %v8600, %v8664
        %v9116 = vunpack.c.l.s4 1983009808
        %v9117 = vunpack.c.0.s8 %v9116
        %v9118 = vlaneseq
        %v9119 = vshrl.u32 %v9118, 7
        %v9120 = vsub.s32 %v9117, %v9119
        %v9121 = vrot.slane %v9114, %v9120
        %v9122 = vcombine.low %v8696, %v8760
        %v9124 = vunpack.c.l.s4 1983009808
        %v9125 = vunpack.c.0.s8 %v9124
        %v9126 = vlaneseq
        %v9127 = vshrl.u32 %v9126, 7
        %v9128 = vsub.s32 %v9125, %v9127
        %v9129 = vrot.slane %v9122, %v9128
        %v9130 = vcombine.low %v8728, %v8792
        %v9132 = vunpack.c.l.s4 1983009808
        %v9133 = vunpack.c.0.s8 %v9132
        %v9134 = vlaneseq
        %v9135 = vshrl.u32 %v9134, 7
        %v9136 = vsub.s32 %v9133, %v9135
        %v9137 = vrot.slane %v9130, %v9136
        %v9138 = vcombine.low %v9113, %v9121
        %v9140 = vunpack.c.l.s4 1934713408
        %v9141 = vunpack.c.0.s8 %v9140
        %v9142 = vlaneseq
        %v9143 = vshrl.u32 %v9142, 7
        %v9144 = vsub.s32 %v9141, %v9143
        %v9145 = vrot.slane %v9138, %v9144
        %v9146 = vcombine.low %v9129, %v9137
        %v9148 = vunpack.c.l.s4 1934713408
        %v9149 = vunpack.c.0.s8 %v9148
        %v9150 = vlaneseq
        %v9151 = vshrl.u32 %v9150, 7
        %v9152 = vsub.s32 %v9149, %v9151
        %v9153 = vrot.slane %v9146, %v9152
        %v9154 = vcombine.low %v9145, %v9153
        %v9155 = vcombine.high %v9145, %v9153
        %v9156 = vcombine.low %v8808, %v8872
        %v9158 = vunpack.c.l.s4 1983009808
        %v9159 = vunpack.c.0.s8 %v9158
        %v9160 = vlaneseq
        %v9161 = vshrl.u32 %v9160, 7
        %v9162 = vsub.s32 %v9159, %v9161
        %v9163 = vrot.slane %v9156, %v9162
        %v9164 = vcombine.low %v8840, %v8904
        %v9166 = vunpack.c.l.s4 1983009808
        %v9167 = vunpack.c.0.s8 %v9166
        %v9168 = vlaneseq
        %v9169 = vshrl.u32 %v9168, 7
        %v9170 = vsub.s32 %v9167, %v9169
        %v9171 = vrot.slane %v9164, %v9170
        %v9172 = vcombine.low %v8936, %v9000
        %v9174 = vunpack.c.l.s4 1983009808
        %v9175 = vunpack.c.0.s8 %v9174
        %v9176 = vlaneseq
        %v9177 = vshrl.u32 %v9176, 7
        %v9178 = vsub.s32 %v9175, %v9177
        %v9179 = vrot.slane %v9172, %v9178
        %v9180 = vcombine.low %v8968, %v9032
        %v9182 = vunpack.c.l.s4 1983009808
        %v9183 = vunpack.c.0.s8 %v9182
        %v9184 = vlaneseq
        %v9185 = vshrl.u32 %v9184, 7
        %v9186 = vsub.s32 %v9183, %v9185
        %v9187 = vrot.slane %v9180, %v9186
        %v9188 = vcombine.low %v9163, %v9171
        %v9190 = vunpack.c.l.s4 1934713408
        %v9191 = vunpack.c.0.s8 %v9190
        %v9192 = vlaneseq
        %v9193 = vshrl.u32 %v9192, 7
        %v9194 = vsub.s32 %v9191, %v9193
        %v9195 = vrot.slane %v9188, %v9194
        %v9196 = vcombine.low %v9179, %v9187
        %v9198 = vunpack.c.l.s4 1934713408
        %v9199 = vunpack.c.0.s8 %v9198
        %v9200 = vlaneseq
        %v9201 = vshrl.u32 %v9200, 7
        %v9202 = vsub.s32 %v9199, %v9201
        %v9203 = vrot.slane %v9196, %v9202
        %v9204 = vcombine.low %v9195, %v9203
        %v9205 = vcombine.high %v9195, %v9203
        %v9206 = vcombine.low %v8824, %v8888
        %v9208 = vunpack.c.l.s4 1983009808
        %v9209 = vunpack.c.0.s8 %v9208
        %v9210 = vlaneseq
        %v9211 = vshrl.u32 %v9210, 7
        %v9212 = vsub.s32 %v9209, %v9211
        %v9213 = vrot.slane %v9206, %v9212
        %v9214 = vcombine.low %v8856, %v8920
        %v9216 = vunpack.c.l.s4 1983009808
        %v9217 = vunpack.c.0.s8 %v9216
        %v9218 = vlaneseq
        %v9219 = vshrl.u32 %v9218, 7
        %v9220 = vsub.s32 %v9217, %v9219
        %v9221 = vrot.slane %v9214, %v9220
        %v9222 = vcombine.low %v8952, %v9016
        %v9224 = vunpack.c.l.s4 1983009808
        %v9225 = vunpack.c.0.s8 %v9224
        %v9226 = vlaneseq
        %v9227 = vshrl.u32 %v9226, 7
        %v9228 = vsub.s32 %v9225, %v9227
        %v9229 = vrot.slane %v9222, %v9228
        %v9230 = vcombine.low %v8984, %v9048
        %v9232 = vunpack.c.l.s4 1983009808
        %v9233 = vunpack.c.0.s8 %v9232
        %v9234 = vlaneseq
        %v9235 = vshrl.u32 %v9234, 7
        %v9236 = vsub.s32 %v9233, %v9235
        %v9237 = vrot.slane %v9230, %v9236
        %v9238 = vcombine.low %v9213, %v9221
        %v9240 = vunpack.c.l.s4 1934713408
        %v9241 = vunpack.c.0.s8 %v9240
        %v9242 = vlaneseq
        %v9243 = vshrl.u32 %v9242, 7
        %v9244 = vsub.s32 %v9241, %v9243
        %v9245 = vrot.slane %v9238, %v9244
        %v9246 = vcombine.low %v9229, %v9237
        %v9248 = vunpack.c.l.s4 1934713408
        %v9249 = vunpack.c.0.s8 %v9248
        %v9250 = vlaneseq
        %v9251 = vshrl.u32 %v9250, 7
        %v9252 = vsub.s32 %v9249, %v9251
        %v9253 = vrot.slane %v9246, %v9252
        %v9254 = vcombine.low %v9245, %v9253
        %v9255 = vcombine.high %v9245, %v9253
        %v9258 = vpack.i.b16 %v9154, %v9104
        %v9259 = vshrl.u32 %v9104, 16
        %v9260 = vshrl.u32 %v9154, 16
        %v9261 = vpack.i.b16 %v9260, %v9259
        %v9264 = vpack.i.b16 %v9155, %v9105
        %v9265 = vshrl.u32 %v9105, 16
        %v9266 = vshrl.u32 %v9155, 16
        %v9267 = vpack.i.b16 %v9266, %v9265
        %v9270 = vpack.i.b16 %v9254, %v9204
        %v9271 = vshrl.u32 %v9204, 16
        %v9272 = vshrl.u32 %v9254, 16
        %v9273 = vpack.i.b16 %v9272, %v9271
        %v9276 = vpack.i.b16 %v9255, %v9205
        %v9277 = vshrl.u32 %v9205, 16
        %v9278 = vshrl.u32 %v9255, 16
        %v9279 = vpack.i.b16 %v9278, %v9277
        %v9281 = vsel %vm7567, %v9258, 0
        %v9284 = vsel %vm7567, %v9270, 0
        %v9287 = vsel %vm7567, %v7612, 0
        %9289 = vmatprep.subr.bf16.mxu0 0
        %9290 = vmatpush1.bf16.xpose.msra.mxu0 0
        %9291 = vmatprep.subr.bf16.mxu0 0
        %9292 = vmatpush1.bf16.xpose.msra.mxu0 0
        %9293 = vmatprep.subr.bf16.mxu0 0
        %9294 = vmatpush1.bf16.xpose.msra.mxu0 0
        %9295 = vmatprep.subr.bf16.mxu0 0
        %9296 = vmatpush1.bf16.xpose.msra.mxu0 0
        %9297 = vmatprep.subr.bf16.mxu0 0
        %9298 = vmatpush1.bf16.xpose.msra.mxu0 0
        %9299 = vmatprep.subr.bf16.mxu0 0
        %9300 = vmatpush1.bf16.xpose.msra.mxu0 0
        %9301 = vmatprep.subr.bf16.mxu0 0
        %9302 = vmatpush1.bf16.xpose.msra.mxu0 0
        %9303 = vmatprep.subr.bf16.mxu0 0
        %9304 = vmatpush1.bf16.xpose.msra.mxu0 %v9287
        %9305 = vmatprep.subr.bf16.mxu0 0
        %9306 = vmatpush2.bf16.xpose.msra.mxu0 0
        %9307 = vmatprep.subr.bf16.mxu0 0
        %9308 = vmatpush2.bf16.xpose.msra.mxu0 0
        %9309 = vmatprep.subr.bf16.mxu0 0
        %9310 = vmatpush2.bf16.xpose.msra.mxu0 0
        %9311 = vmatprep.subr.bf16.mxu0 0
        %9312 = vmatpush2.bf16.xpose.msra.mxu0 0
        %9313 = vmatprep.subr.bf16.mxu0 0
        %9314 = vmatpush2.bf16.xpose.msra.mxu0 0
        %9315 = vmatprep.subr.bf16.mxu0 0
        %9316 = vmatpush2.bf16.xpose.msra.mxu0 0
        %9317 = vmatprep.subr.bf16.mxu0 0
        %9318 = vmatpush2.bf16.xpose.msra.mxu0 0
        %9319 = vmatprep.subr.bf16.mxu0 0
        %9320 = vmatpush2.bf16.xpose.msra.mxu0 0
        %9321 = vmatprep.mubr.bf16.mxu0 0
        %9322 = vmatmul.mubr.bf16.gmra.mxu0 %v9281
        %v9323 = vpop.f32.mrf.mxu0
        %v9324 = vadd.f32 0.0, %v9323
        %v9325 = vpop.f32.mrf.mxu0
        %v9326 = vpop.f32.mrf.mxu0
        %v9327 = vadd.f32 0.0, %v9326
        %v9328 = vpop.f32.mrf.mxu0
        %9329 = vmatprep.mubr.bf16.mxu0 0
        %9330 = vmatmul.mubr.bf16.gmra.mxu0 %v9284
        %v9331 = vpop.f32.mrf.mxu0
        %v9332 = vadd.f32 0.0, %v9331
        %v9333 = vpop.f32.mrf.mxu0
        %v9334 = vpop.f32.mrf.mxu0
        %v9335 = vadd.f32 0.0, %v9334
        %v9336 = vpop.f32.mrf.mxu0
        %9337 = vdwg.mxu0
        %v9339 = vsel %vm7567, %v9261, 0
        %v9342 = vsel %vm7567, %v9273, 0
        %v9345 = vsel %vm7567, %v7613, 0
        %9347 = vmatprep.subr.bf16.mxu0 0
        %9348 = vmatpush1.bf16.xpose.msra.mxu0 0
        %9349 = vmatprep.subr.bf16.mxu0 0
        %9350 = vmatpush1.bf16.xpose.msra.mxu0 0
        %9351 = vmatprep.subr.bf16.mxu0 0
        %9352 = vmatpush1.bf16.xpose.msra.mxu0 0
        %9353 = vmatprep.subr.bf16.mxu0 0
        %9354 = vmatpush1.bf16.xpose.msra.mxu0 0
        %9355 = vmatprep.subr.bf16.mxu0 0
        %9356 = vmatpush1.bf16.xpose.msra.mxu0 0
        %9357 = vmatprep.subr.bf16.mxu0 0
        %9358 = vmatpush1.bf16.xpose.msra.mxu0 0
        %9359 = vmatprep.subr.bf16.mxu0 0
        %9360 = vmatpush1.bf16.xpose.msra.mxu0 0
        %9361 = vmatprep.subr.bf16.mxu0 0
        %9362 = vmatpush1.bf16.xpose.msra.mxu0 %v9345
        %9363 = vmatprep.subr.bf16.mxu0 0
        %9364 = vmatpush2.bf16.xpose.msra.mxu0 0
        %9365 = vmatprep.subr.bf16.mxu0 0
        %9366 = vmatpush2.bf16.xpose.msra.mxu0 0
        %9367 = vmatprep.subr.bf16.mxu0 0
        %9368 = vmatpush2.bf16.xpose.msra.mxu0 0
        %9369 = vmatprep.subr.bf16.mxu0 0
        %9370 = vmatpush2.bf16.xpose.msra.mxu0 0
        %9371 = vmatprep.subr.bf16.mxu0 0
        %9372 = vmatpush2.bf16.xpose.msra.mxu0 0
        %9373 = vmatprep.subr.bf16.mxu0 0
        %9374 = vmatpush2.bf16.xpose.msra.mxu0 0
        %9375 = vmatprep.subr.bf16.mxu0 0
        %9376 = vmatpush2.bf16.xpose.msra.mxu0 0
        %9377 = vmatprep.subr.bf16.mxu0 0
        %9378 = vmatpush2.bf16.xpose.msra.mxu0 0
        %9379 = vmatprep.mubr.bf16.mxu0 0
        %9380 = vmatmul.mubr.bf16.gmra.mxu0 %v9339
        %v9381 = vpop.f32.mrf.mxu0
        %v9382 = vadd.f32 0.0, %v9381
        %v9383 = vpop.f32.mrf.mxu0
        %v9384 = vpop.f32.mrf.mxu0
        %v9385 = vadd.f32 0.0, %v9384
        %v9386 = vpop.f32.mrf.mxu0
        %9387 = vmatprep.mubr.bf16.mxu0 0
        %9388 = vmatmul.mubr.bf16.gmra.mxu0 %v9342
        %v9389 = vpop.f32.mrf.mxu0
        %v9390 = vadd.f32 0.0, %v9389
        %v9391 = vpop.f32.mrf.mxu0
        %v9392 = vpop.f32.mrf.mxu0
        %v9393 = vadd.f32 0.0, %v9392
        %v9394 = vpop.f32.mrf.mxu0
        %9395 = vdwg.mxu0
        %v9397 = vsel %vm7567, %v9264, 0
        %v9400 = vsel %vm7567, %v9276, 0
        %v9403 = vsel %vm7567, %v7614, 0
        %9405 = vmatprep.subr.bf16.mxu0 0
        %9406 = vmatpush1.bf16.xpose.msra.mxu0 0
        %9407 = vmatprep.subr.bf16.mxu0 0
        %9408 = vmatpush1.bf16.xpose.msra.mxu0 0
        %9409 = vmatprep.subr.bf16.mxu0 0
        %9410 = vmatpush1.bf16.xpose.msra.mxu0 0
        %9411 = vmatprep.subr.bf16.mxu0 0
        %9412 = vmatpush1.bf16.xpose.msra.mxu0 0
        %9413 = vmatprep.subr.bf16.mxu0 0
        %9414 = vmatpush1.bf16.xpose.msra.mxu0 0
        %9415 = vmatprep.subr.bf16.mxu0 0
        %9416 = vmatpush1.bf16.xpose.msra.mxu0 0
        %9417 = vmatprep.subr.bf16.mxu0 0
        %9418 = vmatpush1.bf16.xpose.msra.mxu0 0
        %9419 = vmatprep.subr.bf16.mxu0 0
        %9420 = vmatpush1.bf16.xpose.msra.mxu0 %v9403
        %9421 = vmatprep.subr.bf16.mxu0 0
        %9422 = vmatpush2.bf16.xpose.msra.mxu0 0
        %9423 = vmatprep.subr.bf16.mxu0 0
        %9424 = vmatpush2.bf16.xpose.msra.mxu0 0
        %9425 = vmatprep.subr.bf16.mxu0 0
        %9426 = vmatpush2.bf16.xpose.msra.mxu0 0
        %9427 = vmatprep.subr.bf16.mxu0 0
        %9428 = vmatpush2.bf16.xpose.msra.mxu0 0
        %9429 = vmatprep.subr.bf16.mxu0 0
        %9430 = vmatpush2.bf16.xpose.msra.mxu0 0
        %9431 = vmatprep.subr.bf16.mxu0 0
        %9432 = vmatpush2.bf16.xpose.msra.mxu0 0
        %9433 = vmatprep.subr.bf16.mxu0 0
        %9434 = vmatpush2.bf16.xpose.msra.mxu0 0
        %9435 = vmatprep.subr.bf16.mxu0 0
        %9436 = vmatpush2.bf16.xpose.msra.mxu0 0
        %9437 = vmatprep.mubr.bf16.mxu0 0
        %9438 = vmatmul.mubr.bf16.gmra.mxu0 %v9397
        %v9439 = vpop.f32.mrf.mxu0
        %v9440 = vadd.f32 0.0, %v9439
        %v9441 = vpop.f32.mrf.mxu0
        %v9442 = vpop.f32.mrf.mxu0
        %v9443 = vadd.f32 0.0, %v9442
        %v9444 = vpop.f32.mrf.mxu0
        %9445 = vmatprep.mubr.bf16.mxu0 0
        %9446 = vmatmul.mubr.bf16.gmra.mxu0 %v9400
        %v9447 = vpop.f32.mrf.mxu0
        %v9448 = vadd.f32 0.0, %v9447
        %v9449 = vpop.f32.mrf.mxu0
        %v9450 = vpop.f32.mrf.mxu0
        %v9451 = vadd.f32 0.0, %v9450
        %v9452 = vpop.f32.mrf.mxu0
        %9453 = vdwg.mxu0
        %v9455 = vsel %vm7567, %v9267, 0
        %v9458 = vsel %vm7567, %v9279, 0
        %v9461 = vsel %vm7567, %v7615, 0
        %9463 = vmatprep.subr.bf16.mxu0 0
        %9464 = vmatpush1.bf16.xpose.msra.mxu0 0
        %9465 = vmatprep.subr.bf16.mxu0 0
        %9466 = vmatpush1.bf16.xpose.msra.mxu0 0
        %9467 = vmatprep.subr.bf16.mxu0 0
        %9468 = vmatpush1.bf16.xpose.msra.mxu0 0
        %9469 = vmatprep.subr.bf16.mxu0 0
        %9470 = vmatpush1.bf16.xpose.msra.mxu0 0
        %9471 = vmatprep.subr.bf16.mxu0 0
        %9472 = vmatpush1.bf16.xpose.msra.mxu0 0
        %9473 = vmatprep.subr.bf16.mxu0 0
        %9474 = vmatpush1.bf16.xpose.msra.mxu0 0
        %9475 = vmatprep.subr.bf16.mxu0 0
        %9476 = vmatpush1.bf16.xpose.msra.mxu0 0
        %9477 = vmatprep.subr.bf16.mxu0 0
        %9478 = vmatpush1.bf16.xpose.msra.mxu0 %v9461
        %9479 = vmatprep.subr.bf16.mxu0 0
        %9480 = vmatpush2.bf16.xpose.msra.mxu0 0
        %9481 = vmatprep.subr.bf16.mxu0 0
        %9482 = vmatpush2.bf16.xpose.msra.mxu0 0
        %9483 = vmatprep.subr.bf16.mxu0 0
        %9484 = vmatpush2.bf16.xpose.msra.mxu0 0
        %9485 = vmatprep.subr.bf16.mxu0 0
        %9486 = vmatpush2.bf16.xpose.msra.mxu0 0
        %9487 = vmatprep.subr.bf16.mxu0 0
        %9488 = vmatpush2.bf16.xpose.msra.mxu0 0
        %9489 = vmatprep.subr.bf16.mxu0 0
        %9490 = vmatpush2.bf16.xpose.msra.mxu0 0
        %9491 = vmatprep.subr.bf16.mxu0 0
        %9492 = vmatpush2.bf16.xpose.msra.mxu0 0
        %9493 = vmatprep.subr.bf16.mxu0 0
        %9494 = vmatpush2.bf16.xpose.msra.mxu0 0
        %9495 = vmatprep.mubr.bf16.mxu0 0
        %9496 = vmatmul.mubr.bf16.gmra.mxu0 %v9455
        %v9497 = vpop.f32.mrf.mxu0
        %v9498 = vadd.f32 0.0, %v9497
        %v9499 = vpop.f32.mrf.mxu0
        %v9500 = vpop.f32.mrf.mxu0
        %v9501 = vadd.f32 0.0, %v9500
        %v9502 = vpop.f32.mrf.mxu0
        %9503 = vmatprep.mubr.bf16.mxu0 0
        %9504 = vmatmul.mubr.bf16.gmra.mxu0 %v9458
        %v9505 = vpop.f32.mrf.mxu0
        %v9506 = vadd.f32 0.0, %v9505
        %v9507 = vpop.f32.mrf.mxu0
        %v9508 = vpop.f32.mrf.mxu0
        %v9509 = vadd.f32 0.0, %v9508
        %v9510 = vpop.f32.mrf.mxu0
        %9511 = vdwg.mxu0
        %9512 = vxpose.xlu0.b32.start [1/16] %v9324, 128
        %9513 = vxpose.xlu0.b32.cont [2/16] %v9327, 128
        %9514 = vxpose.xlu0.b32.cont [3/16] %v9332, 128
        %9515 = vxpose.xlu0.b32.cont [4/16] %v9335, 128
        %9516 = vxpose.xlu0.b32.cont [5/16] 0.0, 128
        %9517 = vxpose.xlu0.b32.cont [6/16] 0.0, 128
        %9518 = vxpose.xlu0.b32.cont [7/16] 0.0, 128
        %9519 = vxpose.xlu0.b32.cont [8/16] 0.0, 128
        %9520 = vxpose.xlu0.b32.cont [9/16] 0.0, 128
        %9521 = vxpose.xlu0.b32.cont [10/16] 0.0, 128
        %9522 = vxpose.xlu0.b32.cont [11/16] 0.0, 128
        %9523 = vxpose.xlu0.b32.cont [12/16] 0.0, 128
        %9524 = vxpose.xlu0.b32.cont [13/16] 0.0, 128
        %9525 = vxpose.xlu0.b32.cont [14/16] 0.0, 128
        %9526 = vxpose.xlu0.b32.cont [15/16] 0.0, 128
        %9527 = vxpose.xlu0.b32.end [16/16] 0.0, 128
        %v9528 = vpop.trf.xlu0
        %v9529 = vpop.trf.xlu0
        %v9530 = vpop.trf.xlu0
        %v9531 = vpop.trf.xlu0
        %v9532 = vpop.trf.xlu0
        %v9533 = vpop.trf.xlu0
        %v9534 = vpop.trf.xlu0
        %v9535 = vpop.trf.xlu0
        %v9536 = vpop.trf.xlu0
        %v9537 = vpop.trf.xlu0
        %v9538 = vpop.trf.xlu0
        %v9539 = vpop.trf.xlu0
        %v9540 = vpop.trf.xlu0
        %v9541 = vpop.trf.xlu0
        %v9542 = vpop.trf.xlu0
        %v9543 = vpop.trf.xlu0
        %9544 = vxpose.xlu0.b32.start [1/16] %v9382, 128
        %9545 = vxpose.xlu0.b32.cont [2/16] %v9385, 128
        %9546 = vxpose.xlu0.b32.cont [3/16] %v9390, 128
        %9547 = vxpose.xlu0.b32.cont [4/16] %v9393, 128
        %9548 = vxpose.xlu0.b32.cont [5/16] 0.0, 128
        %9549 = vxpose.xlu0.b32.cont [6/16] 0.0, 128
        %9550 = vxpose.xlu0.b32.cont [7/16] 0.0, 128
        %9551 = vxpose.xlu0.b32.cont [8/16] 0.0, 128
        %9552 = vxpose.xlu0.b32.cont [9/16] 0.0, 128
        %9553 = vxpose.xlu0.b32.cont [10/16] 0.0, 128
        %9554 = vxpose.xlu0.b32.cont [11/16] 0.0, 128
        %9555 = vxpose.xlu0.b32.cont [12/16] 0.0, 128
        %9556 = vxpose.xlu0.b32.cont [13/16] 0.0, 128
        %9557 = vxpose.xlu0.b32.cont [14/16] 0.0, 128
        %9558 = vxpose.xlu0.b32.cont [15/16] 0.0, 128
        %9559 = vxpose.xlu0.b32.end [16/16] 0.0, 128
        %v9560 = vpop.trf.xlu0
        %v9561 = vpop.trf.xlu0
        %v9562 = vpop.trf.xlu0
        %v9563 = vpop.trf.xlu0
        %v9564 = vpop.trf.xlu0
        %v9565 = vpop.trf.xlu0
        %v9566 = vpop.trf.xlu0
        %v9567 = vpop.trf.xlu0
        %v9568 = vpop.trf.xlu0
        %v9569 = vpop.trf.xlu0
        %v9570 = vpop.trf.xlu0
        %v9571 = vpop.trf.xlu0
        %v9572 = vpop.trf.xlu0
        %v9573 = vpop.trf.xlu0
        %v9574 = vpop.trf.xlu0
        %v9575 = vpop.trf.xlu0
        %9576 = vxpose.xlu0.b32.start [1/16] %v9440, 128
        %9577 = vxpose.xlu0.b32.cont [2/16] %v9443, 128
        %9578 = vxpose.xlu0.b32.cont [3/16] %v9448, 128
        %9579 = vxpose.xlu0.b32.cont [4/16] %v9451, 128
        %9580 = vxpose.xlu0.b32.cont [5/16] 0.0, 128
        %9581 = vxpose.xlu0.b32.cont [6/16] 0.0, 128
        %9582 = vxpose.xlu0.b32.cont [7/16] 0.0, 128
        %9583 = vxpose.xlu0.b32.cont [8/16] 0.0, 128
        %9584 = vxpose.xlu0.b32.cont [9/16] 0.0, 128
        %9585 = vxpose.xlu0.b32.cont [10/16] 0.0, 128
        %9586 = vxpose.xlu0.b32.cont [11/16] 0.0, 128
        %9587 = vxpose.xlu0.b32.cont [12/16] 0.0, 128
        %9588 = vxpose.xlu0.b32.cont [13/16] 0.0, 128
        %9589 = vxpose.xlu0.b32.cont [14/16] 0.0, 128
        %9590 = vxpose.xlu0.b32.cont [15/16] 0.0, 128
        %9591 = vxpose.xlu0.b32.end [16/16] 0.0, 128
        %v9592 = vpop.trf.xlu0
        %v9593 = vpop.trf.xlu0
        %v9594 = vpop.trf.xlu0
        %v9595 = vpop.trf.xlu0
        %v9596 = vpop.trf.xlu0
        %v9597 = vpop.trf.xlu0
        %v9598 = vpop.trf.xlu0
        %v9599 = vpop.trf.xlu0
        %v9600 = vpop.trf.xlu0
        %v9601 = vpop.trf.xlu0
        %v9602 = vpop.trf.xlu0
        %v9603 = vpop.trf.xlu0
        %v9604 = vpop.trf.xlu0
        %v9605 = vpop.trf.xlu0
        %v9606 = vpop.trf.xlu0
        %v9607 = vpop.trf.xlu0
        %9608 = vxpose.xlu0.b32.start [1/16] %v9498, 128
        %9609 = vxpose.xlu0.b32.cont [2/16] %v9501, 128
        %9610 = vxpose.xlu0.b32.cont [3/16] %v9506, 128
        %9611 = vxpose.xlu0.b32.cont [4/16] %v9509, 128
        %9612 = vxpose.xlu0.b32.cont [5/16] 0.0, 128
        %9613 = vxpose.xlu0.b32.cont [6/16] 0.0, 128
        %9614 = vxpose.xlu0.b32.cont [7/16] 0.0, 128
        %9615 = vxpose.xlu0.b32.cont [8/16] 0.0, 128
        %9616 = vxpose.xlu0.b32.cont [9/16] 0.0, 128
        %9617 = vxpose.xlu0.b32.cont [10/16] 0.0, 128
        %9618 = vxpose.xlu0.b32.cont [11/16] 0.0, 128
        %9619 = vxpose.xlu0.b32.cont [12/16] 0.0, 128
        %9620 = vxpose.xlu0.b32.cont [13/16] 0.0, 128
        %9621 = vxpose.xlu0.b32.cont [14/16] 0.0, 128
        %9622 = vxpose.xlu0.b32.cont [15/16] 0.0, 128
        %9623 = vxpose.xlu0.b32.end [16/16] 0.0, 128
        %v9624 = vpop.trf.xlu0
        %v9625 = vpop.trf.xlu0
        %v9626 = vpop.trf.xlu0
        %v9627 = vpop.trf.xlu0
        %v9628 = vpop.trf.xlu0
        %v9629 = vpop.trf.xlu0
        %v9630 = vpop.trf.xlu0
        %v9631 = vpop.trf.xlu0
        %v9632 = vpop.trf.xlu0
        %v9633 = vpop.trf.xlu0
        %v9634 = vpop.trf.xlu0
        %v9635 = vpop.trf.xlu0
        %v9636 = vpop.trf.xlu0
        %v9637 = vpop.trf.xlu0
        %v9638 = vpop.trf.xlu0
        %v9639 = vpop.trf.xlu0
        %v9640 = vcombine.low %v9528, %v9592
        %v9641 = vcombine.high %v9528, %v9592
        %v9643 = vunpack.c.l.s4 1983009808
        %v9644 = vunpack.c.0.s8 %v9643
        %v9645 = vlaneseq
        %v9646 = vshrl.u32 %v9645, 7
        %v9647 = vsub.s32 %v9644, %v9646
        %v9648 = vrot.slane %v9640, %v9647
        %v9650 = vunpack.c.l.s4 1983009808
        %v9651 = vunpack.c.0.s8 %v9650
        %v9652 = vlaneseq
        %v9653 = vshrl.u32 %v9652, 7
        %v9654 = vsub.s32 %v9651, %v9653
        %v9655 = vrot.slane %v9641, %v9654
        %v9656 = vcombine.low %v9560, %v9624
        %v9657 = vcombine.high %v9560, %v9624
        %v9659 = vunpack.c.l.s4 1983009808
        %v9660 = vunpack.c.0.s8 %v9659
        %v9661 = vlaneseq
        %v9662 = vshrl.u32 %v9661, 7
        %v9663 = vsub.s32 %v9660, %v9662
        %v9664 = vrot.slane %v9656, %v9663
        %v9666 = vunpack.c.l.s4 1983009808
        %v9667 = vunpack.c.0.s8 %v9666
        %v9668 = vlaneseq
        %v9669 = vshrl.u32 %v9668, 7
        %v9670 = vsub.s32 %v9667, %v9669
        %v9671 = vrot.slane %v9657, %v9670
        %v9672 = vcombine.low %v9648, %v9664
        %v9673 = vcombine.high %v9648, %v9664
        %v9675 = vunpack.c.l.s4 1934713408
        %v9676 = vunpack.c.0.s8 %v9675
        %v9677 = vlaneseq
        %v9678 = vshrl.u32 %v9677, 7
        %v9679 = vsub.s32 %v9676, %v9678
        %v9680 = vrot.slane %v9672, %v9679
        %v9682 = vunpack.c.l.s4 1934713408
        %v9683 = vunpack.c.0.s8 %v9682
        %v9684 = vlaneseq
        %v9685 = vshrl.u32 %v9684, 7
        %v9686 = vsub.s32 %v9683, %v9685
        %v9687 = vrot.slane %v9673, %v9686
        %v9688 = vcombine.low %v9655, %v9671
        %v9689 = vcombine.high %v9655, %v9671
        %v9691 = vunpack.c.l.s4 1934713408
        %v9692 = vunpack.c.0.s8 %v9691
        %v9693 = vlaneseq
        %v9694 = vshrl.u32 %v9693, 7
        %v9695 = vsub.s32 %v9692, %v9694
        %v9696 = vrot.slane %v9688, %v9695
        %v9698 = vunpack.c.l.s4 1934713408
        %v9699 = vunpack.c.0.s8 %v9698
        %v9700 = vlaneseq
        %v9701 = vshrl.u32 %v9700, 7
        %v9702 = vsub.s32 %v9699, %v9701
        %v9703 = vrot.slane %v9689, %v9702
        %v9704 = vcombine.high %v9680, 0.0
        %v9705 = vcombine.high %v9687, 0.0
        %v9706 = vcombine.high %v9696, 0.0
        %v9707 = vcombine.high %v9703, 0.0
        %v9708 = vcombine.low %v9680, %v9687
        %v9710 = vunpack.c.l.s4 1983009808
        %v9711 = vunpack.c.0.s8 %v9710
        %v9712 = vlaneseq
        %v9713 = vshrl.u32 %v9712, 7
        %v9714 = vsub.s32 %v9711, %v9713
        %v9715 = vrot.slane %v9708, %v9714
        %v9716 = vcombine.low %v9704, %v9705
        %v9718 = vunpack.c.l.s4 1983009808
        %v9719 = vunpack.c.0.s8 %v9718
        %v9720 = vlaneseq
        %v9721 = vshrl.u32 %v9720, 7
        %v9722 = vsub.s32 %v9719, %v9721
        %v9723 = vrot.slane %v9716, %v9722
        %v9724 = vcombine.low %v9696, %v9703
        %v9726 = vunpack.c.l.s4 1983009808
        %v9727 = vunpack.c.0.s8 %v9726
        %v9728 = vlaneseq
        %v9729 = vshrl.u32 %v9728, 7
        %v9730 = vsub.s32 %v9727, %v9729
        %v9731 = vrot.slane %v9724, %v9730
        %v9732 = vcombine.low %v9706, %v9707
        %v9734 = vunpack.c.l.s4 1983009808
        %v9735 = vunpack.c.0.s8 %v9734
        %v9736 = vlaneseq
        %v9737 = vshrl.u32 %v9736, 7
        %v9738 = vsub.s32 %v9735, %v9737
        %v9739 = vrot.slane %v9732, %v9738
        %v9740 = vcombine.low %v9715, %v9723
        %v9741 = vcombine.high %v9715, %v9723
        %v9743 = vunpack.c.l.s4 1934713408
        %v9744 = vunpack.c.0.s8 %v9743
        %v9745 = vlaneseq
        %v9746 = vshrl.u32 %v9745, 7
        %v9747 = vsub.s32 %v9744, %v9746
        %v9748 = vrot.slane %v9740, %v9747
        %v9750 = vunpack.c.l.s4 1934713408
        %v9751 = vunpack.c.0.s8 %v9750
        %v9752 = vlaneseq
        %v9753 = vshrl.u32 %v9752, 7
        %v9754 = vsub.s32 %v9751, %v9753
        %v9755 = vrot.slane %v9741, %v9754
        %v9756 = vcombine.low %v9731, %v9739
        %v9757 = vcombine.high %v9731, %v9739
        %v9759 = vunpack.c.l.s4 1934713408
        %v9760 = vunpack.c.0.s8 %v9759
        %v9761 = vlaneseq
        %v9762 = vshrl.u32 %v9761, 7
        %v9763 = vsub.s32 %v9760, %v9762
        %v9764 = vrot.slane %v9756, %v9763
        %v9766 = vunpack.c.l.s4 1934713408
        %v9767 = vunpack.c.0.s8 %v9766
        %v9768 = vlaneseq
        %v9769 = vshrl.u32 %v9768, 7
        %v9770 = vsub.s32 %v9767, %v9769
        %v9771 = vrot.slane %v9757, %v9770
        %v9772 = vcombine.low %v9748, %v9764
        %v9773 = vcombine.high %v9748, %v9764
        %v9774 = vcombine.low %v9755, %v9771
        %v9775 = vcombine.high %v9755, %v9771
        %9777 = vrot.lane.b32.xlu0 %v9773, 32
        %v9778 = vpop.permute.xlu0 %9777
        %9781 = vrot.lane.b32.xlu0 %v9774, 64
        %v9782 = vpop.permute.xlu0 %9781
        %9785 = vrot.lane.b32.xlu0 %v9775, 96
        %v9786 = vpop.permute.xlu0 %9785
        %v9788 = vsel %vm2830, %v9772, %v9778
        %v9789 = vsel %vm4769, %v9788, %v9782
        %v9790 = vsel %vm4771, %v9789, %v9786
        %v9791 = vpack.c.bf16 %v9790, %v9790
        %v9808 = vunpack.c.l.b16 %v4939
        %v9809 = vunpack.c.l.b16 %v4940
        %v9810 = vunpack.c.l.b16 %v4941
        %v9811 = vunpack.c.l.b16 %v4942
        %v9812 = vunpack.c.l.b16 %v4943
        %v9813 = vunpack.c.l.b16 %v4944
        %v9814 = vunpack.c.l.b16 %v4945
        %v9815 = vunpack.c.l.b16 %v4946
        %v9816 = vunpack.c.l.b16 %v4947
        %v9817 = vunpack.c.l.b16 %v4948
        %v9818 = vunpack.c.l.b16 %v4949
        %v9819 = vunpack.c.l.b16 %v4950
        %v9820 = vunpack.c.l.b16 %v4951
        %v9821 = vunpack.c.l.b16 %v4952
        %v9822 = vunpack.c.l.b16 %v4953
        %v9823 = vunpack.c.l.b16 %v4954
        %v9824 = vpack.c.b16 %v9809, %v9808
        %v9825 = vpack.c.b16 %v9811, %v9810
        %v9826 = vpack.c.b16 %v9813, %v9812
        %v9827 = vpack.c.b16 %v9815, %v9814
        %v9828 = vpack.c.b16 %v9817, %v9816
        %v9829 = vpack.c.b16 %v9819, %v9818
        %v9830 = vpack.c.b16 %v9821, %v9820
        %v9831 = vpack.c.b16 %v9823, %v9822
        %9840 = vmatprep.subr.bf16.mxu0 0
        %9841 = vmatpush1.bf16.msra.mxu0 %v9831
        %9842 = vmatprep.subr.bf16.mxu0 0
        %9843 = vmatpush1.bf16.msra.mxu0 %v9830
        %9844 = vmatprep.subr.bf16.mxu0 0
        %9845 = vmatpush1.bf16.msra.mxu0 %v9829
        %9846 = vmatprep.subr.bf16.mxu0 0
        %9847 = vmatpush1.bf16.msra.mxu0 %v9828
        %9848 = vmatprep.subr.bf16.mxu0 0
        %9849 = vmatpush1.bf16.msra.mxu0 %v9827
        %9850 = vmatprep.subr.bf16.mxu0 0
        %9851 = vmatpush1.bf16.msra.mxu0 %v9826
        %9852 = vmatprep.subr.bf16.mxu0 0
        %9853 = vmatpush1.bf16.msra.mxu0 %v9825
        %9854 = vmatprep.subr.bf16.mxu0 0
        %9855 = vmatpush1.bf16.msra.mxu0 %v9824
        %9856 = vmatprep.subr.bf16.mxu0 0
        %9857 = vmatpush2.bf16.msra.mxu0 0
        %9858 = vmatprep.subr.bf16.mxu0 0
        %9859 = vmatpush2.bf16.msra.mxu0 0
        %9860 = vmatprep.subr.bf16.mxu0 0
        %9861 = vmatpush2.bf16.msra.mxu0 0
        %9862 = vmatprep.subr.bf16.mxu0 0
        %9863 = vmatpush2.bf16.msra.mxu0 0
        %9864 = vmatprep.subr.bf16.mxu0 0
        %9865 = vmatpush2.bf16.msra.mxu0 0
        %9866 = vmatprep.subr.bf16.mxu0 0
        %9867 = vmatpush2.bf16.msra.mxu0 0
        %9868 = vmatprep.subr.bf16.mxu0 0
        %9869 = vmatpush2.bf16.msra.mxu0 0
        %9870 = vmatprep.subr.bf16.mxu0 0
        %9871 = vmatpush2.bf16.msra.mxu0 0
        %9872 = vmatprep.mubr.bf16.mxu0 0
        %9873 = vmatmul.mubr.bf16.gmra.mxu0 %v9791
        %v9874 = vpop.f32.mrf.mxu0
        %v9875 = vadd.f32 0.0, %v9874
        %v9876 = vpop.f32.mrf.mxu0
        %v9877 = vpop.f32.mrf.mxu0
        %v9878 = vpop.f32.mrf.mxu0
        %9879 = vdwg.mxu0
        %v9880 = vadd.f32 %v4890, %v9875
        %v9881 = vld [vmem:[%s15] sm:$0x1]
        %v9882 = vld [vmem:[%s16] sm:$0x1]
        %9883 = vadd.xlane.f32.xlu0 %v9880
        %v9884 = vpop.xlane.xlu0 %9883
        %v9885 = vmul.f32 %v9884, %v4867
        %v9886 = vsub.f32 %v9880, %v9885
        %v9887 = vmul.f32 %v9886, %v9886
        %9888 = vadd.xlane.f32.xlu0 %v9887
        %v9889 = vpop.xlane.xlu0 %9888
        %v9890 = vmul.f32 %v9889, %v4867
        %v9891 = vadd.f32 %v9890, 1e-05
        %v9892 = vrsqrt.pop %v9891
        %v9893 = vmul.f32 %v9886, %v9892
        %v9895 = vlaneseq
        %v9896 = vshrl.u32 %v9895, 7
        %v9897 = vsub.s32 0, %v9896
        %v9898 = vrot.slane %v9881, %v9897
        %v9900 = vmul.f32 %v9893, %v9898
        %v9902 = vlaneseq
        %v9903 = vshrl.u32 %v9902, 7
        %v9904 = vsub.s32 0, %v9903
        %v9905 = vrot.slane %v9882, %v9904
        %v9907 = vadd.f32 %v9900, %v9905
        %v9908 = vpack.c.bf16 %v9907, %v9907
        %v9909 = vld [vmem:[#allocation17] sm:$0xff]
        %v9910 = vld [vmem:[#allocation17 + $0x8] sm:$0xff]
        %v9911 = vld [vmem:[#allocation17 + $0x10] sm:$0xff]
        %v9912 = vld [vmem:[#allocation17 + $0x18] sm:$0xff]
        %v9913 = vld [vmem:[#allocation17 + $0x20] sm:$0xff]
        %v9914 = vld [vmem:[#allocation17 + $0x28] sm:$0xff]
        %v9915 = vld [vmem:[#allocation17 + $0x30] sm:$0xff]
        %v9916 = vld [vmem:[#allocation17 + $0x38] sm:$0xff]
        %v9917 = vld [vmem:[#allocation17 + $0x40] sm:$0xff]
        %v9918 = vld [vmem:[#allocation17 + $0x48] sm:$0xff]
        %v9919 = vld [vmem:[#allocation17 + $0x50] sm:$0xff]
        %v9920 = vld [vmem:[#allocation17 + $0x58] sm:$0xff]
        %v9921 = vld [vmem:[#allocation17 + $0x60] sm:$0xff]
        %v9922 = vld [vmem:[#allocation17 + $0x68] sm:$0xff]
        %v9923 = vld [vmem:[#allocation17 + $0x70] sm:$0xff]
        %v9924 = vld [vmem:[#allocation17 + $0x78] sm:$0xff]
        %v9925 = vld [vmem:[%s18] sm:$0x3]
        %v9927 = vlaneseq
        %v9928 = vshrl.u32 %v9927, 7
        %v9929 = vsub.s32 0, %v9928
        %v9930 = vrot.slane %v9925, %v9929
        %v9931 = vlaneseq
        %v9932 = vshrl.u32 %v9931, 7
        %v9933 = vsub.s32 1, %v9932
        %v9934 = vrot.slane %v9925, %v9933
        %v9953 = vunpack.c.l.b16 %v9909
        %v9954 = vunpack.c.h.b16 %v9909
        %v9955 = vunpack.c.l.b16 %v9910
        %v9956 = vunpack.c.h.b16 %v9910
        %v9957 = vunpack.c.l.b16 %v9911
        %v9958 = vunpack.c.h.b16 %v9911
        %v9959 = vunpack.c.l.b16 %v9912
        %v9960 = vunpack.c.h.b16 %v9912
        %v9961 = vunpack.c.l.b16 %v9913
        %v9962 = vunpack.c.h.b16 %v9913
        %v9963 = vunpack.c.l.b16 %v9914
        %v9964 = vunpack.c.h.b16 %v9914
        %v9965 = vunpack.c.l.b16 %v9915
        %v9966 = vunpack.c.h.b16 %v9915
        %v9967 = vunpack.c.l.b16 %v9916
        %v9968 = vunpack.c.h.b16 %v9916
        %v9969 = vunpack.c.l.b16 %v9917
        %v9970 = vunpack.c.h.b16 %v9917
        %v9971 = vunpack.c.l.b16 %v9918
        %v9972 = vunpack.c.h.b16 %v9918
        %v9973 = vunpack.c.l.b16 %v9919
        %v9974 = vunpack.c.h.b16 %v9919
        %v9975 = vunpack.c.l.b16 %v9920
        %v9976 = vunpack.c.h.b16 %v9920
        %v9977 = vunpack.c.l.b16 %v9921
        %v9978 = vunpack.c.h.b16 %v9921
        %v9979 = vunpack.c.l.b16 %v9922
        %v9980 = vunpack.c.h.b16 %v9922
        %v9981 = vunpack.c.l.b16 %v9923
        %v9982 = vunpack.c.h.b16 %v9923
        %v9983 = vunpack.c.l.b16 %v9924
        %v9984 = vunpack.c.h.b16 %v9924
        %v9985 = vpack.c.b16 %v9955, %v9953
        %v9986 = vpack.c.b16 %v9956, %v9954
        %v9987 = vpack.c.b16 %v9959, %v9957
        %v9988 = vpack.c.b16 %v9960, %v9958
        %v9989 = vpack.c.b16 %v9963, %v9961
        %v9990 = vpack.c.b16 %v9964, %v9962
        %v9991 = vpack.c.b16 %v9967, %v9965
        %v9992 = vpack.c.b16 %v9968, %v9966
        %v9993 = vpack.c.b16 %v9971, %v9969
        %v9994 = vpack.c.b16 %v9972, %v9970
        %v9995 = vpack.c.b16 %v9975, %v9973
        %v9996 = vpack.c.b16 %v9976, %v9974
        %v9997 = vpack.c.b16 %v9979, %v9977
        %v9998 = vpack.c.b16 %v9980, %v9978
        %v9999 = vpack.c.b16 %v9983, %v9981
        %v10000 = vpack.c.b16 %v9984, %v9982
        %10017 = vmatprep.subr.bf16.mxu0 %v10000
        %10018 = vmatpush1.bf16.msra.mxu0 %v9999
        %10019 = vmatprep.subr.bf16.mxu0 %v9998
        %10020 = vmatpush1.bf16.msra.mxu0 %v9997
        %10021 = vmatprep.subr.bf16.mxu0 %v9996
        %10022 = vmatpush1.bf16.msra.mxu0 %v9995
        %10023 = vmatprep.subr.bf16.mxu0 %v9994
        %10024 = vmatpush1.bf16.msra.mxu0 %v9993
        %10025 = vmatprep.subr.bf16.mxu0 %v9992
        %10026 = vmatpush1.bf16.msra.mxu0 %v9991
        %10027 = vmatprep.subr.bf16.mxu0 %v9990
        %10028 = vmatpush1.bf16.msra.mxu0 %v9989
        %10029 = vmatprep.subr.bf16.mxu0 %v9988
        %10030 = vmatpush1.bf16.msra.mxu0 %v9987
        %10031 = vmatprep.subr.bf16.mxu0 %v9986
        %10032 = vmatpush1.bf16.msra.mxu0 %v9985
        %10033 = vmatprep.subr.bf16.mxu0 0
        %10034 = vmatpush2.bf16.msra.mxu0 0
        %10035 = vmatprep.subr.bf16.mxu0 0
        %10036 = vmatpush2.bf16.msra.mxu0 0
        %10037 = vmatprep.subr.bf16.mxu0 0
        %10038 = vmatpush2.bf16.msra.mxu0 0
        %10039 = vmatprep.subr.bf16.mxu0 0
        %10040 = vmatpush2.bf16.msra.mxu0 0
        %10041 = vmatprep.subr.bf16.mxu0 0
        %10042 = vmatpush2.bf16.msra.mxu0 0
        %10043 = vmatprep.subr.bf16.mxu0 0
        %10044 = vmatpush2.bf16.msra.mxu0 0
        %10045 = vmatprep.subr.bf16.mxu0 0
        %10046 = vmatpush2.bf16.msra.mxu0 0
        %10047 = vmatprep.subr.bf16.mxu0 0
        %10048 = vmatpush2.bf16.msra.mxu0 0
        %10049 = vmatprep.mubr.bf16.mxu0 0
        %10050 = vmatmul.mubr.bf16.gmra.mxu0 %v9908
        %v10051 = vpop.f32.mrf.mxu0
        %v10052 = vadd.f32 %v9930, %v10051
        %v10053 = vpop.f32.mrf.mxu0
        %v10054 = vadd.f32 %v9934, %v10053
        %v10055 = vpop.f32.mrf.mxu0
        %v10056 = vpop.f32.mrf.mxu0
        %10057 = vdwg.mxu0
        %v10058 = vmax.f32 %v10052, 0.0
        %v10059 = vmax.f32 %v10054, 0.0
        %v10060 = vpack.c.bf16 %v10058, %v10058
        %v10061 = vpack.c.bf16 %v10059, %v10059
        %v10062 = vld [vmem:[#allocation19] sm:$0xf]
        %v10063 = vld [vmem:[#allocation19 + $0x4] sm:$0xf]
        %v10064 = vld [vmem:[#allocation19 + $0x8] sm:$0xf]
        %v10065 = vld [vmem:[#allocation19 + $0xc] sm:$0xf]
        %v10066 = vld [vmem:[#allocation19 + $0x10] sm:$0xf]
        %v10067 = vld [vmem:[#allocation19 + $0x14] sm:$0xf]
        %v10068 = vld [vmem:[#allocation19 + $0x18] sm:$0xf]
        %v10069 = vld [vmem:[#allocation19 + $0x1c] sm:$0xf]
        %v10070 = vld [vmem:[#allocation19 + $0x20] sm:$0xf]
        %v10071 = vld [vmem:[#allocation19 + $0x24] sm:$0xf]
        %v10072 = vld [vmem:[#allocation19 + $0x28] sm:$0xf]
        %v10073 = vld [vmem:[#allocation19 + $0x2c] sm:$0xf]
        %v10074 = vld [vmem:[#allocation19 + $0x30] sm:$0xf]
        %v10075 = vld [vmem:[#allocation19 + $0x34] sm:$0xf]
        %v10076 = vld [vmem:[#allocation19 + $0x38] sm:$0xf]
        %v10077 = vld [vmem:[#allocation19 + $0x3c] sm:$0xf]
        %v10078 = vld [vmem:[#allocation19 + $0x40] sm:$0xf]
        %v10079 = vld [vmem:[#allocation19 + $0x44] sm:$0xf]
        %v10080 = vld [vmem:[#allocation19 + $0x48] sm:$0xf]
        %v10081 = vld [vmem:[#allocation19 + $0x4c] sm:$0xf]
        %v10082 = vld [vmem:[#allocation19 + $0x50] sm:$0xf]
        %v10083 = vld [vmem:[#allocation19 + $0x54] sm:$0xf]
        %v10084 = vld [vmem:[#allocation19 + $0x58] sm:$0xf]
        %v10085 = vld [vmem:[#allocation19 + $0x5c] sm:$0xf]
        %v10086 = vld [vmem:[#allocation19 + $0x60] sm:$0xf]
        %v10087 = vld [vmem:[#allocation19 + $0x64] sm:$0xf]
        %v10088 = vld [vmem:[#allocation19 + $0x68] sm:$0xf]
        %v10089 = vld [vmem:[#allocation19 + $0x6c] sm:$0xf]
        %v10090 = vld [vmem:[#allocation19 + $0x70] sm:$0xf]
        %v10091 = vld [vmem:[#allocation19 + $0x74] sm:$0xf]
        %v10092 = vld [vmem:[#allocation19 + $0x78] sm:$0xf]
        %v10093 = vld [vmem:[#allocation19 + $0x7c] sm:$0xf]
        %v10094 = vld [vmem:[%s20] sm:$0x1]
        %v10096 = vlaneseq
        %v10097 = vshrl.u32 %v10096, 7
        %v10098 = vsub.s32 0, %v10097
        %v10099 = vrot.slane %v10094, %v10098
        %v10133 = vunpack.c.l.b16 %v10062
        %v10134 = vunpack.c.l.b16 %v10063
        %v10135 = vunpack.c.l.b16 %v10064
        %v10136 = vunpack.c.l.b16 %v10065
        %v10137 = vunpack.c.l.b16 %v10066
        %v10138 = vunpack.c.l.b16 %v10067
        %v10139 = vunpack.c.l.b16 %v10068
        %v10140 = vunpack.c.l.b16 %v10069
        %v10141 = vunpack.c.l.b16 %v10070
        %v10142 = vunpack.c.l.b16 %v10071
        %v10143 = vunpack.c.l.b16 %v10072
        %v10144 = vunpack.c.l.b16 %v10073
        %v10145 = vunpack.c.l.b16 %v10074
        %v10146 = vunpack.c.l.b16 %v10075
        %v10147 = vunpack.c.l.b16 %v10076
        %v10148 = vunpack.c.l.b16 %v10077
        %v10149 = vunpack.c.l.b16 %v10078
        %v10150 = vunpack.c.l.b16 %v10079
        %v10151 = vunpack.c.l.b16 %v10080
        %v10152 = vunpack.c.l.b16 %v10081
        %v10153 = vunpack.c.l.b16 %v10082
        %v10154 = vunpack.c.l.b16 %v10083
        %v10155 = vunpack.c.l.b16 %v10084
        %v10156 = vunpack.c.l.b16 %v10085
        %v10157 = vunpack.c.l.b16 %v10086
        %v10158 = vunpack.c.l.b16 %v10087
        %v10159 = vunpack.c.l.b16 %v10088
        %v10160 = vunpack.c.l.b16 %v10089
        %v10161 = vunpack.c.l.b16 %v10090
        %v10162 = vunpack.c.l.b16 %v10091
        %v10163 = vunpack.c.l.b16 %v10092
        %v10164 = vunpack.c.l.b16 %v10093
        %v10165 = vpack.c.b16 %v10134, %v10133
        %v10166 = vpack.c.b16 %v10136, %v10135
        %v10167 = vpack.c.b16 %v10138, %v10137
        %v10168 = vpack.c.b16 %v10140, %v10139
        %v10169 = vpack.c.b16 %v10142, %v10141
        %v10170 = vpack.c.b16 %v10144, %v10143
        %v10171 = vpack.c.b16 %v10146, %v10145
        %v10172 = vpack.c.b16 %v10148, %v10147
        %v10173 = vpack.c.b16 %v10150, %v10149
        %v10174 = vpack.c.b16 %v10152, %v10151
        %v10175 = vpack.c.b16 %v10154, %v10153
        %v10176 = vpack.c.b16 %v10156, %v10155
        %v10177 = vpack.c.b16 %v10158, %v10157
        %v10178 = vpack.c.b16 %v10160, %v10159
        %v10179 = vpack.c.b16 %v10162, %v10161
        %v10180 = vpack.c.b16 %v10164, %v10163
        %10197 = vmatprep.subr.bf16.mxu0 0
        %10198 = vmatpush1.bf16.msra.mxu0 %v10172
        %10199 = vmatprep.subr.bf16.mxu0 0
        %10200 = vmatpush1.bf16.msra.mxu0 %v10171
        %10201 = vmatprep.subr.bf16.mxu0 0
        %10202 = vmatpush1.bf16.msra.mxu0 %v10170
        %10203 = vmatprep.subr.bf16.mxu0 0
        %10204 = vmatpush1.bf16.msra.mxu0 %v10169
        %10205 = vmatprep.subr.bf16.mxu0 0
        %10206 = vmatpush1.bf16.msra.mxu0 %v10168
        %10207 = vmatprep.subr.bf16.mxu0 0
        %10208 = vmatpush1.bf16.msra.mxu0 %v10167
        %10209 = vmatprep.subr.bf16.mxu0 0
        %10210 = vmatpush1.bf16.msra.mxu0 %v10166
        %10211 = vmatprep.subr.bf16.mxu0 0
        %10212 = vmatpush1.bf16.msra.mxu0 %v10165
        %10213 = vmatprep.subr.bf16.mxu0 0
        %10214 = vmatpush2.bf16.msra.mxu0 %v10180
        %10215 = vmatprep.subr.bf16.mxu0 0
        %10216 = vmatpush2.bf16.msra.mxu0 %v10179
        %10217 = vmatprep.subr.bf16.mxu0 0
        %10218 = vmatpush2.bf16.msra.mxu0 %v10178
        %10219 = vmatprep.subr.bf16.mxu0 0
        %10220 = vmatpush2.bf16.msra.mxu0 %v10177
        %10221 = vmatprep.subr.bf16.mxu0 0
        %10222 = vmatpush2.bf16.msra.mxu0 %v10176
        %10223 = vmatprep.subr.bf16.mxu0 0
        %10224 = vmatpush2.bf16.msra.mxu0 %v10175
        %10225 = vmatprep.subr.bf16.mxu0 0
        %10226 = vmatpush2.bf16.msra.mxu0 %v10174
        %10227 = vmatprep.subr.bf16.mxu0 0
        %10228 = vmatpush2.bf16.msra.mxu0 %v10173
        %10229 = vmatprep.mubr.bf16.mxu0 %v10061
        %10230 = vmatmul.mubr.bf16.gmra.mxu0 %v10060
        %v10231 = vpop.f32.mrf.mxu0
        %v10232 = vadd.f32 %v10099, %v10231
        %v10233 = vpop.f32.mrf.mxu0
        %v10234 = vpop.f32.mrf.mxu0
        %v10235 = vpop.f32.mrf.mxu0
        %10236 = vdwg.mxu0
        %v10237 = vadd.f32 %v9907, %v10232
        %v10238 = vld [vmem:[%s21] sm:$0x1]
        %v10239 = vld [vmem:[%s22] sm:$0x1]
        %10240 = vadd.xlane.f32.xlu0 %v10237
        %v10241 = vpop.xlane.xlu0 %10240
        %v10242 = vmul.f32 %v10241, %v4867
        %v10243 = vsub.f32 %v10237, %v10242
        %v10244 = vmul.f32 %v10243, %v10243
        %10245 = vadd.xlane.f32.xlu0 %v10244
        %v10246 = vpop.xlane.xlu0 %10245
        %v10247 = vmul.f32 %v10246, %v4867
        %v10248 = vadd.f32 %v10247, 1e-05
        %v10249 = vrsqrt.pop %v10248
        %v10250 = vmul.f32 %v10243, %v10249
        %v10252 = vlaneseq
        %v10253 = vshrl.u32 %v10252, 7
        %v10254 = vsub.s32 0, %v10253
        %v10255 = vrot.slane %v10238, %v10254
        %v10257 = vmul.f32 %v10250, %v10255
        %v10259 = vlaneseq
        %v10260 = vshrl.u32 %v10259, 7
        %v10261 = vsub.s32 0, %v10260
        %v10262 = vrot.slane %v10239, %v10261
        %v10264 = vadd.f32 %v10257, %v10262
        %10265 = vst [vmem:[%s921] sm:$0xff] %v10264
        %s10266 = sand.u32 %s561, 1
        %s10267 = scalar_lea.sflag [#allocation4], %s10266
        %s10268 = sand.u32 %s561, 1
        %s10269 = smul.addr %s10268, 8
        %s10270 = scalar_lea.vmem [#allocation20], %s10269
        // Predicated region
        $region157: #{tpu_custom_call.1} parent=111 // pred_check
          %p10271 = pneg %p571
        $region158: #{tpu_custom_call.1} parent=111 // pred_check_branch
          %10273 = sbr.rel (%p10271) target = $region160
        $region159: #{tpu_custom_call.1} parent=111 // pred_region
          %s10275 = ssub.s32 128, 128
          %10276 = vsyncadd %s10267, %s10275
          %s10277 = smul.addr %s45, 128
          %s10278 = scalar_lea.hbm %s23, %s10277
          %s10280 = sshll.u32 %s10270, 4
          %s10281 = int_to_ptr.vmem [resolvable:$true] %s10280
          %10283 = dma.vmem_to_hbm [thread:$0]  %s10281, 128, %s10278, %s10267
        $region160: #{tpu_custom_call.1} parent=111 // pred_fallthru
          _
      $region112: #{tpu_custom_call.1} parent=5 // pred_fallthru
        _
      %p10284 = scmp.le.s32.totalorder 2, %s40
      // Predicated region
      $region161: #{tpu_custom_call.1} parent=5 // pred_check
        %p10285 = pneg %p10284
      $region162: #{tpu_custom_call.1} parent=5 // pred_check_branch
        %10287 = sbr.rel (%p10285) target = $region164
      $region163: #{tpu_custom_call.1} parent=5 // pred_region
        %s10288 = ssub.s32 %s40, 2
        // Predicated region
        $region165: #{tpu_custom_call.1} parent=163 // pred_check
          %p10289 = pneg %p577
        $region166: #{tpu_custom_call.1} parent=163 // pred_check_branch
          %10291 = sbr.rel (%p10289) target = $region168
        $region167: #{tpu_custom_call.1} parent=163 // pred_region
          %s10292 = sand.u32 %s562, 1
          %s10293 = scalar_lea.sflag [#allocation4], %s10292
          %s10294 = sand.u32 %s562, 1
          %s10295 = smul.addr %s10294, 8
          %s10296 = scalar_lea.vmem [#allocation20], %s10295
          %10297 = dma.done %s10293, 128
        $region168: #{tpu_custom_call.1} parent=163 // pred_fallthru
          _
      $region164: #{tpu_custom_call.1} parent=5 // pred_fallthru
        _
    $region6: #{tpu_custom_call.1} parent=1 // loop_footer
      %s44 = sadd.s32 1, %s40
    $region7: #{tpu_custom_call.1} parent=1 // loop_footer_branch
      %39 = sbr.rel target = $region3
    $region8: #{tpu_custom_call.1} parent=1 // loop_exit
      _
    %10298 = vsyncpa [#allocation3], 1
    %s10299 = scalar_lea.sflag [#allocation3], 1
    %10300 = vsyncpa %s10299, 1
    %10301 = vsyncpa [#allocation6], 1
    %10302 = vsyncpa [#allocation9], 1
    %10303 = vsyncpa [#allocation12], 1
    %10304 = vsyncpa [#allocation15], 1
    %10305 = vsyncpa [#allocation18], 1
    %10306 = vsyncpa [#allocation4], 1
    %s10307 = scalar_lea.sflag [#allocation4], 1
    %10308 = vsyncpa %s10307, 1

</llo_original>
